<compile_context>
chip_gen: v5e
topology: v5e:2x2
jax: 0.10.0
libtpu: 0.0.40
codegen_flags: <defaults>
</compile_context>

<pallas_src>
import math

import jax
import jax.numpy as jnp
from jax.experimental import pallas as pl
from jax.experimental.pallas import tpu as pltpu


# --------------------------------------------------------------------------
# Fused BIG kernel
# --------------------------------------------------------------------------
def _make_big_kernel(H, W, C, eps=1e-5):
    HW = H * W
    f32 = jnp.float32
    bf16 = jnp.bfloat16

    def group_norm(acc, mg_scaled, gamma, beta):
        # acc: (HW, C) f32; mg_scaled: (C, C) same-group mask already / count.
        s = jnp.sum(acc, axis=0, keepdims=True)
        ss = jnp.sum(acc * acc, axis=0, keepdims=True)
        stats = jnp.concatenate([s, ss], axis=0)                     # (2, C)
        gstats = jnp.dot(stats, mg_scaled, preferred_element_type=f32)
        mean = gstats[0:1, :]
        var = jnp.maximum(gstats[1:2, :] - mean * mean, 0.0)         # cancellation guard
        inv = jax.lax.rsqrt(var + eps)
        return (acc - mean) * inv * gamma + beta

    def kernel(x_ref, edge_ref, w3_ref, wq_ref, mg_ref, vec_ref,
               o_ref, xp_ref, patch_ref):
        # ---- padded tile: zero ONLY the 1-pixel halo strips, write interior once ----
        zrow = jnp.zeros((1, W + 2, C), f32)
        zcol = jnp.zeros((H + 2, 1, C), f32)
        xp_ref[0:1, :, :] = zrow
        xp_ref[H + 1:H + 2, :, :] = zrow
        xp_ref[:, 0:1, :] = zcol
        xp_ref[:, W + 1:W + 2, :] = zcol
        xp_ref[1:H + 1, 1:W + 1, :] = x_ref[0]

        # ---- im2col patch matrix (HW, 9*C), built ONCE in bf16, used by both convs ----
        xp = xp_ref[...]
        for k in range(9):
            dy, dx = k // 3, k % 3
            patch_ref[:, k * C:(k + 1) * C] = (
                xp[dy:dy + H, dx:dx + W, :].reshape(HW, C).astype(bf16))
        patch = patch_ref[...]                                       # (HW, 9C) bf16

        # ---- gate branches: block-diagonal conv3x3 + GroupNorm + PReLU ----
        b1 = vec_ref[0:1, :]
        gamma1 = vec_ref[1:2, :]
        beta1 = vec_ref[2:3, :]
        alpha1 = vec_ref[3:4, :]
        acc1 = jnp.dot(patch, w3_ref[0], preferred_element_type=f32) + b1
        y1 = group_norm(acc1, mg_ref[0], gamma1, beta1)
        y1 = jnp.where(y1 > 0, y1, alpha1 * y1)

        # ---- gate heads: block-diag 1x1 conv -> sigmoid; edge gating; pooling ----
        bg1 = vec_ref[8:9, 0:4]
        c = jax.nn.sigmoid(
            jnp.dot(y1, wq_ref[:, 0:4], preferred_element_type=f32) + bg1)   # (HW, 4)
        e = jax.nn.sigmoid(edge_ref[0])                                      # (HW, 1)
        gmap = c * e                                                         # (HW, 4)
        gv = jnp.mean(gmap, axis=0, keepdims=True)        # global avg pool (1, 4)
        gm = jnp.max(gmap, axis=0, keepdims=True)         # global max pool (1, 4)

        # ---- fusion conv1x1 + eval-mode BatchNorm (folded) -> softmax weights ----
        fa = vec_ref[9:10, 0:4]
        fb = vec_ref[10:11, 0:4]
        fc = vec_ref[11:12, 0:4]
        g = gv * fa + gm * fb + fc                        # (1, 4)
        g = g - jnp.max(g, axis=1, keepdims=True)
        gexp = jnp.exp(g)
        wgt = gexp / jnp.sum(gexp, axis=1, keepdims=True)  # softmax over the 4 gates

        # ---- fold per-quarter softmax weight into the FINAL conv weight ----
        # s_c[c] = softmax weight of the quarter channel c belongs to  (C, 1)
        s_c = jnp.sum(wq_ref[:, 4:8] * wgt, axis=1, keepdims=True)
        w3f = w3_ref[1]                                    # (9C, C) bf16
        w2 = jnp.concatenate(
            [w3f[k * C:(k + 1) * C, :] * s_c for k in range(9)],
            axis=0).astype(bf16)                           # (9C, C) bf16, 36K mults

        # ---- final conv3x3 + GroupNorm + PReLU (patch reused unscaled) ----
        b2 = vec_ref[4:5, :]
        gamma2 = vec_ref[5:6, :]
        beta2 = vec_ref[6:7, :]
        alpha2 = vec_ref[7:8, :]
        acc2 = jnp.dot(patch, w2, preferred_element_type=f32) + b2
        y2 = group_norm(acc2, mg_ref[1], gamma2, beta2)
        y2 = jnp.where(y2 > 0, y2, alpha2 * y2)
        o_ref[0] = y2.reshape(H, W, C)

    return kernel


def big_forward_nhwc(prep, x_nhwc, edge_flat):
    """x_nhwc: (N,H,W,C) f32; edge_flat: (N, H*W, 1) f32."""
    N, H, W, C = x_nhwc.shape
    HW = H * W
    kernel = _make_big_kernel(H, W, C)

    # ---- explicit VMEM budget from the actual buffer sizes (+ headroom) ----
    vmem_bytes = (
        2 * HW * C * 4                    # x block (double-buffered)
        + 2 * HW * 128 * 4                # edge block (lane-padded)
        + 2 * 2 * 9 * C * C * 2           # conv3x3 weights (bf16)
        + 2 * C * 128 * 4                 # gate-head / membership (lane-padded)
        + 2 * 2 * C * C * 4               # GN membership masks
        + 2 * 16 * C * 4                  # packed per-channel vectors
        + 2 * HW * C * 4                  # out block
        + (H + 2) * (W + 2) * C * 4       # padded-tile scratch (f32)
        + HW * 9 * C * 2                  # im2col patch scratch (bf16)
    )
    vmem_limit = int(min(max(2 * vmem_bytes, 24 << 20), 100 << 20))

    # Tiny latency-bound kernel: give XLA a cost estimate so it can overlap it.
    cost = pl.CostEstimate(
        flops=int(N * (2 * 2 * HW * 9 * C * C + 2 * HW * C * 4 + 9 * C * C)),
        transcendentals=int(N * (5 * HW + 8)),
        bytes_accessed=int(2 * N * HW * C * 4 + N * HW * 4
                           + 2 * 9 * C * C * 2 + 2 * C * C * 4 + 20 * C * 4),
    )

    return pl.pallas_call(
        kernel,
        out_shape=jax.ShapeDtypeStruct((N, H, W, C), jnp.float32),
        grid=(N,),
        in_specs=[
            pl.BlockSpec((1, H, W, C), lambda n: (n, 0, 0, 0)),      # x
            pl.BlockSpec((1, HW, 1), lambda n: (n, 0, 0)),           # edge
            pl.BlockSpec((2, 9 * C, C), lambda n: (0, 0, 0)),        # conv3x3 weights (bf16)
            pl.BlockSpec((C, 8), lambda n: (0, 0)),                  # gate 1x1 | quarter one-hot
            pl.BlockSpec((2, C, C), lambda n: (0, 0, 0)),            # GN membership masks
            pl.BlockSpec((12, C), lambda n: (0, 0)),                 # packed per-channel vectors
        ],
        out_specs=pl.BlockSpec((1, H, W, C), lambda n: (n, 0, 0, 0)),
        scratch_shapes=[
            pltpu.VMEM((H + 2, W + 2, C), jnp.float32),              # padded tile
            pltpu.VMEM((HW, 9 * C), jnp.bfloat16),                   # im2col patches (bf16)
        ],
        compiler_params=pltpu.CompilerParams(
            dimension_semantics=("parallel",),                       # v7x: 1 batch elt / TC
            vmem_limit_bytes=vmem_limit),
        cost_estimate=cost,
    )(x_nhwc, edge_flat, prep["w3"], prep["wq"], prep["mg"], prep["vec"])


def big_forward(prep, x_nchw, edge_nchw):
    """PyTorch-layout interface: x (N,C,H,W), edge (N,1,H,W) -> (N,C,H,W)."""
    # TODO(synk): if the surrounding model can stay NHWC end-to-end, drop these
    # two transposes (each is an extra HBM pass outside the kernel).
    N, C, H, W = x_nchw.shape
    x = jnp.transpose(x_nchw, (0, 2, 3, 1))            # NCHW -> NHWC
    edge = edge_nchw.reshape(N, H * W, 1)              # (N,1,H,W) -> (N, H*W, 1)
    y = big_forward_nhwc(prep, x, edge)
    return jnp.transpose(y, (0, 3, 1, 2))              # NHWC -> NCHW


# --------------------------------------------------------------------------
# Parameters: synthetic init mirroring the PyTorch module's defaults
# --------------------------------------------------------------------------
def init_params(key, C=64, groups=16):
    Cq = C // 4
    assert Cq % groups == 0 and C % groups == 0
    ks = iter(jax.random.split(key, 64))

    def u(shape, fan_in):
        b = 1.0 / math.sqrt(fan_in)
        return jax.random.uniform(next(ks), shape, jnp.float32, -b, b)

    # conv3x3 weights stored as (ky, kx, Cin, Cout); a PyTorch (Cout,Cin,3,3)
    # weight maps via w.transpose(2, 3, 1, 0).
    gates = [dict(w3=u((3, 3, Cq, Cq), Cq * 9), b3=u((Cq,), Cq * 9),
                  gn_gamma=jnp.ones((Cq,), jnp.float32),
                  gn_beta=jnp.zeros((Cq,), jnp.float32),
                  prelu=jnp.float32(0.25),
                  w1=u((Cq, 1), Cq), b1=u((1,), Cq))
             for _ in range(4)]
    # fusionX = Conv2d(2,1,1x1) + BatchNorm2d(1) evaluated in inference mode
    # (running statistics, default affine).
    fusions = [dict(w_av=u((), 2.0), w_mx=u((), 2.0), b=u((), 2.0),
                    bn_gamma=jnp.float32(1.0), bn_beta=jnp.float32(0.0),
                    bn_mean=jnp.float32(0.0), bn_var=jnp.float32(1.0))
               for _ in range(4)]
    conv = dict(w3=u((3, 3, C, C), C * 9), b3=u((C,), C * 9),
                gn_gamma=jnp.ones((C,), jnp.float32),
                gn_beta=jnp.zeros((C,), jnp.float32),
                prelu=jnp.float32(0.25))
    return dict(C=C, groups=groups, gates=gates, fusions=fusions, conv=conv)


def prepare(params, H, W):
    """Fold / pack the module parameters into the dense operands the kernel reads."""
    C, groups = params["C"], params["groups"]
    Cq = C // 4
    HW = H * W
    bn_eps = 1e-5
    # The fused, concatenated GroupNorm is exact only if no normalization group
    # straddles a quarter — fail loudly otherwise.
    assert C % 4 == 0, "channel must be divisible by 4"
    assert Cq % groups == 0, "gate GroupNorm needs (channel//4) % groups == 0"
    assert C % groups == 0, "final GroupNorm needs channel % groups == 0"

    # Block-diagonal gate conv3x3; gate 1x1 head + quarter one-hot packed as (C, 8).
    wg3 = jnp.zeros((3, 3, C, C), jnp.float32)
    wq = jnp.zeros((C, 8), jnp.float32)
    b1, gamma1, beta1, alpha1, bg1 = [], [], [], [], []
    for k, g in enumerate(params["gates"]):
        sl = slice(k * Cq, (k + 1) * Cq)
        wg3 = wg3.at[:, :, sl, sl].set(g["w3"])
        wq = wq.at[sl, k].set(g["w1"][:, 0])          # gate 1x1 weights (block-diag)
        wq = wq.at[sl, 4 + k].set(1.0)                # quarter membership one-hot
        b1.append(g["b3"])
        gamma1.append(g["gn_gamma"])
        beta1.append(g["gn_beta"])
        alpha1.append(jnp.full((Cq,), g["prelu"], jnp.float32))
        bg1.append(g["b1"][0])
    b1 = jnp.concatenate(b1)
    gamma1 = jnp.concatenate(gamma1)
    beta1 = jnp.concatenate(beta1)
    alpha1 = jnp.concatenate(alpha1)
    bg1 = jnp.stack(bg1)

    conv = params["conv"]
    # im2col weight layout: row = (ky*3 + kx)*C + cin, matching the kernel's
    # patch-matrix column order. bf16 operands (f32 accumulation in-kernel).
    w3 = jnp.stack([wg3.reshape(9 * C, C),
                    conv["w3"].reshape(9 * C, C)]).astype(jnp.bfloat16)

    # GroupNorm same-group membership masks, pre-scaled by 1/count.
    cpg_g = Cq // groups                       # gate GN group size (per quarter)
    gid_g = jnp.arange(C) // cpg_g             # groups never straddle a quarter
    mg_g = (gid_g[:, None] == gid_g[None, :]).astype(jnp.float32) / (HW * cpg_g)
    cpg_c = C // groups                        # final-conv GN group size
    gid_c = jnp.arange(C) // cpg_c
    mg_c = (gid_c[:, None] == gid_c[None, :]).astype(jnp.float32) / (HW * cpg_c)
    mg = jnp.stack([mg_g, mg_c])

    # Fold Conv2d(2,1,1x1) + eval-mode BatchNorm2d(1) per gate into scale/shift.
    fa, fb, fc = [], [], []
    for f in params["fusions"]:
        kbn = f["bn_gamma"] / jnp.sqrt(f["bn_var"] + bn_eps)
        fa.append(f["w_av"] * kbn)
        fb.append(f["w_mx"] * kbn)
        fc.append((f["b"] - f["bn_mean"]) * kbn + f["bn_beta"])
    fa, fb, fc = jnp.stack(fa), jnp.stack(fb), jnp.stack(fc)

    def pad4(v):
        return jnp.zeros((C,), jnp.float32).at[:4].set(v)

    vec = jnp.stack([
        b1, gamma1, beta1, alpha1,                                   # gate conv / GN / PReLU
        conv["b3"], conv["gn_gamma"], conv["gn_beta"],               # final conv / GN
        jnp.full((C,), conv["prelu"], jnp.float32),                  # final PReLU
        pad4(bg1), pad4(fa), pad4(fb), pad4(fc),                     # heads (first 4 lanes)
    ])                                                               # (12, C)
    return dict(w3=w3, wq=wq, mg=mg, vec=vec)


# --------------------------------------------------------------------------
if __name__ == "__main__":
    key = jax.random.PRNGKey(0)
    kx, ke, kp = jax.random.split(key, 3)
    N, C, H, W = 2, 64, 16, 16
    groups = 16

    x_nchw = jax.random.normal(kx, (N, C, H, W), jnp.float32)
    edge_nchw = jax.random.normal(ke, (N, 1, H, W), jnp.float32)

    params = init_params(kp, C=C, groups=groups)
    prep = prepare(params, H, W)

    fwd = jax.jit(lambda xn, en: big_forward(prep, xn, en))
    out = fwd(x_nchw, edge_nchw)
    jax.block_until_ready(out)

    assert out.shape == (N, C, H, W)
    assert bool(jnp.all(jnp.isfinite(out)))
    print("KERNEL_OK")
</pallas_src>

<mosaic_0001>
module attributes {stable_mosaic.version = 11 : i64} {
  func.func @kernel(%arg0: i32, %arg1: memref<1x16x16x64xf32, #tpu.memory_space<vmem>>, %arg2: memref<1x256x1xf32, #tpu.memory_space<vmem>>, %arg3: memref<2x576x64xbf16, #tpu.memory_space<vmem>>, %arg4: memref<64x8xf32, #tpu.memory_space<vmem>>, %arg5: memref<2x64x64xf32, #tpu.memory_space<vmem>>, %arg6: memref<12x64xf32, #tpu.memory_space<vmem>>, %arg7: memref<1x16x16x64xf32, #tpu.memory_space<vmem>>, %arg8: memref<18x18x64xf32, #tpu.memory_space<vmem>>, %arg9: memref<256x576xbf16, #tpu.memory_space<vmem>>) attributes {dimension_semantics = [#tpu.dimension_semantics<parallel>], iteration_bounds = array<i64: 2>, scalar_prefetch = 0 : i64, scratch_operands = 2 : i64, tpu.core_type = #tpu.core_type<tc>, window_params = [{transform_indices = @transform_0, window_bounds = array<i64: 1, 16, 16, 64>}, {transform_indices = @transform_1, window_bounds = array<i64: 1, 256, 1>}, {pipeline_mode = #tpu.pipeline_mode<synchronous>, transform_indices = @transform_2, window_bounds = array<i64: 2, 576, 64>}, {pipeline_mode = #tpu.pipeline_mode<synchronous>, transform_indices = @transform_3, window_bounds = array<i64: 64, 8>}, {pipeline_mode = #tpu.pipeline_mode<synchronous>, transform_indices = @transform_4, window_bounds = array<i64: 2, 64, 64>}, {pipeline_mode = #tpu.pipeline_mode<synchronous>, transform_indices = @transform_5, window_bounds = array<i64: 12, 64>}, {transform_indices = @transform_6, window_bounds = array<i64: 1, 16, 16, 64>}]} {
    %cst = arith.constant 0.000000e+00 : f32
    %0 = vector.broadcast %cst : f32 to vector<1x18x64xf32>
    %cst_0 = arith.constant 0.000000e+00 : f32
    %1 = vector.broadcast %cst_0 : f32 to vector<18x1x64xf32>
    %c0 = arith.constant 0 : index
    %c0_1 = arith.constant 0 : index
    %c0_2 = arith.constant 0 : index
    %2 = vector.load %arg8[%c0, %c0_1, %c0_2] : memref<18x18x64xf32, #tpu.memory_space<vmem>>, vector<1x18x64xf32>
    tpu.vector_store %arg8[%c0, %c0_1, %c0_2], %0 {strides = array<i32>} : memref<18x18x64xf32, #tpu.memory_space<vmem>>, vector<1x18x64xf32>,
    %c17 = arith.constant 17 : index
    %c0_3 = arith.constant 0 : index
    %c0_4 = arith.constant 0 : index
    %3 = vector.load %arg8[%c17, %c0_3, %c0_4] : memref<18x18x64xf32, #tpu.memory_space<vmem>>, vector<1x18x64xf32>
    tpu.vector_store %arg8[%c17, %c0_3, %c0_4], %0 {strides = array<i32>} : memref<18x18x64xf32, #tpu.memory_space<vmem>>, vector<1x18x64xf32>,
    %c0_5 = arith.constant 0 : index
    %c0_6 = arith.constant 0 : index
    %c0_7 = arith.constant 0 : index
    %4 = vector.load %arg8[%c0_5, %c0_6, %c0_7] : memref<18x18x64xf32, #tpu.memory_space<vmem>>, vector<18x1x64xf32>
    tpu.vector_store %arg8[%c0_5, %c0_6, %c0_7], %1 {strides = array<i32>} : memref<18x18x64xf32, #tpu.memory_space<vmem>>, vector<18x1x64xf32>,
    %c0_8 = arith.constant 0 : index
    %c17_9 = arith.constant 17 : index
    %c0_10 = arith.constant 0 : index
    %5 = vector.load %arg8[%c0_8, %c17_9, %c0_10] : memref<18x18x64xf32, #tpu.memory_space<vmem>>, vector<18x1x64xf32>
    tpu.vector_store %arg8[%c0_8, %c17_9, %c0_10], %1 {strides = array<i32>} : memref<18x18x64xf32, #tpu.memory_space<vmem>>, vector<18x1x64xf32>,
    %c0_11 = arith.constant 0 : index
    %c0_12 = arith.constant 0 : index
    %c0_13 = arith.constant 0 : index
    %c0_14 = arith.constant 0 : index
    %6 = vector.load %arg1[%c0_11, %c0_12, %c0_13, %c0_14] : memref<1x16x16x64xf32, #tpu.memory_space<vmem>>, vector<1x16x16x64xf32>
    %7 = vector.shape_cast %6 : vector<1x16x16x64xf32> to vector<16x16x64xf32>
    %c1 = arith.constant 1 : index
    %c1_15 = arith.constant 1 : index
    %c0_16 = arith.constant 0 : index
    %8 = vector.load %arg8[%c1, %c1_15, %c0_16] : memref<18x18x64xf32, #tpu.memory_space<vmem>>, vector<16x16x64xf32>
    tpu.vector_store %arg8[%c1, %c1_15, %c0_16], %7 {strides = array<i32>} : memref<18x18x64xf32, #tpu.memory_space<vmem>>, vector<16x16x64xf32>,
    %c0_17 = arith.constant 0 : index
    %c0_18 = arith.constant 0 : index
    %c0_19 = arith.constant 0 : index
    %9 = vector.load %arg8[%c0_17, %c0_18, %c0_19] : memref<18x18x64xf32, #tpu.memory_space<vmem>>, vector<18x18x64xf32>
    %10 = vector.extract_strided_slice %9 {offsets = [0, 0, 0], sizes = [16, 16, 64], strides = [1, 1, 1]} : vector<18x18x64xf32> to vector<16x16x64xf32>
    %11 = vector.shape_cast %10 : vector<16x16x64xf32> to vector<256x64xf32>
    %12 = arith.truncf %11 : vector<256x64xf32> to vector<256x64xbf16>
    %c0_20 = arith.constant 0 : index
    %c0_21 = arith.constant 0 : index
    %13 = vector.load %arg9[%c0_20, %c0_21] : memref<256x576xbf16, #tpu.memory_space<vmem>>, vector<256x64xbf16>
    tpu.vector_store %arg9[%c0_20, %c0_21], %12 {strides = array<i32>} : memref<256x576xbf16, #tpu.memory_space<vmem>>, vector<256x64xbf16>,
    %14 = vector.extract_strided_slice %9 {offsets = [0, 1, 0], sizes = [16, 16, 64], strides = [1, 1, 1]} : vector<18x18x64xf32> to vector<16x16x64xf32>
    %15 = vector.shape_cast %14 : vector<16x16x64xf32> to vector<256x64xf32>
    %16 = arith.truncf %15 : vector<256x64xf32> to vector<256x64xbf16>
    %c0_22 = arith.constant 0 : index
    %c64 = arith.constant 64 : index
    %17 = vector.load %arg9[%c0_22, %c64] : memref<256x576xbf16, #tpu.memory_space<vmem>>, vector<256x64xbf16>
    tpu.vector_store %arg9[%c0_22, %c64], %16 {strides = array<i32>} : memref<256x576xbf16, #tpu.memory_space<vmem>>, vector<256x64xbf16>,
    %18 = vector.extract_strided_slice %9 {offsets = [0, 2, 0], sizes = [16, 16, 64], strides = [1, 1, 1]} : vector<18x18x64xf32> to vector<16x16x64xf32>
    %19 = vector.shape_cast %18 : vector<16x16x64xf32> to vector<256x64xf32>
    %20 = arith.truncf %19 : vector<256x64xf32> to vector<256x64xbf16>
    %c0_23 = arith.constant 0 : index
    %c128 = arith.constant 128 : index
    %21 = vector.load %arg9[%c0_23, %c128] : memref<256x576xbf16, #tpu.memory_space<vmem>>, vector<256x64xbf16>
    tpu.vector_store %arg9[%c0_23, %c128], %20 {strides = array<i32>} : memref<256x576xbf16, #tpu.memory_space<vmem>>, vector<256x64xbf16>,
    %22 = vector.extract_strided_slice %9 {offsets = [1, 0, 0], sizes = [16, 16, 64], strides = [1, 1, 1]} : vector<18x18x64xf32> to vector<16x16x64xf32>
    %23 = vector.shape_cast %22 : vector<16x16x64xf32> to vector<256x64xf32>
    %24 = arith.truncf %23 : vector<256x64xf32> to vector<256x64xbf16>
    %c0_24 = arith.constant 0 : index
    %c192 = arith.constant 192 : index
    %25 = vector.load %arg9[%c0_24, %c192] : memref<256x576xbf16, #tpu.memory_space<vmem>>, vector<256x64xbf16>
    tpu.vector_store %arg9[%c0_24, %c192], %24 {strides = array<i32>} : memref<256x576xbf16, #tpu.memory_space<vmem>>, vector<256x64xbf16>,
    %26 = vector.extract_strided_slice %9 {offsets = [1, 1, 0], sizes = [16, 16, 64], strides = [1, 1, 1]} : vector<18x18x64xf32> to vector<16x16x64xf32>
    %27 = vector.shape_cast %26 : vector<16x16x64xf32> to vector<256x64xf32>
    %28 = arith.truncf %27 : vector<256x64xf32> to vector<256x64xbf16>
    %c0_25 = arith.constant 0 : index
    %c256 = arith.constant 256 : index
    %29 = vector.load %arg9[%c0_25, %c256] : memref<256x576xbf16, #tpu.memory_space<vmem>>, vector<256x64xbf16>
    tpu.vector_store %arg9[%c0_25, %c256], %28 {strides = array<i32>} : memref<256x576xbf16, #tpu.memory_space<vmem>>, vector<256x64xbf16>,
    %30 = vector.extract_strided_slice %9 {offsets = [1, 2, 0], sizes = [16, 16, 64], strides = [1, 1, 1]} : vector<18x18x64xf32> to vector<16x16x64xf32>
    %31 = vector.shape_cast %30 : vector<16x16x64xf32> to vector<256x64xf32>
    %32 = arith.truncf %31 : vector<256x64xf32> to vector<256x64xbf16>
    %c0_26 = arith.constant 0 : index
    %c320 = arith.constant 320 : index
    %33 = vector.load %arg9[%c0_26, %c320] : memref<256x576xbf16, #tpu.memory_space<vmem>>, vector<256x64xbf16>
    tpu.vector_store %arg9[%c0_26, %c320], %32 {strides = array<i32>} : memref<256x576xbf16, #tpu.memory_space<vmem>>, vector<256x64xbf16>,
    %34 = vector.extract_strided_slice %9 {offsets = [2, 0, 0], sizes = [16, 16, 64], strides = [1, 1, 1]} : vector<18x18x64xf32> to vector<16x16x64xf32>
    %35 = vector.shape_cast %34 : vector<16x16x64xf32> to vector<256x64xf32>
    %36 = arith.truncf %35 : vector<256x64xf32> to vector<256x64xbf16>
    %c0_27 = arith.constant 0 : index
    %c384 = arith.constant 384 : index
    %37 = vector.load %arg9[%c0_27, %c384] : memref<256x576xbf16, #tpu.memory_space<vmem>>, vector<256x64xbf16>
    tpu.vector_store %arg9[%c0_27, %c384], %36 {strides = array<i32>} : memref<256x576xbf16, #tpu.memory_space<vmem>>, vector<256x64xbf16>,
    %38 = vector.extract_strided_slice %9 {offsets = [2, 1, 0], sizes = [16, 16, 64], strides = [1, 1, 1]} : vector<18x18x64xf32> to vector<16x16x64xf32>
    %39 = vector.shape_cast %38 : vector<16x16x64xf32> to vector<256x64xf32>
    %40 = arith.truncf %39 : vector<256x64xf32> to vector<256x64xbf16>
    %c0_28 = arith.constant 0 : index
    %c448 = arith.constant 448 : index
    %41 = vector.load %arg9[%c0_28, %c448] : memref<256x576xbf16, #tpu.memory_space<vmem>>, vector<256x64xbf16>
    tpu.vector_store %arg9[%c0_28, %c448], %40 {strides = array<i32>} : memref<256x576xbf16, #tpu.memory_space<vmem>>, vector<256x64xbf16>,
    %42 = vector.extract_strided_slice %9 {offsets = [2, 2, 0], sizes = [16, 16, 64], strides = [1, 1, 1]} : vector<18x18x64xf32> to vector<16x16x64xf32>
    %43 = vector.shape_cast %42 : vector<16x16x64xf32> to vector<256x64xf32>
    %44 = arith.truncf %43 : vector<256x64xf32> to vector<256x64xbf16>
    %c0_29 = arith.constant 0 : index
    %c512 = arith.constant 512 : index
    %45 = vector.load %arg9[%c0_29, %c512] : memref<256x576xbf16, #tpu.memory_space<vmem>>, vector<256x64xbf16>
    tpu.vector_store %arg9[%c0_29, %c512], %44 {strides = array<i32>} : memref<256x576xbf16, #tpu.memory_space<vmem>>, vector<256x64xbf16>,
    %c0_30 = arith.constant 0 : index
    %c0_31 = arith.constant 0 : index
    %46 = vector.load %arg9[%c0_30, %c0_31] : memref<256x576xbf16, #tpu.memory_space<vmem>>, vector<256x576xbf16>
    %c0_32 = arith.constant 0 : index
    %c0_33 = arith.constant 0 : index
    %47 = vector.load %arg6[%c0_32, %c0_33] : memref<12x64xf32, #tpu.memory_space<vmem>>, vector<1x64xf32>
    %c1_34 = arith.constant 1 : index
    %c0_35 = arith.constant 0 : index
    %48 = vector.load %arg6[%c1_34, %c0_35] : memref<12x64xf32, #tpu.memory_space<vmem>>, vector<1x64xf32>
    %c2 = arith.constant 2 : index
    %c0_36 = arith.constant 0 : index
    %49 = vector.load %arg6[%c2, %c0_36] : memref<12x64xf32, #tpu.memory_space<vmem>>, vector<1x64xf32>
    %c3 = arith.constant 3 : index
    %c0_37 = arith.constant 0 : index
    %50 = vector.load %arg6[%c3, %c0_37] : memref<12x64xf32, #tpu.memory_space<vmem>>, vector<1x64xf32>
    %c0_38 = arith.constant 0 : index
    %c0_39 = arith.constant 0 : index
    %c0_40 = arith.constant 0 : index
    %51 = vector.load %arg3[%c0_38, %c0_39, %c0_40] : memref<2x576x64xbf16, #tpu.memory_space<vmem>>, vector<1x576x64xbf16>
    %52 = vector.shape_cast %51 : vector<1x576x64xbf16> to vector<576x64xbf16>
    %cst_41 = arith.constant dense<0.000000e+00> : vector<256x64xf32>
    %53 = tpu.matmul %46, %52, %cst_41 {dimension_numbers = #tpu.dot_dimension_numbers<[1], [0], [0], [1], [0, 0, 1, 1], [], []>} : vector<256x576xbf16>, vector<576x64xbf16>, vector<256x64xf32> -> vector<256x64xf32>
    %54 = vector.broadcast %47 : vector<1x64xf32> to vector<256x64xf32>
    %55 = arith.addf %53, %54 : vector<256x64xf32>
    %c0_42 = arith.constant 0 : index
    %c0_43 = arith.constant 0 : index
    %c0_44 = arith.constant 0 : index
    %56 = vector.load %arg5[%c0_42, %c0_43, %c0_44] : memref<2x64x64xf32, #tpu.memory_space<vmem>>, vector<1x64x64xf32>
    %57 = vector.shape_cast %56 : vector<1x64x64xf32> to vector<64x64xf32>
    %cst_45 = arith.constant dense<0.000000e+00> : vector<64xf32>
    %58 = vector.multi_reduction <add>, %55, %cst_45 [0] : vector<256x64xf32> to vector<64xf32>
    %59 = vector.shape_cast %58 : vector<64xf32> to vector<1x64xf32>
    %60 = arith.mulf %55, %55 : vector<256x64xf32>
    %cst_46 = arith.constant dense<0.000000e+00> : vector<64xf32>
    %61 = vector.multi_reduction <add>, %60, %cst_46 [0] : vector<256x64xf32> to vector<64xf32>
    %62 = vector.shape_cast %61 : vector<64xf32> to vector<1x64xf32>
    %63 = tpu.concatenate %59, %62 in 0 : vector<1x64xf32>, vector<1x64xf32> -> vector<2x64xf32>
    %cst_47 = arith.constant dense<0.000000e+00> : vector<2x64xf32>
    %64 = tpu.matmul %63, %57, %cst_47 {dimension_numbers = #tpu.dot_dimension_numbers<[1], [0], [0], [1], [0, 0, 1, 1], [], []>} : vector<2x64xf32>, vector<64x64xf32>, vector<2x64xf32> -> vector<2x64xf32>
    %65 = vector.extract_strided_slice %64 {offsets = [0, 0], sizes = [1, 64], strides = [1, 1]} : vector<2x64xf32> to vector<1x64xf32>
    %66 = vector.extract_strided_slice %64 {offsets = [1, 0], sizes = [1, 64], strides = [1, 1]} : vector<2x64xf32> to vector<1x64xf32>
    %67 = arith.mulf %65, %65 : vector<1x64xf32>
    %68 = arith.subf %66, %67 : vector<1x64xf32>
    %cst_48 = arith.constant 0.000000e+00 : f32
    %69 = vector.broadcast %cst_48 : f32 to vector<1x64xf32>
    %70 = arith.maximumf %68, %69 : vector<1x64xf32>
    %cst_49 = arith.constant 9.99999974E-6 : f32
    %71 = vector.broadcast %cst_49 : f32 to vector<1x64xf32>
    %72 = arith.addf %70, %71 : vector<1x64xf32>
    %73 = math.rsqrt %72 : vector<1x64xf32>
    %74 = vector.broadcast %65 : vector<1x64xf32> to vector<256x64xf32>
    %75 = arith.subf %55, %74 : vector<256x64xf32>
    %76 = vector.broadcast %73 : vector<1x64xf32> to vector<256x64xf32>
    %77 = arith.mulf %75, %76 : vector<256x64xf32>
    %78 = vector.broadcast %48 : vector<1x64xf32> to vector<256x64xf32>
    %79 = arith.mulf %77, %78 : vector<256x64xf32>
    %80 = vector.broadcast %49 : vector<1x64xf32> to vector<256x64xf32>
    %81 = arith.addf %79, %80 : vector<256x64xf32>
    %cst_50 = arith.constant 0.000000e+00 : f32
    %82 = vector.broadcast %cst_50 : f32 to vector<256x64xf32>
    %83 = arith.cmpf ogt, %81, %82 : vector<256x64xf32>
    %84 = vector.broadcast %50 : vector<1x64xf32> to vector<256x64xf32>
    %85 = arith.mulf %84, %81 : vector<256x64xf32>
    %86 = arith.select %83, %81, %85 : vector<256x64xi1>, vector<256x64xf32>
    %c8 = arith.constant 8 : index
    %c0_51 = arith.constant 0 : index
    %87 = vector.load %arg6[%c8, %c0_51] : memref<12x64xf32, #tpu.memory_space<vmem>>, vector<1x4xf32>
    %c0_52 = arith.constant 0 : index
    %c0_53 = arith.constant 0 : index
    %88 = vector.load %arg4[%c0_52, %c0_53] : memref<64x8xf32, #tpu.memory_space<vmem>>, vector<64x4xf32>
    %cst_54 = arith.constant dense<0.000000e+00> : vector<256x4xf32>
    %89 = tpu.matmul %86, %88, %cst_54 {dimension_numbers = #tpu.dot_dimension_numbers<[1], [0], [0], [1], [0, 0, 1, 1], [], []>} : vector<256x64xf32>, vector<64x4xf32>, vector<256x4xf32> -> vector<256x4xf32>
    %90 = vector.broadcast %87 : vector<1x4xf32> to vector<256x4xf32>
    %91 = arith.addf %89, %90 : vector<256x4xf32>
    %92 = arith.negf %91 : vector<256x4xf32>
    %93 = math.exp %92 : vector<256x4xf32>
    %cst_55 = arith.constant 1.000000e+00 : f32
    %94 = vector.broadcast %cst_55 : f32 to vector<256x4xf32>
    %95 = arith.addf %94, %93 : vector<256x4xf32>
    %96 = arith.divf %94, %95 : vector<256x4xf32>
    %c0_56 = arith.constant 0 : index
    %c0_57 = arith.constant 0 : index
    %c0_58 = arith.constant 0 : index
    %97 = vector.load %arg2[%c0_56, %c0_57, %c0_58] : memref<1x256x1xf32, #tpu.memory_space<vmem>>, vector<1x256x1xf32>
    %98 = vector.shape_cast %97 : vector<1x256x1xf32> to vector<256x1xf32>
    %99 = arith.negf %98 : vector<256x1xf32>
    %100 = math.exp %99 : vector<256x1xf32>
    %cst_59 = arith.constant 1.000000e+00 : f32
    %101 = vector.broadcast %cst_59 : f32 to vector<256x1xf32>
    %102 = arith.addf %101, %100 : vector<256x1xf32>
    %103 = arith.divf %101, %102 : vector<256x1xf32>
    %104 = vector.broadcast %103 : vector<256x1xf32> to vector<256x4xf32>
    %105 = arith.mulf %96, %104 : vector<256x4xf32>
    %cst_60 = arith.constant dense<0.000000e+00> : vector<4xf32>
    %106 = vector.multi_reduction <add>, %105, %cst_60 [0] : vector<256x4xf32> to vector<4xf32>
    %107 = vector.shape_cast %106 : vector<4xf32> to vector<1x4xf32>
    %cst_61 = arith.constant 2.560000e+02 : f32
    %108 = vector.broadcast %cst_61 : f32 to vector<1x4xf32>
    %109 = arith.divf %107, %108 : vector<1x4xf32>
    %cst_62 = arith.constant dense<0xFF800000> : vector<4xf32>
    %110 = vector.multi_reduction <maximumf>, %105, %cst_62 [0] : vector<256x4xf32> to vector<4xf32>
    %111 = vector.shape_cast %110 : vector<4xf32> to vector<1x4xf32>
    %c9 = arith.constant 9 : index
    %c0_63 = arith.constant 0 : index
    %112 = vector.load %arg6[%c9, %c0_63] : memref<12x64xf32, #tpu.memory_space<vmem>>, vector<1x4xf32>
    %c10 = arith.constant 10 : index
    %c0_64 = arith.constant 0 : index
    %113 = vector.load %arg6[%c10, %c0_64] : memref<12x64xf32, #tpu.memory_space<vmem>>, vector<1x4xf32>
    %c11 = arith.constant 11 : index
    %c0_65 = arith.constant 0 : index
    %114 = vector.load %arg6[%c11, %c0_65] : memref<12x64xf32, #tpu.memory_space<vmem>>, vector<1x4xf32>
    %115 = arith.mulf %109, %112 : vector<1x4xf32>
    %116 = arith.mulf %111, %113 : vector<1x4xf32>
    %117 = arith.addf %115, %116 : vector<1x4xf32>
    %118 = arith.addf %117, %114 : vector<1x4xf32>
    %cst_66 = arith.constant dense<0xFF800000> : vector<1xf32>
    %119 = vector.multi_reduction <maximumf>, %118, %cst_66 [1] : vector<1x4xf32> to vector<1xf32>
    %120 = vector.shape_cast %119 : vector<1xf32> to vector<1x1xf32>
    %121 = vector.broadcast %120 : vector<1x1xf32> to vector<1x4xf32>
    %122 = arith.subf %118, %121 : vector<1x4xf32>
    %123 = math.exp %122 : vector<1x4xf32>
    %cst_67 = arith.constant dense<0.000000e+00> : vector<1xf32>
    %124 = vector.multi_reduction <add>, %123, %cst_67 [1] : vector<1x4xf32> to vector<1xf32>
    %125 = vector.shape_cast %124 : vector<1xf32> to vector<1x1xf32>
    %126 = vector.broadcast %125 : vector<1x1xf32> to vector<1x4xf32>
    %127 = arith.divf %123, %126 : vector<1x4xf32>
    %c0_68 = arith.constant 0 : index
    %c4 = arith.constant 4 : index
    %128 = vector.load %arg4[%c0_68, %c4] : memref<64x8xf32, #tpu.memory_space<vmem>>, vector<64x4xf32>
    %129 = vector.broadcast %127 : vector<1x4xf32> to vector<64x4xf32>
    %130 = arith.mulf %128, %129 : vector<64x4xf32>
    %cst_69 = arith.constant dense<0.000000e+00> : vector<64xf32>
    %131 = vector.multi_reduction <add>, %130, %cst_69 [1] : vector<64x4xf32> to vector<64xf32>
    %132 = vector.shape_cast %131 : vector<64xf32> to vector<64x1xf32>
    %c1_70 = arith.constant 1 : index
    %c0_71 = arith.constant 0 : index
    %c0_72 = arith.constant 0 : index
    %133 = vector.load %arg3[%c1_70, %c0_71, %c0_72] : memref<2x576x64xbf16, #tpu.memory_space<vmem>>, vector<1x576x64xbf16>
    %134 = vector.shape_cast %133 : vector<1x576x64xbf16> to vector<576x64xbf16>
    %135 = vector.extract_strided_slice %134 {offsets = [0, 0], sizes = [64, 64], strides = [1, 1]} : vector<576x64xbf16> to vector<64x64xbf16>
    %136 = arith.extf %135 : vector<64x64xbf16> to vector<64x64xf32>
    %137 = vector.broadcast %132 : vector<64x1xf32> to vector<64x64xf32>
    %138 = arith.mulf %136, %137 : vector<64x64xf32>
    %139 = vector.extract_strided_slice %134 {offsets = [64, 0], sizes = [64, 64], strides = [1, 1]} : vector<576x64xbf16> to vector<64x64xbf16>
    %140 = arith.extf %139 : vector<64x64xbf16> to vector<64x64xf32>
    %141 = vector.broadcast %132 : vector<64x1xf32> to vector<64x64xf32>
    %142 = arith.mulf %140, %141 : vector<64x64xf32>
    %143 = vector.extract_strided_slice %134 {offsets = [128, 0], sizes = [64, 64], strides = [1, 1]} : vector<576x64xbf16> to vector<64x64xbf16>
    %144 = arith.extf %143 : vector<64x64xbf16> to vector<64x64xf32>
    %145 = vector.broadcast %132 : vector<64x1xf32> to vector<64x64xf32>
    %146 = arith.mulf %144, %145 : vector<64x64xf32>
    %147 = vector.extract_strided_slice %134 {offsets = [192, 0], sizes = [64, 64], strides = [1, 1]} : vector<576x64xbf16> to vector<64x64xbf16>
    %148 = arith.extf %147 : vector<64x64xbf16> to vector<64x64xf32>
    %149 = vector.broadcast %132 : vector<64x1xf32> to vector<64x64xf32>
    %150 = arith.mulf %148, %149 : vector<64x64xf32>
    %151 = vector.extract_strided_slice %134 {offsets = [256, 0], sizes = [64, 64], strides = [1, 1]} : vector<576x64xbf16> to vector<64x64xbf16>
    %152 = arith.extf %151 : vector<64x64xbf16> to vector<64x64xf32>
    %153 = vector.broadcast %132 : vector<64x1xf32> to vector<64x64xf32>
    %154 = arith.mulf %152, %153 : vector<64x64xf32>
    %155 = vector.extract_strided_slice %134 {offsets = [320, 0], sizes = [64, 64], strides = [1, 1]} : vector<576x64xbf16> to vector<64x64xbf16>
    %156 = arith.extf %155 : vector<64x64xbf16> to vector<64x64xf32>
    %157 = vector.broadcast %132 : vector<64x1xf32> to vector<64x64xf32>
    %158 = arith.mulf %156, %157 : vector<64x64xf32>
    %159 = vector.extract_strided_slice %134 {offsets = [384, 0], sizes = [64, 64], strides = [1, 1]} : vector<576x64xbf16> to vector<64x64xbf16>
    %160 = arith.extf %159 : vector<64x64xbf16> to vector<64x64xf32>
    %161 = vector.broadcast %132 : vector<64x1xf32> to vector<64x64xf32>
    %162 = arith.mulf %160, %161 : vector<64x64xf32>
    %163 = vector.extract_strided_slice %134 {offsets = [448, 0], sizes = [64, 64], strides = [1, 1]} : vector<576x64xbf16> to vector<64x64xbf16>
    %164 = arith.extf %163 : vector<64x64xbf16> to vector<64x64xf32>
    %165 = vector.broadcast %132 : vector<64x1xf32> to vector<64x64xf32>
    %166 = arith.mulf %164, %165 : vector<64x64xf32>
    %167 = vector.extract_strided_slice %134 {offsets = [512, 0], sizes = [64, 64], strides = [1, 1]} : vector<576x64xbf16> to vector<64x64xbf16>
    %168 = arith.extf %167 : vector<64x64xbf16> to vector<64x64xf32>
    %169 = vector.broadcast %132 : vector<64x1xf32> to vector<64x64xf32>
    %170 = arith.mulf %168, %169 : vector<64x64xf32>
    %171 = tpu.concatenate %138, %142, %146, %150, %154, %158, %162, %166, %170 in 0 : vector<64x64xf32>, vector<64x64xf32>, vector<64x64xf32>, vector<64x64xf32>, vector<64x64xf32>, vector<64x64xf32>, vector<64x64xf32>, vector<64x64xf32>, vector<64x64xf32> -> vector<576x64xf32>
    %172 = arith.truncf %171 : vector<576x64xf32> to vector<576x64xbf16>
    %c4_73 = arith.constant 4 : index
    %c0_74 = arith.constant 0 : index
    %173 = vector.load %arg6[%c4_73, %c0_74] : memref<12x64xf32, #tpu.memory_space<vmem>>, vector<1x64xf32>
    %c5 = arith.constant 5 : index
    %c0_75 = arith.constant 0 : index
    %174 = vector.load %arg6[%c5, %c0_75] : memref<12x64xf32, #tpu.memory_space<vmem>>, vector<1x64xf32>
    %c6 = arith.constant 6 : index
    %c0_76 = arith.constant 0 : index
    %175 = vector.load %arg6[%c6, %c0_76] : memref<12x64xf32, #tpu.memory_space<vmem>>, vector<1x64xf32>
    %c7 = arith.constant 7 : index
    %c0_77 = arith.constant 0 : index
    %176 = vector.load %arg6[%c7, %c0_77] : memref<12x64xf32, #tpu.memory_space<vmem>>, vector<1x64xf32>
    %cst_78 = arith.constant dense<0.000000e+00> : vector<256x64xf32>
    %177 = tpu.matmul %46, %172, %cst_78 {dimension_numbers = #tpu.dot_dimension_numbers<[1], [0], [0], [1], [0, 0, 1, 1], [], []>} : vector<256x576xbf16>, vector<576x64xbf16>, vector<256x64xf32> -> vector<256x64xf32>
    %178 = vector.broadcast %173 : vector<1x64xf32> to vector<256x64xf32>
    %179 = arith.addf %177, %178 : vector<256x64xf32>
    %c1_79 = arith.constant 1 : index
    %c0_80 = arith.constant 0 : index
    %c0_81 = arith.constant 0 : index
    %180 = vector.load %arg5[%c1_79, %c0_80, %c0_81] : memref<2x64x64xf32, #tpu.memory_space<vmem>>, vector<1x64x64xf32>
    %181 = vector.shape_cast %180 : vector<1x64x64xf32> to vector<64x64xf32>
    %cst_82 = arith.constant dense<0.000000e+00> : vector<64xf32>
    %182 = vector.multi_reduction <add>, %179, %cst_82 [0] : vector<256x64xf32> to vector<64xf32>
    %183 = vector.shape_cast %182 : vector<64xf32> to vector<1x64xf32>
    %184 = arith.mulf %179, %179 : vector<256x64xf32>
    %cst_83 = arith.constant dense<0.000000e+00> : vector<64xf32>
    %185 = vector.multi_reduction <add>, %184, %cst_83 [0] : vector<256x64xf32> to vector<64xf32>
    %186 = vector.shape_cast %185 : vector<64xf32> to vector<1x64xf32>
    %187 = tpu.concatenate %183, %186 in 0 : vector<1x64xf32>, vector<1x64xf32> -> vector<2x64xf32>
    %cst_84 = arith.constant dense<0.000000e+00> : vector<2x64xf32>
    %188 = tpu.matmul %187, %181, %cst_84 {dimension_numbers = #tpu.dot_dimension_numbers<[1], [0], [0], [1], [0, 0, 1, 1], [], []>} : vector<2x64xf32>, vector<64x64xf32>, vector<2x64xf32> -> vector<2x64xf32>
    %189 = vector.extract_strided_slice %188 {offsets = [0, 0], sizes = [1, 64], strides = [1, 1]} : vector<2x64xf32> to vector<1x64xf32>
    %190 = vector.extract_strided_slice %188 {offsets = [1, 0], sizes = [1, 64], strides = [1, 1]} : vector<2x64xf32> to vector<1x64xf32>
    %191 = arith.mulf %189, %189 : vector<1x64xf32>
    %192 = arith.subf %190, %191 : vector<1x64xf32>
    %cst_85 = arith.constant 0.000000e+00 : f32
    %193 = vector.broadcast %cst_85 : f32 to vector<1x64xf32>
    %194 = arith.maximumf %192, %193 : vector<1x64xf32>
    %cst_86 = arith.constant 9.99999974E-6 : f32
    %195 = vector.broadcast %cst_86 : f32 to vector<1x64xf32>
    %196 = arith.addf %194, %195 : vector<1x64xf32>
    %197 = math.rsqrt %196 : vector<1x64xf32>
    %198 = vector.broadcast %189 : vector<1x64xf32> to vector<256x64xf32>
    %199 = arith.subf %179, %198 : vector<256x64xf32>
    %200 = vector.broadcast %197 : vector<1x64xf32> to vector<256x64xf32>
    %201 = arith.mulf %199, %200 : vector<256x64xf32>
    %202 = vector.broadcast %174 : vector<1x64xf32> to vector<256x64xf32>
    %203 = arith.mulf %201, %202 : vector<256x64xf32>
    %204 = vector.broadcast %175 : vector<1x64xf32> to vector<256x64xf32>
    %205 = arith.addf %203, %204 : vector<256x64xf32>
    %cst_87 = arith.constant 0.000000e+00 : f32
    %206 = vector.broadcast %cst_87 : f32 to vector<256x64xf32>
    %207 = arith.cmpf ogt, %205, %206 : vector<256x64xf32>
    %208 = vector.broadcast %176 : vector<1x64xf32> to vector<256x64xf32>
    %209 = arith.mulf %208, %205 : vector<256x64xf32>
    %210 = arith.select %207, %205, %209 : vector<256x64xi1>, vector<256x64xf32>
    %211 = vector.shape_cast %210 : vector<256x64xf32> to vector<16x16x64xf32>
    %c0_88 = arith.constant 0 : index
    %c0_89 = arith.constant 0 : index
    %c0_90 = arith.constant 0 : index
    %c0_91 = arith.constant 0 : index
    %212 = vector.load %arg7[%c0_88, %c0_89, %c0_90, %c0_91] : memref<1x16x16x64xf32, #tpu.memory_space<vmem>>, vector<1x16x16x64xf32>
    %213 = vector.shape_cast %212 : vector<1x16x16x64xf32> to vector<16x16x64xf32>
    %214 = vector.shape_cast %211 : vector<16x16x64xf32> to vector<1x16x16x64xf32>
    tpu.vector_store %arg7[%c0_88, %c0_89, %c0_90, %c0_91], %214 {strides = array<i32>} : memref<1x16x16x64xf32, #tpu.memory_space<vmem>>, vector<1x16x16x64xf32>,
    return
  }
  func.func @transform_0(%arg0: i32) -> (i32, i32, i32, i32) {
    %c0_i32 = arith.constant 0 : i32
    %c0_i32_0 = arith.constant 0 : i32
    %c0_i32_1 = arith.constant 0 : i32
    %c0_i32_2 = arith.constant 0 : i32
    return %arg0, %c0_i32, %c0_i32_0, %c0_i32_1 : i32, i32, i32, i32
  }
  func.func @transform_1(%arg0: i32) -> (i32, i32, i32) {
    %c0_i32 = arith.constant 0 : i32
    %c0_i32_0 = arith.constant 0 : i32
    %c0_i32_1 = arith.constant 0 : i32
    return %arg0, %c0_i32, %c0_i32_0 : i32, i32, i32
  }
  func.func @transform_2(%arg0: i32) -> (i32, i32, i32) {
    %c0_i32 = arith.constant 0 : i32
    %c0_i32_0 = arith.constant 0 : i32
    %c0_i32_1 = arith.constant 0 : i32
    %c0_i32_2 = arith.constant 0 : i32
    return %c0_i32, %c0_i32_0, %c0_i32_1 : i32, i32, i32
  }
  func.func @transform_3(%arg0: i32) -> (i32, i32) {
    %c0_i32 = arith.constant 0 : i32
    %c0_i32_0 = arith.constant 0 : i32
    %c0_i32_1 = arith.constant 0 : i32
    return %c0_i32, %c0_i32_0 : i32, i32
  }
  func.func @transform_4(%arg0: i32) -> (i32, i32, i32) {
    %c0_i32 = arith.constant 0 : i32
    %c0_i32_0 = arith.constant 0 : i32
    %c0_i32_1 = arith.constant 0 : i32
    %c0_i32_2 = arith.constant 0 : i32
    return %c0_i32, %c0_i32_0, %c0_i32_1 : i32, i32, i32
  }
  func.func @transform_5(%arg0: i32) -> (i32, i32) {
    %c0_i32 = arith.constant 0 : i32
    %c0_i32_0 = arith.constant 0 : i32
    %c0_i32_1 = arith.constant 0 : i32
    return %c0_i32, %c0_i32_0 : i32, i32
  }
  func.func @transform_6(%arg0: i32) -> (i32, i32, i32, i32) {
    %c0_i32 = arith.constant 0 : i32
    %c0_i32_0 = arith.constant 0 : i32
    %c0_i32_1 = arith.constant 0 : i32
    %c0_i32_2 = arith.constant 0 : i32
    return %arg0, %c0_i32, %c0_i32_0, %c0_i32_1 : i32, i32, i32, i32
  }
}

</mosaic_0001>

<llo_original>
// kernel: _lambda_.1
$region0: #{_lambda_.1}
  #allocation0 [shape = 'u32[]', space=smem, size = 0x4, offset = 0x4, fixed_abs, tag = 'smem constant byte address 0x4 - core index']
  #allocation1 [shape = 'u32[72,128]{1,0:T(1,128)}', space=vmem, size = 0x9000, scoped, tag = 'internal scratch']
  #allocation2 [shape = 'f32[18,18,64]{2,1,0:T(8,128)}', space=vmem, size = 0x36000, scoped, tag = 'scratch operand']
  #allocation3 [shape = 'bf16[256,576]{1,0:T(8,128)(2,1)}', space=vmem, size = 0x50000, scoped, tag = 'scratch operand']
  %s0 = inlined_call_operand.vmem [shape: f32[2,16,16,64], index: 0, kind: input, shape index: {}]
  %s1 = inlined_call_operand.vmem [shape: f32[2,256,1], index: 1, kind: input, shape index: {}]
  %s2 = inlined_call_operand.hbm [shape: bf16[2,576,64], index: 2, kind: input, shape index: {}]
  %s3 = inlined_call_operand.hbm [shape: f32[64,8], index: 3, kind: input, shape index: {}]
  %s4 = inlined_call_operand.hbm [shape: f32[2,64,64], index: 4, kind: input, shape index: {}]
  %s5 = inlined_call_operand.vmem [shape: f32[12,64], index: 5, kind: input, shape index: {}]
  %s6 = inlined_call_operand.hbm [shape: f32[2,16,16,64], index: 6, kind: output, shape index: {}]
  %s7 = sld [smem:[#allocation0]]
  $region69: #{_lambda_.1} parent=0
    _
  %s9 = ssub.s32 1, %s7
  %s10 = scalar_select 0, %s9, %s7
  $region1: #{_lambda_.1} parent=0
    #allocation4 [shape = 'u8[294912]{0}', space=vmem, size = 0x48000, scoped, tag = 'input window, operand 2, single buffered']
    #allocation5 [shape = 's32[2]{0}', space=sflag, size = 0x8, scoped, tag = 'scoped memory for _lambda_.1']
    #allocation6 [shape = 's32[2]{0}', space=sflag, size = 0x8, scoped, tag = 'scoped memory for _lambda_.1']
    #allocation7 [shape = 'u8[32768]{0}', space=vmem, size = 0x8000, scoped, tag = 'input window, operand 3, single buffered']
    #allocation8 [shape = 's32[1]{0}', space=sflag, size = 0x4, scoped, tag = 'scoped memory for _lambda_.1']
    #allocation9 [shape = 'u8[65536]{0}', space=vmem, size = 0x10000, scoped, tag = 'input window, operand 4, single buffered']
    #allocation10 [shape = 'u8[262144]{0}', space=vmem, size = 0x40000, scoped, tag = 'output window, operand 0']
    %11 = vsyncpa [#allocation5], 0
    %12 = vsyncpa [#allocation8], 0
    %13 = vsyncpa [#allocation6], 0
    %s14 = scalar_lea.sflag [#allocation6], 1
    %15 = vsyncpa %s14, 0
    loop: start=0, step=1, limit=4
    $region2: #{_lambda_.1} parent=1 // loop_pre_header
      _
    $region3: #{_lambda_.1} parent=1 // loop_header
      %s17 = sphi 0, %s21
      %p18 = scmp.ge.s32.totalorder %s17, 4
      %s27 = sphi 0, %s29
      %s30 = sphi 0, %s27
      %s31 = sphi 0, %s30
      %s47 = sphi 0, %s31
      %s53 = sphi 0, %s55
      %s56 = sphi 0, %s53
      %s57 = sphi 0, %s56
      %s73 = sphi 0, %s57
      %s77 = sphi 0, %s77
      %s79 = sphi 0, %s77
      %s80 = sphi 0, %s79
      %s94 = sphi 0, %s80
      %s98 = sphi 0, %s98
      %s100 = sphi 0, %s98
      %s101 = sphi 0, %s100
      %s115 = sphi 0, %s101
      %s119 = sphi 0, %s119
      %s121 = sphi 0, %s119
      %s122 = sphi 0, %s121
      %s136 = sphi 0, %s122
      %s140 = sphi 0, %s140
      %s142 = sphi 0, %s140
      %s143 = sphi 0, %s142
      %s157 = sphi 0, %s143
      %s163 = sphi 0, %s165
      %s166 = sphi 0, %s163
      %s167 = sphi 0, %s166
      %s183 = sphi 0, %s167
    $region4: #{_lambda_.1} parent=1 // loop_header_branch
      %20 = sbr.rel (%p18) target = $region8
    $region5: #{_lambda_.1} parent=1 // loop_body
      %s22 = ssub.s32 %s17, 1
      %s23 = ssub.s32 %s17, 2
      %s24 = sadd.s32 %s17, 1
      %s25 = ssub.s32 %s17, %s24
      %p26 = scmp.eq.s32.totalorder %s25, 0
      %s28 = sadd.s32 %s27, 1
      %s29 = scalar_select %p26, %s27, %s28
      %p32 = pneg %p26
      %p33 = scmp.eq.s32.totalorder %s17, 1
      %p34 = por %p32, %p33
      %p35 = scmp.ne.s32.totalorder %s27, %s30
      %p36 = scmp.eq.s32.totalorder %s17, 0
      %p37 = por %p35, %p36
      %p38 = scmp.ne.s32.totalorder %s27, %s30
      %p39 = scmp.eq.s32.totalorder %s22, 1
      %p40 = por %p38, %p39
      %p41 = scmp.ne.s32.totalorder %s30, %s31
      %p42 = scmp.eq.s32.totalorder %s22, 0
      %p43 = por %p41, %p42
      %p44 = scmp.ne.s32.totalorder %s30, %s31
      %p45 = scmp.eq.s32.totalorder %s23, 1
      %p46 = por %p44, %p45
      %p48 = scmp.ne.s32.totalorder %s31, %s47
      %p49 = scmp.eq.s32.totalorder %s23, 0
      %p50 = por %p48, %p49
      %s51 = ssub.s32 %s17, %s24
      %p52 = scmp.eq.s32.totalorder %s51, 0
      %s54 = sadd.s32 %s53, 1
      %s55 = scalar_select %p52, %s53, %s54
      %p58 = pneg %p52
      %p59 = scmp.eq.s32.totalorder %s17, 1
      %p60 = por %p58, %p59
      %p61 = scmp.ne.s32.totalorder %s53, %s56
      %p62 = scmp.eq.s32.totalorder %s17, 0
      %p63 = por %p61, %p62
      %p64 = scmp.ne.s32.totalorder %s53, %s56
      %p65 = scmp.eq.s32.totalorder %s22, 1
      %p66 = por %p64, %p65
      %p67 = scmp.ne.s32.totalorder %s56, %s57
      %p68 = scmp.eq.s32.totalorder %s22, 0
      %p69 = por %p67, %p68
      %p70 = scmp.ne.s32.totalorder %s56, %s57
      %p71 = scmp.eq.s32.totalorder %s23, 1
      %p72 = por %p70, %p71
      %p74 = scmp.ne.s32.totalorder %s57, %s73
      %p75 = scmp.eq.s32.totalorder %s23, 0
      %p76 = por %p74, %p75
      %s78 = sadd.s32 %s77, 1
      %p81 = scmp.eq.s32.totalorder %s17, 1
      %p82 = scmp.ne.s32.totalorder %s77, %s79
      %p83 = scmp.eq.s32.totalorder %s17, 0
      %p84 = por %p82, %p83
      %p85 = scmp.ne.s32.totalorder %s77, %s79
      %p86 = scmp.eq.s32.totalorder %s22, 1
      %p87 = por %p85, %p86
      %p88 = scmp.ne.s32.totalorder %s79, %s80
      %p89 = scmp.eq.s32.totalorder %s22, 0
      %p90 = por %p88, %p89
      %p91 = scmp.ne.s32.totalorder %s79, %s80
      %p92 = scmp.eq.s32.totalorder %s23, 1
      %p93 = por %p91, %p92
      %p95 = scmp.ne.s32.totalorder %s80, %s94
      %p96 = scmp.eq.s32.totalorder %s23, 0
      %p97 = por %p95, %p96
      %s99 = sadd.s32 %s98, 1
      %p102 = scmp.eq.s32.totalorder %s17, 1
      %p103 = scmp.ne.s32.totalorder %s98, %s100
      %p104 = scmp.eq.s32.totalorder %s17, 0
      %p105 = por %p103, %p104
      %p106 = scmp.ne.s32.totalorder %s98, %s100
      %p107 = scmp.eq.s32.totalorder %s22, 1
      %p108 = por %p106, %p107
      %p109 = scmp.ne.s32.totalorder %s100, %s101
      %p110 = scmp.eq.s32.totalorder %s22, 0
      %p111 = por %p109, %p110
      %p112 = scmp.ne.s32.totalorder %s100, %s101
      %p113 = scmp.eq.s32.totalorder %s23, 1
      %p114 = por %p112, %p113
      %p116 = scmp.ne.s32.totalorder %s101, %s115
      %p117 = scmp.eq.s32.totalorder %s23, 0
      %p118 = por %p116, %p117
      %s120 = sadd.s32 %s119, 1
      %p123 = scmp.eq.s32.totalorder %s17, 1
      %p124 = scmp.ne.s32.totalorder %s119, %s121
      %p125 = scmp.eq.s32.totalorder %s17, 0
      %p126 = por %p124, %p125
      %p127 = scmp.ne.s32.totalorder %s119, %s121
      %p128 = scmp.eq.s32.totalorder %s22, 1
      %p129 = por %p127, %p128
      %p130 = scmp.ne.s32.totalorder %s121, %s122
      %p131 = scmp.eq.s32.totalorder %s22, 0
      %p132 = por %p130, %p131
      %p133 = scmp.ne.s32.totalorder %s121, %s122
      %p134 = scmp.eq.s32.totalorder %s23, 1
      %p135 = por %p133, %p134
      %p137 = scmp.ne.s32.totalorder %s122, %s136
      %p138 = scmp.eq.s32.totalorder %s23, 0
      %p139 = por %p137, %p138
      %s141 = sadd.s32 %s140, 1
      %p144 = scmp.eq.s32.totalorder %s17, 1
      %p145 = scmp.ne.s32.totalorder %s140, %s142
      %p146 = scmp.eq.s32.totalorder %s17, 0
      %p147 = por %p145, %p146
      %p148 = scmp.ne.s32.totalorder %s140, %s142
      %p149 = scmp.eq.s32.totalorder %s22, 1
      %p150 = por %p148, %p149
      %p151 = scmp.ne.s32.totalorder %s142, %s143
      %p152 = scmp.eq.s32.totalorder %s22, 0
      %p153 = por %p151, %p152
      %p154 = scmp.ne.s32.totalorder %s142, %s143
      %p155 = scmp.eq.s32.totalorder %s23, 1
      %p156 = por %p154, %p155
      %p158 = scmp.ne.s32.totalorder %s143, %s157
      %p159 = scmp.eq.s32.totalorder %s23, 0
      %p160 = por %p158, %p159
      %s161 = ssub.s32 %s17, %s24
      %p162 = scmp.eq.s32.totalorder %s161, 0
      %s164 = sadd.s32 %s163, 1
      %s165 = scalar_select %p162, %s163, %s164
      %p168 = pneg %p162
      %p169 = scmp.eq.s32.totalorder %s17, 1
      %p170 = por %p168, %p169
      %p171 = scmp.ne.s32.totalorder %s163, %s166
      %p172 = scmp.eq.s32.totalorder %s17, 0
      %p173 = por %p171, %p172
      %p174 = scmp.ne.s32.totalorder %s163, %s166
      %p175 = scmp.eq.s32.totalorder %s22, 1
      %p176 = por %p174, %p175
      %p177 = scmp.ne.s32.totalorder %s166, %s167
      %p178 = scmp.eq.s32.totalorder %s22, 0
      %p179 = por %p177, %p178
      %p180 = scmp.ne.s32.totalorder %s166, %s167
      %p181 = scmp.eq.s32.totalorder %s23, 1
      %p182 = por %p180, %p181
      %p184 = scmp.ne.s32.totalorder %s167, %s183
      %p185 = scmp.eq.s32.totalorder %s23, 0
      %p186 = por %p184, %p185
      %p187 = scmp.le.s32.totalorder 1, %s17
      %p188 = scmp.lt.s32.totalorder %s17, 3
      %p189 = pnand %p187, %p188
      %p190 = pneg %p189
      // Predicated region
      $region9: #{_lambda_.1} parent=5 // pred_check
        _
      $region10: #{_lambda_.1} parent=5 // pred_check_branch
        %192 = sbr.rel (%p189) target = $region12
      $region11: #{_lambda_.1} parent=5 // pred_region
        %s193 = ssub.s32 %s17, 1
        // Predicated region
        $region13: #{_lambda_.1} parent=11 // pred_check
          %p194 = pneg %p90
        $region14: #{_lambda_.1} parent=11 // pred_check_branch
          %196 = sbr.rel (%p194) target = $region16
        $region15: #{_lambda_.1} parent=11 // pred_region
          %198 = vsyncadd [#allocation5], 0
          %s199 = sshll.u32 %s2, 4
          %s200 = int_to_ptr.hbm [resolvable:$true] %s199
          %s201 = sshll.u32 [#allocation4], 4
          %s202 = int_to_ptr.vmem [resolvable:$true] %s201
          %207 = dma.hbm_to_vmem [thread:$0]  %s200, 9216, %s202, [#allocation5], 64, 64, 4
        $region16: #{_lambda_.1} parent=11 // pred_fallthru
          _
        // Predicated region
        $region17: #{_lambda_.1} parent=11 // pred_check
          %p208 = pneg %p111
        $region18: #{_lambda_.1} parent=11 // pred_check_branch
          %210 = sbr.rel (%p208) target = $region20
        $region19: #{_lambda_.1} parent=11 // pred_region
          %212 = vsyncadd [#allocation8], 0
          %s213 = sshll.u32 %s3, 4
          %s214 = int_to_ptr.hbm [resolvable:$true] %s213
          %s215 = sshll.u32 [#allocation7], 4
          %s216 = int_to_ptr.vmem [resolvable:$true] %s215
          %221 = dma.hbm_to_vmem [thread:$0]  %s214, 1024, %s216, [#allocation8], 128, 128, 8
        $region20: #{_lambda_.1} parent=11 // pred_fallthru
          _
        // Predicated region
        $region21: #{_lambda_.1} parent=11 // pred_check
          %p222 = pneg %p132
        $region22: #{_lambda_.1} parent=11 // pred_check_branch
          %224 = sbr.rel (%p222) target = $region24
        $region23: #{_lambda_.1} parent=11 // pred_region
          %226 = vsyncadd [#allocation8], 0
          %s227 = sshll.u32 %s4, 4
          %s228 = int_to_ptr.hbm [resolvable:$true] %s227
          %s229 = sshll.u32 [#allocation9], 4
          %s230 = int_to_ptr.vmem [resolvable:$true] %s229
          %235 = dma.hbm_to_vmem [thread:$0]  %s228, 2048, %s230, [#allocation8], 128, 128, 8
        $region24: #{_lambda_.1} parent=11 // pred_fallthru
          _
        // Predicated region
        $region25: #{_lambda_.1} parent=11 // pred_check
          %p236 = pneg %p153
        $region26: #{_lambda_.1} parent=11 // pred_check_branch
          %238 = sbr.rel (%p236) target = $region28
        $region27: #{_lambda_.1} parent=11 // pred_region
          _
        $region28: #{_lambda_.1} parent=11 // pred_fallthru
          _
      $region12: #{_lambda_.1} parent=5 // pred_fallthru
        _
      %p239 = scmp.lt.s32.totalorder %s17, 2
      // Predicated region
      $region29: #{_lambda_.1} parent=5 // pred_check
        %p240 = pneg %p239
      $region30: #{_lambda_.1} parent=5 // pred_check_branch
        %242 = sbr.rel (%p240) target = $region32
      $region31: #{_lambda_.1} parent=5 // pred_region
        // Predicated region
        $region33: #{_lambda_.1} parent=31 // pred_check
          %p243 = pneg %p37
        $region34: #{_lambda_.1} parent=31 // pred_check_branch
          %245 = sbr.rel (%p243) target = $region36
        $region35: #{_lambda_.1} parent=31 // pred_region
          %p246 = scmp.lt.s32.totalorder %s17, 1
          %s247 = scalar_select %p246, %s17, 1
          %s248 = smul.addr %s247, 32
          %s249 = smul.addr %s248, 8
          %s250 = scalar_lea.vmem %s0, %s249
        $region36: #{_lambda_.1} parent=31 // pred_fallthru
          _
        // Predicated region
        $region37: #{_lambda_.1} parent=31 // pred_check
          %p251 = pneg %p63
        $region38: #{_lambda_.1} parent=31 // pred_check_branch
          %253 = sbr.rel (%p251) target = $region40
        $region39: #{_lambda_.1} parent=31 // pred_region
          %p254 = scmp.lt.s32.totalorder %s17, 1
          %s255 = scalar_select %p254, %s17, 1
          %s256 = smul.addr %s255, 32
          %s257 = smul.addr %s256, 8
          %s258 = scalar_lea.vmem %s1, %s257
        $region40: #{_lambda_.1} parent=31 // pred_fallthru
          _
      $region32: #{_lambda_.1} parent=5 // pred_fallthru
        _
      %p259 = scmp.le.s32.totalorder 1, %s17
      %p260 = scmp.lt.s32.totalorder %s17, 3
      %p261 = pnand %p259, %p260
      %p262 = pneg %p261
      // Predicated region
      $region41: #{_lambda_.1} parent=5 // pred_check
        _
      $region42: #{_lambda_.1} parent=5 // pred_check_branch
        %264 = sbr.rel (%p261) target = $region44
      $region43: #{_lambda_.1} parent=5 // pred_region
        %s265 = ssub.s32 %s17, 1
        // Predicated region
        $region45: #{_lambda_.1} parent=43 // pred_check
          %p266 = pneg %p90
        $region46: #{_lambda_.1} parent=43 // pred_check_branch
          %268 = sbr.rel (%p266) target = $region48
        $region47: #{_lambda_.1} parent=43 // pred_region
          %270 = dma.done [#allocation5], 9216
        $region48: #{_lambda_.1} parent=43 // pred_fallthru
          _
        // Predicated region
        $region49: #{_lambda_.1} parent=43 // pred_check
          %p271 = pneg %p111
        $region50: #{_lambda_.1} parent=43 // pred_check_branch
          %273 = sbr.rel (%p271) target = $region52
        $region51: #{_lambda_.1} parent=43 // pred_region
          %275 = dma.done [#allocation8], 1024
        $region52: #{_lambda_.1} parent=43 // pred_fallthru
          _
        // Predicated region
        $region53: #{_lambda_.1} parent=43 // pred_check
          %p276 = pneg %p132
        $region54: #{_lambda_.1} parent=43 // pred_check_branch
          %278 = sbr.rel (%p276) target = $region56
        $region55: #{_lambda_.1} parent=43 // pred_region
          %280 = dma.done [#allocation8], 2048
        $region56: #{_lambda_.1} parent=43 // pred_fallthru
          _
        %p281 = scmp.lt.s32.totalorder %s22, 1
        %s282 = scalar_select %p281, %s22, 1
        %s283 = smul.addr %s282, 32
        %s284 = smul.addr %s283, 8
        %s285 = scalar_lea.vmem %s0, %s284
        %p286 = pneg %p43
        %p287 = pneg %p40
        %p288 = scmp.lt.s32.totalorder %s22, 1
        %s289 = scalar_select %p288, %s22, 1
        %s290 = smul.addr %s289, 32
        %s291 = smul.addr %s290, 8
        %s292 = scalar_lea.vmem %s1, %s291
        %p293 = pneg %p69
        %p294 = pneg %p66
        %p295 = pneg %p90
        %p296 = pneg %p87
        %p297 = pneg %p111
        %p298 = pneg %p108
        %p299 = pneg %p132
        %p300 = pneg %p129
        %p301 = pneg %p153
        %p302 = pneg %p150
        %p303 = pneg %p179
        %p304 = pneg %p176
        %s305 = sand.u32 %s166, 1
        %s306 = scalar_lea.sflag [#allocation6], %s305
        %s307 = sand.u32 %s166, 1
        %s308 = smul.addr %s307, 256
        %s309 = scalar_lea.vmem [#allocation10], %s308
        %p310 = scmp.lt.s32.totalorder %s22, 1
        %s311 = scalar_select %p310, %s22, 1
        %s312 = smul.addr %s311, 32
        %s313 = smul.addr %s312, 8
        %s314 = scalar_lea.vmem %s0, %s313
        %p315 = scmp.lt.s32.totalorder %s22, 1
        %s316 = scalar_select %p315, %s22, 1
        %s317 = smul.addr %s316, 32
        %s318 = smul.addr %s317, 8
        %s319 = scalar_lea.vmem %s1, %s318
        %vm321 = vcmask 523264
        %322 = vst.msk [vmem:[#allocation2] sm:$0xff] %vm321, 0.0
        %323 = vst.msk [vmem:[#allocation2 + $0x8] sm:$0xff] %vm321, 0.0
        %vm324 = vcmask 517120
        %325 = vst.msk [vmem:[#allocation2 + $0x10] sm:$0x3] %vm324, 0.0
        %s326 = scalar_lea.vmem [#allocation2], 408
        %327 = vst.msk [vmem:[%s326] sm:$0xff] %vm321, 0.0
        %328 = vst.msk [vmem:[%s326 + $0x8] sm:$0xff] %vm321, 0.0
        %329 = vst.msk [vmem:[%s326 + $0x10] sm:$0x3] %vm324, 0.0
        %vm330 = vcmask 516096
        %331 = vst.msk [vmem:[#allocation2] sm:$0x1] %vm330, 0.0
        %332 = vst.msk [vmem:[#allocation2 + $0x18] sm:$0x1] %vm330, 0.0
        %333 = vst.msk [vmem:[#allocation2 + $0x30] sm:$0x1] %vm330, 0.0
        %334 = vst.msk [vmem:[#allocation2 + $0x48] sm:$0x1] %vm330, 0.0
        %335 = vst.msk [vmem:[#allocation2 + $0x60] sm:$0x1] %vm330, 0.0
        %336 = vst.msk [vmem:[#allocation2 + $0x78] sm:$0x1] %vm330, 0.0
        %337 = vst.msk [vmem:[#allocation2 + $0x90] sm:$0x1] %vm330, 0.0
        %338 = vst.msk [vmem:[#allocation2 + $0xa8] sm:$0x1] %vm330, 0.0
        %339 = vst.msk [vmem:[#allocation2 + $0xc0] sm:$0x1] %vm330, 0.0
        %340 = vst.msk [vmem:[#allocation2 + $0xd8] sm:$0x1] %vm330, 0.0
        %341 = vst.msk [vmem:[#allocation2 + $0xf0] sm:$0x1] %vm330, 0.0
        %342 = vst.msk [vmem:[#allocation2 + $0x108] sm:$0x1] %vm330, 0.0
        %343 = vst.msk [vmem:[#allocation2 + $0x120] sm:$0x1] %vm330, 0.0
        %344 = vst.msk [vmem:[#allocation2 + $0x138] sm:$0x1] %vm330, 0.0
        %345 = vst.msk [vmem:[#allocation2 + $0x150] sm:$0x1] %vm330, 0.0
        %346 = vst.msk [vmem:[#allocation2 + $0x168] sm:$0x1] %vm330, 0.0
        %347 = vst.msk [vmem:[#allocation2 + $0x180] sm:$0x1] %vm330, 0.0
        %348 = vst.msk [vmem:[#allocation2 + $0x198] sm:$0x1] %vm330, 0.0
        %349 = vst.msk [vmem:[#allocation2 + $0x11] sm:$0x1] %vm330, 0.0
        %350 = vst.msk [vmem:[#allocation2 + $0x29] sm:$0x1] %vm330, 0.0
        %351 = vst.msk [vmem:[#allocation2 + $0x41] sm:$0x1] %vm330, 0.0
        %352 = vst.msk [vmem:[#allocation2 + $0x59] sm:$0x1] %vm330, 0.0
        %353 = vst.msk [vmem:[#allocation2 + $0x71] sm:$0x1] %vm330, 0.0
        %354 = vst.msk [vmem:[#allocation2 + $0x89] sm:$0x1] %vm330, 0.0
        %355 = vst.msk [vmem:[#allocation2 + $0xa1] sm:$0x1] %vm330, 0.0
        %356 = vst.msk [vmem:[#allocation2 + $0xb9] sm:$0x1] %vm330, 0.0
        %357 = vst.msk [vmem:[#allocation2 + $0xd1] sm:$0x1] %vm330, 0.0
        %358 = vst.msk [vmem:[#allocation2 + $0xe9] sm:$0x1] %vm330, 0.0
        %359 = vst.msk [vmem:[#allocation2 + $0x101] sm:$0x1] %vm330, 0.0
        %360 = vst.msk [vmem:[#allocation2 + $0x119] sm:$0x1] %vm330, 0.0
        %361 = vst.msk [vmem:[#allocation2 + $0x131] sm:$0x1] %vm330, 0.0
        %362 = vst.msk [vmem:[#allocation2 + $0x149] sm:$0x1] %vm330, 0.0
        %363 = vst.msk [vmem:[#allocation2 + $0x161] sm:$0x1] %vm330, 0.0
        %364 = vst.msk [vmem:[#allocation2 + $0x179] sm:$0x1] %vm330, 0.0
        %365 = vst.msk [vmem:[#allocation2 + $0x191] sm:$0x1] %vm330, 0.0
        %366 = vst.msk [vmem:[#allocation2 + $0x1a9] sm:$0x1] %vm330, 0.0
        %v367 = vld [vmem:[%s314] sm:$0xff]
        %v368 = vld [vmem:[%s314 + $0x8] sm:$0xff]
        %v369 = vld [vmem:[%s314 + $0x10] sm:$0xff]
        %v370 = vld [vmem:[%s314 + $0x18] sm:$0xff]
        %v371 = vld [vmem:[%s314 + $0x20] sm:$0xff]
        %v372 = vld [vmem:[%s314 + $0x28] sm:$0xff]
        %v373 = vld [vmem:[%s314 + $0x30] sm:$0xff]
        %v374 = vld [vmem:[%s314 + $0x38] sm:$0xff]
        %v375 = vld [vmem:[%s314 + $0x40] sm:$0xff]
        %v376 = vld [vmem:[%s314 + $0x48] sm:$0xff]
        %v377 = vld [vmem:[%s314 + $0x50] sm:$0xff]
        %v378 = vld [vmem:[%s314 + $0x58] sm:$0xff]
        %v379 = vld [vmem:[%s314 + $0x60] sm:$0xff]
        %v380 = vld [vmem:[%s314 + $0x68] sm:$0xff]
        %v381 = vld [vmem:[%s314 + $0x70] sm:$0xff]
        %v382 = vld [vmem:[%s314 + $0x78] sm:$0xff]
        %v383 = vld [vmem:[%s314 + $0x80] sm:$0xff]
        %v384 = vld [vmem:[%s314 + $0x88] sm:$0xff]
        %v385 = vld [vmem:[%s314 + $0x90] sm:$0xff]
        %v386 = vld [vmem:[%s314 + $0x98] sm:$0xff]
        %v387 = vld [vmem:[%s314 + $0xa0] sm:$0xff]
        %v388 = vld [vmem:[%s314 + $0xa8] sm:$0xff]
        %v389 = vld [vmem:[%s314 + $0xb0] sm:$0xff]
        %v390 = vld [vmem:[%s314 + $0xb8] sm:$0xff]
        %v391 = vld [vmem:[%s314 + $0xc0] sm:$0xff]
        %v392 = vld [vmem:[%s314 + $0xc8] sm:$0xff]
        %v393 = vld [vmem:[%s314 + $0xd0] sm:$0xff]
        %v394 = vld [vmem:[%s314 + $0xd8] sm:$0xff]
        %v395 = vld [vmem:[%s314 + $0xe0] sm:$0xff]
        %v396 = vld [vmem:[%s314 + $0xe8] sm:$0xff]
        %v397 = vld [vmem:[%s314 + $0xf0] sm:$0xff]
        %v398 = vld [vmem:[%s314 + $0xf8] sm:$0xff]
        %s399 = scalar_lea.vmem [#allocation2], 24
        %400 = vst.msk [vmem:[%s399 + $0x1] sm:$0xff] %vm321, %v367
        %401 = vst.msk [vmem:[%s399 + $0x9] sm:$0xff] %vm321, %v368
        %402 = vst.msk [vmem:[%s399 + $0x19] sm:$0xff] %vm321, %v369
        %403 = vst.msk [vmem:[%s399 + $0x21] sm:$0xff] %vm321, %v370
        %404 = vst.msk [vmem:[%s399 + $0x31] sm:$0xff] %vm321, %v371
        %405 = vst.msk [vmem:[%s399 + $0x39] sm:$0xff] %vm321, %v372
        %406 = vst.msk [vmem:[%s399 + $0x49] sm:$0xff] %vm321, %v373
        %407 = vst.msk [vmem:[%s399 + $0x51] sm:$0xff] %vm321, %v374
        %408 = vst.msk [vmem:[%s399 + $0x61] sm:$0xff] %vm321, %v375
        %409 = vst.msk [vmem:[%s399 + $0x69] sm:$0xff] %vm321, %v376
        %410 = vst.msk [vmem:[%s399 + $0x79] sm:$0xff] %vm321, %v377
        %411 = vst.msk [vmem:[%s399 + $0x81] sm:$0xff] %vm321, %v378
        %412 = vst.msk [vmem:[%s399 + $0x91] sm:$0xff] %vm321, %v379
        %413 = vst.msk [vmem:[%s399 + $0x99] sm:$0xff] %vm321, %v380
        %414 = vst.msk [vmem:[%s399 + $0xa9] sm:$0xff] %vm321, %v381
        %415 = vst.msk [vmem:[%s399 + $0xb1] sm:$0xff] %vm321, %v382
        %416 = vst.msk [vmem:[%s399 + $0xc1] sm:$0xff] %vm321, %v383
        %417 = vst.msk [vmem:[%s399 + $0xc9] sm:$0xff] %vm321, %v384
        %418 = vst.msk [vmem:[%s399 + $0xd9] sm:$0xff] %vm321, %v385
        %419 = vst.msk [vmem:[%s399 + $0xe1] sm:$0xff] %vm321, %v386
        %420 = vst.msk [vmem:[%s399 + $0xf1] sm:$0xff] %vm321, %v387
        %421 = vst.msk [vmem:[%s399 + $0xf9] sm:$0xff] %vm321, %v388
        %422 = vst.msk [vmem:[%s399 + $0x109] sm:$0xff] %vm321, %v389
        %423 = vst.msk [vmem:[%s399 + $0x111] sm:$0xff] %vm321, %v390
        %424 = vst.msk [vmem:[%s399 + $0x121] sm:$0xff] %vm321, %v391
        %425 = vst.msk [vmem:[%s399 + $0x129] sm:$0xff] %vm321, %v392
        %426 = vst.msk [vmem:[%s399 + $0x139] sm:$0xff] %vm321, %v393
        %427 = vst.msk [vmem:[%s399 + $0x141] sm:$0xff] %vm321, %v394
        %428 = vst.msk [vmem:[%s399 + $0x151] sm:$0xff] %vm321, %v395
        %429 = vst.msk [vmem:[%s399 + $0x159] sm:$0xff] %vm321, %v396
        %430 = vst.msk [vmem:[%s399 + $0x169] sm:$0xff] %vm321, %v397
        %431 = vst.msk [vmem:[%s399 + $0x171] sm:$0xff] %vm321, %v398
        %v432 = vld [vmem:[#allocation2] sm:$0xff]
        %v433 = vld [vmem:[#allocation2 + $0x8] sm:$0xff]
        %v434 = vld [vmem:[#allocation2 + $0x10] sm:$0x3]
        %v435 = vld [vmem:[#allocation2 + $0x18] sm:$0xff]
        %v436 = vld [vmem:[#allocation2 + $0x20] sm:$0xff]
        %v437 = vld [vmem:[#allocation2 + $0x28] sm:$0x3]
        %v438 = vld [vmem:[#allocation2 + $0x30] sm:$0xff]
        %v439 = vld [vmem:[#allocation2 + $0x38] sm:$0xff]
        %v440 = vld [vmem:[#allocation2 + $0x40] sm:$0x3]
        %v441 = vld [vmem:[#allocation2 + $0x48] sm:$0xff]
        %v442 = vld [vmem:[#allocation2 + $0x50] sm:$0xff]
        %v443 = vld [vmem:[#allocation2 + $0x58] sm:$0x3]
        %v444 = vld [vmem:[#allocation2 + $0x60] sm:$0xff]
        %v445 = vld [vmem:[#allocation2 + $0x68] sm:$0xff]
        %v446 = vld [vmem:[#allocation2 + $0x70] sm:$0x3]
        %v447 = vld [vmem:[#allocation2 + $0x78] sm:$0xff]
        %v448 = vld [vmem:[#allocation2 + $0x80] sm:$0xff]
        %v449 = vld [vmem:[#allocation2 + $0x88] sm:$0x3]
        %v450 = vld [vmem:[#allocation2 + $0x90] sm:$0xff]
        %v451 = vld [vmem:[#allocation2 + $0x98] sm:$0xff]
        %v452 = vld [vmem:[#allocation2 + $0xa0] sm:$0x3]
        %v453 = vld [vmem:[#allocation2 + $0xa8] sm:$0xff]
        %v454 = vld [vmem:[#allocation2 + $0xb0] sm:$0xff]
        %v455 = vld [vmem:[#allocation2 + $0xb8] sm:$0x3]
        %v456 = vld [vmem:[#allocation2 + $0xc0] sm:$0xff]
        %v457 = vld [vmem:[#allocation2 + $0xc8] sm:$0xff]
        %v458 = vld [vmem:[#allocation2 + $0xd0] sm:$0x3]
        %v459 = vld [vmem:[#allocation2 + $0xd8] sm:$0xff]
        %v460 = vld [vmem:[#allocation2 + $0xe0] sm:$0xff]
        %v461 = vld [vmem:[#allocation2 + $0xe8] sm:$0x3]
        %v462 = vld [vmem:[#allocation2 + $0xf0] sm:$0xff]
        %v463 = vld [vmem:[#allocation2 + $0xf8] sm:$0xff]
        %v464 = vld [vmem:[#allocation2 + $0x100] sm:$0x3]
        %v465 = vld [vmem:[#allocation2 + $0x108] sm:$0xff]
        %v466 = vld [vmem:[#allocation2 + $0x110] sm:$0xff]
        %v467 = vld [vmem:[#allocation2 + $0x118] sm:$0x3]
        %v468 = vld [vmem:[#allocation2 + $0x120] sm:$0xff]
        %v469 = vld [vmem:[#allocation2 + $0x128] sm:$0xff]
        %v470 = vld [vmem:[#allocation2 + $0x130] sm:$0x3]
        %v471 = vld [vmem:[#allocation2 + $0x138] sm:$0xff]
        %v472 = vld [vmem:[#allocation2 + $0x140] sm:$0xff]
        %v473 = vld [vmem:[#allocation2 + $0x148] sm:$0x3]
        %v474 = vld [vmem:[#allocation2 + $0x150] sm:$0xff]
        %v475 = vld [vmem:[#allocation2 + $0x158] sm:$0xff]
        %v476 = vld [vmem:[#allocation2 + $0x160] sm:$0x3]
        %v477 = vld [vmem:[#allocation2 + $0x168] sm:$0xff]
        %v478 = vld [vmem:[#allocation2 + $0x170] sm:$0xff]
        %v479 = vld [vmem:[#allocation2 + $0x178] sm:$0x3]
        %v480 = vld [vmem:[#allocation2 + $0x180] sm:$0xff]
        %v481 = vld [vmem:[#allocation2 + $0x188] sm:$0xff]
        %v482 = vld [vmem:[#allocation2 + $0x190] sm:$0x3]
        %v483 = vld [vmem:[#allocation2 + $0x198] sm:$0xff]
        %v484 = vld [vmem:[#allocation2 + $0x1a0] sm:$0xff]
        %v485 = vld [vmem:[#allocation2 + $0x1a8] sm:$0x3]
        %v486 = vpack.c.bf16 %v432, %v432
        %v487 = vpack.c.bf16 %v433, %v433
        %v488 = vpack.c.bf16 %v435, %v435
        %v489 = vpack.c.bf16 %v436, %v436
        %v490 = vpack.c.bf16 %v438, %v438
        %v491 = vpack.c.bf16 %v439, %v439
        %v492 = vpack.c.bf16 %v441, %v441
        %v493 = vpack.c.bf16 %v442, %v442
        %v494 = vpack.c.bf16 %v444, %v444
        %v495 = vpack.c.bf16 %v445, %v445
        %v496 = vpack.c.bf16 %v447, %v447
        %v497 = vpack.c.bf16 %v448, %v448
        %v498 = vpack.c.bf16 %v450, %v450
        %v499 = vpack.c.bf16 %v451, %v451
        %v500 = vpack.c.bf16 %v453, %v453
        %v501 = vpack.c.bf16 %v454, %v454
        %v502 = vpack.c.bf16 %v456, %v456
        %v503 = vpack.c.bf16 %v457, %v457
        %v504 = vpack.c.bf16 %v459, %v459
        %v505 = vpack.c.bf16 %v460, %v460
        %v506 = vpack.c.bf16 %v462, %v462
        %v507 = vpack.c.bf16 %v463, %v463
        %v508 = vpack.c.bf16 %v465, %v465
        %v509 = vpack.c.bf16 %v466, %v466
        %v510 = vpack.c.bf16 %v468, %v468
        %v511 = vpack.c.bf16 %v469, %v469
        %v512 = vpack.c.bf16 %v471, %v471
        %v513 = vpack.c.bf16 %v472, %v472
        %v514 = vpack.c.bf16 %v474, %v474
        %v515 = vpack.c.bf16 %v475, %v475
        %v516 = vpack.c.bf16 %v477, %v477
        %v517 = vpack.c.bf16 %v478, %v478
        %vm518 = vcmask 519168
        %519 = vst.msk [vmem:[#allocation3] sm:$0xf] %vm518, %v486
        %520 = vst.msk [vmem:[#allocation3 + $0x14] sm:$0xf] %vm518, %v487
        %521 = vst.msk [vmem:[#allocation3 + $0x28] sm:$0xf] %vm518, %v488
        %522 = vst.msk [vmem:[#allocation3 + $0x3c] sm:$0xf] %vm518, %v489
        %523 = vst.msk [vmem:[#allocation3 + $0x50] sm:$0xf] %vm518, %v490
        %524 = vst.msk [vmem:[#allocation3 + $0x64] sm:$0xf] %vm518, %v491
        %525 = vst.msk [vmem:[#allocation3 + $0x78] sm:$0xf] %vm518, %v492
        %526 = vst.msk [vmem:[#allocation3 + $0x8c] sm:$0xf] %vm518, %v493
        %527 = vst.msk [vmem:[#allocation3 + $0xa0] sm:$0xf] %vm518, %v494
        %528 = vst.msk [vmem:[#allocation3 + $0xb4] sm:$0xf] %vm518, %v495
        %529 = vst.msk [vmem:[#allocation3 + $0xc8] sm:$0xf] %vm518, %v496
        %530 = vst.msk [vmem:[#allocation3 + $0xdc] sm:$0xf] %vm518, %v497
        %531 = vst.msk [vmem:[#allocation3 + $0xf0] sm:$0xf] %vm518, %v498
        %532 = vst.msk [vmem:[#allocation3 + $0x104] sm:$0xf] %vm518, %v499
        %533 = vst.msk [vmem:[#allocation3 + $0x118] sm:$0xf] %vm518, %v500
        %534 = vst.msk [vmem:[#allocation3 + $0x12c] sm:$0xf] %vm518, %v501
        %535 = vst.msk [vmem:[#allocation3 + $0x140] sm:$0xf] %vm518, %v502
        %536 = vst.msk [vmem:[#allocation3 + $0x154] sm:$0xf] %vm518, %v503
        %537 = vst.msk [vmem:[#allocation3 + $0x168] sm:$0xf] %vm518, %v504
        %538 = vst.msk [vmem:[#allocation3 + $0x17c] sm:$0xf] %vm518, %v505
        %539 = vst.msk [vmem:[#allocation3 + $0x190] sm:$0xf] %vm518, %v506
        %540 = vst.msk [vmem:[#allocation3 + $0x1a4] sm:$0xf] %vm518, %v507
        %541 = vst.msk [vmem:[#allocation3 + $0x1b8] sm:$0xf] %vm518, %v508
        %542 = vst.msk [vmem:[#allocation3 + $0x1cc] sm:$0xf] %vm518, %v509
        %543 = vst.msk [vmem:[#allocation3 + $0x1e0] sm:$0xf] %vm518, %v510
        %544 = vst.msk [vmem:[#allocation3 + $0x1f4] sm:$0xf] %vm518, %v511
        %545 = vst.msk [vmem:[#allocation3 + $0x208] sm:$0xf] %vm518, %v512
        %546 = vst.msk [vmem:[#allocation3 + $0x21c] sm:$0xf] %vm518, %v513
        %547 = vst.msk [vmem:[#allocation3 + $0x230] sm:$0xf] %vm518, %v514
        %548 = vst.msk [vmem:[#allocation3 + $0x244] sm:$0xf] %vm518, %v515
        %549 = vst.msk [vmem:[#allocation3 + $0x258] sm:$0xf] %vm518, %v516
        %550 = vst.msk [vmem:[#allocation3 + $0x26c] sm:$0xf] %vm518, %v517
        %vm599 = vcmask 1046528
        %v600 = vrot.slane %v432, 1
        %v601 = vrot.slane %v433, 1
        %v602 = vsel %vm599, %v600, %v601
        %v603 = vrot.slane %v434, 1
        %v604 = vsel %vm599, %v601, %v603
        %v605 = vrot.slane %v435, 1
        %v606 = vrot.slane %v436, 1
        %v607 = vsel %vm599, %v605, %v606
        %v608 = vrot.slane %v437, 1
        %v609 = vsel %vm599, %v606, %v608
        %v610 = vrot.slane %v438, 1
        %v611 = vrot.slane %v439, 1
        %v612 = vsel %vm599, %v610, %v611
        %v613 = vrot.slane %v440, 1
        %v614 = vsel %vm599, %v611, %v613
        %v615 = vrot.slane %v441, 1
        %v616 = vrot.slane %v442, 1
        %v617 = vsel %vm599, %v615, %v616
        %v618 = vrot.slane %v443, 1
        %v619 = vsel %vm599, %v616, %v618
        %v620 = vrot.slane %v444, 1
        %v621 = vrot.slane %v445, 1
        %v622 = vsel %vm599, %v620, %v621
        %v623 = vrot.slane %v446, 1
        %v624 = vsel %vm599, %v621, %v623
        %v625 = vrot.slane %v447, 1
        %v626 = vrot.slane %v448, 1
        %v627 = vsel %vm599, %v625, %v626
        %v628 = vrot.slane %v449, 1
        %v629 = vsel %vm599, %v626, %v628
        %v630 = vrot.slane %v450, 1
        %v631 = vrot.slane %v451, 1
        %v632 = vsel %vm599, %v630, %v631
        %v633 = vrot.slane %v452, 1
        %v634 = vsel %vm599, %v631, %v633
        %v635 = vrot.slane %v453, 1
        %v636 = vrot.slane %v454, 1
        %v637 = vsel %vm599, %v635, %v636
        %v638 = vrot.slane %v455, 1
        %v639 = vsel %vm599, %v636, %v638
        %v640 = vrot.slane %v456, 1
        %v641 = vrot.slane %v457, 1
        %v642 = vsel %vm599, %v640, %v641
        %v643 = vrot.slane %v458, 1
        %v644 = vsel %vm599, %v641, %v643
        %v645 = vrot.slane %v459, 1
        %v646 = vrot.slane %v460, 1
        %v647 = vsel %vm599, %v645, %v646
        %v648 = vrot.slane %v461, 1
        %v649 = vsel %vm599, %v646, %v648
        %v650 = vrot.slane %v462, 1
        %v651 = vrot.slane %v463, 1
        %v652 = vsel %vm599, %v650, %v651
        %v653 = vrot.slane %v464, 1
        %v654 = vsel %vm599, %v651, %v653
        %v655 = vrot.slane %v465, 1
        %v656 = vrot.slane %v466, 1
        %v657 = vsel %vm599, %v655, %v656
        %v658 = vrot.slane %v467, 1
        %v659 = vsel %vm599, %v656, %v658
        %v660 = vrot.slane %v468, 1
        %v661 = vrot.slane %v469, 1
        %v662 = vsel %vm599, %v660, %v661
        %v663 = vrot.slane %v470, 1
        %v664 = vsel %vm599, %v661, %v663
        %v665 = vrot.slane %v471, 1
        %v666 = vrot.slane %v472, 1
        %v667 = vsel %vm599, %v665, %v666
        %v668 = vrot.slane %v473, 1
        %v669 = vsel %vm599, %v666, %v668
        %v670 = vrot.slane %v474, 1
        %v671 = vrot.slane %v475, 1
        %v672 = vsel %vm599, %v670, %v671
        %v673 = vrot.slane %v476, 1
        %v674 = vsel %vm599, %v671, %v673
        %v675 = vrot.slane %v477, 1
        %v676 = vrot.slane %v478, 1
        %v677 = vsel %vm599, %v675, %v676
        %v678 = vrot.slane %v479, 1
        %v679 = vsel %vm599, %v676, %v678
        %v712 = vpack.c.bf16 %v602, %v602
        %v713 = vpack.c.bf16 %v604, %v604
        %v714 = vpack.c.bf16 %v607, %v607
        %v715 = vpack.c.bf16 %v609, %v609
        %v716 = vpack.c.bf16 %v612, %v612
        %v717 = vpack.c.bf16 %v614, %v614
        %v718 = vpack.c.bf16 %v617, %v617
        %v719 = vpack.c.bf16 %v619, %v619
        %v720 = vpack.c.bf16 %v622, %v622
        %v721 = vpack.c.bf16 %v624, %v624
        %v722 = vpack.c.bf16 %v627, %v627
        %v723 = vpack.c.bf16 %v629, %v629
        %v724 = vpack.c.bf16 %v632, %v632
        %v725 = vpack.c.bf16 %v634, %v634
        %v726 = vpack.c.bf16 %v637, %v637
        %v727 = vpack.c.bf16 %v639, %v639
        %v728 = vpack.c.bf16 %v642, %v642
        %v729 = vpack.c.bf16 %v644, %v644
        %v730 = vpack.c.bf16 %v647, %v647
        %v731 = vpack.c.bf16 %v649, %v649
        %v732 = vpack.c.bf16 %v652, %v652
        %v733 = vpack.c.bf16 %v654, %v654
        %v734 = vpack.c.bf16 %v657, %v657
        %v735 = vpack.c.bf16 %v659, %v659
        %v736 = vpack.c.bf16 %v662, %v662
        %v737 = vpack.c.bf16 %v664, %v664
        %v738 = vpack.c.bf16 %v667, %v667
        %v739 = vpack.c.bf16 %v669, %v669
        %v740 = vpack.c.bf16 %v672, %v672
        %v741 = vpack.c.bf16 %v674, %v674
        %v742 = vpack.c.bf16 %v677, %v677
        %v743 = vpack.c.bf16 %v679, %v679
        %776 = vrot.lane.b32.xlu0 %v712, 64
        %v777 = vpop.permute.xlu0 %776
        %778 = vrot.lane.b32.xlu0 %v713, 64
        %v779 = vpop.permute.xlu0 %778
        %780 = vrot.lane.b32.xlu0 %v714, 64
        %v781 = vpop.permute.xlu0 %780
        %782 = vrot.lane.b32.xlu0 %v715, 64
        %v783 = vpop.permute.xlu0 %782
        %784 = vrot.lane.b32.xlu0 %v716, 64
        %v785 = vpop.permute.xlu0 %784
        %786 = vrot.lane.b32.xlu0 %v717, 64
        %v787 = vpop.permute.xlu0 %786
        %788 = vrot.lane.b32.xlu0 %v718, 64
        %v789 = vpop.permute.xlu0 %788
        %790 = vrot.lane.b32.xlu0 %v719, 64
        %v791 = vpop.permute.xlu0 %790
        %792 = vrot.lane.b32.xlu0 %v720, 64
        %v793 = vpop.permute.xlu0 %792
        %794 = vrot.lane.b32.xlu0 %v721, 64
        %v795 = vpop.permute.xlu0 %794
        %796 = vrot.lane.b32.xlu0 %v722, 64
        %v797 = vpop.permute.xlu0 %796
        %798 = vrot.lane.b32.xlu0 %v723, 64
        %v799 = vpop.permute.xlu0 %798
        %800 = vrot.lane.b32.xlu0 %v724, 64
        %v801 = vpop.permute.xlu0 %800
        %802 = vrot.lane.b32.xlu0 %v725, 64
        %v803 = vpop.permute.xlu0 %802
        %804 = vrot.lane.b32.xlu0 %v726, 64
        %v805 = vpop.permute.xlu0 %804
        %806 = vrot.lane.b32.xlu0 %v727, 64
        %v807 = vpop.permute.xlu0 %806
        %808 = vrot.lane.b32.xlu0 %v728, 64
        %v809 = vpop.permute.xlu0 %808
        %810 = vrot.lane.b32.xlu0 %v729, 64
        %v811 = vpop.permute.xlu0 %810
        %812 = vrot.lane.b32.xlu0 %v730, 64
        %v813 = vpop.permute.xlu0 %812
        %814 = vrot.lane.b32.xlu0 %v731, 64
        %v815 = vpop.permute.xlu0 %814
        %816 = vrot.lane.b32.xlu0 %v732, 64
        %v817 = vpop.permute.xlu0 %816
        %818 = vrot.lane.b32.xlu0 %v733, 64
        %v819 = vpop.permute.xlu0 %818
        %820 = vrot.lane.b32.xlu0 %v734, 64
        %v821 = vpop.permute.xlu0 %820
        %822 = vrot.lane.b32.xlu0 %v735, 64
        %v823 = vpop.permute.xlu0 %822
        %824 = vrot.lane.b32.xlu0 %v736, 64
        %v825 = vpop.permute.xlu0 %824
        %826 = vrot.lane.b32.xlu0 %v737, 64
        %v827 = vpop.permute.xlu0 %826
        %828 = vrot.lane.b32.xlu0 %v738, 64
        %v829 = vpop.permute.xlu0 %828
        %830 = vrot.lane.b32.xlu0 %v739, 64
        %v831 = vpop.permute.xlu0 %830
        %832 = vrot.lane.b32.xlu0 %v740, 64
        %v833 = vpop.permute.xlu0 %832
        %834 = vrot.lane.b32.xlu0 %v741, 64
        %v835 = vpop.permute.xlu0 %834
        %836 = vrot.lane.b32.xlu0 %v742, 64
        %v837 = vpop.permute.xlu0 %836
        %838 = vrot.lane.b32.xlu0 %v743, 64
        %v839 = vpop.permute.xlu0 %838
        %vm872 = vcmask 1043968
        %873 = vst.msk [vmem:[#allocation3] sm:$0xf] %vm872, %v777
        %874 = vst.msk [vmem:[#allocation3 + $0x14] sm:$0xf] %vm872, %v779
        %875 = vst.msk [vmem:[#allocation3 + $0x28] sm:$0xf] %vm872, %v781
        %876 = vst.msk [vmem:[#allocation3 + $0x3c] sm:$0xf] %vm872, %v783
        %877 = vst.msk [vmem:[#allocation3 + $0x50] sm:$0xf] %vm872, %v785
        %878 = vst.msk [vmem:[#allocation3 + $0x64] sm:$0xf] %vm872, %v787
        %879 = vst.msk [vmem:[#allocation3 + $0x78] sm:$0xf] %vm872, %v789
        %880 = vst.msk [vmem:[#allocation3 + $0x8c] sm:$0xf] %vm872, %v791
        %881 = vst.msk [vmem:[#allocation3 + $0xa0] sm:$0xf] %vm872, %v793
        %882 = vst.msk [vmem:[#allocation3 + $0xb4] sm:$0xf] %vm872, %v795
        %883 = vst.msk [vmem:[#allocation3 + $0xc8] sm:$0xf] %vm872, %v797
        %884 = vst.msk [vmem:[#allocation3 + $0xdc] sm:$0xf] %vm872, %v799
        %885 = vst.msk [vmem:[#allocation3 + $0xf0] sm:$0xf] %vm872, %v801
        %886 = vst.msk [vmem:[#allocation3 + $0x104] sm:$0xf] %vm872, %v803
        %887 = vst.msk [vmem:[#allocation3 + $0x118] sm:$0xf] %vm872, %v805
        %888 = vst.msk [vmem:[#allocation3 + $0x12c] sm:$0xf] %vm872, %v807
        %889 = vst.msk [vmem:[#allocation3 + $0x140] sm:$0xf] %vm872, %v809
        %890 = vst.msk [vmem:[#allocation3 + $0x154] sm:$0xf] %vm872, %v811
        %891 = vst.msk [vmem:[#allocation3 + $0x168] sm:$0xf] %vm872, %v813
        %892 = vst.msk [vmem:[#allocation3 + $0x17c] sm:$0xf] %vm872, %v815
        %893 = vst.msk [vmem:[#allocation3 + $0x190] sm:$0xf] %vm872, %v817
        %894 = vst.msk [vmem:[#allocation3 + $0x1a4] sm:$0xf] %vm872, %v819
        %895 = vst.msk [vmem:[#allocation3 + $0x1b8] sm:$0xf] %vm872, %v821
        %896 = vst.msk [vmem:[#allocation3 + $0x1cc] sm:$0xf] %vm872, %v823
        %897 = vst.msk [vmem:[#allocation3 + $0x1e0] sm:$0xf] %vm872, %v825
        %898 = vst.msk [vmem:[#allocation3 + $0x1f4] sm:$0xf] %vm872, %v827
        %899 = vst.msk [vmem:[#allocation3 + $0x208] sm:$0xf] %vm872, %v829
        %900 = vst.msk [vmem:[#allocation3 + $0x21c] sm:$0xf] %vm872, %v831
        %901 = vst.msk [vmem:[#allocation3 + $0x230] sm:$0xf] %vm872, %v833
        %902 = vst.msk [vmem:[#allocation3 + $0x244] sm:$0xf] %vm872, %v835
        %903 = vst.msk [vmem:[#allocation3 + $0x258] sm:$0xf] %vm872, %v837
        %904 = vst.msk [vmem:[#allocation3 + $0x26c] sm:$0xf] %vm872, %v839
        %vm905 = vcmask 1045504
        %v906 = vrot.slane %v432, 2
        %v907 = vrot.slane %v433, 2
        %v908 = vsel %vm905, %v906, %v907
        %v909 = vrot.slane %v434, 2
        %v910 = vsel %vm905, %v907, %v909
        %v911 = vrot.slane %v435, 2
        %v912 = vrot.slane %v436, 2
        %v913 = vsel %vm905, %v911, %v912
        %v914 = vrot.slane %v437, 2
        %v915 = vsel %vm905, %v912, %v914
        %v916 = vrot.slane %v438, 2
        %v917 = vrot.slane %v439, 2
        %v918 = vsel %vm905, %v916, %v917
        %v919 = vrot.slane %v440, 2
        %v920 = vsel %vm905, %v917, %v919
        %v921 = vrot.slane %v441, 2
        %v922 = vrot.slane %v442, 2
        %v923 = vsel %vm905, %v921, %v922
        %v924 = vrot.slane %v443, 2
        %v925 = vsel %vm905, %v922, %v924
        %v926 = vrot.slane %v444, 2
        %v927 = vrot.slane %v445, 2
        %v928 = vsel %vm905, %v926, %v927
        %v929 = vrot.slane %v446, 2
        %v930 = vsel %vm905, %v927, %v929
        %v931 = vrot.slane %v447, 2
        %v932 = vrot.slane %v448, 2
        %v933 = vsel %vm905, %v931, %v932
        %v934 = vrot.slane %v449, 2
        %v935 = vsel %vm905, %v932, %v934
        %v936 = vrot.slane %v450, 2
        %v937 = vrot.slane %v451, 2
        %v938 = vsel %vm905, %v936, %v937
        %v939 = vrot.slane %v452, 2
        %v940 = vsel %vm905, %v937, %v939
        %v941 = vrot.slane %v453, 2
        %v942 = vrot.slane %v454, 2
        %v943 = vsel %vm905, %v941, %v942
        %v944 = vrot.slane %v455, 2
        %v945 = vsel %vm905, %v942, %v944
        %v946 = vrot.slane %v456, 2
        %v947 = vrot.slane %v457, 2
        %v948 = vsel %vm905, %v946, %v947
        %v949 = vrot.slane %v458, 2
        %v950 = vsel %vm905, %v947, %v949
        %v951 = vrot.slane %v459, 2
        %v952 = vrot.slane %v460, 2
        %v953 = vsel %vm905, %v951, %v952
        %v954 = vrot.slane %v461, 2
        %v955 = vsel %vm905, %v952, %v954
        %v956 = vrot.slane %v462, 2
        %v957 = vrot.slane %v463, 2
        %v958 = vsel %vm905, %v956, %v957
        %v959 = vrot.slane %v464, 2
        %v960 = vsel %vm905, %v957, %v959
        %v961 = vrot.slane %v465, 2
        %v962 = vrot.slane %v466, 2
        %v963 = vsel %vm905, %v961, %v962
        %v964 = vrot.slane %v467, 2
        %v965 = vsel %vm905, %v962, %v964
        %v966 = vrot.slane %v468, 2
        %v967 = vrot.slane %v469, 2
        %v968 = vsel %vm905, %v966, %v967
        %v969 = vrot.slane %v470, 2
        %v970 = vsel %vm905, %v967, %v969
        %v971 = vrot.slane %v471, 2
        %v972 = vrot.slane %v472, 2
        %v973 = vsel %vm905, %v971, %v972
        %v974 = vrot.slane %v473, 2
        %v975 = vsel %vm905, %v972, %v974
        %v976 = vrot.slane %v474, 2
        %v977 = vrot.slane %v475, 2
        %v978 = vsel %vm905, %v976, %v977
        %v979 = vrot.slane %v476, 2
        %v980 = vsel %vm905, %v977, %v979
        %v981 = vrot.slane %v477, 2
        %v982 = vrot.slane %v478, 2
        %v983 = vsel %vm905, %v981, %v982
        %v984 = vrot.slane %v479, 2
        %v985 = vsel %vm905, %v982, %v984
        %v1018 = vpack.c.bf16 %v908, %v908
        %v1019 = vpack.c.bf16 %v910, %v910
        %v1020 = vpack.c.bf16 %v913, %v913
        %v1021 = vpack.c.bf16 %v915, %v915
        %v1022 = vpack.c.bf16 %v918, %v918
        %v1023 = vpack.c.bf16 %v920, %v920
        %v1024 = vpack.c.bf16 %v923, %v923
        %v1025 = vpack.c.bf16 %v925, %v925
        %v1026 = vpack.c.bf16 %v928, %v928
        %v1027 = vpack.c.bf16 %v930, %v930
        %v1028 = vpack.c.bf16 %v933, %v933
        %v1029 = vpack.c.bf16 %v935, %v935
        %v1030 = vpack.c.bf16 %v938, %v938
        %v1031 = vpack.c.bf16 %v940, %v940
        %v1032 = vpack.c.bf16 %v943, %v943
        %v1033 = vpack.c.bf16 %v945, %v945
        %v1034 = vpack.c.bf16 %v948, %v948
        %v1035 = vpack.c.bf16 %v950, %v950
        %v1036 = vpack.c.bf16 %v953, %v953
        %v1037 = vpack.c.bf16 %v955, %v955
        %v1038 = vpack.c.bf16 %v958, %v958
        %v1039 = vpack.c.bf16 %v960, %v960
        %v1040 = vpack.c.bf16 %v963, %v963
        %v1041 = vpack.c.bf16 %v965, %v965
        %v1042 = vpack.c.bf16 %v968, %v968
        %v1043 = vpack.c.bf16 %v970, %v970
        %v1044 = vpack.c.bf16 %v973, %v973
        %v1045 = vpack.c.bf16 %v975, %v975
        %v1046 = vpack.c.bf16 %v978, %v978
        %v1047 = vpack.c.bf16 %v980, %v980
        %v1048 = vpack.c.bf16 %v983, %v983
        %v1049 = vpack.c.bf16 %v985, %v985
        %1050 = vst.msk [vmem:[#allocation3 + $0x4] sm:$0xf] %vm518, %v1018
        %1051 = vst.msk [vmem:[#allocation3 + $0x18] sm:$0xf] %vm518, %v1019
        %1052 = vst.msk [vmem:[#allocation3 + $0x2c] sm:$0xf] %vm518, %v1020
        %1053 = vst.msk [vmem:[#allocation3 + $0x40] sm:$0xf] %vm518, %v1021
        %1054 = vst.msk [vmem:[#allocation3 + $0x54] sm:$0xf] %vm518, %v1022
        %1055 = vst.msk [vmem:[#allocation3 + $0x68] sm:$0xf] %vm518, %v1023
        %1056 = vst.msk [vmem:[#allocation3 + $0x7c] sm:$0xf] %vm518, %v1024
        %1057 = vst.msk [vmem:[#allocation3 + $0x90] sm:$0xf] %vm518, %v1025
        %1058 = vst.msk [vmem:[#allocation3 + $0xa4] sm:$0xf] %vm518, %v1026
        %1059 = vst.msk [vmem:[#allocation3 + $0xb8] sm:$0xf] %vm518, %v1027
        %1060 = vst.msk [vmem:[#allocation3 + $0xcc] sm:$0xf] %vm518, %v1028
        %1061 = vst.msk [vmem:[#allocation3 + $0xe0] sm:$0xf] %vm518, %v1029
        %1062 = vst.msk [vmem:[#allocation3 + $0xf4] sm:$0xf] %vm518, %v1030
        %1063 = vst.msk [vmem:[#allocation3 + $0x108] sm:$0xf] %vm518, %v1031
        %1064 = vst.msk [vmem:[#allocation3 + $0x11c] sm:$0xf] %vm518, %v1032
        %1065 = vst.msk [vmem:[#allocation3 + $0x130] sm:$0xf] %vm518, %v1033
        %1066 = vst.msk [vmem:[#allocation3 + $0x144] sm:$0xf] %vm518, %v1034
        %1067 = vst.msk [vmem:[#allocation3 + $0x158] sm:$0xf] %vm518, %v1035
        %1068 = vst.msk [vmem:[#allocation3 + $0x16c] sm:$0xf] %vm518, %v1036
        %1069 = vst.msk [vmem:[#allocation3 + $0x180] sm:$0xf] %vm518, %v1037
        %1070 = vst.msk [vmem:[#allocation3 + $0x194] sm:$0xf] %vm518, %v1038
        %1071 = vst.msk [vmem:[#allocation3 + $0x1a8] sm:$0xf] %vm518, %v1039
        %1072 = vst.msk [vmem:[#allocation3 + $0x1bc] sm:$0xf] %vm518, %v1040
        %1073 = vst.msk [vmem:[#allocation3 + $0x1d0] sm:$0xf] %vm518, %v1041
        %1074 = vst.msk [vmem:[#allocation3 + $0x1e4] sm:$0xf] %vm518, %v1042
        %1075 = vst.msk [vmem:[#allocation3 + $0x1f8] sm:$0xf] %vm518, %v1043
        %1076 = vst.msk [vmem:[#allocation3 + $0x20c] sm:$0xf] %vm518, %v1044
        %1077 = vst.msk [vmem:[#allocation3 + $0x220] sm:$0xf] %vm518, %v1045
        %1078 = vst.msk [vmem:[#allocation3 + $0x234] sm:$0xf] %vm518, %v1046
        %1079 = vst.msk [vmem:[#allocation3 + $0x248] sm:$0xf] %vm518, %v1047
        %1080 = vst.msk [vmem:[#allocation3 + $0x25c] sm:$0xf] %vm518, %v1048
        %1081 = vst.msk [vmem:[#allocation3 + $0x270] sm:$0xf] %vm518, %v1049
        %v1082 = vpack.c.bf16 %v480, %v480
        %v1083 = vpack.c.bf16 %v481, %v481
        %1116 = vrot.lane.b32.xlu0 %v488, 64
        %v1117 = vpop.permute.xlu0 %1116
        %1118 = vrot.lane.b32.xlu0 %v489, 64
        %v1119 = vpop.permute.xlu0 %1118
        %1120 = vrot.lane.b32.xlu0 %v490, 64
        %v1121 = vpop.permute.xlu0 %1120
        %1122 = vrot.lane.b32.xlu0 %v491, 64
        %v1123 = vpop.permute.xlu0 %1122
        %1124 = vrot.lane.b32.xlu0 %v492, 64
        %v1125 = vpop.permute.xlu0 %1124
        %1126 = vrot.lane.b32.xlu0 %v493, 64
        %v1127 = vpop.permute.xlu0 %1126
        %1128 = vrot.lane.b32.xlu0 %v494, 64
        %v1129 = vpop.permute.xlu0 %1128
        %1130 = vrot.lane.b32.xlu0 %v495, 64
        %v1131 = vpop.permute.xlu0 %1130
        %1132 = vrot.lane.b32.xlu0 %v496, 64
        %v1133 = vpop.permute.xlu0 %1132
        %1134 = vrot.lane.b32.xlu0 %v497, 64
        %v1135 = vpop.permute.xlu0 %1134
        %1136 = vrot.lane.b32.xlu0 %v498, 64
        %v1137 = vpop.permute.xlu0 %1136
        %1138 = vrot.lane.b32.xlu0 %v499, 64
        %v1139 = vpop.permute.xlu0 %1138
        %1140 = vrot.lane.b32.xlu0 %v500, 64
        %v1141 = vpop.permute.xlu0 %1140
        %1142 = vrot.lane.b32.xlu0 %v501, 64
        %v1143 = vpop.permute.xlu0 %1142
        %1144 = vrot.lane.b32.xlu0 %v502, 64
        %v1145 = vpop.permute.xlu0 %1144
        %1146 = vrot.lane.b32.xlu0 %v503, 64
        %v1147 = vpop.permute.xlu0 %1146
        %1148 = vrot.lane.b32.xlu0 %v504, 64
        %v1149 = vpop.permute.xlu0 %1148
        %1150 = vrot.lane.b32.xlu0 %v505, 64
        %v1151 = vpop.permute.xlu0 %1150
        %1152 = vrot.lane.b32.xlu0 %v506, 64
        %v1153 = vpop.permute.xlu0 %1152
        %1154 = vrot.lane.b32.xlu0 %v507, 64
        %v1155 = vpop.permute.xlu0 %1154
        %1156 = vrot.lane.b32.xlu0 %v508, 64
        %v1157 = vpop.permute.xlu0 %1156
        %1158 = vrot.lane.b32.xlu0 %v509, 64
        %v1159 = vpop.permute.xlu0 %1158
        %1160 = vrot.lane.b32.xlu0 %v510, 64
        %v1161 = vpop.permute.xlu0 %1160
        %1162 = vrot.lane.b32.xlu0 %v511, 64
        %v1163 = vpop.permute.xlu0 %1162
        %1164 = vrot.lane.b32.xlu0 %v512, 64
        %v1165 = vpop.permute.xlu0 %1164
        %1166 = vrot.lane.b32.xlu0 %v513, 64
        %v1167 = vpop.permute.xlu0 %1166
        %1168 = vrot.lane.b32.xlu0 %v514, 64
        %v1169 = vpop.permute.xlu0 %1168
        %1170 = vrot.lane.b32.xlu0 %v515, 64
        %v1171 = vpop.permute.xlu0 %1170
        %1172 = vrot.lane.b32.xlu0 %v516, 64
        %v1173 = vpop.permute.xlu0 %1172
        %1174 = vrot.lane.b32.xlu0 %v517, 64
        %v1175 = vpop.permute.xlu0 %1174
        %1176 = vrot.lane.b32.xlu0 %v1082, 64
        %v1177 = vpop.permute.xlu0 %1176
        %1178 = vrot.lane.b32.xlu0 %v1083, 64
        %v1179 = vpop.permute.xlu0 %1178
        %1212 = vst.msk [vmem:[#allocation3 + $0x4] sm:$0xf] %vm872, %v1117
        %1213 = vst.msk [vmem:[#allocation3 + $0x18] sm:$0xf] %vm872, %v1119
        %1214 = vst.msk [vmem:[#allocation3 + $0x2c] sm:$0xf] %vm872, %v1121
        %1215 = vst.msk [vmem:[#allocation3 + $0x40] sm:$0xf] %vm872, %v1123
        %1216 = vst.msk [vmem:[#allocation3 + $0x54] sm:$0xf] %vm872, %v1125
        %1217 = vst.msk [vmem:[#allocation3 + $0x68] sm:$0xf] %vm872, %v1127
        %1218 = vst.msk [vmem:[#allocation3 + $0x7c] sm:$0xf] %vm872, %v1129
        %1219 = vst.msk [vmem:[#allocation3 + $0x90] sm:$0xf] %vm872, %v1131
        %1220 = vst.msk [vmem:[#allocation3 + $0xa4] sm:$0xf] %vm872, %v1133
        %1221 = vst.msk [vmem:[#allocation3 + $0xb8] sm:$0xf] %vm872, %v1135
        %1222 = vst.msk [vmem:[#allocation3 + $0xcc] sm:$0xf] %vm872, %v1137
        %1223 = vst.msk [vmem:[#allocation3 + $0xe0] sm:$0xf] %vm872, %v1139
        %1224 = vst.msk [vmem:[#allocation3 + $0xf4] sm:$0xf] %vm872, %v1141
        %1225 = vst.msk [vmem:[#allocation3 + $0x108] sm:$0xf] %vm872, %v1143
        %1226 = vst.msk [vmem:[#allocation3 + $0x11c] sm:$0xf] %vm872, %v1145
        %1227 = vst.msk [vmem:[#allocation3 + $0x130] sm:$0xf] %vm872, %v1147
        %1228 = vst.msk [vmem:[#allocation3 + $0x144] sm:$0xf] %vm872, %v1149
        %1229 = vst.msk [vmem:[#allocation3 + $0x158] sm:$0xf] %vm872, %v1151
        %1230 = vst.msk [vmem:[#allocation3 + $0x16c] sm:$0xf] %vm872, %v1153
        %1231 = vst.msk [vmem:[#allocation3 + $0x180] sm:$0xf] %vm872, %v1155
        %1232 = vst.msk [vmem:[#allocation3 + $0x194] sm:$0xf] %vm872, %v1157
        %1233 = vst.msk [vmem:[#allocation3 + $0x1a8] sm:$0xf] %vm872, %v1159
        %1234 = vst.msk [vmem:[#allocation3 + $0x1bc] sm:$0xf] %vm872, %v1161
        %1235 = vst.msk [vmem:[#allocation3 + $0x1d0] sm:$0xf] %vm872, %v1163
        %1236 = vst.msk [vmem:[#allocation3 + $0x1e4] sm:$0xf] %vm872, %v1165
        %1237 = vst.msk [vmem:[#allocation3 + $0x1f8] sm:$0xf] %vm872, %v1167
        %1238 = vst.msk [vmem:[#allocation3 + $0x20c] sm:$0xf] %vm872, %v1169
        %1239 = vst.msk [vmem:[#allocation3 + $0x220] sm:$0xf] %vm872, %v1171
        %1240 = vst.msk [vmem:[#allocation3 + $0x234] sm:$0xf] %vm872, %v1173
        %1241 = vst.msk [vmem:[#allocation3 + $0x248] sm:$0xf] %vm872, %v1175
        %1242 = vst.msk [vmem:[#allocation3 + $0x25c] sm:$0xf] %vm872, %v1177
        %1243 = vst.msk [vmem:[#allocation3 + $0x270] sm:$0xf] %vm872, %v1179
        %v1247 = vrot.slane %v480, 1
        %v1248 = vrot.slane %v481, 1
        %v1249 = vsel %vm599, %v1247, %v1248
        %v1250 = vrot.slane %v482, 1
        %v1251 = vsel %vm599, %v1248, %v1250
        %v1254 = vpack.c.bf16 %v1249, %v1249
        %v1255 = vpack.c.bf16 %v1251, %v1251
        %1256 = vst.msk [vmem:[#allocation3 + $0x8] sm:$0xf] %vm518, %v714
        %1257 = vst.msk [vmem:[#allocation3 + $0x1c] sm:$0xf] %vm518, %v715
        %1258 = vst.msk [vmem:[#allocation3 + $0x30] sm:$0xf] %vm518, %v716
        %1259 = vst.msk [vmem:[#allocation3 + $0x44] sm:$0xf] %vm518, %v717
        %1260 = vst.msk [vmem:[#allocation3 + $0x58] sm:$0xf] %vm518, %v718
        %1261 = vst.msk [vmem:[#allocation3 + $0x6c] sm:$0xf] %vm518, %v719
        %1262 = vst.msk [vmem:[#allocation3 + $0x80] sm:$0xf] %vm518, %v720
        %1263 = vst.msk [vmem:[#allocation3 + $0x94] sm:$0xf] %vm518, %v721
        %1264 = vst.msk [vmem:[#allocation3 + $0xa8] sm:$0xf] %vm518, %v722
        %1265 = vst.msk [vmem:[#allocation3 + $0xbc] sm:$0xf] %vm518, %v723
        %1266 = vst.msk [vmem:[#allocation3 + $0xd0] sm:$0xf] %vm518, %v724
        %1267 = vst.msk [vmem:[#allocation3 + $0xe4] sm:$0xf] %vm518, %v725
        %1268 = vst.msk [vmem:[#allocation3 + $0xf8] sm:$0xf] %vm518, %v726
        %1269 = vst.msk [vmem:[#allocation3 + $0x10c] sm:$0xf] %vm518, %v727
        %1270 = vst.msk [vmem:[#allocation3 + $0x120] sm:$0xf] %vm518, %v728
        %1271 = vst.msk [vmem:[#allocation3 + $0x134] sm:$0xf] %vm518, %v729
        %1272 = vst.msk [vmem:[#allocation3 + $0x148] sm:$0xf] %vm518, %v730
        %1273 = vst.msk [vmem:[#allocation3 + $0x15c] sm:$0xf] %vm518, %v731
        %1274 = vst.msk [vmem:[#allocation3 + $0x170] sm:$0xf] %vm518, %v732
        %1275 = vst.msk [vmem:[#allocation3 + $0x184] sm:$0xf] %vm518, %v733
        %1276 = vst.msk [vmem:[#allocation3 + $0x198] sm:$0xf] %vm518, %v734
        %1277 = vst.msk [vmem:[#allocation3 + $0x1ac] sm:$0xf] %vm518, %v735
        %1278 = vst.msk [vmem:[#allocation3 + $0x1c0] sm:$0xf] %vm518, %v736
        %1279 = vst.msk [vmem:[#allocation3 + $0x1d4] sm:$0xf] %vm518, %v737
        %1280 = vst.msk [vmem:[#allocation3 + $0x1e8] sm:$0xf] %vm518, %v738
        %1281 = vst.msk [vmem:[#allocation3 + $0x1fc] sm:$0xf] %vm518, %v739
        %1282 = vst.msk [vmem:[#allocation3 + $0x210] sm:$0xf] %vm518, %v740
        %1283 = vst.msk [vmem:[#allocation3 + $0x224] sm:$0xf] %vm518, %v741
        %1284 = vst.msk [vmem:[#allocation3 + $0x238] sm:$0xf] %vm518, %v742
        %1285 = vst.msk [vmem:[#allocation3 + $0x24c] sm:$0xf] %vm518, %v743
        %1286 = vst.msk [vmem:[#allocation3 + $0x260] sm:$0xf] %vm518, %v1254
        %1287 = vst.msk [vmem:[#allocation3 + $0x274] sm:$0xf] %vm518, %v1255
        %v1288 = vrot.slane %v480, 2
        %v1289 = vrot.slane %v481, 2
        %v1290 = vsel %vm905, %v1288, %v1289
        %v1291 = vrot.slane %v482, 2
        %v1292 = vsel %vm905, %v1289, %v1291
        %v1295 = vpack.c.bf16 %v1290, %v1290
        %v1296 = vpack.c.bf16 %v1292, %v1292
        %1329 = vrot.lane.b32.xlu0 %v1020, 64
        %v1330 = vpop.permute.xlu0 %1329
        %1331 = vrot.lane.b32.xlu0 %v1021, 64
        %v1332 = vpop.permute.xlu0 %1331
        %1333 = vrot.lane.b32.xlu0 %v1022, 64
        %v1334 = vpop.permute.xlu0 %1333
        %1335 = vrot.lane.b32.xlu0 %v1023, 64
        %v1336 = vpop.permute.xlu0 %1335
        %1337 = vrot.lane.b32.xlu0 %v1024, 64
        %v1338 = vpop.permute.xlu0 %1337
        %1339 = vrot.lane.b32.xlu0 %v1025, 64
        %v1340 = vpop.permute.xlu0 %1339
        %1341 = vrot.lane.b32.xlu0 %v1026, 64
        %v1342 = vpop.permute.xlu0 %1341
        %1343 = vrot.lane.b32.xlu0 %v1027, 64
        %v1344 = vpop.permute.xlu0 %1343
        %1345 = vrot.lane.b32.xlu0 %v1028, 64
        %v1346 = vpop.permute.xlu0 %1345
        %1347 = vrot.lane.b32.xlu0 %v1029, 64
        %v1348 = vpop.permute.xlu0 %1347
        %1349 = vrot.lane.b32.xlu0 %v1030, 64
        %v1350 = vpop.permute.xlu0 %1349
        %1351 = vrot.lane.b32.xlu0 %v1031, 64
        %v1352 = vpop.permute.xlu0 %1351
        %1353 = vrot.lane.b32.xlu0 %v1032, 64
        %v1354 = vpop.permute.xlu0 %1353
        %1355 = vrot.lane.b32.xlu0 %v1033, 64
        %v1356 = vpop.permute.xlu0 %1355
        %1357 = vrot.lane.b32.xlu0 %v1034, 64
        %v1358 = vpop.permute.xlu0 %1357
        %1359 = vrot.lane.b32.xlu0 %v1035, 64
        %v1360 = vpop.permute.xlu0 %1359
        %1361 = vrot.lane.b32.xlu0 %v1036, 64
        %v1362 = vpop.permute.xlu0 %1361
        %1363 = vrot.lane.b32.xlu0 %v1037, 64
        %v1364 = vpop.permute.xlu0 %1363
        %1365 = vrot.lane.b32.xlu0 %v1038, 64
        %v1366 = vpop.permute.xlu0 %1365
        %1367 = vrot.lane.b32.xlu0 %v1039, 64
        %v1368 = vpop.permute.xlu0 %1367
        %1369 = vrot.lane.b32.xlu0 %v1040, 64
        %v1370 = vpop.permute.xlu0 %1369
        %1371 = vrot.lane.b32.xlu0 %v1041, 64
        %v1372 = vpop.permute.xlu0 %1371
        %1373 = vrot.lane.b32.xlu0 %v1042, 64
        %v1374 = vpop.permute.xlu0 %1373
        %1375 = vrot.lane.b32.xlu0 %v1043, 64
        %v1376 = vpop.permute.xlu0 %1375
        %1377 = vrot.lane.b32.xlu0 %v1044, 64
        %v1378 = vpop.permute.xlu0 %1377
        %1379 = vrot.lane.b32.xlu0 %v1045, 64
        %v1380 = vpop.permute.xlu0 %1379
        %1381 = vrot.lane.b32.xlu0 %v1046, 64
        %v1382 = vpop.permute.xlu0 %1381
        %1383 = vrot.lane.b32.xlu0 %v1047, 64
        %v1384 = vpop.permute.xlu0 %1383
        %1385 = vrot.lane.b32.xlu0 %v1048, 64
        %v1386 = vpop.permute.xlu0 %1385
        %1387 = vrot.lane.b32.xlu0 %v1049, 64
        %v1388 = vpop.permute.xlu0 %1387
        %1389 = vrot.lane.b32.xlu0 %v1295, 64
        %v1390 = vpop.permute.xlu0 %1389
        %1391 = vrot.lane.b32.xlu0 %v1296, 64
        %v1392 = vpop.permute.xlu0 %1391
        %1425 = vst.msk [vmem:[#allocation3 + $0x8] sm:$0xf] %vm872, %v1330
        %1426 = vst.msk [vmem:[#allocation3 + $0x1c] sm:$0xf] %vm872, %v1332
        %1427 = vst.msk [vmem:[#allocation3 + $0x30] sm:$0xf] %vm872, %v1334
        %1428 = vst.msk [vmem:[#allocation3 + $0x44] sm:$0xf] %vm872, %v1336
        %1429 = vst.msk [vmem:[#allocation3 + $0x58] sm:$0xf] %vm872, %v1338
        %1430 = vst.msk [vmem:[#allocation3 + $0x6c] sm:$0xf] %vm872, %v1340
        %1431 = vst.msk [vmem:[#allocation3 + $0x80] sm:$0xf] %vm872, %v1342
        %1432 = vst.msk [vmem:[#allocation3 + $0x94] sm:$0xf] %vm872, %v1344
        %1433 = vst.msk [vmem:[#allocation3 + $0xa8] sm:$0xf] %vm872, %v1346
        %1434 = vst.msk [vmem:[#allocation3 + $0xbc] sm:$0xf] %vm872, %v1348
        %1435 = vst.msk [vmem:[#allocation3 + $0xd0] sm:$0xf] %vm872, %v1350
        %1436 = vst.msk [vmem:[#allocation3 + $0xe4] sm:$0xf] %vm872, %v1352
        %1437 = vst.msk [vmem:[#allocation3 + $0xf8] sm:$0xf] %vm872, %v1354
        %1438 = vst.msk [vmem:[#allocation3 + $0x10c] sm:$0xf] %vm872, %v1356
        %1439 = vst.msk [vmem:[#allocation3 + $0x120] sm:$0xf] %vm872, %v1358
        %1440 = vst.msk [vmem:[#allocation3 + $0x134] sm:$0xf] %vm872, %v1360
        %1441 = vst.msk [vmem:[#allocation3 + $0x148] sm:$0xf] %vm872, %v1362
        %1442 = vst.msk [vmem:[#allocation3 + $0x15c] sm:$0xf] %vm872, %v1364
        %1443 = vst.msk [vmem:[#allocation3 + $0x170] sm:$0xf] %vm872, %v1366
        %1444 = vst.msk [vmem:[#allocation3 + $0x184] sm:$0xf] %vm872, %v1368
        %1445 = vst.msk [vmem:[#allocation3 + $0x198] sm:$0xf] %vm872, %v1370
        %1446 = vst.msk [vmem:[#allocation3 + $0x1ac] sm:$0xf] %vm872, %v1372
        %1447 = vst.msk [vmem:[#allocation3 + $0x1c0] sm:$0xf] %vm872, %v1374
        %1448 = vst.msk [vmem:[#allocation3 + $0x1d4] sm:$0xf] %vm872, %v1376
        %1449 = vst.msk [vmem:[#allocation3 + $0x1e8] sm:$0xf] %vm872, %v1378
        %1450 = vst.msk [vmem:[#allocation3 + $0x1fc] sm:$0xf] %vm872, %v1380
        %1451 = vst.msk [vmem:[#allocation3 + $0x210] sm:$0xf] %vm872, %v1382
        %1452 = vst.msk [vmem:[#allocation3 + $0x224] sm:$0xf] %vm872, %v1384
        %1453 = vst.msk [vmem:[#allocation3 + $0x238] sm:$0xf] %vm872, %v1386
        %1454 = vst.msk [vmem:[#allocation3 + $0x24c] sm:$0xf] %vm872, %v1388
        %1455 = vst.msk [vmem:[#allocation3 + $0x260] sm:$0xf] %vm872, %v1390
        %1456 = vst.msk [vmem:[#allocation3 + $0x274] sm:$0xf] %vm872, %v1392
        %v1457 = vpack.c.bf16 %v483, %v483
        %v1458 = vpack.c.bf16 %v484, %v484
        %1459 = vst.msk [vmem:[#allocation3 + $0xc] sm:$0xf] %vm518, %v490
        %1460 = vst.msk [vmem:[#allocation3 + $0x20] sm:$0xf] %vm518, %v491
        %1461 = vst.msk [vmem:[#allocation3 + $0x34] sm:$0xf] %vm518, %v492
        %1462 = vst.msk [vmem:[#allocation3 + $0x48] sm:$0xf] %vm518, %v493
        %1463 = vst.msk [vmem:[#allocation3 + $0x5c] sm:$0xf] %vm518, %v494
        %1464 = vst.msk [vmem:[#allocation3 + $0x70] sm:$0xf] %vm518, %v495
        %1465 = vst.msk [vmem:[#allocation3 + $0x84] sm:$0xf] %vm518, %v496
        %1466 = vst.msk [vmem:[#allocation3 + $0x98] sm:$0xf] %vm518, %v497
        %1467 = vst.msk [vmem:[#allocation3 + $0xac] sm:$0xf] %vm518, %v498
        %1468 = vst.msk [vmem:[#allocation3 + $0xc0] sm:$0xf] %vm518, %v499
        %1469 = vst.msk [vmem:[#allocation3 + $0xd4] sm:$0xf] %vm518, %v500
        %1470 = vst.msk [vmem:[#allocation3 + $0xe8] sm:$0xf] %vm518, %v501
        %1471 = vst.msk [vmem:[#allocation3 + $0xfc] sm:$0xf] %vm518, %v502
        %1472 = vst.msk [vmem:[#allocation3 + $0x110] sm:$0xf] %vm518, %v503
        %1473 = vst.msk [vmem:[#allocation3 + $0x124] sm:$0xf] %vm518, %v504
        %1474 = vst.msk [vmem:[#allocation3 + $0x138] sm:$0xf] %vm518, %v505
        %1475 = vst.msk [vmem:[#allocation3 + $0x14c] sm:$0xf] %vm518, %v506
        %1476 = vst.msk [vmem:[#allocation3 + $0x160] sm:$0xf] %vm518, %v507
        %1477 = vst.msk [vmem:[#allocation3 + $0x174] sm:$0xf] %vm518, %v508
        %1478 = vst.msk [vmem:[#allocation3 + $0x188] sm:$0xf] %vm518, %v509
        %1479 = vst.msk [vmem:[#allocation3 + $0x19c] sm:$0xf] %vm518, %v510
        %1480 = vst.msk [vmem:[#allocation3 + $0x1b0] sm:$0xf] %vm518, %v511
        %1481 = vst.msk [vmem:[#allocation3 + $0x1c4] sm:$0xf] %vm518, %v512
        %1482 = vst.msk [vmem:[#allocation3 + $0x1d8] sm:$0xf] %vm518, %v513
        %1483 = vst.msk [vmem:[#allocation3 + $0x1ec] sm:$0xf] %vm518, %v514
        %1484 = vst.msk [vmem:[#allocation3 + $0x200] sm:$0xf] %vm518, %v515
        %1485 = vst.msk [vmem:[#allocation3 + $0x214] sm:$0xf] %vm518, %v516
        %1486 = vst.msk [vmem:[#allocation3 + $0x228] sm:$0xf] %vm518, %v517
        %1487 = vst.msk [vmem:[#allocation3 + $0x23c] sm:$0xf] %vm518, %v1082
        %1488 = vst.msk [vmem:[#allocation3 + $0x250] sm:$0xf] %vm518, %v1083
        %1489 = vst.msk [vmem:[#allocation3 + $0x264] sm:$0xf] %vm518, %v1457
        %1490 = vst.msk [vmem:[#allocation3 + $0x278] sm:$0xf] %vm518, %v1458
        %v1494 = vrot.slane %v483, 1
        %v1495 = vrot.slane %v484, 1
        %v1496 = vsel %vm599, %v1494, %v1495
        %v1497 = vrot.slane %v485, 1
        %v1498 = vsel %vm599, %v1495, %v1497
        %v1501 = vpack.c.bf16 %v1496, %v1496
        %v1502 = vpack.c.bf16 %v1498, %v1498
        %1507 = vrot.lane.b32.xlu0 %v1254, 64
        %v1508 = vpop.permute.xlu0 %1507
        %1509 = vrot.lane.b32.xlu0 %v1255, 64
        %v1510 = vpop.permute.xlu0 %1509
        %1511 = vrot.lane.b32.xlu0 %v1501, 64
        %v1512 = vpop.permute.xlu0 %1511
        %1513 = vrot.lane.b32.xlu0 %v1502, 64
        %v1514 = vpop.permute.xlu0 %1513
        %1519 = vst.msk [vmem:[#allocation3 + $0xc] sm:$0xf] %vm872, %v785
        %1520 = vst.msk [vmem:[#allocation3 + $0x20] sm:$0xf] %vm872, %v787
        %1521 = vst.msk [vmem:[#allocation3 + $0x34] sm:$0xf] %vm872, %v789
        %1522 = vst.msk [vmem:[#allocation3 + $0x48] sm:$0xf] %vm872, %v791
        %1523 = vst.msk [vmem:[#allocation3 + $0x5c] sm:$0xf] %vm872, %v793
        %1524 = vst.msk [vmem:[#allocation3 + $0x70] sm:$0xf] %vm872, %v795
        %1525 = vst.msk [vmem:[#allocation3 + $0x84] sm:$0xf] %vm872, %v797
        %1526 = vst.msk [vmem:[#allocation3 + $0x98] sm:$0xf] %vm872, %v799
        %1527 = vst.msk [vmem:[#allocation3 + $0xac] sm:$0xf] %vm872, %v801
        %1528 = vst.msk [vmem:[#allocation3 + $0xc0] sm:$0xf] %vm872, %v803
        %1529 = vst.msk [vmem:[#allocation3 + $0xd4] sm:$0xf] %vm872, %v805
        %1530 = vst.msk [vmem:[#allocation3 + $0xe8] sm:$0xf] %vm872, %v807
        %1531 = vst.msk [vmem:[#allocation3 + $0xfc] sm:$0xf] %vm872, %v809
        %1532 = vst.msk [vmem:[#allocation3 + $0x110] sm:$0xf] %vm872, %v811
        %1533 = vst.msk [vmem:[#allocation3 + $0x124] sm:$0xf] %vm872, %v813
        %1534 = vst.msk [vmem:[#allocation3 + $0x138] sm:$0xf] %vm872, %v815
        %1535 = vst.msk [vmem:[#allocation3 + $0x14c] sm:$0xf] %vm872, %v817
        %1536 = vst.msk [vmem:[#allocation3 + $0x160] sm:$0xf] %vm872, %v819
        %1537 = vst.msk [vmem:[#allocation3 + $0x174] sm:$0xf] %vm872, %v821
        %1538 = vst.msk [vmem:[#allocation3 + $0x188] sm:$0xf] %vm872, %v823
        %1539 = vst.msk [vmem:[#allocation3 + $0x19c] sm:$0xf] %vm872, %v825
        %1540 = vst.msk [vmem:[#allocation3 + $0x1b0] sm:$0xf] %vm872, %v827
        %1541 = vst.msk [vmem:[#allocation3 + $0x1c4] sm:$0xf] %vm872, %v829
        %1542 = vst.msk [vmem:[#allocation3 + $0x1d8] sm:$0xf] %vm872, %v831
        %1543 = vst.msk [vmem:[#allocation3 + $0x1ec] sm:$0xf] %vm872, %v833
        %1544 = vst.msk [vmem:[#allocation3 + $0x200] sm:$0xf] %vm872, %v835
        %1545 = vst.msk [vmem:[#allocation3 + $0x214] sm:$0xf] %vm872, %v837
        %1546 = vst.msk [vmem:[#allocation3 + $0x228] sm:$0xf] %vm872, %v839
        %1547 = vst.msk [vmem:[#allocation3 + $0x23c] sm:$0xf] %vm872, %v1508
        %1548 = vst.msk [vmem:[#allocation3 + $0x250] sm:$0xf] %vm872, %v1510
        %1549 = vst.msk [vmem:[#allocation3 + $0x264] sm:$0xf] %vm872, %v1512
        %1550 = vst.msk [vmem:[#allocation3 + $0x278] sm:$0xf] %vm872, %v1514
        %v1551 = vrot.slane %v483, 2
        %v1552 = vrot.slane %v484, 2
        %v1553 = vsel %vm905, %v1551, %v1552
        %v1554 = vrot.slane %v485, 2
        %v1555 = vsel %vm905, %v1552, %v1554
        %v1558 = vpack.c.bf16 %v1553, %v1553
        %v1559 = vpack.c.bf16 %v1555, %v1555
        %1560 = vst.msk [vmem:[#allocation3 + $0x10] sm:$0xf] %vm518, %v1022
        %1561 = vst.msk [vmem:[#allocation3 + $0x24] sm:$0xf] %vm518, %v1023
        %1562 = vst.msk [vmem:[#allocation3 + $0x38] sm:$0xf] %vm518, %v1024
        %1563 = vst.msk [vmem:[#allocation3 + $0x4c] sm:$0xf] %vm518, %v1025
        %1564 = vst.msk [vmem:[#allocation3 + $0x60] sm:$0xf] %vm518, %v1026
        %1565 = vst.msk [vmem:[#allocation3 + $0x74] sm:$0xf] %vm518, %v1027
        %1566 = vst.msk [vmem:[#allocation3 + $0x88] sm:$0xf] %vm518, %v1028
        %1567 = vst.msk [vmem:[#allocation3 + $0x9c] sm:$0xf] %vm518, %v1029
        %1568 = vst.msk [vmem:[#allocation3 + $0xb0] sm:$0xf] %vm518, %v1030
        %1569 = vst.msk [vmem:[#allocation3 + $0xc4] sm:$0xf] %vm518, %v1031
        %1570 = vst.msk [vmem:[#allocation3 + $0xd8] sm:$0xf] %vm518, %v1032
        %1571 = vst.msk [vmem:[#allocation3 + $0xec] sm:$0xf] %vm518, %v1033
        %1572 = vst.msk [vmem:[#allocation3 + $0x100] sm:$0xf] %vm518, %v1034
        %1573 = vst.msk [vmem:[#allocation3 + $0x114] sm:$0xf] %vm518, %v1035
        %1574 = vst.msk [vmem:[#allocation3 + $0x128] sm:$0xf] %vm518, %v1036
        %1575 = vst.msk [vmem:[#allocation3 + $0x13c] sm:$0xf] %vm518, %v1037
        %1576 = vst.msk [vmem:[#allocation3 + $0x150] sm:$0xf] %vm518, %v1038
        %1577 = vst.msk [vmem:[#allocation3 + $0x164] sm:$0xf] %vm518, %v1039
        %1578 = vst.msk [vmem:[#allocation3 + $0x178] sm:$0xf] %vm518, %v1040
        %1579 = vst.msk [vmem:[#allocation3 + $0x18c] sm:$0xf] %vm518, %v1041
        %1580 = vst.msk [vmem:[#allocation3 + $0x1a0] sm:$0xf] %vm518, %v1042
        %1581 = vst.msk [vmem:[#allocation3 + $0x1b4] sm:$0xf] %vm518, %v1043
        %1582 = vst.msk [vmem:[#allocation3 + $0x1c8] sm:$0xf] %vm518, %v1044
        %1583 = vst.msk [vmem:[#allocation3 + $0x1dc] sm:$0xf] %vm518, %v1045
        %1584 = vst.msk [vmem:[#allocation3 + $0x1f0] sm:$0xf] %vm518, %v1046
        %1585 = vst.msk [vmem:[#allocation3 + $0x204] sm:$0xf] %vm518, %v1047
        %1586 = vst.msk [vmem:[#allocation3 + $0x218] sm:$0xf] %vm518, %v1048
        %1587 = vst.msk [vmem:[#allocation3 + $0x22c] sm:$0xf] %vm518, %v1049
        %1588 = vst.msk [vmem:[#allocation3 + $0x240] sm:$0xf] %vm518, %v1295
        %1589 = vst.msk [vmem:[#allocation3 + $0x254] sm:$0xf] %vm518, %v1296
        %1590 = vst.msk [vmem:[#allocation3 + $0x268] sm:$0xf] %vm518, %v1558
        %1591 = vst.msk [vmem:[#allocation3 + $0x27c] sm:$0xf] %vm518, %v1559
        %v1592 = vld [vmem:[#allocation3] sm:$0xff]
        %v1593 = vld [vmem:[#allocation3 + $0x8] sm:$0xff]
        %v1594 = vld [vmem:[#allocation3 + $0x10] sm:$0xf]
        %v1595 = vld [vmem:[#allocation3 + $0x14] sm:$0xff]
        %v1596 = vld [vmem:[#allocation3 + $0x1c] sm:$0xff]
        %v1597 = vld [vmem:[#allocation3 + $0x24] sm:$0xf]
        %v1598 = vld [vmem:[#allocation3 + $0x28] sm:$0xff]
        %v1599 = vld [vmem:[#allocation3 + $0x30] sm:$0xff]
        %v1600 = vld [vmem:[#allocation3 + $0x38] sm:$0xf]
        %v1601 = vld [vmem:[#allocation3 + $0x3c] sm:$0xff]
        %v1602 = vld [vmem:[#allocation3 + $0x44] sm:$0xff]
        %v1603 = vld [vmem:[#allocation3 + $0x4c] sm:$0xf]
        %v1604 = vld [vmem:[#allocation3 + $0x50] sm:$0xff]
        %v1605 = vld [vmem:[#allocation3 + $0x58] sm:$0xff]
        %v1606 = vld [vmem:[#allocation3 + $0x60] sm:$0xf]
        %v1607 = vld [vmem:[#allocation3 + $0x64] sm:$0xff]
        %v1608 = vld [vmem:[#allocation3 + $0x6c] sm:$0xff]
        %v1609 = vld [vmem:[#allocation3 + $0x74] sm:$0xf]
        %v1610 = vld [vmem:[#allocation3 + $0x78] sm:$0xff]
        %v1611 = vld [vmem:[#allocation3 + $0x80] sm:$0xff]
        %v1612 = vld [vmem:[#allocation3 + $0x88] sm:$0xf]
        %v1613 = vld [vmem:[#allocation3 + $0x8c] sm:$0xff]
        %v1614 = vld [vmem:[#allocation3 + $0x94] sm:$0xff]
        %v1615 = vld [vmem:[#allocation3 + $0x9c] sm:$0xf]
        %v1616 = vld [vmem:[#allocation3 + $0xa0] sm:$0xff]
        %v1617 = vld [vmem:[#allocation3 + $0xa8] sm:$0xff]
        %v1618 = vld [vmem:[#allocation3 + $0xb0] sm:$0xf]
        %v1619 = vld [vmem:[#allocation3 + $0xb4] sm:$0xff]
        %v1620 = vld [vmem:[#allocation3 + $0xbc] sm:$0xff]
        %v1621 = vld [vmem:[#allocation3 + $0xc4] sm:$0xf]
        %v1622 = vld [vmem:[#allocation3 + $0xc8] sm:$0xff]
        %v1623 = vld [vmem:[#allocation3 + $0xd0] sm:$0xff]
        %v1624 = vld [vmem:[#allocation3 + $0xd8] sm:$0xf]
        %v1625 = vld [vmem:[#allocation3 + $0xdc] sm:$0xff]
        %v1626 = vld [vmem:[#allocation3 + $0xe4] sm:$0xff]
        %v1627 = vld [vmem:[#allocation3 + $0xec] sm:$0xf]
        %v1628 = vld [vmem:[#allocation3 + $0xf0] sm:$0xff]
        %v1629 = vld [vmem:[#allocation3 + $0xf8] sm:$0xff]
        %v1630 = vld [vmem:[#allocation3 + $0x100] sm:$0xf]
        %v1631 = vld [vmem:[#allocation3 + $0x104] sm:$0xff]
        %v1632 = vld [vmem:[#allocation3 + $0x10c] sm:$0xff]
        %v1633 = vld [vmem:[#allocation3 + $0x114] sm:$0xf]
        %v1634 = vld [vmem:[#allocation3 + $0x118] sm:$0xff]
        %v1635 = vld [vmem:[#allocation3 + $0x120] sm:$0xff]
        %v1636 = vld [vmem:[#allocation3 + $0x128] sm:$0xf]
        %v1637 = vld [vmem:[#allocation3 + $0x12c] sm:$0xff]
        %v1638 = vld [vmem:[#allocation3 + $0x134] sm:$0xff]
        %v1639 = vld [vmem:[#allocation3 + $0x13c] sm:$0xf]
        %v1640 = vld [vmem:[#allocation3 + $0x140] sm:$0xff]
        %v1641 = vld [vmem:[#allocation3 + $0x148] sm:$0xff]
        %v1642 = vld [vmem:[#allocation3 + $0x150] sm:$0xf]
        %v1643 = vld [vmem:[#allocation3 + $0x154] sm:$0xff]
        %v1644 = vld [vmem:[#allocation3 + $0x15c] sm:$0xff]
        %v1645 = vld [vmem:[#allocation3 + $0x164] sm:$0xf]
        %v1646 = vld [vmem:[#allocation3 + $0x168] sm:$0xff]
        %v1647 = vld [vmem:[#allocation3 + $0x170] sm:$0xff]
        %v1648 = vld [vmem:[#allocation3 + $0x178] sm:$0xf]
        %v1649 = vld [vmem:[#allocation3 + $0x17c] sm:$0xff]
        %v1650 = vld [vmem:[#allocation3 + $0x184] sm:$0xff]
        %v1651 = vld [vmem:[#allocation3 + $0x18c] sm:$0xf]
        %v1652 = vld [vmem:[#allocation3 + $0x190] sm:$0xff]
        %v1653 = vld [vmem:[#allocation3 + $0x198] sm:$0xff]
        %v1654 = vld [vmem:[#allocation3 + $0x1a0] sm:$0xf]
        %v1655 = vld [vmem:[#allocation3 + $0x1a4] sm:$0xff]
        %v1656 = vld [vmem:[#allocation3 + $0x1ac] sm:$0xff]
        %v1657 = vld [vmem:[#allocation3 + $0x1b4] sm:$0xf]
        %v1658 = vld [vmem:[#allocation3 + $0x1b8] sm:$0xff]
        %v1659 = vld [vmem:[#allocation3 + $0x1c0] sm:$0xff]
        %v1660 = vld [vmem:[#allocation3 + $0x1c8] sm:$0xf]
        %v1661 = vld [vmem:[#allocation3 + $0x1cc] sm:$0xff]
        %v1662 = vld [vmem:[#allocation3 + $0x1d4] sm:$0xff]
        %v1663 = vld [vmem:[#allocation3 + $0x1dc] sm:$0xf]
        %v1664 = vld [vmem:[#allocation3 + $0x1e0] sm:$0xff]
        %v1665 = vld [vmem:[#allocation3 + $0x1e8] sm:$0xff]
        %v1666 = vld [vmem:[#allocation3 + $0x1f0] sm:$0xf]
        %v1667 = vld [vmem:[#allocation3 + $0x1f4] sm:$0xff]
        %v1668 = vld [vmem:[#allocation3 + $0x1fc] sm:$0xff]
        %v1669 = vld [vmem:[#allocation3 + $0x204] sm:$0xf]
        %v1670 = vld [vmem:[#allocation3 + $0x208] sm:$0xff]
        %v1671 = vld [vmem:[#allocation3 + $0x210] sm:$0xff]
        %v1672 = vld [vmem:[#allocation3 + $0x218] sm:$0xf]
        %v1673 = vld [vmem:[#allocation3 + $0x21c] sm:$0xff]
        %v1674 = vld [vmem:[#allocation3 + $0x224] sm:$0xff]
        %v1675 = vld [vmem:[#allocation3 + $0x22c] sm:$0xf]
        %v1676 = vld [vmem:[#allocation3 + $0x230] sm:$0xff]
        %v1677 = vld [vmem:[#allocation3 + $0x238] sm:$0xff]
        %v1678 = vld [vmem:[#allocation3 + $0x240] sm:$0xf]
        %v1679 = vld [vmem:[#allocation3 + $0x244] sm:$0xff]
        %v1680 = vld [vmem:[#allocation3 + $0x24c] sm:$0xff]
        %v1681 = vld [vmem:[#allocation3 + $0x254] sm:$0xf]
        %v1682 = vld [vmem:[#allocation3 + $0x258] sm:$0xff]
        %v1683 = vld [vmem:[#allocation3 + $0x260] sm:$0xff]
        %v1684 = vld [vmem:[#allocation3 + $0x268] sm:$0xf]
        %v1685 = vld [vmem:[#allocation3 + $0x26c] sm:$0xff]
        %v1686 = vld [vmem:[#allocation3 + $0x274] sm:$0xff]
        %v1687 = vld [vmem:[#allocation3 + $0x27c] sm:$0xf]
        %v1688 = vld [vmem:[%s5] sm:$0x1]
        %v1689 = vld [vmem:[%s5 + $0x1] sm:$0x1]
        %v1690 = vld [vmem:[%s5 + $0x2] sm:$0x1]
        %v1691 = vld [vmem:[%s5 + $0x3] sm:$0x1]
        %v1692 = vld [vmem:[#allocation4] sm:$0xf]
        %v1693 = vld [vmem:[#allocation4 + $0x4] sm:$0xf]
        %v1694 = vld [vmem:[#allocation4 + $0x8] sm:$0xf]
        %v1695 = vld [vmem:[#allocation4 + $0xc] sm:$0xf]
        %v1696 = vld [vmem:[#allocation4 + $0x10] sm:$0xf]
        %v1697 = vld [vmem:[#allocation4 + $0x14] sm:$0xf]
        %v1698 = vld [vmem:[#allocation4 + $0x18] sm:$0xf]
        %v1699 = vld [vmem:[#allocation4 + $0x1c] sm:$0xf]
        %v1700 = vld [vmem:[#allocation4 + $0x20] sm:$0xf]
        %v1701 = vld [vmem:[#allocation4 + $0x24] sm:$0xf]
        %v1702 = vld [vmem:[#allocation4 + $0x28] sm:$0xf]
        %v1703 = vld [vmem:[#allocation4 + $0x2c] sm:$0xf]
        %v1704 = vld [vmem:[#allocation4 + $0x30] sm:$0xf]
        %v1705 = vld [vmem:[#allocation4 + $0x34] sm:$0xf]
        %v1706 = vld [vmem:[#allocation4 + $0x38] sm:$0xf]
        %v1707 = vld [vmem:[#allocation4 + $0x3c] sm:$0xf]
        %v1708 = vld [vmem:[#allocation4 + $0x40] sm:$0xf]
        %v1709 = vld [vmem:[#allocation4 + $0x44] sm:$0xf]
        %v1710 = vld [vmem:[#allocation4 + $0x48] sm:$0xf]
        %v1711 = vld [vmem:[#allocation4 + $0x4c] sm:$0xf]
        %v1712 = vld [vmem:[#allocation4 + $0x50] sm:$0xf]
        %v1713 = vld [vmem:[#allocation4 + $0x54] sm:$0xf]
        %v1714 = vld [vmem:[#allocation4 + $0x58] sm:$0xf]
        %v1715 = vld [vmem:[#allocation4 + $0x5c] sm:$0xf]
        %v1716 = vld [vmem:[#allocation4 + $0x60] sm:$0xf]
        %v1717 = vld [vmem:[#allocation4 + $0x64] sm:$0xf]
        %v1718 = vld [vmem:[#allocation4 + $0x68] sm:$0xf]
        %v1719 = vld [vmem:[#allocation4 + $0x6c] sm:$0xf]
        %v1720 = vld [vmem:[#allocation4 + $0x70] sm:$0xf]
        %v1721 = vld [vmem:[#allocation4 + $0x74] sm:$0xf]
        %v1722 = vld [vmem:[#allocation4 + $0x78] sm:$0xf]
        %v1723 = vld [vmem:[#allocation4 + $0x7c] sm:$0xf]
        %v1724 = vld [vmem:[#allocation4 + $0x80] sm:$0xf]
        %v1725 = vld [vmem:[#allocation4 + $0x84] sm:$0xf]
        %v1726 = vld [vmem:[#allocation4 + $0x88] sm:$0xf]
        %v1727 = vld [vmem:[#allocation4 + $0x8c] sm:$0xf]
        %v1728 = vld [vmem:[#allocation4 + $0x90] sm:$0xf]
        %v1729 = vld [vmem:[#allocation4 + $0x94] sm:$0xf]
        %v1730 = vld [vmem:[#allocation4 + $0x98] sm:$0xf]
        %v1731 = vld [vmem:[#allocation4 + $0x9c] sm:$0xf]
        %v1732 = vld [vmem:[#allocation4 + $0xa0] sm:$0xf]
        %v1733 = vld [vmem:[#allocation4 + $0xa4] sm:$0xf]
        %v1734 = vld [vmem:[#allocation4 + $0xa8] sm:$0xf]
        %v1735 = vld [vmem:[#allocation4 + $0xac] sm:$0xf]
        %v1736 = vld [vmem:[#allocation4 + $0xb0] sm:$0xf]
        %v1737 = vld [vmem:[#allocation4 + $0xb4] sm:$0xf]
        %v1738 = vld [vmem:[#allocation4 + $0xb8] sm:$0xf]
        %v1739 = vld [vmem:[#allocation4 + $0xbc] sm:$0xf]
        %v1740 = vld [vmem:[#allocation4 + $0xc0] sm:$0xf]
        %v1741 = vld [vmem:[#allocation4 + $0xc4] sm:$0xf]
        %v1742 = vld [vmem:[#allocation4 + $0xc8] sm:$0xf]
        %v1743 = vld [vmem:[#allocation4 + $0xcc] sm:$0xf]
        %v1744 = vld [vmem:[#allocation4 + $0xd0] sm:$0xf]
        %v1745 = vld [vmem:[#allocation4 + $0xd4] sm:$0xf]
        %v1746 = vld [vmem:[#allocation4 + $0xd8] sm:$0xf]
        %v1747 = vld [vmem:[#allocation4 + $0xdc] sm:$0xf]
        %v1748 = vld [vmem:[#allocation4 + $0xe0] sm:$0xf]
        %v1749 = vld [vmem:[#allocation4 + $0xe4] sm:$0xf]
        %v1750 = vld [vmem:[#allocation4 + $0xe8] sm:$0xf]
        %v1751 = vld [vmem:[#allocation4 + $0xec] sm:$0xf]
        %v1752 = vld [vmem:[#allocation4 + $0xf0] sm:$0xf]
        %v1753 = vld [vmem:[#allocation4 + $0xf4] sm:$0xf]
        %v1754 = vld [vmem:[#allocation4 + $0xf8] sm:$0xf]
        %v1755 = vld [vmem:[#allocation4 + $0xfc] sm:$0xf]
        %v1756 = vld [vmem:[#allocation4 + $0x100] sm:$0xf]
        %v1757 = vld [vmem:[#allocation4 + $0x104] sm:$0xf]
        %v1758 = vld [vmem:[#allocation4 + $0x108] sm:$0xf]
        %v1759 = vld [vmem:[#allocation4 + $0x10c] sm:$0xf]
        %v1760 = vld [vmem:[#allocation4 + $0x110] sm:$0xf]
        %v1761 = vld [vmem:[#allocation4 + $0x114] sm:$0xf]
        %v1762 = vld [vmem:[#allocation4 + $0x118] sm:$0xf]
        %v1763 = vld [vmem:[#allocation4 + $0x11c] sm:$0xf]
        %v1764 = vperm.slane %v1688, 0
        %v1861 = vunpack.c.l.b16 %v1592
        %v1862 = vunpack.c.h.b16 %v1592
        %v1863 = vunpack.c.l.b16 %v1593
        %v1864 = vunpack.c.h.b16 %v1593
        %v1865 = vunpack.c.l.b16 %v1594
        %v1866 = vunpack.c.l.b16 %v1595
        %v1867 = vunpack.c.h.b16 %v1595
        %v1868 = vunpack.c.l.b16 %v1596
        %v1869 = vunpack.c.h.b16 %v1596
        %v1870 = vunpack.c.l.b16 %v1597
        %v1871 = vunpack.c.l.b16 %v1598
        %v1872 = vunpack.c.h.b16 %v1598
        %v1873 = vunpack.c.l.b16 %v1599
        %v1874 = vunpack.c.h.b16 %v1599
        %v1875 = vunpack.c.l.b16 %v1600
        %v1876 = vunpack.c.l.b16 %v1601
        %v1877 = vunpack.c.h.b16 %v1601
        %v1878 = vunpack.c.l.b16 %v1602
        %v1879 = vunpack.c.h.b16 %v1602
        %v1880 = vunpack.c.l.b16 %v1603
        %v1881 = vunpack.c.l.b16 %v1604
        %v1882 = vunpack.c.h.b16 %v1604
        %v1883 = vunpack.c.l.b16 %v1605
        %v1884 = vunpack.c.h.b16 %v1605
        %v1885 = vunpack.c.l.b16 %v1606
        %v1886 = vunpack.c.l.b16 %v1607
        %v1887 = vunpack.c.h.b16 %v1607
        %v1888 = vunpack.c.l.b16 %v1608
        %v1889 = vunpack.c.h.b16 %v1608
        %v1890 = vunpack.c.l.b16 %v1609
        %v1891 = vunpack.c.l.b16 %v1610
        %v1892 = vunpack.c.h.b16 %v1610
        %v1893 = vunpack.c.l.b16 %v1611
        %v1894 = vunpack.c.h.b16 %v1611
        %v1895 = vunpack.c.l.b16 %v1612
        %v1896 = vunpack.c.l.b16 %v1613
        %v1897 = vunpack.c.h.b16 %v1613
        %v1898 = vunpack.c.l.b16 %v1614
        %v1899 = vunpack.c.h.b16 %v1614
        %v1900 = vunpack.c.l.b16 %v1615
        %v1901 = vunpack.c.l.b16 %v1616
        %v1902 = vunpack.c.h.b16 %v1616
        %v1903 = vunpack.c.l.b16 %v1617
        %v1904 = vunpack.c.h.b16 %v1617
        %v1905 = vunpack.c.l.b16 %v1618
        %v1906 = vunpack.c.l.b16 %v1619
        %v1907 = vunpack.c.h.b16 %v1619
        %v1908 = vunpack.c.l.b16 %v1620
        %v1909 = vunpack.c.h.b16 %v1620
        %v1910 = vunpack.c.l.b16 %v1621
        %v1911 = vunpack.c.l.b16 %v1622
        %v1912 = vunpack.c.h.b16 %v1622
        %v1913 = vunpack.c.l.b16 %v1623
        %v1914 = vunpack.c.h.b16 %v1623
        %v1915 = vunpack.c.l.b16 %v1624
        %v1916 = vunpack.c.l.b16 %v1625
        %v1917 = vunpack.c.h.b16 %v1625
        %v1918 = vunpack.c.l.b16 %v1626
        %v1919 = vunpack.c.h.b16 %v1626
        %v1920 = vunpack.c.l.b16 %v1627
        %v1921 = vunpack.c.l.b16 %v1628
        %v1922 = vunpack.c.h.b16 %v1628
        %v1923 = vunpack.c.l.b16 %v1629
        %v1924 = vunpack.c.h.b16 %v1629
        %v1925 = vunpack.c.l.b16 %v1630
        %v1926 = vunpack.c.l.b16 %v1631
        %v1927 = vunpack.c.h.b16 %v1631
        %v1928 = vunpack.c.l.b16 %v1632
        %v1929 = vunpack.c.h.b16 %v1632
        %v1930 = vunpack.c.l.b16 %v1633
        %v1931 = vunpack.c.l.b16 %v1634
        %v1932 = vunpack.c.h.b16 %v1634
        %v1933 = vunpack.c.l.b16 %v1635
        %v1934 = vunpack.c.h.b16 %v1635
        %v1935 = vunpack.c.l.b16 %v1636
        %v1936 = vunpack.c.l.b16 %v1637
        %v1937 = vunpack.c.h.b16 %v1637
        %v1938 = vunpack.c.l.b16 %v1638
        %v1939 = vunpack.c.h.b16 %v1638
        %v1940 = vunpack.c.l.b16 %v1639
        %v1941 = vunpack.c.l.b16 %v1640
        %v1942 = vunpack.c.h.b16 %v1640
        %v1943 = vunpack.c.l.b16 %v1641
        %v1944 = vunpack.c.h.b16 %v1641
        %v1945 = vunpack.c.l.b16 %v1642
        %v1946 = vunpack.c.l.b16 %v1643
        %v1947 = vunpack.c.h.b16 %v1643
        %v1948 = vunpack.c.l.b16 %v1644
        %v1949 = vunpack.c.h.b16 %v1644
        %v1950 = vunpack.c.l.b16 %v1645
        %v1951 = vunpack.c.l.b16 %v1646
        %v1952 = vunpack.c.h.b16 %v1646
        %v1953 = vunpack.c.l.b16 %v1647
        %v1954 = vunpack.c.h.b16 %v1647
        %v1955 = vunpack.c.l.b16 %v1648
        %v1956 = vunpack.c.l.b16 %v1649
        %v1957 = vunpack.c.h.b16 %v1649
        %v1958 = vunpack.c.l.b16 %v1650
        %v1959 = vunpack.c.h.b16 %v1650
        %v1960 = vunpack.c.l.b16 %v1651
        %v1961 = vunpack.c.l.b16 %v1652
        %v1962 = vunpack.c.h.b16 %v1652
        %v1963 = vunpack.c.l.b16 %v1653
        %v1964 = vunpack.c.h.b16 %v1653
        %v1965 = vunpack.c.l.b16 %v1654
        %v1966 = vunpack.c.l.b16 %v1655
        %v1967 = vunpack.c.h.b16 %v1655
        %v1968 = vunpack.c.l.b16 %v1656
        %v1969 = vunpack.c.h.b16 %v1656
        %v1970 = vunpack.c.l.b16 %v1657
        %v1971 = vunpack.c.l.b16 %v1658
        %v1972 = vunpack.c.h.b16 %v1658
        %v1973 = vunpack.c.l.b16 %v1659
        %v1974 = vunpack.c.h.b16 %v1659
        %v1975 = vunpack.c.l.b16 %v1660
        %v1976 = vunpack.c.l.b16 %v1661
        %v1977 = vunpack.c.h.b16 %v1661
        %v1978 = vunpack.c.l.b16 %v1662
        %v1979 = vunpack.c.h.b16 %v1662
        %v1980 = vunpack.c.l.b16 %v1663
        %v1981 = vunpack.c.l.b16 %v1664
        %v1982 = vunpack.c.h.b16 %v1664
        %v1983 = vunpack.c.l.b16 %v1665
        %v1984 = vunpack.c.h.b16 %v1665
        %v1985 = vunpack.c.l.b16 %v1666
        %v1986 = vunpack.c.l.b16 %v1667
        %v1987 = vunpack.c.h.b16 %v1667
        %v1988 = vunpack.c.l.b16 %v1668
        %v1989 = vunpack.c.h.b16 %v1668
        %v1990 = vunpack.c.l.b16 %v1669
        %v1991 = vunpack.c.l.b16 %v1670
        %v1992 = vunpack.c.h.b16 %v1670
        %v1993 = vunpack.c.l.b16 %v1671
        %v1994 = vunpack.c.h.b16 %v1671
        %v1995 = vunpack.c.l.b16 %v1672
        %v1996 = vunpack.c.l.b16 %v1673
        %v1997 = vunpack.c.h.b16 %v1673
        %v1998 = vunpack.c.l.b16 %v1674
        %v1999 = vunpack.c.h.b16 %v1674
        %v2000 = vunpack.c.l.b16 %v1675
        %v2001 = vunpack.c.l.b16 %v1676
        %v2002 = vunpack.c.h.b16 %v1676
        %v2003 = vunpack.c.l.b16 %v1677
        %v2004 = vunpack.c.h.b16 %v1677
        %v2005 = vunpack.c.l.b16 %v1678
        %v2006 = vunpack.c.l.b16 %v1679
        %v2007 = vunpack.c.h.b16 %v1679
        %v2008 = vunpack.c.l.b16 %v1680
        %v2009 = vunpack.c.h.b16 %v1680
        %v2010 = vunpack.c.l.b16 %v1681
        %v2011 = vunpack.c.l.b16 %v1682
        %v2012 = vunpack.c.h.b16 %v1682
        %v2013 = vunpack.c.l.b16 %v1683
        %v2014 = vunpack.c.h.b16 %v1683
        %v2015 = vunpack.c.l.b16 %v1684
        %v2016 = vunpack.c.l.b16 %v1685
        %v2017 = vunpack.c.h.b16 %v1685
        %v2018 = vunpack.c.l.b16 %v1686
        %v2019 = vunpack.c.h.b16 %v1686
        %v2020 = vunpack.c.l.b16 %v1687
        %v2021 = vpack.c.b16 %v1866, %v1861
        %v2022 = vpack.c.b16 %v1867, %v1862
        %v2023 = vpack.c.b16 %v1868, %v1863
        %v2024 = vpack.c.b16 %v1869, %v1864
        %v2025 = vpack.c.b16 %v1870, %v1865
        %v2026 = vpack.c.b16 %v1876, %v1871
        %v2027 = vpack.c.b16 %v1877, %v1872
        %v2028 = vpack.c.b16 %v1878, %v1873
        %v2029 = vpack.c.b16 %v1879, %v1874
        %v2030 = vpack.c.b16 %v1880, %v1875
        %v2031 = vpack.c.b16 %v1886, %v1881
        %v2032 = vpack.c.b16 %v1887, %v1882
        %v2033 = vpack.c.b16 %v1888, %v1883
        %v2034 = vpack.c.b16 %v1889, %v1884
        %v2035 = vpack.c.b16 %v1890, %v1885
        %v2036 = vpack.c.b16 %v1896, %v1891
        %v2037 = vpack.c.b16 %v1897, %v1892
        %v2038 = vpack.c.b16 %v1898, %v1893
        %v2039 = vpack.c.b16 %v1899, %v1894
        %v2040 = vpack.c.b16 %v1900, %v1895
        %v2041 = vpack.c.b16 %v1906, %v1901
        %v2042 = vpack.c.b16 %v1907, %v1902
        %v2043 = vpack.c.b16 %v1908, %v1903
        %v2044 = vpack.c.b16 %v1909, %v1904
        %v2045 = vpack.c.b16 %v1910, %v1905
        %v2046 = vpack.c.b16 %v1916, %v1911
        %v2047 = vpack.c.b16 %v1917, %v1912
        %v2048 = vpack.c.b16 %v1918, %v1913
        %v2049 = vpack.c.b16 %v1919, %v1914
        %v2050 = vpack.c.b16 %v1920, %v1915
        %v2051 = vpack.c.b16 %v1926, %v1921
        %v2052 = vpack.c.b16 %v1927, %v1922
        %v2053 = vpack.c.b16 %v1928, %v1923
        %v2054 = vpack.c.b16 %v1929, %v1924
        %v2055 = vpack.c.b16 %v1930, %v1925
        %v2056 = vpack.c.b16 %v1936, %v1931
        %v2057 = vpack.c.b16 %v1937, %v1932
        %v2058 = vpack.c.b16 %v1938, %v1933
        %v2059 = vpack.c.b16 %v1939, %v1934
        %v2060 = vpack.c.b16 %v1940, %v1935
        %v2061 = vpack.c.b16 %v1946, %v1941
        %v2062 = vpack.c.b16 %v1947, %v1942
        %v2063 = vpack.c.b16 %v1948, %v1943
        %v2064 = vpack.c.b16 %v1949, %v1944
        %v2065 = vpack.c.b16 %v1950, %v1945
        %v2066 = vpack.c.b16 %v1956, %v1951
        %v2067 = vpack.c.b16 %v1957, %v1952
        %v2068 = vpack.c.b16 %v1958, %v1953
        %v2069 = vpack.c.b16 %v1959, %v1954
        %v2070 = vpack.c.b16 %v1960, %v1955
        %v2071 = vpack.c.b16 %v1966, %v1961
        %v2072 = vpack.c.b16 %v1967, %v1962
        %v2073 = vpack.c.b16 %v1968, %v1963
        %v2074 = vpack.c.b16 %v1969, %v1964
        %v2075 = vpack.c.b16 %v1970, %v1965
        %v2076 = vpack.c.b16 %v1976, %v1971
        %v2077 = vpack.c.b16 %v1977, %v1972
        %v2078 = vpack.c.b16 %v1978, %v1973
        %v2079 = vpack.c.b16 %v1979, %v1974
        %v2080 = vpack.c.b16 %v1980, %v1975
        %v2081 = vpack.c.b16 %v1986, %v1981
        %v2082 = vpack.c.b16 %v1987, %v1982
        %v2083 = vpack.c.b16 %v1988, %v1983
        %v2084 = vpack.c.b16 %v1989, %v1984
        %v2085 = vpack.c.b16 %v1990, %v1985
        %v2086 = vpack.c.b16 %v1996, %v1991
        %v2087 = vpack.c.b16 %v1997, %v1992
        %v2088 = vpack.c.b16 %v1998, %v1993
        %v2089 = vpack.c.b16 %v1999, %v1994
        %v2090 = vpack.c.b16 %v2000, %v1995
        %v2091 = vpack.c.b16 %v2006, %v2001
        %v2092 = vpack.c.b16 %v2007, %v2002
        %v2093 = vpack.c.b16 %v2008, %v2003
        %v2094 = vpack.c.b16 %v2009, %v2004
        %v2095 = vpack.c.b16 %v2010, %v2005
        %v2096 = vpack.c.b16 %v2016, %v2011
        %v2097 = vpack.c.b16 %v2017, %v2012
        %v2098 = vpack.c.b16 %v2018, %v2013
        %v2099 = vpack.c.b16 %v2019, %v2014
        %v2100 = vpack.c.b16 %v2020, %v2015
        %v2237 = vunpack.c.l.b16 %v1692
        %v2238 = vunpack.c.l.b16 %v1693
        %v2239 = vunpack.c.l.b16 %v1694
        %v2240 = vunpack.c.l.b16 %v1695
        %v2241 = vunpack.c.l.b16 %v1696
        %v2242 = vunpack.c.l.b16 %v1697
        %v2243 = vunpack.c.l.b16 %v1698
        %v2244 = vunpack.c.l.b16 %v1699
        %v2245 = vunpack.c.l.b16 %v1700
        %v2246 = vunpack.c.l.b16 %v1701
        %v2247 = vunpack.c.l.b16 %v1702
        %v2248 = vunpack.c.l.b16 %v1703
        %v2249 = vunpack.c.l.b16 %v1704
        %v2250 = vunpack.c.l.b16 %v1705
        %v2251 = vunpack.c.l.b16 %v1706
        %v2252 = vunpack.c.l.b16 %v1707
        %v2253 = vunpack.c.l.b16 %v1708
        %v2254 = vunpack.c.l.b16 %v1709
        %v2255 = vunpack.c.l.b16 %v1710
        %v2256 = vunpack.c.l.b16 %v1711
        %v2257 = vunpack.c.l.b16 %v1712
        %v2258 = vunpack.c.l.b16 %v1713
        %v2259 = vunpack.c.l.b16 %v1714
        %v2260 = vunpack.c.l.b16 %v1715
        %v2261 = vunpack.c.l.b16 %v1716
        %v2262 = vunpack.c.l.b16 %v1717
        %v2263 = vunpack.c.l.b16 %v1718
        %v2264 = vunpack.c.l.b16 %v1719
        %v2265 = vunpack.c.l.b16 %v1720
        %v2266 = vunpack.c.l.b16 %v1721
        %v2267 = vunpack.c.l.b16 %v1722
        %v2268 = vunpack.c.l.b16 %v1723
        %v2269 = vunpack.c.l.b16 %v1724
        %v2270 = vunpack.c.l.b16 %v1725
        %v2271 = vunpack.c.l.b16 %v1726
        %v2272 = vunpack.c.l.b16 %v1727
        %v2273 = vunpack.c.l.b16 %v1728
        %v2274 = vunpack.c.l.b16 %v1729
        %v2275 = vunpack.c.l.b16 %v1730
        %v2276 = vunpack.c.l.b16 %v1731
        %v2277 = vunpack.c.l.b16 %v1732
        %v2278 = vunpack.c.l.b16 %v1733
        %v2279 = vunpack.c.l.b16 %v1734
        %v2280 = vunpack.c.l.b16 %v1735
        %v2281 = vunpack.c.l.b16 %v1736
        %v2282 = vunpack.c.l.b16 %v1737
        %v2283 = vunpack.c.l.b16 %v1738
        %v2284 = vunpack.c.l.b16 %v1739
        %v2285 = vunpack.c.l.b16 %v1740
        %v2286 = vunpack.c.l.b16 %v1741
        %v2287 = vunpack.c.l.b16 %v1742
        %v2288 = vunpack.c.l.b16 %v1743
        %v2289 = vunpack.c.l.b16 %v1744
        %v2290 = vunpack.c.l.b16 %v1745
        %v2291 = vunpack.c.l.b16 %v1746
        %v2292 = vunpack.c.l.b16 %v1747
        %v2293 = vunpack.c.l.b16 %v1748
        %v2294 = vunpack.c.l.b16 %v1749
        %v2295 = vunpack.c.l.b16 %v1750
        %v2296 = vunpack.c.l.b16 %v1751
        %v2297 = vunpack.c.l.b16 %v1752
        %v2298 = vunpack.c.l.b16 %v1753
        %v2299 = vunpack.c.l.b16 %v1754
        %v2300 = vunpack.c.l.b16 %v1755
        %v2301 = vunpack.c.l.b16 %v1756
        %v2302 = vunpack.c.l.b16 %v1757
        %v2303 = vunpack.c.l.b16 %v1758
        %v2304 = vunpack.c.l.b16 %v1759
        %v2305 = vunpack.c.l.b16 %v1760
        %v2306 = vunpack.c.l.b16 %v1761
        %v2307 = vunpack.c.l.b16 %v1762
        %v2308 = vunpack.c.l.b16 %v1763
        %v2309 = vpack.c.b16 %v2238, %v2237
        %v2310 = vpack.c.b16 %v2240, %v2239
        %v2311 = vpack.c.b16 %v2242, %v2241
        %v2312 = vpack.c.b16 %v2244, %v2243
        %v2313 = vpack.c.b16 %v2246, %v2245
        %v2314 = vpack.c.b16 %v2248, %v2247
        %v2315 = vpack.c.b16 %v2250, %v2249
        %v2316 = vpack.c.b16 %v2252, %v2251
        %v2317 = vpack.c.b16 %v2254, %v2253
        %v2318 = vpack.c.b16 %v2256, %v2255
        %v2319 = vpack.c.b16 %v2258, %v2257
        %v2320 = vpack.c.b16 %v2260, %v2259
        %v2321 = vpack.c.b16 %v2262, %v2261
        %v2322 = vpack.c.b16 %v2264, %v2263
        %v2323 = vpack.c.b16 %v2266, %v2265
        %v2324 = vpack.c.b16 %v2268, %v2267
        %v2325 = vpack.c.b16 %v2270, %v2269
        %v2326 = vpack.c.b16 %v2272, %v2271
        %v2327 = vpack.c.b16 %v2274, %v2273
        %v2328 = vpack.c.b16 %v2276, %v2275
        %v2329 = vpack.c.b16 %v2278, %v2277
        %v2330 = vpack.c.b16 %v2280, %v2279
        %v2331 = vpack.c.b16 %v2282, %v2281
        %v2332 = vpack.c.b16 %v2284, %v2283
        %v2333 = vpack.c.b16 %v2286, %v2285
        %v2334 = vpack.c.b16 %v2288, %v2287
        %v2335 = vpack.c.b16 %v2290, %v2289
        %v2336 = vpack.c.b16 %v2292, %v2291
        %v2337 = vpack.c.b16 %v2294, %v2293
        %v2338 = vpack.c.b16 %v2296, %v2295
        %v2339 = vpack.c.b16 %v2298, %v2297
        %v2340 = vpack.c.b16 %v2300, %v2299
        %v2341 = vpack.c.b16 %v2302, %v2301
        %v2342 = vpack.c.b16 %v2304, %v2303
        %v2343 = vpack.c.b16 %v2306, %v2305
        %v2344 = vpack.c.b16 %v2308, %v2307
        %v2382 = vsel %vm321, %v2025, 0
        %v2385 = vsel %vm321, %v2030, 0
        %v2388 = vsel %vm321, %v2035, 0
        %v2391 = vsel %vm321, %v2040, 0
        %v2394 = vsel %vm321, %v2045, 0
        %v2397 = vsel %vm321, %v2050, 0
        %v2400 = vsel %vm321, %v2055, 0
        %v2403 = vsel %vm321, %v2060, 0
        %v2406 = vsel %vm321, %v2065, 0
        %v2409 = vsel %vm321, %v2070, 0
        %v2412 = vsel %vm321, %v2075, 0
        %v2415 = vsel %vm321, %v2080, 0
        %v2418 = vsel %vm321, %v2085, 0
        %v2421 = vsel %vm321, %v2090, 0
        %v2424 = vsel %vm321, %v2095, 0
        %v2427 = vsel %vm321, %v2100, 0
        %2429 = vmatpush.bf16.msra.mxu0 %v2316
        %2430 = vmatpush.bf16.msra.mxu0 %v2315
        %2431 = vmatpush.bf16.msra.mxu0 %v2314
        %2432 = vmatpush.bf16.msra.mxu0 %v2313
        %2433 = vmatpush.bf16.msra.mxu0 %v2312
        %2434 = vmatpush.bf16.msra.mxu0 %v2311
        %2435 = vmatpush.bf16.msra.mxu0 %v2310
        %2436 = vmatpush.bf16.msra.mxu0 %v2309
        %2437 = vmatmul.bf16.gmra.mxu0 %v2021
        %v2438 = vpop.f32.mrf.mxu0
        %v2439 = vadd.f32 %v1764, %v2438
        %v2440 = vpop.f32.mrf.mxu0
        %v2441 = vadd.f32 %v1764, %v2440
        %2442 = vmatmul.bf16.gmra.mxu0 %v2026
        %v2443 = vpop.f32.mrf.mxu0
        %v2444 = vadd.f32 %v1764, %v2443
        %v2445 = vpop.f32.mrf.mxu0
        %v2446 = vadd.f32 %v1764, %v2445
        %2447 = vmatmul.bf16.gmra.mxu0 %v2031
        %v2448 = vpop.f32.mrf.mxu0
        %v2449 = vadd.f32 %v1764, %v2448
        %v2450 = vpop.f32.mrf.mxu0
        %v2451 = vadd.f32 %v1764, %v2450
        %2452 = vmatmul.bf16.gmra.mxu0 %v2036
        %v2453 = vpop.f32.mrf.mxu0
        %v2454 = vadd.f32 %v1764, %v2453
        %v2455 = vpop.f32.mrf.mxu0
        %v2456 = vadd.f32 %v1764, %v2455
        %2457 = vmatmul.bf16.gmra.mxu0 %v2041
        %v2458 = vpop.f32.mrf.mxu0
        %v2459 = vadd.f32 %v1764, %v2458
        %v2460 = vpop.f32.mrf.mxu0
        %v2461 = vadd.f32 %v1764, %v2460
        %2462 = vmatmul.bf16.gmra.mxu0 %v2046
        %v2463 = vpop.f32.mrf.mxu0
        %v2464 = vadd.f32 %v1764, %v2463
        %v2465 = vpop.f32.mrf.mxu0
        %v2466 = vadd.f32 %v1764, %v2465
        %2467 = vmatmul.bf16.gmra.mxu0 %v2051
        %v2468 = vpop.f32.mrf.mxu0
        %v2469 = vadd.f32 %v1764, %v2468
        %v2470 = vpop.f32.mrf.mxu0
        %v2471 = vadd.f32 %v1764, %v2470
        %2472 = vmatmul.bf16.gmra.mxu0 %v2056
        %v2473 = vpop.f32.mrf.mxu0
        %v2474 = vadd.f32 %v1764, %v2473
        %v2475 = vpop.f32.mrf.mxu0
        %v2476 = vadd.f32 %v1764, %v2475
        %2477 = vmatmul.bf16.gmra.mxu0 %v2061
        %v2478 = vpop.f32.mrf.mxu0
        %v2479 = vadd.f32 %v1764, %v2478
        %v2480 = vpop.f32.mrf.mxu0
        %v2481 = vadd.f32 %v1764, %v2480
        %2482 = vmatmul.bf16.gmra.mxu0 %v2066
        %v2483 = vpop.f32.mrf.mxu0
        %v2484 = vadd.f32 %v1764, %v2483
        %v2485 = vpop.f32.mrf.mxu0
        %v2486 = vadd.f32 %v1764, %v2485
        %2487 = vmatmul.bf16.gmra.mxu0 %v2071
        %v2488 = vpop.f32.mrf.mxu0
        %v2489 = vadd.f32 %v1764, %v2488
        %v2490 = vpop.f32.mrf.mxu0
        %v2491 = vadd.f32 %v1764, %v2490
        %2492 = vmatmul.bf16.gmra.mxu0 %v2076
        %v2493 = vpop.f32.mrf.mxu0
        %v2494 = vadd.f32 %v1764, %v2493
        %v2495 = vpop.f32.mrf.mxu0
        %v2496 = vadd.f32 %v1764, %v2495
        %2497 = vmatmul.bf16.gmra.mxu0 %v2081
        %v2498 = vpop.f32.mrf.mxu0
        %v2499 = vadd.f32 %v1764, %v2498
        %v2500 = vpop.f32.mrf.mxu0
        %v2501 = vadd.f32 %v1764, %v2500
        %2502 = vmatmul.bf16.gmra.mxu0 %v2086
        %v2503 = vpop.f32.mrf.mxu0
        %v2504 = vadd.f32 %v1764, %v2503
        %v2505 = vpop.f32.mrf.mxu0
        %v2506 = vadd.f32 %v1764, %v2505
        %2507 = vmatmul.bf16.gmra.mxu0 %v2091
        %v2508 = vpop.f32.mrf.mxu0
        %v2509 = vadd.f32 %v1764, %v2508
        %v2510 = vpop.f32.mrf.mxu0
        %v2511 = vadd.f32 %v1764, %v2510
        %2512 = vmatmul.bf16.gmra.mxu0 %v2096
        %v2513 = vpop.f32.mrf.mxu0
        %v2514 = vadd.f32 %v1764, %v2513
        %v2515 = vpop.f32.mrf.mxu0
        %v2516 = vadd.f32 %v1764, %v2515
        %2517 = vdwg.mxu0
        %2518 = vmatpush.bf16.msra.mxu0 %v2324
        %2519 = vmatpush.bf16.msra.mxu0 %v2323
        %2520 = vmatpush.bf16.msra.mxu0 %v2322
        %2521 = vmatpush.bf16.msra.mxu0 %v2321
        %2522 = vmatpush.bf16.msra.mxu0 %v2320
        %2523 = vmatpush.bf16.msra.mxu0 %v2319
        %2524 = vmatpush.bf16.msra.mxu0 %v2318
        %2525 = vmatpush.bf16.msra.mxu0 %v2317
        %2526 = vmatmul.bf16.gmra.mxu0 %v2022
        %v2527 = vpop.f32.mrf.mxu0
        %v2528 = vadd.f32 %v2439, %v2527
        %v2529 = vpop.f32.mrf.mxu0
        %v2530 = vadd.f32 %v2441, %v2529
        %2531 = vmatmul.bf16.gmra.mxu0 %v2027
        %v2532 = vpop.f32.mrf.mxu0
        %v2533 = vadd.f32 %v2444, %v2532
        %v2534 = vpop.f32.mrf.mxu0
        %v2535 = vadd.f32 %v2446, %v2534
        %2536 = vmatmul.bf16.gmra.mxu0 %v2032
        %v2537 = vpop.f32.mrf.mxu0
        %v2538 = vadd.f32 %v2449, %v2537
        %v2539 = vpop.f32.mrf.mxu0
        %v2540 = vadd.f32 %v2451, %v2539
        %2541 = vmatmul.bf16.gmra.mxu0 %v2037
        %v2542 = vpop.f32.mrf.mxu0
        %v2543 = vadd.f32 %v2454, %v2542
        %v2544 = vpop.f32.mrf.mxu0
        %v2545 = vadd.f32 %v2456, %v2544
        %2546 = vmatmul.bf16.gmra.mxu0 %v2042
        %v2547 = vpop.f32.mrf.mxu0
        %v2548 = vadd.f32 %v2459, %v2547
        %v2549 = vpop.f32.mrf.mxu0
        %v2550 = vadd.f32 %v2461, %v2549
        %2551 = vmatmul.bf16.gmra.mxu0 %v2047
        %v2552 = vpop.f32.mrf.mxu0
        %v2553 = vadd.f32 %v2464, %v2552
        %v2554 = vpop.f32.mrf.mxu0
        %v2555 = vadd.f32 %v2466, %v2554
        %2556 = vmatmul.bf16.gmra.mxu0 %v2052
        %v2557 = vpop.f32.mrf.mxu0
        %v2558 = vadd.f32 %v2469, %v2557
        %v2559 = vpop.f32.mrf.mxu0
        %v2560 = vadd.f32 %v2471, %v2559
        %2561 = vmatmul.bf16.gmra.mxu0 %v2057
        %v2562 = vpop.f32.mrf.mxu0
        %v2563 = vadd.f32 %v2474, %v2562
        %v2564 = vpop.f32.mrf.mxu0
        %v2565 = vadd.f32 %v2476, %v2564
        %2566 = vmatmul.bf16.gmra.mxu0 %v2062
        %v2567 = vpop.f32.mrf.mxu0
        %v2568 = vadd.f32 %v2479, %v2567
        %v2569 = vpop.f32.mrf.mxu0
        %v2570 = vadd.f32 %v2481, %v2569
        %2571 = vmatmul.bf16.gmra.mxu0 %v2067
        %v2572 = vpop.f32.mrf.mxu0
        %v2573 = vadd.f32 %v2484, %v2572
        %v2574 = vpop.f32.mrf.mxu0
        %v2575 = vadd.f32 %v2486, %v2574
        %2576 = vmatmul.bf16.gmra.mxu0 %v2072
        %v2577 = vpop.f32.mrf.mxu0
        %v2578 = vadd.f32 %v2489, %v2577
        %v2579 = vpop.f32.mrf.mxu0
        %v2580 = vadd.f32 %v2491, %v2579
        %2581 = vmatmul.bf16.gmra.mxu0 %v2077
        %v2582 = vpop.f32.mrf.mxu0
        %v2583 = vadd.f32 %v2494, %v2582
        %v2584 = vpop.f32.mrf.mxu0
        %v2585 = vadd.f32 %v2496, %v2584
        %2586 = vmatmul.bf16.gmra.mxu0 %v2082
        %v2587 = vpop.f32.mrf.mxu0
        %v2588 = vadd.f32 %v2499, %v2587
        %v2589 = vpop.f32.mrf.mxu0
        %v2590 = vadd.f32 %v2501, %v2589
        %2591 = vmatmul.bf16.gmra.mxu0 %v2087
        %v2592 = vpop.f32.mrf.mxu0
        %v2593 = vadd.f32 %v2504, %v2592
        %v2594 = vpop.f32.mrf.mxu0
        %v2595 = vadd.f32 %v2506, %v2594
        %2596 = vmatmul.bf16.gmra.mxu0 %v2092
        %v2597 = vpop.f32.mrf.mxu0
        %v2598 = vadd.f32 %v2509, %v2597
        %v2599 = vpop.f32.mrf.mxu0
        %v2600 = vadd.f32 %v2511, %v2599
        %2601 = vmatmul.bf16.gmra.mxu0 %v2097
        %v2602 = vpop.f32.mrf.mxu0
        %v2603 = vadd.f32 %v2514, %v2602
        %v2604 = vpop.f32.mrf.mxu0
        %v2605 = vadd.f32 %v2516, %v2604
        %2606 = vdwg.mxu0
        %2607 = vmatpush.bf16.msra.mxu0 %v2332
        %2608 = vmatpush.bf16.msra.mxu0 %v2331
        %2609 = vmatpush.bf16.msra.mxu0 %v2330
        %2610 = vmatpush.bf16.msra.mxu0 %v2329
        %2611 = vmatpush.bf16.msra.mxu0 %v2328
        %2612 = vmatpush.bf16.msra.mxu0 %v2327
        %2613 = vmatpush.bf16.msra.mxu0 %v2326
        %2614 = vmatpush.bf16.msra.mxu0 %v2325
        %2615 = vmatmul.bf16.gmra.mxu0 %v2023
        %v2616 = vpop.f32.mrf.mxu0
        %v2617 = vadd.f32 %v2528, %v2616
        %v2618 = vpop.f32.mrf.mxu0
        %v2619 = vadd.f32 %v2530, %v2618
        %2620 = vmatmul.bf16.gmra.mxu0 %v2028
        %v2621 = vpop.f32.mrf.mxu0
        %v2622 = vadd.f32 %v2533, %v2621
        %v2623 = vpop.f32.mrf.mxu0
        %v2624 = vadd.f32 %v2535, %v2623
        %2625 = vmatmul.bf16.gmra.mxu0 %v2033
        %v2626 = vpop.f32.mrf.mxu0
        %v2627 = vadd.f32 %v2538, %v2626
        %v2628 = vpop.f32.mrf.mxu0
        %v2629 = vadd.f32 %v2540, %v2628
        %2630 = vmatmul.bf16.gmra.mxu0 %v2038
        %v2631 = vpop.f32.mrf.mxu0
        %v2632 = vadd.f32 %v2543, %v2631
        %v2633 = vpop.f32.mrf.mxu0
        %v2634 = vadd.f32 %v2545, %v2633
        %2635 = vmatmul.bf16.gmra.mxu0 %v2043
        %v2636 = vpop.f32.mrf.mxu0
        %v2637 = vadd.f32 %v2548, %v2636
        %v2638 = vpop.f32.mrf.mxu0
        %v2639 = vadd.f32 %v2550, %v2638
        %2640 = vmatmul.bf16.gmra.mxu0 %v2048
        %v2641 = vpop.f32.mrf.mxu0
        %v2642 = vadd.f32 %v2553, %v2641
        %v2643 = vpop.f32.mrf.mxu0
        %v2644 = vadd.f32 %v2555, %v2643
        %2645 = vmatmul.bf16.gmra.mxu0 %v2053
        %v2646 = vpop.f32.mrf.mxu0
        %v2647 = vadd.f32 %v2558, %v2646
        %v2648 = vpop.f32.mrf.mxu0
        %v2649 = vadd.f32 %v2560, %v2648
        %2650 = vmatmul.bf16.gmra.mxu0 %v2058
        %v2651 = vpop.f32.mrf.mxu0
        %v2652 = vadd.f32 %v2563, %v2651
        %v2653 = vpop.f32.mrf.mxu0
        %v2654 = vadd.f32 %v2565, %v2653
        %2655 = vmatmul.bf16.gmra.mxu0 %v2063
        %v2656 = vpop.f32.mrf.mxu0
        %v2657 = vadd.f32 %v2568, %v2656
        %v2658 = vpop.f32.mrf.mxu0
        %v2659 = vadd.f32 %v2570, %v2658
        %2660 = vmatmul.bf16.gmra.mxu0 %v2068
        %v2661 = vpop.f32.mrf.mxu0
        %v2662 = vadd.f32 %v2573, %v2661
        %v2663 = vpop.f32.mrf.mxu0
        %v2664 = vadd.f32 %v2575, %v2663
        %2665 = vmatmul.bf16.gmra.mxu0 %v2073
        %v2666 = vpop.f32.mrf.mxu0
        %v2667 = vadd.f32 %v2578, %v2666
        %v2668 = vpop.f32.mrf.mxu0
        %v2669 = vadd.f32 %v2580, %v2668
        %2670 = vmatmul.bf16.gmra.mxu0 %v2078
        %v2671 = vpop.f32.mrf.mxu0
        %v2672 = vadd.f32 %v2583, %v2671
        %v2673 = vpop.f32.mrf.mxu0
        %v2674 = vadd.f32 %v2585, %v2673
        %2675 = vmatmul.bf16.gmra.mxu0 %v2083
        %v2676 = vpop.f32.mrf.mxu0
        %v2677 = vadd.f32 %v2588, %v2676
        %v2678 = vpop.f32.mrf.mxu0
        %v2679 = vadd.f32 %v2590, %v2678
        %2680 = vmatmul.bf16.gmra.mxu0 %v2088
        %v2681 = vpop.f32.mrf.mxu0
        %v2682 = vadd.f32 %v2593, %v2681
        %v2683 = vpop.f32.mrf.mxu0
        %v2684 = vadd.f32 %v2595, %v2683
        %2685 = vmatmul.bf16.gmra.mxu0 %v2093
        %v2686 = vpop.f32.mrf.mxu0
        %v2687 = vadd.f32 %v2598, %v2686
        %v2688 = vpop.f32.mrf.mxu0
        %v2689 = vadd.f32 %v2600, %v2688
        %2690 = vmatmul.bf16.gmra.mxu0 %v2098
        %v2691 = vpop.f32.mrf.mxu0
        %v2692 = vadd.f32 %v2603, %v2691
        %v2693 = vpop.f32.mrf.mxu0
        %v2694 = vadd.f32 %v2605, %v2693
        %2695 = vdwg.mxu0
        %2696 = vmatpush.bf16.msra.mxu0 %v2340
        %2697 = vmatpush.bf16.msra.mxu0 %v2339
        %2698 = vmatpush.bf16.msra.mxu0 %v2338
        %2699 = vmatpush.bf16.msra.mxu0 %v2337
        %2700 = vmatpush.bf16.msra.mxu0 %v2336
        %2701 = vmatpush.bf16.msra.mxu0 %v2335
        %2702 = vmatpush.bf16.msra.mxu0 %v2334
        %2703 = vmatpush.bf16.msra.mxu0 %v2333
        %2704 = vmatmul.bf16.gmra.mxu0 %v2024
        %v2705 = vpop.f32.mrf.mxu0
        %v2706 = vadd.f32 %v2617, %v2705
        %v2707 = vpop.f32.mrf.mxu0
        %v2708 = vadd.f32 %v2619, %v2707
        %2709 = vmatmul.bf16.gmra.mxu0 %v2029
        %v2710 = vpop.f32.mrf.mxu0
        %v2711 = vadd.f32 %v2622, %v2710
        %v2712 = vpop.f32.mrf.mxu0
        %v2713 = vadd.f32 %v2624, %v2712
        %2714 = vmatmul.bf16.gmra.mxu0 %v2034
        %v2715 = vpop.f32.mrf.mxu0
        %v2716 = vadd.f32 %v2627, %v2715
        %v2717 = vpop.f32.mrf.mxu0
        %v2718 = vadd.f32 %v2629, %v2717
        %2719 = vmatmul.bf16.gmra.mxu0 %v2039
        %v2720 = vpop.f32.mrf.mxu0
        %v2721 = vadd.f32 %v2632, %v2720
        %v2722 = vpop.f32.mrf.mxu0
        %v2723 = vadd.f32 %v2634, %v2722
        %2724 = vmatmul.bf16.gmra.mxu0 %v2044
        %v2725 = vpop.f32.mrf.mxu0
        %v2726 = vadd.f32 %v2637, %v2725
        %v2727 = vpop.f32.mrf.mxu0
        %v2728 = vadd.f32 %v2639, %v2727
        %2729 = vmatmul.bf16.gmra.mxu0 %v2049
        %v2730 = vpop.f32.mrf.mxu0
        %v2731 = vadd.f32 %v2642, %v2730
        %v2732 = vpop.f32.mrf.mxu0
        %v2733 = vadd.f32 %v2644, %v2732
        %2734 = vmatmul.bf16.gmra.mxu0 %v2054
        %v2735 = vpop.f32.mrf.mxu0
        %v2736 = vadd.f32 %v2647, %v2735
        %v2737 = vpop.f32.mrf.mxu0
        %v2738 = vadd.f32 %v2649, %v2737
        %2739 = vmatmul.bf16.gmra.mxu0 %v2059
        %v2740 = vpop.f32.mrf.mxu0
        %v2741 = vadd.f32 %v2652, %v2740
        %v2742 = vpop.f32.mrf.mxu0
        %v2743 = vadd.f32 %v2654, %v2742
        %2744 = vmatmul.bf16.gmra.mxu0 %v2064
        %v2745 = vpop.f32.mrf.mxu0
        %v2746 = vadd.f32 %v2657, %v2745
        %v2747 = vpop.f32.mrf.mxu0
        %v2748 = vadd.f32 %v2659, %v2747
        %2749 = vmatmul.bf16.gmra.mxu0 %v2069
        %v2750 = vpop.f32.mrf.mxu0
        %v2751 = vadd.f32 %v2662, %v2750
        %v2752 = vpop.f32.mrf.mxu0
        %v2753 = vadd.f32 %v2664, %v2752
        %2754 = vmatmul.bf16.gmra.mxu0 %v2074
        %v2755 = vpop.f32.mrf.mxu0
        %v2756 = vadd.f32 %v2667, %v2755
        %v2757 = vpop.f32.mrf.mxu0
        %v2758 = vadd.f32 %v2669, %v2757
        %2759 = vmatmul.bf16.gmra.mxu0 %v2079
        %v2760 = vpop.f32.mrf.mxu0
        %v2761 = vadd.f32 %v2672, %v2760
        %v2762 = vpop.f32.mrf.mxu0
        %v2763 = vadd.f32 %v2674, %v2762
        %2764 = vmatmul.bf16.gmra.mxu0 %v2084
        %v2765 = vpop.f32.mrf.mxu0
        %v2766 = vadd.f32 %v2677, %v2765
        %v2767 = vpop.f32.mrf.mxu0
        %v2768 = vadd.f32 %v2679, %v2767
        %2769 = vmatmul.bf16.gmra.mxu0 %v2089
        %v2770 = vpop.f32.mrf.mxu0
        %v2771 = vadd.f32 %v2682, %v2770
        %v2772 = vpop.f32.mrf.mxu0
        %v2773 = vadd.f32 %v2684, %v2772
        %2774 = vmatmul.bf16.gmra.mxu0 %v2094
        %v2775 = vpop.f32.mrf.mxu0
        %v2776 = vadd.f32 %v2687, %v2775
        %v2777 = vpop.f32.mrf.mxu0
        %v2778 = vadd.f32 %v2689, %v2777
        %2779 = vmatmul.bf16.gmra.mxu0 %v2099
        %v2780 = vpop.f32.mrf.mxu0
        %v2781 = vadd.f32 %v2692, %v2780
        %v2782 = vpop.f32.mrf.mxu0
        %v2783 = vadd.f32 %v2694, %v2782
        %2784 = vdwg.mxu0
        %2785 = vmatpush.bf16.msra.mxu0 0
        %2786 = vmatpush.bf16.msra.mxu0 0
        %2787 = vmatpush.bf16.msra.mxu0 0
        %2788 = vmatpush.bf16.msra.mxu0 0
        %2789 = vmatpush.bf16.msra.mxu0 %v2344
        %2790 = vmatpush.bf16.msra.mxu0 %v2343
        %2791 = vmatpush.bf16.msra.mxu0 %v2342
        %2792 = vmatpush.bf16.msra.mxu0 %v2341
        %2793 = vmatmul.bf16.gmra.mxu0 %v2382
        %v2794 = vpop.f32.mrf.mxu0
        %v2795 = vadd.f32 %v2706, %v2794
        %v2796 = vpop.f32.mrf.mxu0
        %v2797 = vadd.f32 %v2708, %v2796
        %2798 = vmatmul.bf16.gmra.mxu0 %v2385
        %v2799 = vpop.f32.mrf.mxu0
        %v2800 = vadd.f32 %v2711, %v2799
        %v2801 = vpop.f32.mrf.mxu0
        %v2802 = vadd.f32 %v2713, %v2801
        %2803 = vmatmul.bf16.gmra.mxu0 %v2388
        %v2804 = vpop.f32.mrf.mxu0
        %v2805 = vadd.f32 %v2716, %v2804
        %v2806 = vpop.f32.mrf.mxu0
        %v2807 = vadd.f32 %v2718, %v2806
        %2808 = vmatmul.bf16.gmra.mxu0 %v2391
        %v2809 = vpop.f32.mrf.mxu0
        %v2810 = vadd.f32 %v2721, %v2809
        %v2811 = vpop.f32.mrf.mxu0
        %v2812 = vadd.f32 %v2723, %v2811
        %2813 = vmatmul.bf16.gmra.mxu0 %v2394
        %v2814 = vpop.f32.mrf.mxu0
        %v2815 = vadd.f32 %v2726, %v2814
        %v2816 = vpop.f32.mrf.mxu0
        %v2817 = vadd.f32 %v2728, %v2816
        %2818 = vmatmul.bf16.gmra.mxu0 %v2397
        %v2819 = vpop.f32.mrf.mxu0
        %v2820 = vadd.f32 %v2731, %v2819
        %v2821 = vpop.f32.mrf.mxu0
        %v2822 = vadd.f32 %v2733, %v2821
        %2823 = vmatmul.bf16.gmra.mxu0 %v2400
        %v2824 = vpop.f32.mrf.mxu0
        %v2825 = vadd.f32 %v2736, %v2824
        %v2826 = vpop.f32.mrf.mxu0
        %v2827 = vadd.f32 %v2738, %v2826
        %2828 = vmatmul.bf16.gmra.mxu0 %v2403
        %v2829 = vpop.f32.mrf.mxu0
        %v2830 = vadd.f32 %v2741, %v2829
        %v2831 = vpop.f32.mrf.mxu0
        %v2832 = vadd.f32 %v2743, %v2831
        %2833 = vmatmul.bf16.gmra.mxu0 %v2406
        %v2834 = vpop.f32.mrf.mxu0
        %v2835 = vadd.f32 %v2746, %v2834
        %v2836 = vpop.f32.mrf.mxu0
        %v2837 = vadd.f32 %v2748, %v2836
        %2838 = vmatmul.bf16.gmra.mxu0 %v2409
        %v2839 = vpop.f32.mrf.mxu0
        %v2840 = vadd.f32 %v2751, %v2839
        %v2841 = vpop.f32.mrf.mxu0
        %v2842 = vadd.f32 %v2753, %v2841
        %2843 = vmatmul.bf16.gmra.mxu0 %v2412
        %v2844 = vpop.f32.mrf.mxu0
        %v2845 = vadd.f32 %v2756, %v2844
        %v2846 = vpop.f32.mrf.mxu0
        %v2847 = vadd.f32 %v2758, %v2846
        %2848 = vmatmul.bf16.gmra.mxu0 %v2415
        %v2849 = vpop.f32.mrf.mxu0
        %v2850 = vadd.f32 %v2761, %v2849
        %v2851 = vpop.f32.mrf.mxu0
        %v2852 = vadd.f32 %v2763, %v2851
        %2853 = vmatmul.bf16.gmra.mxu0 %v2418
        %v2854 = vpop.f32.mrf.mxu0
        %v2855 = vadd.f32 %v2766, %v2854
        %v2856 = vpop.f32.mrf.mxu0
        %v2857 = vadd.f32 %v2768, %v2856
        %2858 = vmatmul.bf16.gmra.mxu0 %v2421
        %v2859 = vpop.f32.mrf.mxu0
        %v2860 = vadd.f32 %v2771, %v2859
        %v2861 = vpop.f32.mrf.mxu0
        %v2862 = vadd.f32 %v2773, %v2861
        %2863 = vmatmul.bf16.gmra.mxu0 %v2424
        %v2864 = vpop.f32.mrf.mxu0
        %v2865 = vadd.f32 %v2776, %v2864
        %v2866 = vpop.f32.mrf.mxu0
        %v2867 = vadd.f32 %v2778, %v2866
        %2868 = vmatmul.bf16.gmra.mxu0 %v2427
        %v2869 = vpop.f32.mrf.mxu0
        %v2870 = vadd.f32 %v2781, %v2869
        %v2871 = vpop.f32.mrf.mxu0
        %v2872 = vadd.f32 %v2783, %v2871
        %2873 = vdwg.mxu0
        %v2874 = vld [vmem:[#allocation9] sm:$0xff]
        %v2875 = vld [vmem:[#allocation9 + $0x8] sm:$0xff]
        %v2876 = vld [vmem:[#allocation9 + $0x10] sm:$0xff]
        %v2877 = vld [vmem:[#allocation9 + $0x18] sm:$0xff]
        %v2878 = vld [vmem:[#allocation9 + $0x20] sm:$0xff]
        %v2879 = vld [vmem:[#allocation9 + $0x28] sm:$0xff]
        %v2880 = vld [vmem:[#allocation9 + $0x30] sm:$0xff]
        %v2881 = vld [vmem:[#allocation9 + $0x38] sm:$0xff]
        %v2882 = vsel %vm321, %v2795, 0.0
        %v2883 = vsel %vm321, %v2797, 0.0
        %v2884 = vadd.f32 %v2882, %v2883
        %v2885 = vsel %vm321, %v2800, 0.0
        %v2886 = vadd.f32 %v2884, %v2885
        %v2887 = vsel %vm321, %v2802, 0.0
        %v2888 = vadd.f32 %v2886, %v2887
        %v2889 = vsel %vm321, %v2805, 0.0
        %v2890 = vadd.f32 %v2888, %v2889
        %v2891 = vsel %vm321, %v2807, 0.0
        %v2892 = vadd.f32 %v2890, %v2891
        %v2893 = vsel %vm321, %v2810, 0.0
        %v2894 = vadd.f32 %v2892, %v2893
        %v2895 = vsel %vm321, %v2812, 0.0
        %v2896 = vadd.f32 %v2894, %v2895
        %v2897 = vsel %vm321, %v2815, 0.0
        %v2898 = vadd.f32 %v2896, %v2897
        %v2899 = vsel %vm321, %v2817, 0.0
        %v2900 = vadd.f32 %v2898, %v2899
        %v2901 = vsel %vm321, %v2820, 0.0
        %v2902 = vadd.f32 %v2900, %v2901
        %v2903 = vsel %vm321, %v2822, 0.0
        %v2904 = vadd.f32 %v2902, %v2903
        %v2905 = vsel %vm321, %v2825, 0.0
        %v2906 = vadd.f32 %v2904, %v2905
        %v2907 = vsel %vm321, %v2827, 0.0
        %v2908 = vadd.f32 %v2906, %v2907
        %v2909 = vsel %vm321, %v2830, 0.0
        %v2910 = vadd.f32 %v2908, %v2909
        %v2911 = vsel %vm321, %v2832, 0.0
        %v2912 = vadd.f32 %v2910, %v2911
        %v2913 = vsel %vm321, %v2835, 0.0
        %v2914 = vadd.f32 %v2912, %v2913
        %v2915 = vsel %vm321, %v2837, 0.0
        %v2916 = vadd.f32 %v2914, %v2915
        %v2917 = vsel %vm321, %v2840, 0.0
        %v2918 = vadd.f32 %v2916, %v2917
        %v2919 = vsel %vm321, %v2842, 0.0
        %v2920 = vadd.f32 %v2918, %v2919
        %v2921 = vsel %vm321, %v2845, 0.0
        %v2922 = vadd.f32 %v2920, %v2921
        %v2923 = vsel %vm321, %v2847, 0.0
        %v2924 = vadd.f32 %v2922, %v2923
        %v2925 = vsel %vm321, %v2850, 0.0
        %v2926 = vadd.f32 %v2924, %v2925
        %v2927 = vsel %vm321, %v2852, 0.0
        %v2928 = vadd.f32 %v2926, %v2927
        %v2929 = vsel %vm321, %v2855, 0.0
        %v2930 = vadd.f32 %v2928, %v2929
        %v2931 = vsel %vm321, %v2857, 0.0
        %v2932 = vadd.f32 %v2930, %v2931
        %v2933 = vsel %vm321, %v2860, 0.0
        %v2934 = vadd.f32 %v2932, %v2933
        %v2935 = vsel %vm321, %v2862, 0.0
        %v2936 = vadd.f32 %v2934, %v2935
        %v2937 = vsel %vm321, %v2865, 0.0
        %v2938 = vadd.f32 %v2936, %v2937
        %v2939 = vsel %vm321, %v2867, 0.0
        %v2940 = vadd.f32 %v2938, %v2939
        %v2941 = vsel %vm321, %v2870, 0.0
        %v2942 = vadd.f32 %v2940, %v2941
        %v2943 = vsel %vm321, %v2872, 0.0
        %v2944 = vadd.f32 %v2942, %v2943
        %v2945 = vrot.slane %v2944, 4
        %v2946 = vadd.f32 %v2944, %v2945
        %v2947 = vrot.slane %v2946, 2
        %v2948 = vadd.f32 %v2946, %v2947
        %v2949 = vrot.slane %v2948, 1
        %v2950 = vadd.f32 %v2948, %v2949
        %v2951 = vmul.f32 %v2795, %v2795
        %v2952 = vmul.f32 %v2797, %v2797
        %v2953 = vmul.f32 %v2800, %v2800
        %v2954 = vmul.f32 %v2802, %v2802
        %v2955 = vmul.f32 %v2805, %v2805
        %v2956 = vmul.f32 %v2807, %v2807
        %v2957 = vmul.f32 %v2810, %v2810
        %v2958 = vmul.f32 %v2812, %v2812
        %v2959 = vmul.f32 %v2815, %v2815
        %v2960 = vmul.f32 %v2817, %v2817
        %v2961 = vmul.f32 %v2820, %v2820
        %v2962 = vmul.f32 %v2822, %v2822
        %v2963 = vmul.f32 %v2825, %v2825
        %v2964 = vmul.f32 %v2827, %v2827
        %v2965 = vmul.f32 %v2830, %v2830
        %v2966 = vmul.f32 %v2832, %v2832
        %v2967 = vmul.f32 %v2835, %v2835
        %v2968 = vmul.f32 %v2837, %v2837
        %v2969 = vmul.f32 %v2840, %v2840
        %v2970 = vmul.f32 %v2842, %v2842
        %v2971 = vmul.f32 %v2845, %v2845
        %v2972 = vmul.f32 %v2847, %v2847
        %v2973 = vmul.f32 %v2850, %v2850
        %v2974 = vmul.f32 %v2852, %v2852
        %v2975 = vmul.f32 %v2855, %v2855
        %v2976 = vmul.f32 %v2857, %v2857
        %v2977 = vmul.f32 %v2860, %v2860
        %v2978 = vmul.f32 %v2862, %v2862
        %v2979 = vmul.f32 %v2865, %v2865
        %v2980 = vmul.f32 %v2867, %v2867
        %v2981 = vmul.f32 %v2870, %v2870
        %v2982 = vmul.f32 %v2872, %v2872
        %v2983 = vsel %vm321, %v2951, 0.0
        %v2984 = vsel %vm321, %v2952, 0.0
        %v2985 = vadd.f32 %v2983, %v2984
        %v2986 = vsel %vm321, %v2953, 0.0
        %v2987 = vadd.f32 %v2985, %v2986
        %v2988 = vsel %vm321, %v2954, 0.0
        %v2989 = vadd.f32 %v2987, %v2988
        %v2990 = vsel %vm321, %v2955, 0.0
        %v2991 = vadd.f32 %v2989, %v2990
        %v2992 = vsel %vm321, %v2956, 0.0
        %v2993 = vadd.f32 %v2991, %v2992
        %v2994 = vsel %vm321, %v2957, 0.0
        %v2995 = vadd.f32 %v2993, %v2994
        %v2996 = vsel %vm321, %v2958, 0.0
        %v2997 = vadd.f32 %v2995, %v2996
        %v2998 = vsel %vm321, %v2959, 0.0
        %v2999 = vadd.f32 %v2997, %v2998
        %v3000 = vsel %vm321, %v2960, 0.0
        %v3001 = vadd.f32 %v2999, %v3000
        %v3002 = vsel %vm321, %v2961, 0.0
        %v3003 = vadd.f32 %v3001, %v3002
        %v3004 = vsel %vm321, %v2962, 0.0
        %v3005 = vadd.f32 %v3003, %v3004
        %v3006 = vsel %vm321, %v2963, 0.0
        %v3007 = vadd.f32 %v3005, %v3006
        %v3008 = vsel %vm321, %v2964, 0.0
        %v3009 = vadd.f32 %v3007, %v3008
        %v3010 = vsel %vm321, %v2965, 0.0
        %v3011 = vadd.f32 %v3009, %v3010
        %v3012 = vsel %vm321, %v2966, 0.0
        %v3013 = vadd.f32 %v3011, %v3012
        %v3014 = vsel %vm321, %v2967, 0.0
        %v3015 = vadd.f32 %v3013, %v3014
        %v3016 = vsel %vm321, %v2968, 0.0
        %v3017 = vadd.f32 %v3015, %v3016
        %v3018 = vsel %vm321, %v2969, 0.0
        %v3019 = vadd.f32 %v3017, %v3018
        %v3020 = vsel %vm321, %v2970, 0.0
        %v3021 = vadd.f32 %v3019, %v3020
        %v3022 = vsel %vm321, %v2971, 0.0
        %v3023 = vadd.f32 %v3021, %v3022
        %v3024 = vsel %vm321, %v2972, 0.0
        %v3025 = vadd.f32 %v3023, %v3024
        %v3026 = vsel %vm321, %v2973, 0.0
        %v3027 = vadd.f32 %v3025, %v3026
        %v3028 = vsel %vm321, %v2974, 0.0
        %v3029 = vadd.f32 %v3027, %v3028
        %v3030 = vsel %vm321, %v2975, 0.0
        %v3031 = vadd.f32 %v3029, %v3030
        %v3032 = vsel %vm321, %v2976, 0.0
        %v3033 = vadd.f32 %v3031, %v3032
        %v3034 = vsel %vm321, %v2977, 0.0
        %v3035 = vadd.f32 %v3033, %v3034
        %v3036 = vsel %vm321, %v2978, 0.0
        %v3037 = vadd.f32 %v3035, %v3036
        %v3038 = vsel %vm321, %v2979, 0.0
        %v3039 = vadd.f32 %v3037, %v3038
        %v3040 = vsel %vm321, %v2980, 0.0
        %v3041 = vadd.f32 %v3039, %v3040
        %v3042 = vsel %vm321, %v2981, 0.0
        %v3043 = vadd.f32 %v3041, %v3042
        %v3044 = vsel %vm321, %v2982, 0.0
        %v3045 = vadd.f32 %v3043, %v3044
        %v3046 = vrot.slane %v3045, 4
        %v3047 = vadd.f32 %v3045, %v3046
        %v3048 = vrot.slane %v3047, 2
        %v3049 = vadd.f32 %v3047, %v3048
        %v3050 = vrot.slane %v3049, 1
        %v3051 = vadd.f32 %v3049, %v3050
        %vm3052 = vcmask 1040384
        %v3053 = vsel %vm3052, %v2950, %v3051
        %v3055 = vsel %vm321, %v3053, 0
        %3057 = vmatpush.msra.mxu0 0.0
        %3058 = vmatpush.msra.mxu0 0.0
        %3059 = vmatpush.msra.mxu0 0.0
        %3060 = vmatpush.msra.mxu0 0.0
        %3061 = vmatpush.msra.mxu0 0.0
        %3062 = vmatpush.msra.mxu0 0.0
        %3063 = vmatpush.msra.mxu0 0.0
        %3064 = vmatpush.msra.mxu0 0.0
        %3065 = vmatpush.msra.mxu0 %v2881
        %3066 = vmatpush.msra.mxu0 %v2880
        %3067 = vmatpush.msra.mxu0 %v2879
        %3068 = vmatpush.msra.mxu0 %v2878
        %3069 = vmatpush.msra.mxu0 %v2877
        %3070 = vmatpush.msra.mxu0 %v2876
        %3071 = vmatpush.msra.mxu0 %v2875
        %3072 = vmatpush.msra.mxu0 %v2874
        %3073 = vmatmul.f32.gmra.mxu0 %v3055
        %v3074 = vpop.f32.mrf.mxu0
        %v3075 = vadd.f32 0.0, %v3074
        %3076 = vdwg.mxu0
        %v3077 = vmul.f32 %v3075, %v3075
        %v3079 = vrot.slane %v3077, 7
        %v3081 = vsub.f32 %v3075, %v3079
        %v3082 = vmax.f32 %v3081, 0.0
        %v3083 = vadd.f32 %v3082, 1e-05
        %v3084 = vrsqrt.pop %v3083
        %v3085 = vmul.f32 %v3084, %v3083
        %v3086 = vmul.f32 %v3085, %v3084
        %v3087 = vmul.f32 0.5, %v3086
        %v3088 = vsub.f32 1.5, %v3087
        %v3089 = vmul.f32 %v3084, %v3088
        %vm3090 = vweird.f32 %v3083
        %vm3091 = vweird.f32 %v3084
        %vm3092 = vmor %vm3090, %vm3091
        %v3093 = vsel %vm3092, %v3084, %v3089
        %v3094 = vperm.slane %v3075, 0
        %v3095 = vsub.f32 %v2795, %v3094
        %v3096 = vsub.f32 %v2797, %v3094
        %v3097 = vsub.f32 %v2800, %v3094
        %v3098 = vsub.f32 %v2802, %v3094
        %v3099 = vsub.f32 %v2805, %v3094
        %v3100 = vsub.f32 %v2807, %v3094
        %v3101 = vsub.f32 %v2810, %v3094
        %v3102 = vsub.f32 %v2812, %v3094
        %v3103 = vsub.f32 %v2815, %v3094
        %v3104 = vsub.f32 %v2817, %v3094
        %v3105 = vsub.f32 %v2820, %v3094
        %v3106 = vsub.f32 %v2822, %v3094
        %v3107 = vsub.f32 %v2825, %v3094
        %v3108 = vsub.f32 %v2827, %v3094
        %v3109 = vsub.f32 %v2830, %v3094
        %v3110 = vsub.f32 %v2832, %v3094
        %v3111 = vsub.f32 %v2835, %v3094
        %v3112 = vsub.f32 %v2837, %v3094
        %v3113 = vsub.f32 %v2840, %v3094
        %v3114 = vsub.f32 %v2842, %v3094
        %v3115 = vsub.f32 %v2845, %v3094
        %v3116 = vsub.f32 %v2847, %v3094
        %v3117 = vsub.f32 %v2850, %v3094
        %v3118 = vsub.f32 %v2852, %v3094
        %v3119 = vsub.f32 %v2855, %v3094
        %v3120 = vsub.f32 %v2857, %v3094
        %v3121 = vsub.f32 %v2860, %v3094
        %v3122 = vsub.f32 %v2862, %v3094
        %v3123 = vsub.f32 %v2865, %v3094
        %v3124 = vsub.f32 %v2867, %v3094
        %v3125 = vsub.f32 %v2870, %v3094
        %v3126 = vsub.f32 %v2872, %v3094
        %v3127 = vperm.slane %v3093, 1
        %v3128 = vmul.f32 %v3095, %v3127
        %v3129 = vmul.f32 %v3096, %v3127
        %v3130 = vmul.f32 %v3097, %v3127
        %v3131 = vmul.f32 %v3098, %v3127
        %v3132 = vmul.f32 %v3099, %v3127
        %v3133 = vmul.f32 %v3100, %v3127
        %v3134 = vmul.f32 %v3101, %v3127
        %v3135 = vmul.f32 %v3102, %v3127
        %v3136 = vmul.f32 %v3103, %v3127
        %v3137 = vmul.f32 %v3104, %v3127
        %v3138 = vmul.f32 %v3105, %v3127
        %v3139 = vmul.f32 %v3106, %v3127
        %v3140 = vmul.f32 %v3107, %v3127
        %v3141 = vmul.f32 %v3108, %v3127
        %v3142 = vmul.f32 %v3109, %v3127
        %v3143 = vmul.f32 %v3110, %v3127
        %v3144 = vmul.f32 %v3111, %v3127
        %v3145 = vmul.f32 %v3112, %v3127
        %v3146 = vmul.f32 %v3113, %v3127
        %v3147 = vmul.f32 %v3114, %v3127
        %v3148 = vmul.f32 %v3115, %v3127
        %v3149 = vmul.f32 %v3116, %v3127
        %v3150 = vmul.f32 %v3117, %v3127
        %v3151 = vmul.f32 %v3118, %v3127
        %v3152 = vmul.f32 %v3119, %v3127
        %v3153 = vmul.f32 %v3120, %v3127
        %v3154 = vmul.f32 %v3121, %v3127
        %v3155 = vmul.f32 %v3122, %v3127
        %v3156 = vmul.f32 %v3123, %v3127
        %v3157 = vmul.f32 %v3124, %v3127
        %v3158 = vmul.f32 %v3125, %v3127
        %v3159 = vmul.f32 %v3126, %v3127
        %v3160 = vperm.slane %v1689, 0
        %v3161 = vmul.f32 %v3128, %v3160
        %v3162 = vmul.f32 %v3129, %v3160
        %v3163 = vmul.f32 %v3130, %v3160
        %v3164 = vmul.f32 %v3131, %v3160
        %v3165 = vmul.f32 %v3132, %v3160
        %v3166 = vmul.f32 %v3133, %v3160
        %v3167 = vmul.f32 %v3134, %v3160
        %v3168 = vmul.f32 %v3135, %v3160
        %v3169 = vmul.f32 %v3136, %v3160
        %v3170 = vmul.f32 %v3137, %v3160
        %v3171 = vmul.f32 %v3138, %v3160
        %v3172 = vmul.f32 %v3139, %v3160
        %v3173 = vmul.f32 %v3140, %v3160
        %v3174 = vmul.f32 %v3141, %v3160
        %v3175 = vmul.f32 %v3142, %v3160
        %v3176 = vmul.f32 %v3143, %v3160
        %v3177 = vmul.f32 %v3144, %v3160
        %v3178 = vmul.f32 %v3145, %v3160
        %v3179 = vmul.f32 %v3146, %v3160
        %v3180 = vmul.f32 %v3147, %v3160
        %v3181 = vmul.f32 %v3148, %v3160
        %v3182 = vmul.f32 %v3149, %v3160
        %v3183 = vmul.f32 %v3150, %v3160
        %v3184 = vmul.f32 %v3151, %v3160
        %v3185 = vmul.f32 %v3152, %v3160
        %v3186 = vmul.f32 %v3153, %v3160
        %v3187 = vmul.f32 %v3154, %v3160
        %v3188 = vmul.f32 %v3155, %v3160
        %v3189 = vmul.f32 %v3156, %v3160
        %v3190 = vmul.f32 %v3157, %v3160
        %v3191 = vmul.f32 %v3158, %v3160
        %v3192 = vmul.f32 %v3159, %v3160
        %v3193 = vperm.slane %v1690, 0
        %v3194 = vadd.f32 %v3161, %v3193
        %v3195 = vadd.f32 %v3162, %v3193
        %v3196 = vadd.f32 %v3163, %v3193
        %v3197 = vadd.f32 %v3164, %v3193
        %v3198 = vadd.f32 %v3165, %v3193
        %v3199 = vadd.f32 %v3166, %v3193
        %v3200 = vadd.f32 %v3167, %v3193
        %v3201 = vadd.f32 %v3168, %v3193
        %v3202 = vadd.f32 %v3169, %v3193
        %v3203 = vadd.f32 %v3170, %v3193
        %v3204 = vadd.f32 %v3171, %v3193
        %v3205 = vadd.f32 %v3172, %v3193
        %v3206 = vadd.f32 %v3173, %v3193
        %v3207 = vadd.f32 %v3174, %v3193
        %v3208 = vadd.f32 %v3175, %v3193
        %v3209 = vadd.f32 %v3176, %v3193
        %v3210 = vadd.f32 %v3177, %v3193
        %v3211 = vadd.f32 %v3178, %v3193
        %v3212 = vadd.f32 %v3179, %v3193
        %v3213 = vadd.f32 %v3180, %v3193
        %v3214 = vadd.f32 %v3181, %v3193
        %v3215 = vadd.f32 %v3182, %v3193
        %v3216 = vadd.f32 %v3183, %v3193
        %v3217 = vadd.f32 %v3184, %v3193
        %v3218 = vadd.f32 %v3185, %v3193
        %v3219 = vadd.f32 %v3186, %v3193
        %v3220 = vadd.f32 %v3187, %v3193
        %v3221 = vadd.f32 %v3188, %v3193
        %v3222 = vadd.f32 %v3189, %v3193
        %v3223 = vadd.f32 %v3190, %v3193
        %v3224 = vadd.f32 %v3191, %v3193
        %v3225 = vadd.f32 %v3192, %v3193
        %vm3226 = vcmp.gt.f32.partialorder %v3194, 0.0
        %vm3227 = vcmp.gt.f32.partialorder %v3195, 0.0
        %vm3228 = vcmp.gt.f32.partialorder %v3196, 0.0
        %vm3229 = vcmp.gt.f32.partialorder %v3197, 0.0
        %vm3230 = vcmp.gt.f32.partialorder %v3198, 0.0
        %vm3231 = vcmp.gt.f32.partialorder %v3199, 0.0
        %vm3232 = vcmp.gt.f32.partialorder %v3200, 0.0
        %vm3233 = vcmp.gt.f32.partialorder %v3201, 0.0
        %vm3234 = vcmp.gt.f32.partialorder %v3202, 0.0
        %vm3235 = vcmp.gt.f32.partialorder %v3203, 0.0
        %vm3236 = vcmp.gt.f32.partialorder %v3204, 0.0
        %vm3237 = vcmp.gt.f32.partialorder %v3205, 0.0
        %vm3238 = vcmp.gt.f32.partialorder %v3206, 0.0
        %vm3239 = vcmp.gt.f32.partialorder %v3207, 0.0
        %vm3240 = vcmp.gt.f32.partialorder %v3208, 0.0
        %vm3241 = vcmp.gt.f32.partialorder %v3209, 0.0
        %vm3242 = vcmp.gt.f32.partialorder %v3210, 0.0
        %vm3243 = vcmp.gt.f32.partialorder %v3211, 0.0
        %vm3244 = vcmp.gt.f32.partialorder %v3212, 0.0
        %vm3245 = vcmp.gt.f32.partialorder %v3213, 0.0
        %vm3246 = vcmp.gt.f32.partialorder %v3214, 0.0
        %vm3247 = vcmp.gt.f32.partialorder %v3215, 0.0
        %vm3248 = vcmp.gt.f32.partialorder %v3216, 0.0
        %vm3249 = vcmp.gt.f32.partialorder %v3217, 0.0
        %vm3250 = vcmp.gt.f32.partialorder %v3218, 0.0
        %vm3251 = vcmp.gt.f32.partialorder %v3219, 0.0
        %vm3252 = vcmp.gt.f32.partialorder %v3220, 0.0
        %vm3253 = vcmp.gt.f32.partialorder %v3221, 0.0
        %vm3254 = vcmp.gt.f32.partialorder %v3222, 0.0
        %vm3255 = vcmp.gt.f32.partialorder %v3223, 0.0
        %vm3256 = vcmp.gt.f32.partialorder %v3224, 0.0
        %vm3257 = vcmp.gt.f32.partialorder %v3225, 0.0
        %v3258 = vperm.slane %v1691, 0
        %v3259 = vmul.f32 %v3258, %v3194
        %v3260 = vmul.f32 %v3258, %v3195
        %v3261 = vmul.f32 %v3258, %v3196
        %v3262 = vmul.f32 %v3258, %v3197
        %v3263 = vmul.f32 %v3258, %v3198
        %v3264 = vmul.f32 %v3258, %v3199
        %v3265 = vmul.f32 %v3258, %v3200
        %v3266 = vmul.f32 %v3258, %v3201
        %v3267 = vmul.f32 %v3258, %v3202
        %v3268 = vmul.f32 %v3258, %v3203
        %v3269 = vmul.f32 %v3258, %v3204
        %v3270 = vmul.f32 %v3258, %v3205
        %v3271 = vmul.f32 %v3258, %v3206
        %v3272 = vmul.f32 %v3258, %v3207
        %v3273 = vmul.f32 %v3258, %v3208
        %v3274 = vmul.f32 %v3258, %v3209
        %v3275 = vmul.f32 %v3258, %v3210
        %v3276 = vmul.f32 %v3258, %v3211
        %v3277 = vmul.f32 %v3258, %v3212
        %v3278 = vmul.f32 %v3258, %v3213
        %v3279 = vmul.f32 %v3258, %v3214
        %v3280 = vmul.f32 %v3258, %v3215
        %v3281 = vmul.f32 %v3258, %v3216
        %v3282 = vmul.f32 %v3258, %v3217
        %v3283 = vmul.f32 %v3258, %v3218
        %v3284 = vmul.f32 %v3258, %v3219
        %v3285 = vmul.f32 %v3258, %v3220
        %v3286 = vmul.f32 %v3258, %v3221
        %v3287 = vmul.f32 %v3258, %v3222
        %v3288 = vmul.f32 %v3258, %v3223
        %v3289 = vmul.f32 %v3258, %v3224
        %v3290 = vmul.f32 %v3258, %v3225
        %v3291 = vsel %vm3226, %v3194, %v3259
        %v3292 = vsel %vm3227, %v3195, %v3260
        %v3293 = vsel %vm3228, %v3196, %v3261
        %v3294 = vsel %vm3229, %v3197, %v3262
        %v3295 = vsel %vm3230, %v3198, %v3263
        %v3296 = vsel %vm3231, %v3199, %v3264
        %v3297 = vsel %vm3232, %v3200, %v3265
        %v3298 = vsel %vm3233, %v3201, %v3266
        %v3299 = vsel %vm3234, %v3202, %v3267
        %v3300 = vsel %vm3235, %v3203, %v3268
        %v3301 = vsel %vm3236, %v3204, %v3269
        %v3302 = vsel %vm3237, %v3205, %v3270
        %v3303 = vsel %vm3238, %v3206, %v3271
        %v3304 = vsel %vm3239, %v3207, %v3272
        %v3305 = vsel %vm3240, %v3208, %v3273
        %v3306 = vsel %vm3241, %v3209, %v3274
        %v3307 = vsel %vm3242, %v3210, %v3275
        %v3308 = vsel %vm3243, %v3211, %v3276
        %v3309 = vsel %vm3244, %v3212, %v3277
        %v3310 = vsel %vm3245, %v3213, %v3278
        %v3311 = vsel %vm3246, %v3214, %v3279
        %v3312 = vsel %vm3247, %v3215, %v3280
        %v3313 = vsel %vm3248, %v3216, %v3281
        %v3314 = vsel %vm3249, %v3217, %v3282
        %v3315 = vsel %vm3250, %v3218, %v3283
        %v3316 = vsel %vm3251, %v3219, %v3284
        %v3317 = vsel %vm3252, %v3220, %v3285
        %v3318 = vsel %vm3253, %v3221, %v3286
        %v3319 = vsel %vm3254, %v3222, %v3287
        %v3320 = vsel %vm3255, %v3223, %v3288
        %v3321 = vsel %vm3256, %v3224, %v3289
        %v3322 = vsel %vm3257, %v3225, %v3290
        %v3323 = vld [vmem:[%s5 + $0x8] sm:$0x1]
        %v3324 = vld [vmem:[#allocation7] sm:$0xff]
        %v3325 = vld [vmem:[#allocation7 + $0x8] sm:$0xff]
        %v3326 = vld [vmem:[#allocation7 + $0x10] sm:$0xff]
        %v3327 = vld [vmem:[#allocation7 + $0x18] sm:$0xff]
        %v3328 = vld [vmem:[#allocation7 + $0x20] sm:$0xff]
        %v3329 = vld [vmem:[#allocation7 + $0x28] sm:$0xff]
        %v3330 = vld [vmem:[#allocation7 + $0x30] sm:$0xff]
        %v3331 = vld [vmem:[#allocation7 + $0x38] sm:$0xff]
        %v3332 = vperm.slane %v3323, 0
        %v3334 = vsel %vm321, %v3291, 0
        %v3337 = vsel %vm321, %v3292, 0
        %v3340 = vsel %vm321, %v3293, 0
        %v3343 = vsel %vm321, %v3294, 0
        %v3346 = vsel %vm321, %v3295, 0
        %v3349 = vsel %vm321, %v3296, 0
        %v3352 = vsel %vm321, %v3297, 0
        %v3355 = vsel %vm321, %v3298, 0
        %v3358 = vsel %vm321, %v3299, 0
        %v3361 = vsel %vm321, %v3300, 0
        %v3364 = vsel %vm321, %v3301, 0
        %v3367 = vsel %vm321, %v3302, 0
        %v3370 = vsel %vm321, %v3303, 0
        %v3373 = vsel %vm321, %v3304, 0
        %v3376 = vsel %vm321, %v3305, 0
        %v3379 = vsel %vm321, %v3306, 0
        %v3382 = vsel %vm321, %v3307, 0
        %v3385 = vsel %vm321, %v3308, 0
        %v3388 = vsel %vm321, %v3309, 0
        %v3391 = vsel %vm321, %v3310, 0
        %v3394 = vsel %vm321, %v3311, 0
        %v3397 = vsel %vm321, %v3312, 0
        %v3400 = vsel %vm321, %v3313, 0
        %v3403 = vsel %vm321, %v3314, 0
        %v3406 = vsel %vm321, %v3315, 0
        %v3409 = vsel %vm321, %v3316, 0
        %v3412 = vsel %vm321, %v3317, 0
        %v3415 = vsel %vm321, %v3318, 0
        %v3418 = vsel %vm321, %v3319, 0
        %v3421 = vsel %vm321, %v3320, 0
        %v3424 = vsel %vm321, %v3321, 0
        %v3427 = vsel %vm321, %v3322, 0
        %3429 = vmatpush.msra.mxu0 0.0
        %3430 = vmatpush.msra.mxu0 0.0
        %3431 = vmatpush.msra.mxu0 0.0
        %3432 = vmatpush.msra.mxu0 0.0
        %3433 = vmatpush.msra.mxu0 0.0
        %3434 = vmatpush.msra.mxu0 0.0
        %3435 = vmatpush.msra.mxu0 0.0
        %3436 = vmatpush.msra.mxu0 0.0
        %3437 = vmatpush.msra.mxu0 %v3331
        %3438 = vmatpush.msra.mxu0 %v3330
        %3439 = vmatpush.msra.mxu0 %v3329
        %3440 = vmatpush.msra.mxu0 %v3328
        %3441 = vmatpush.msra.mxu0 %v3327
        %3442 = vmatpush.msra.mxu0 %v3326
        %3443 = vmatpush.msra.mxu0 %v3325
        %3444 = vmatpush.msra.mxu0 %v3324
        %3445 = vmatmul.f32.gmra.mxu0 %v3334
        %v3446 = vpop.f32.mrf.mxu0
        %v3447 = vadd.f32 %v3332, %v3446
        %3448 = vmatmul.f32.gmra.mxu0 %v3337
        %v3449 = vpop.f32.mrf.mxu0
        %v3450 = vadd.f32 %v3332, %v3449
        %3451 = vmatmul.f32.gmra.mxu0 %v3340
        %v3452 = vpop.f32.mrf.mxu0
        %v3453 = vadd.f32 %v3332, %v3452
        %3454 = vmatmul.f32.gmra.mxu0 %v3343
        %v3455 = vpop.f32.mrf.mxu0
        %v3456 = vadd.f32 %v3332, %v3455
        %3457 = vmatmul.f32.gmra.mxu0 %v3346
        %v3458 = vpop.f32.mrf.mxu0
        %v3459 = vadd.f32 %v3332, %v3458
        %3460 = vmatmul.f32.gmra.mxu0 %v3349
        %v3461 = vpop.f32.mrf.mxu0
        %v3462 = vadd.f32 %v3332, %v3461
        %3463 = vmatmul.f32.gmra.mxu0 %v3352
        %v3464 = vpop.f32.mrf.mxu0
        %v3465 = vadd.f32 %v3332, %v3464
        %3466 = vmatmul.f32.gmra.mxu0 %v3355
        %v3467 = vpop.f32.mrf.mxu0
        %v3468 = vadd.f32 %v3332, %v3467
        %3469 = vmatmul.f32.gmra.mxu0 %v3358
        %v3470 = vpop.f32.mrf.mxu0
        %v3471 = vadd.f32 %v3332, %v3470
        %3472 = vmatmul.f32.gmra.mxu0 %v3361
        %v3473 = vpop.f32.mrf.mxu0
        %v3474 = vadd.f32 %v3332, %v3473
        %3475 = vmatmul.f32.gmra.mxu0 %v3364
        %v3476 = vpop.f32.mrf.mxu0
        %v3477 = vadd.f32 %v3332, %v3476
        %3478 = vmatmul.f32.gmra.mxu0 %v3367
        %v3479 = vpop.f32.mrf.mxu0
        %v3480 = vadd.f32 %v3332, %v3479
        %3481 = vmatmul.f32.gmra.mxu0 %v3370
        %v3482 = vpop.f32.mrf.mxu0
        %v3483 = vadd.f32 %v3332, %v3482
        %3484 = vmatmul.f32.gmra.mxu0 %v3373
        %v3485 = vpop.f32.mrf.mxu0
        %v3486 = vadd.f32 %v3332, %v3485
        %3487 = vmatmul.f32.gmra.mxu0 %v3376
        %v3488 = vpop.f32.mrf.mxu0
        %v3489 = vadd.f32 %v3332, %v3488
        %3490 = vmatmul.f32.gmra.mxu0 %v3379
        %v3491 = vpop.f32.mrf.mxu0
        %v3492 = vadd.f32 %v3332, %v3491
        %3493 = vmatmul.f32.gmra.mxu0 %v3382
        %v3494 = vpop.f32.mrf.mxu0
        %v3495 = vadd.f32 %v3332, %v3494
        %3496 = vmatmul.f32.gmra.mxu0 %v3385
        %v3497 = vpop.f32.mrf.mxu0
        %v3498 = vadd.f32 %v3332, %v3497
        %3499 = vmatmul.f32.gmra.mxu0 %v3388
        %v3500 = vpop.f32.mrf.mxu0
        %v3501 = vadd.f32 %v3332, %v3500
        %3502 = vmatmul.f32.gmra.mxu0 %v3391
        %v3503 = vpop.f32.mrf.mxu0
        %v3504 = vadd.f32 %v3332, %v3503
        %3505 = vmatmul.f32.gmra.mxu0 %v3394
        %v3506 = vpop.f32.mrf.mxu0
        %v3507 = vadd.f32 %v3332, %v3506
        %3508 = vmatmul.f32.gmra.mxu0 %v3397
        %v3509 = vpop.f32.mrf.mxu0
        %v3510 = vadd.f32 %v3332, %v3509
        %3511 = vmatmul.f32.gmra.mxu0 %v3400
        %v3512 = vpop.f32.mrf.mxu0
        %v3513 = vadd.f32 %v3332, %v3512
        %3514 = vmatmul.f32.gmra.mxu0 %v3403
        %v3515 = vpop.f32.mrf.mxu0
        %v3516 = vadd.f32 %v3332, %v3515
        %3517 = vmatmul.f32.gmra.mxu0 %v3406
        %v3518 = vpop.f32.mrf.mxu0
        %v3519 = vadd.f32 %v3332, %v3518
        %3520 = vmatmul.f32.gmra.mxu0 %v3409
        %v3521 = vpop.f32.mrf.mxu0
        %v3522 = vadd.f32 %v3332, %v3521
        %3523 = vmatmul.f32.gmra.mxu0 %v3412
        %v3524 = vpop.f32.mrf.mxu0
        %v3525 = vadd.f32 %v3332, %v3524
        %3526 = vmatmul.f32.gmra.mxu0 %v3415
        %v3527 = vpop.f32.mrf.mxu0
        %v3528 = vadd.f32 %v3332, %v3527
        %3529 = vmatmul.f32.gmra.mxu0 %v3418
        %v3530 = vpop.f32.mrf.mxu0
        %v3531 = vadd.f32 %v3332, %v3530
        %3532 = vmatmul.f32.gmra.mxu0 %v3421
        %v3533 = vpop.f32.mrf.mxu0
        %v3534 = vadd.f32 %v3332, %v3533
        %3535 = vmatmul.f32.gmra.mxu0 %v3424
        %v3536 = vpop.f32.mrf.mxu0
        %v3537 = vadd.f32 %v3332, %v3536
        %3538 = vmatmul.f32.gmra.mxu0 %v3427
        %v3539 = vpop.f32.mrf.mxu0
        %v3540 = vadd.f32 %v3332, %v3539
        %3541 = vdwg.mxu0
        %v3542 = vxor.u32 %v3447, 2147483648
        %v3543 = vxor.u32 %v3450, 2147483648
        %v3544 = vxor.u32 %v3453, 2147483648
        %v3545 = vxor.u32 %v3456, 2147483648
        %v3546 = vxor.u32 %v3459, 2147483648
        %v3547 = vxor.u32 %v3462, 2147483648
        %v3548 = vxor.u32 %v3465, 2147483648
        %v3549 = vxor.u32 %v3468, 2147483648
        %v3550 = vxor.u32 %v3471, 2147483648
        %v3551 = vxor.u32 %v3474, 2147483648
        %v3552 = vxor.u32 %v3477, 2147483648
        %v3553 = vxor.u32 %v3480, 2147483648
        %v3554 = vxor.u32 %v3483, 2147483648
        %v3555 = vxor.u32 %v3486, 2147483648
        %v3556 = vxor.u32 %v3489, 2147483648
        %v3557 = vxor.u32 %v3492, 2147483648
        %v3558 = vxor.u32 %v3495, 2147483648
        %v3559 = vxor.u32 %v3498, 2147483648
        %v3560 = vxor.u32 %v3501, 2147483648
        %v3561 = vxor.u32 %v3504, 2147483648
        %v3562 = vxor.u32 %v3507, 2147483648
        %v3563 = vxor.u32 %v3510, 2147483648
        %v3564 = vxor.u32 %v3513, 2147483648
        %v3565 = vxor.u32 %v3516, 2147483648
        %v3566 = vxor.u32 %v3519, 2147483648
        %v3567 = vxor.u32 %v3522, 2147483648
        %v3568 = vxor.u32 %v3525, 2147483648
        %v3569 = vxor.u32 %v3528, 2147483648
        %v3570 = vxor.u32 %v3531, 2147483648
        %v3571 = vxor.u32 %v3534, 2147483648
        %v3572 = vxor.u32 %v3537, 2147483648
        %v3573 = vxor.u32 %v3540, 2147483648
        %v3574 = vmul.f32 %v3542, 1.442695
        %v3575 = vpow.pop %v3574
        %v3576 = vmul.f32 %v3543, 1.442695
        %v3577 = vpow.pop %v3576
        %v3578 = vmul.f32 %v3544, 1.442695
        %v3579 = vpow.pop %v3578
        %v3580 = vmul.f32 %v3545, 1.442695
        %v3581 = vpow.pop %v3580
        %v3582 = vmul.f32 %v3546, 1.442695
        %v3583 = vpow.pop %v3582
        %v3584 = vmul.f32 %v3547, 1.442695
        %v3585 = vpow.pop %v3584
        %v3586 = vmul.f32 %v3548, 1.442695
        %v3587 = vpow.pop %v3586
        %v3588 = vmul.f32 %v3549, 1.442695
        %v3589 = vpow.pop %v3588
        %v3590 = vmul.f32 %v3550, 1.442695
        %v3591 = vpow.pop %v3590
        %v3592 = vmul.f32 %v3551, 1.442695
        %v3593 = vpow.pop %v3592
        %v3594 = vmul.f32 %v3552, 1.442695
        %v3595 = vpow.pop %v3594
        %v3596 = vmul.f32 %v3553, 1.442695
        %v3597 = vpow.pop %v3596
        %v3598 = vmul.f32 %v3554, 1.442695
        %v3599 = vpow.pop %v3598
        %v3600 = vmul.f32 %v3555, 1.442695
        %v3601 = vpow.pop %v3600
        %v3602 = vmul.f32 %v3556, 1.442695
        %v3603 = vpow.pop %v3602
        %v3604 = vmul.f32 %v3557, 1.442695
        %v3605 = vpow.pop %v3604
        %v3606 = vmul.f32 %v3558, 1.442695
        %v3607 = vpow.pop %v3606
        %v3608 = vmul.f32 %v3559, 1.442695
        %v3609 = vpow.pop %v3608
        %v3610 = vmul.f32 %v3560, 1.442695
        %v3611 = vpow.pop %v3610
        %v3612 = vmul.f32 %v3561, 1.442695
        %v3613 = vpow.pop %v3612
        %v3614 = vmul.f32 %v3562, 1.442695
        %v3615 = vpow.pop %v3614
        %v3616 = vmul.f32 %v3563, 1.442695
        %v3617 = vpow.pop %v3616
        %v3618 = vmul.f32 %v3564, 1.442695
        %v3619 = vpow.pop %v3618
        %v3620 = vmul.f32 %v3565, 1.442695
        %v3621 = vpow.pop %v3620
        %v3622 = vmul.f32 %v3566, 1.442695
        %v3623 = vpow.pop %v3622
        %v3624 = vmul.f32 %v3567, 1.442695
        %v3625 = vpow.pop %v3624
        %v3626 = vmul.f32 %v3568, 1.442695
        %v3627 = vpow.pop %v3626
        %v3628 = vmul.f32 %v3569, 1.442695
        %v3629 = vpow.pop %v3628
        %v3630 = vmul.f32 %v3570, 1.442695
        %v3631 = vpow.pop %v3630
        %v3632 = vmul.f32 %v3571, 1.442695
        %v3633 = vpow.pop %v3632
        %v3634 = vmul.f32 %v3572, 1.442695
        %v3635 = vpow.pop %v3634
        %v3636 = vmul.f32 %v3573, 1.442695
        %v3637 = vpow.pop %v3636
        %v3638 = vadd.f32 %v3575, 1.0
        %v3639 = vadd.f32 %v3577, 1.0
        %v3640 = vadd.f32 %v3579, 1.0
        %v3641 = vadd.f32 %v3581, 1.0
        %v3642 = vadd.f32 %v3583, 1.0
        %v3643 = vadd.f32 %v3585, 1.0
        %v3644 = vadd.f32 %v3587, 1.0
        %v3645 = vadd.f32 %v3589, 1.0
        %v3646 = vadd.f32 %v3591, 1.0
        %v3647 = vadd.f32 %v3593, 1.0
        %v3648 = vadd.f32 %v3595, 1.0
        %v3649 = vadd.f32 %v3597, 1.0
        %v3650 = vadd.f32 %v3599, 1.0
        %v3651 = vadd.f32 %v3601, 1.0
        %v3652 = vadd.f32 %v3603, 1.0
        %v3653 = vadd.f32 %v3605, 1.0
        %v3654 = vadd.f32 %v3607, 1.0
        %v3655 = vadd.f32 %v3609, 1.0
        %v3656 = vadd.f32 %v3611, 1.0
        %v3657 = vadd.f32 %v3613, 1.0
        %v3658 = vadd.f32 %v3615, 1.0
        %v3659 = vadd.f32 %v3617, 1.0
        %v3660 = vadd.f32 %v3619, 1.0
        %v3661 = vadd.f32 %v3621, 1.0
        %v3662 = vadd.f32 %v3623, 1.0
        %v3663 = vadd.f32 %v3625, 1.0
        %v3664 = vadd.f32 %v3627, 1.0
        %v3665 = vadd.f32 %v3629, 1.0
        %v3666 = vadd.f32 %v3631, 1.0
        %v3667 = vadd.f32 %v3633, 1.0
        %v3668 = vadd.f32 %v3635, 1.0
        %v3669 = vadd.f32 %v3637, 1.0
        %v3670 = vrcp.pop %v3638
        %v3671 = vmul.f32 %v3638, %v3670
        %v3672 = vsub.f32 1.0, %v3671
        %v3673 = vmul.f32 %v3670, %v3672
        %v3674 = vadd.f32 %v3670, %v3673
        %vm3675 = vweird.f32 %v3638
        %vm3676 = vweird.f32 %v3670
        %vm3677 = vmor %vm3675, %vm3676
        %v3678 = vsel %vm3677, %v3670, %v3674
        %v3679 = vand.u32 2147483647, %v3638
        %vm3680 = vcmp.eq.f32.partialorder %v3679, 8.507059e+37
        %v3681 = vand.u32 %v3638, 2147483648
        %v3682 = vor.u32 1.1754944e-38, %v3681
        %v3683 = vsel %vm3680, %v3682, %v3678
        %v3684 = vmul.f32 1.0, %v3683
        %v3685 = vrcp.pop %v3639
        %v3686 = vmul.f32 %v3639, %v3685
        %v3687 = vsub.f32 1.0, %v3686
        %v3688 = vmul.f32 %v3685, %v3687
        %v3689 = vadd.f32 %v3685, %v3688
        %vm3690 = vweird.f32 %v3639
        %vm3691 = vweird.f32 %v3685
        %vm3692 = vmor %vm3690, %vm3691
        %v3693 = vsel %vm3692, %v3685, %v3689
        %v3694 = vand.u32 2147483647, %v3639
        %vm3695 = vcmp.eq.f32.partialorder %v3694, 8.507059e+37
        %v3696 = vand.u32 %v3639, 2147483648
        %v3697 = vor.u32 1.1754944e-38, %v3696
        %v3698 = vsel %vm3695, %v3697, %v3693
        %v3699 = vmul.f32 1.0, %v3698
        %v3700 = vrcp.pop %v3640
        %v3701 = vmul.f32 %v3640, %v3700
        %v3702 = vsub.f32 1.0, %v3701
        %v3703 = vmul.f32 %v3700, %v3702
        %v3704 = vadd.f32 %v3700, %v3703
        %vm3705 = vweird.f32 %v3640
        %vm3706 = vweird.f32 %v3700
        %vm3707 = vmor %vm3705, %vm3706
        %v3708 = vsel %vm3707, %v3700, %v3704
        %v3709 = vand.u32 2147483647, %v3640
        %vm3710 = vcmp.eq.f32.partialorder %v3709, 8.507059e+37
        %v3711 = vand.u32 %v3640, 2147483648
        %v3712 = vor.u32 1.1754944e-38, %v3711
        %v3713 = vsel %vm3710, %v3712, %v3708
        %v3714 = vmul.f32 1.0, %v3713
        %v3715 = vrcp.pop %v3641
        %v3716 = vmul.f32 %v3641, %v3715
        %v3717 = vsub.f32 1.0, %v3716
        %v3718 = vmul.f32 %v3715, %v3717
        %v3719 = vadd.f32 %v3715, %v3718
        %vm3720 = vweird.f32 %v3641
        %vm3721 = vweird.f32 %v3715
        %vm3722 = vmor %vm3720, %vm3721
        %v3723 = vsel %vm3722, %v3715, %v3719
        %v3724 = vand.u32 2147483647, %v3641
        %vm3725 = vcmp.eq.f32.partialorder %v3724, 8.507059e+37
        %v3726 = vand.u32 %v3641, 2147483648
        %v3727 = vor.u32 1.1754944e-38, %v3726
        %v3728 = vsel %vm3725, %v3727, %v3723
        %v3729 = vmul.f32 1.0, %v3728
        %v3730 = vrcp.pop %v3642
        %v3731 = vmul.f32 %v3642, %v3730
        %v3732 = vsub.f32 1.0, %v3731
        %v3733 = vmul.f32 %v3730, %v3732
        %v3734 = vadd.f32 %v3730, %v3733
        %vm3735 = vweird.f32 %v3642
        %vm3736 = vweird.f32 %v3730
        %vm3737 = vmor %vm3735, %vm3736
        %v3738 = vsel %vm3737, %v3730, %v3734
        %v3739 = vand.u32 2147483647, %v3642
        %vm3740 = vcmp.eq.f32.partialorder %v3739, 8.507059e+37
        %v3741 = vand.u32 %v3642, 2147483648
        %v3742 = vor.u32 1.1754944e-38, %v3741
        %v3743 = vsel %vm3740, %v3742, %v3738
        %v3744 = vmul.f32 1.0, %v3743
        %v3745 = vrcp.pop %v3643
        %v3746 = vmul.f32 %v3643, %v3745
        %v3747 = vsub.f32 1.0, %v3746
        %v3748 = vmul.f32 %v3745, %v3747
        %v3749 = vadd.f32 %v3745, %v3748
        %vm3750 = vweird.f32 %v3643
        %vm3751 = vweird.f32 %v3745
        %vm3752 = vmor %vm3750, %vm3751
        %v3753 = vsel %vm3752, %v3745, %v3749
        %v3754 = vand.u32 2147483647, %v3643
        %vm3755 = vcmp.eq.f32.partialorder %v3754, 8.507059e+37
        %v3756 = vand.u32 %v3643, 2147483648
        %v3757 = vor.u32 1.1754944e-38, %v3756
        %v3758 = vsel %vm3755, %v3757, %v3753
        %v3759 = vmul.f32 1.0, %v3758
        %v3760 = vrcp.pop %v3644
        %v3761 = vmul.f32 %v3644, %v3760
        %v3762 = vsub.f32 1.0, %v3761
        %v3763 = vmul.f32 %v3760, %v3762
        %v3764 = vadd.f32 %v3760, %v3763
        %vm3765 = vweird.f32 %v3644
        %vm3766 = vweird.f32 %v3760
        %vm3767 = vmor %vm3765, %vm3766
        %v3768 = vsel %vm3767, %v3760, %v3764
        %v3769 = vand.u32 2147483647, %v3644
        %vm3770 = vcmp.eq.f32.partialorder %v3769, 8.507059e+37
        %v3771 = vand.u32 %v3644, 2147483648
        %v3772 = vor.u32 1.1754944e-38, %v3771
        %v3773 = vsel %vm3770, %v3772, %v3768
        %v3774 = vmul.f32 1.0, %v3773
        %v3775 = vrcp.pop %v3645
        %v3776 = vmul.f32 %v3645, %v3775
        %v3777 = vsub.f32 1.0, %v3776
        %v3778 = vmul.f32 %v3775, %v3777
        %v3779 = vadd.f32 %v3775, %v3778
        %vm3780 = vweird.f32 %v3645
        %vm3781 = vweird.f32 %v3775
        %vm3782 = vmor %vm3780, %vm3781
        %v3783 = vsel %vm3782, %v3775, %v3779
        %v3784 = vand.u32 2147483647, %v3645
        %vm3785 = vcmp.eq.f32.partialorder %v3784, 8.507059e+37
        %v3786 = vand.u32 %v3645, 2147483648
        %v3787 = vor.u32 1.1754944e-38, %v3786
        %v3788 = vsel %vm3785, %v3787, %v3783
        %v3789 = vmul.f32 1.0, %v3788
        %v3790 = vrcp.pop %v3646
        %v3791 = vmul.f32 %v3646, %v3790
        %v3792 = vsub.f32 1.0, %v3791
        %v3793 = vmul.f32 %v3790, %v3792
        %v3794 = vadd.f32 %v3790, %v3793
        %vm3795 = vweird.f32 %v3646
        %vm3796 = vweird.f32 %v3790
        %vm3797 = vmor %vm3795, %vm3796
        %v3798 = vsel %vm3797, %v3790, %v3794
        %v3799 = vand.u32 2147483647, %v3646
        %vm3800 = vcmp.eq.f32.partialorder %v3799, 8.507059e+37
        %v3801 = vand.u32 %v3646, 2147483648
        %v3802 = vor.u32 1.1754944e-38, %v3801
        %v3803 = vsel %vm3800, %v3802, %v3798
        %v3804 = vmul.f32 1.0, %v3803
        %v3805 = vrcp.pop %v3647
        %v3806 = vmul.f32 %v3647, %v3805
        %v3807 = vsub.f32 1.0, %v3806
        %v3808 = vmul.f32 %v3805, %v3807
        %v3809 = vadd.f32 %v3805, %v3808
        %vm3810 = vweird.f32 %v3647
        %vm3811 = vweird.f32 %v3805
        %vm3812 = vmor %vm3810, %vm3811
        %v3813 = vsel %vm3812, %v3805, %v3809
        %v3814 = vand.u32 2147483647, %v3647
        %vm3815 = vcmp.eq.f32.partialorder %v3814, 8.507059e+37
        %v3816 = vand.u32 %v3647, 2147483648
        %v3817 = vor.u32 1.1754944e-38, %v3816
        %v3818 = vsel %vm3815, %v3817, %v3813
        %v3819 = vmul.f32 1.0, %v3818
        %v3820 = vrcp.pop %v3648
        %v3821 = vmul.f32 %v3648, %v3820
        %v3822 = vsub.f32 1.0, %v3821
        %v3823 = vmul.f32 %v3820, %v3822
        %v3824 = vadd.f32 %v3820, %v3823
        %vm3825 = vweird.f32 %v3648
        %vm3826 = vweird.f32 %v3820
        %vm3827 = vmor %vm3825, %vm3826
        %v3828 = vsel %vm3827, %v3820, %v3824
        %v3829 = vand.u32 2147483647, %v3648
        %vm3830 = vcmp.eq.f32.partialorder %v3829, 8.507059e+37
        %v3831 = vand.u32 %v3648, 2147483648
        %v3832 = vor.u32 1.1754944e-38, %v3831
        %v3833 = vsel %vm3830, %v3832, %v3828
        %v3834 = vmul.f32 1.0, %v3833
        %v3835 = vrcp.pop %v3649
        %v3836 = vmul.f32 %v3649, %v3835
        %v3837 = vsub.f32 1.0, %v3836
        %v3838 = vmul.f32 %v3835, %v3837
        %v3839 = vadd.f32 %v3835, %v3838
        %vm3840 = vweird.f32 %v3649
        %vm3841 = vweird.f32 %v3835
        %vm3842 = vmor %vm3840, %vm3841
        %v3843 = vsel %vm3842, %v3835, %v3839
        %v3844 = vand.u32 2147483647, %v3649
        %vm3845 = vcmp.eq.f32.partialorder %v3844, 8.507059e+37
        %v3846 = vand.u32 %v3649, 2147483648
        %v3847 = vor.u32 1.1754944e-38, %v3846
        %v3848 = vsel %vm3845, %v3847, %v3843
        %v3849 = vmul.f32 1.0, %v3848
        %v3850 = vrcp.pop %v3650
        %v3851 = vmul.f32 %v3650, %v3850
        %v3852 = vsub.f32 1.0, %v3851
        %v3853 = vmul.f32 %v3850, %v3852
        %v3854 = vadd.f32 %v3850, %v3853
        %vm3855 = vweird.f32 %v3650
        %vm3856 = vweird.f32 %v3850
        %vm3857 = vmor %vm3855, %vm3856
        %v3858 = vsel %vm3857, %v3850, %v3854
        %v3859 = vand.u32 2147483647, %v3650
        %vm3860 = vcmp.eq.f32.partialorder %v3859, 8.507059e+37
        %v3861 = vand.u32 %v3650, 2147483648
        %v3862 = vor.u32 1.1754944e-38, %v3861
        %v3863 = vsel %vm3860, %v3862, %v3858
        %v3864 = vmul.f32 1.0, %v3863
        %v3865 = vrcp.pop %v3651
        %v3866 = vmul.f32 %v3651, %v3865
        %v3867 = vsub.f32 1.0, %v3866
        %v3868 = vmul.f32 %v3865, %v3867
        %v3869 = vadd.f32 %v3865, %v3868
        %vm3870 = vweird.f32 %v3651
        %vm3871 = vweird.f32 %v3865
        %vm3872 = vmor %vm3870, %vm3871
        %v3873 = vsel %vm3872, %v3865, %v3869
        %v3874 = vand.u32 2147483647, %v3651
        %vm3875 = vcmp.eq.f32.partialorder %v3874, 8.507059e+37
        %v3876 = vand.u32 %v3651, 2147483648
        %v3877 = vor.u32 1.1754944e-38, %v3876
        %v3878 = vsel %vm3875, %v3877, %v3873
        %v3879 = vmul.f32 1.0, %v3878
        %v3880 = vrcp.pop %v3652
        %v3881 = vmul.f32 %v3652, %v3880
        %v3882 = vsub.f32 1.0, %v3881
        %v3883 = vmul.f32 %v3880, %v3882
        %v3884 = vadd.f32 %v3880, %v3883
        %vm3885 = vweird.f32 %v3652
        %vm3886 = vweird.f32 %v3880
        %vm3887 = vmor %vm3885, %vm3886
        %v3888 = vsel %vm3887, %v3880, %v3884
        %v3889 = vand.u32 2147483647, %v3652
        %vm3890 = vcmp.eq.f32.partialorder %v3889, 8.507059e+37
        %v3891 = vand.u32 %v3652, 2147483648
        %v3892 = vor.u32 1.1754944e-38, %v3891
        %v3893 = vsel %vm3890, %v3892, %v3888
        %v3894 = vmul.f32 1.0, %v3893
        %v3895 = vrcp.pop %v3653
        %v3896 = vmul.f32 %v3653, %v3895
        %v3897 = vsub.f32 1.0, %v3896
        %v3898 = vmul.f32 %v3895, %v3897
        %v3899 = vadd.f32 %v3895, %v3898
        %vm3900 = vweird.f32 %v3653
        %vm3901 = vweird.f32 %v3895
        %vm3902 = vmor %vm3900, %vm3901
        %v3903 = vsel %vm3902, %v3895, %v3899
        %v3904 = vand.u32 2147483647, %v3653
        %vm3905 = vcmp.eq.f32.partialorder %v3904, 8.507059e+37
        %v3906 = vand.u32 %v3653, 2147483648
        %v3907 = vor.u32 1.1754944e-38, %v3906
        %v3908 = vsel %vm3905, %v3907, %v3903
        %v3909 = vmul.f32 1.0, %v3908
        %v3910 = vrcp.pop %v3654
        %v3911 = vmul.f32 %v3654, %v3910
        %v3912 = vsub.f32 1.0, %v3911
        %v3913 = vmul.f32 %v3910, %v3912
        %v3914 = vadd.f32 %v3910, %v3913
        %vm3915 = vweird.f32 %v3654
        %vm3916 = vweird.f32 %v3910
        %vm3917 = vmor %vm3915, %vm3916
        %v3918 = vsel %vm3917, %v3910, %v3914
        %v3919 = vand.u32 2147483647, %v3654
        %vm3920 = vcmp.eq.f32.partialorder %v3919, 8.507059e+37
        %v3921 = vand.u32 %v3654, 2147483648
        %v3922 = vor.u32 1.1754944e-38, %v3921
        %v3923 = vsel %vm3920, %v3922, %v3918
        %v3924 = vmul.f32 1.0, %v3923
        %v3925 = vrcp.pop %v3655
        %v3926 = vmul.f32 %v3655, %v3925
        %v3927 = vsub.f32 1.0, %v3926
        %v3928 = vmul.f32 %v3925, %v3927
        %v3929 = vadd.f32 %v3925, %v3928
        %vm3930 = vweird.f32 %v3655
        %vm3931 = vweird.f32 %v3925
        %vm3932 = vmor %vm3930, %vm3931
        %v3933 = vsel %vm3932, %v3925, %v3929
        %v3934 = vand.u32 2147483647, %v3655
        %vm3935 = vcmp.eq.f32.partialorder %v3934, 8.507059e+37
        %v3936 = vand.u32 %v3655, 2147483648
        %v3937 = vor.u32 1.1754944e-38, %v3936
        %v3938 = vsel %vm3935, %v3937, %v3933
        %v3939 = vmul.f32 1.0, %v3938
        %v3940 = vrcp.pop %v3656
        %v3941 = vmul.f32 %v3656, %v3940
        %v3942 = vsub.f32 1.0, %v3941
        %v3943 = vmul.f32 %v3940, %v3942
        %v3944 = vadd.f32 %v3940, %v3943
        %vm3945 = vweird.f32 %v3656
        %vm3946 = vweird.f32 %v3940
        %vm3947 = vmor %vm3945, %vm3946
        %v3948 = vsel %vm3947, %v3940, %v3944
        %v3949 = vand.u32 2147483647, %v3656
        %vm3950 = vcmp.eq.f32.partialorder %v3949, 8.507059e+37
        %v3951 = vand.u32 %v3656, 2147483648
        %v3952 = vor.u32 1.1754944e-38, %v3951
        %v3953 = vsel %vm3950, %v3952, %v3948
        %v3954 = vmul.f32 1.0, %v3953
        %v3955 = vrcp.pop %v3657
        %v3956 = vmul.f32 %v3657, %v3955
        %v3957 = vsub.f32 1.0, %v3956
        %v3958 = vmul.f32 %v3955, %v3957
        %v3959 = vadd.f32 %v3955, %v3958
        %vm3960 = vweird.f32 %v3657
        %vm3961 = vweird.f32 %v3955
        %vm3962 = vmor %vm3960, %vm3961
        %v3963 = vsel %vm3962, %v3955, %v3959
        %v3964 = vand.u32 2147483647, %v3657
        %vm3965 = vcmp.eq.f32.partialorder %v3964, 8.507059e+37
        %v3966 = vand.u32 %v3657, 2147483648
        %v3967 = vor.u32 1.1754944e-38, %v3966
        %v3968 = vsel %vm3965, %v3967, %v3963
        %v3969 = vmul.f32 1.0, %v3968
        %v3970 = vrcp.pop %v3658
        %v3971 = vmul.f32 %v3658, %v3970
        %v3972 = vsub.f32 1.0, %v3971
        %v3973 = vmul.f32 %v3970, %v3972
        %v3974 = vadd.f32 %v3970, %v3973
        %vm3975 = vweird.f32 %v3658
        %vm3976 = vweird.f32 %v3970
        %vm3977 = vmor %vm3975, %vm3976
        %v3978 = vsel %vm3977, %v3970, %v3974
        %v3979 = vand.u32 2147483647, %v3658
        %vm3980 = vcmp.eq.f32.partialorder %v3979, 8.507059e+37
        %v3981 = vand.u32 %v3658, 2147483648
        %v3982 = vor.u32 1.1754944e-38, %v3981
        %v3983 = vsel %vm3980, %v3982, %v3978
        %v3984 = vmul.f32 1.0, %v3983
        %v3985 = vrcp.pop %v3659
        %v3986 = vmul.f32 %v3659, %v3985
        %v3987 = vsub.f32 1.0, %v3986
        %v3988 = vmul.f32 %v3985, %v3987
        %v3989 = vadd.f32 %v3985, %v3988
        %vm3990 = vweird.f32 %v3659
        %vm3991 = vweird.f32 %v3985
        %vm3992 = vmor %vm3990, %vm3991
        %v3993 = vsel %vm3992, %v3985, %v3989
        %v3994 = vand.u32 2147483647, %v3659
        %vm3995 = vcmp.eq.f32.partialorder %v3994, 8.507059e+37
        %v3996 = vand.u32 %v3659, 2147483648
        %v3997 = vor.u32 1.1754944e-38, %v3996
        %v3998 = vsel %vm3995, %v3997, %v3993
        %v3999 = vmul.f32 1.0, %v3998
        %v4000 = vrcp.pop %v3660
        %v4001 = vmul.f32 %v3660, %v4000
        %v4002 = vsub.f32 1.0, %v4001
        %v4003 = vmul.f32 %v4000, %v4002
        %v4004 = vadd.f32 %v4000, %v4003
        %vm4005 = vweird.f32 %v3660
        %vm4006 = vweird.f32 %v4000
        %vm4007 = vmor %vm4005, %vm4006
        %v4008 = vsel %vm4007, %v4000, %v4004
        %v4009 = vand.u32 2147483647, %v3660
        %vm4010 = vcmp.eq.f32.partialorder %v4009, 8.507059e+37
        %v4011 = vand.u32 %v3660, 2147483648
        %v4012 = vor.u32 1.1754944e-38, %v4011
        %v4013 = vsel %vm4010, %v4012, %v4008
        %v4014 = vmul.f32 1.0, %v4013
        %v4015 = vrcp.pop %v3661
        %v4016 = vmul.f32 %v3661, %v4015
        %v4017 = vsub.f32 1.0, %v4016
        %v4018 = vmul.f32 %v4015, %v4017
        %v4019 = vadd.f32 %v4015, %v4018
        %vm4020 = vweird.f32 %v3661
        %vm4021 = vweird.f32 %v4015
        %vm4022 = vmor %vm4020, %vm4021
        %v4023 = vsel %vm4022, %v4015, %v4019
        %v4024 = vand.u32 2147483647, %v3661
        %vm4025 = vcmp.eq.f32.partialorder %v4024, 8.507059e+37
        %v4026 = vand.u32 %v3661, 2147483648
        %v4027 = vor.u32 1.1754944e-38, %v4026
        %v4028 = vsel %vm4025, %v4027, %v4023
        %v4029 = vmul.f32 1.0, %v4028
        %v4030 = vrcp.pop %v3662
        %v4031 = vmul.f32 %v3662, %v4030
        %v4032 = vsub.f32 1.0, %v4031
        %v4033 = vmul.f32 %v4030, %v4032
        %v4034 = vadd.f32 %v4030, %v4033
        %vm4035 = vweird.f32 %v3662
        %vm4036 = vweird.f32 %v4030
        %vm4037 = vmor %vm4035, %vm4036
        %v4038 = vsel %vm4037, %v4030, %v4034
        %v4039 = vand.u32 2147483647, %v3662
        %vm4040 = vcmp.eq.f32.partialorder %v4039, 8.507059e+37
        %v4041 = vand.u32 %v3662, 2147483648
        %v4042 = vor.u32 1.1754944e-38, %v4041
        %v4043 = vsel %vm4040, %v4042, %v4038
        %v4044 = vmul.f32 1.0, %v4043
        %v4045 = vrcp.pop %v3663
        %v4046 = vmul.f32 %v3663, %v4045
        %v4047 = vsub.f32 1.0, %v4046
        %v4048 = vmul.f32 %v4045, %v4047
        %v4049 = vadd.f32 %v4045, %v4048
        %vm4050 = vweird.f32 %v3663
        %vm4051 = vweird.f32 %v4045
        %vm4052 = vmor %vm4050, %vm4051
        %v4053 = vsel %vm4052, %v4045, %v4049
        %v4054 = vand.u32 2147483647, %v3663
        %vm4055 = vcmp.eq.f32.partialorder %v4054, 8.507059e+37
        %v4056 = vand.u32 %v3663, 2147483648
        %v4057 = vor.u32 1.1754944e-38, %v4056
        %v4058 = vsel %vm4055, %v4057, %v4053
        %v4059 = vmul.f32 1.0, %v4058
        %v4060 = vrcp.pop %v3664
        %v4061 = vmul.f32 %v3664, %v4060
        %v4062 = vsub.f32 1.0, %v4061
        %v4063 = vmul.f32 %v4060, %v4062
        %v4064 = vadd.f32 %v4060, %v4063
        %vm4065 = vweird.f32 %v3664
        %vm4066 = vweird.f32 %v4060
        %vm4067 = vmor %vm4065, %vm4066
        %v4068 = vsel %vm4067, %v4060, %v4064
        %v4069 = vand.u32 2147483647, %v3664
        %vm4070 = vcmp.eq.f32.partialorder %v4069, 8.507059e+37
        %v4071 = vand.u32 %v3664, 2147483648
        %v4072 = vor.u32 1.1754944e-38, %v4071
        %v4073 = vsel %vm4070, %v4072, %v4068
        %v4074 = vmul.f32 1.0, %v4073
        %v4075 = vrcp.pop %v3665
        %v4076 = vmul.f32 %v3665, %v4075
        %v4077 = vsub.f32 1.0, %v4076
        %v4078 = vmul.f32 %v4075, %v4077
        %v4079 = vadd.f32 %v4075, %v4078
        %vm4080 = vweird.f32 %v3665
        %vm4081 = vweird.f32 %v4075
        %vm4082 = vmor %vm4080, %vm4081
        %v4083 = vsel %vm4082, %v4075, %v4079
        %v4084 = vand.u32 2147483647, %v3665
        %vm4085 = vcmp.eq.f32.partialorder %v4084, 8.507059e+37
        %v4086 = vand.u32 %v3665, 2147483648
        %v4087 = vor.u32 1.1754944e-38, %v4086
        %v4088 = vsel %vm4085, %v4087, %v4083
        %v4089 = vmul.f32 1.0, %v4088
        %v4090 = vrcp.pop %v3666
        %v4091 = vmul.f32 %v3666, %v4090
        %v4092 = vsub.f32 1.0, %v4091
        %v4093 = vmul.f32 %v4090, %v4092
        %v4094 = vadd.f32 %v4090, %v4093
        %vm4095 = vweird.f32 %v3666
        %vm4096 = vweird.f32 %v4090
        %vm4097 = vmor %vm4095, %vm4096
        %v4098 = vsel %vm4097, %v4090, %v4094
        %v4099 = vand.u32 2147483647, %v3666
        %vm4100 = vcmp.eq.f32.partialorder %v4099, 8.507059e+37
        %v4101 = vand.u32 %v3666, 2147483648
        %v4102 = vor.u32 1.1754944e-38, %v4101
        %v4103 = vsel %vm4100, %v4102, %v4098
        %v4104 = vmul.f32 1.0, %v4103
        %v4105 = vrcp.pop %v3667
        %v4106 = vmul.f32 %v3667, %v4105
        %v4107 = vsub.f32 1.0, %v4106
        %v4108 = vmul.f32 %v4105, %v4107
        %v4109 = vadd.f32 %v4105, %v4108
        %vm4110 = vweird.f32 %v3667
        %vm4111 = vweird.f32 %v4105
        %vm4112 = vmor %vm4110, %vm4111
        %v4113 = vsel %vm4112, %v4105, %v4109
        %v4114 = vand.u32 2147483647, %v3667
        %vm4115 = vcmp.eq.f32.partialorder %v4114, 8.507059e+37
        %v4116 = vand.u32 %v3667, 2147483648
        %v4117 = vor.u32 1.1754944e-38, %v4116
        %v4118 = vsel %vm4115, %v4117, %v4113
        %v4119 = vmul.f32 1.0, %v4118
        %v4120 = vrcp.pop %v3668
        %v4121 = vmul.f32 %v3668, %v4120
        %v4122 = vsub.f32 1.0, %v4121
        %v4123 = vmul.f32 %v4120, %v4122
        %v4124 = vadd.f32 %v4120, %v4123
        %vm4125 = vweird.f32 %v3668
        %vm4126 = vweird.f32 %v4120
        %vm4127 = vmor %vm4125, %vm4126
        %v4128 = vsel %vm4127, %v4120, %v4124
        %v4129 = vand.u32 2147483647, %v3668
        %vm4130 = vcmp.eq.f32.partialorder %v4129, 8.507059e+37
        %v4131 = vand.u32 %v3668, 2147483648
        %v4132 = vor.u32 1.1754944e-38, %v4131
        %v4133 = vsel %vm4130, %v4132, %v4128
        %v4134 = vmul.f32 1.0, %v4133
        %v4135 = vrcp.pop %v3669
        %v4136 = vmul.f32 %v3669, %v4135
        %v4137 = vsub.f32 1.0, %v4136
        %v4138 = vmul.f32 %v4135, %v4137
        %v4139 = vadd.f32 %v4135, %v4138
        %vm4140 = vweird.f32 %v3669
        %vm4141 = vweird.f32 %v4135
        %vm4142 = vmor %vm4140, %vm4141
        %v4143 = vsel %vm4142, %v4135, %v4139
        %v4144 = vand.u32 2147483647, %v3669
        %vm4145 = vcmp.eq.f32.partialorder %v4144, 8.507059e+37
        %v4146 = vand.u32 %v3669, 2147483648
        %v4147 = vor.u32 1.1754944e-38, %v4146
        %v4148 = vsel %vm4145, %v4147, %v4143
        %v4149 = vmul.f32 1.0, %v4148
        %v4150 = vld [vmem:[%s319] sm:$0xff]
        %v4151 = vld [vmem:[%s319 + $0x8] sm:$0xff]
        %v4152 = vld [vmem:[%s319 + $0x10] sm:$0xff]
        %v4153 = vld [vmem:[%s319 + $0x18] sm:$0xff]
        %v4154 = vld [vmem:[%s319 + $0x20] sm:$0xff]
        %v4155 = vld [vmem:[%s319 + $0x28] sm:$0xff]
        %v4156 = vld [vmem:[%s319 + $0x30] sm:$0xff]
        %v4157 = vld [vmem:[%s319 + $0x38] sm:$0xff]
        %v4158 = vld [vmem:[%s319 + $0x40] sm:$0xff]
        %v4159 = vld [vmem:[%s319 + $0x48] sm:$0xff]
        %v4160 = vld [vmem:[%s319 + $0x50] sm:$0xff]
        %v4161 = vld [vmem:[%s319 + $0x58] sm:$0xff]
        %v4162 = vld [vmem:[%s319 + $0x60] sm:$0xff]
        %v4163 = vld [vmem:[%s319 + $0x68] sm:$0xff]
        %v4164 = vld [vmem:[%s319 + $0x70] sm:$0xff]
        %v4165 = vld [vmem:[%s319 + $0x78] sm:$0xff]
        %v4166 = vld [vmem:[%s319 + $0x80] sm:$0xff]
        %v4167 = vld [vmem:[%s319 + $0x88] sm:$0xff]
        %v4168 = vld [vmem:[%s319 + $0x90] sm:$0xff]
        %v4169 = vld [vmem:[%s319 + $0x98] sm:$0xff]
        %v4170 = vld [vmem:[%s319 + $0xa0] sm:$0xff]
        %v4171 = vld [vmem:[%s319 + $0xa8] sm:$0xff]
        %v4172 = vld [vmem:[%s319 + $0xb0] sm:$0xff]
        %v4173 = vld [vmem:[%s319 + $0xb8] sm:$0xff]
        %v4174 = vld [vmem:[%s319 + $0xc0] sm:$0xff]
        %v4175 = vld [vmem:[%s319 + $0xc8] sm:$0xff]
        %v4176 = vld [vmem:[%s319 + $0xd0] sm:$0xff]
        %v4177 = vld [vmem:[%s319 + $0xd8] sm:$0xff]
        %v4178 = vld [vmem:[%s319 + $0xe0] sm:$0xff]
        %v4179 = vld [vmem:[%s319 + $0xe8] sm:$0xff]
        %v4180 = vld [vmem:[%s319 + $0xf0] sm:$0xff]
        %v4181 = vld [vmem:[%s319 + $0xf8] sm:$0xff]
        %v4182 = vxor.u32 %v4150, 2147483648
        %v4183 = vxor.u32 %v4151, 2147483648
        %v4184 = vxor.u32 %v4152, 2147483648
        %v4185 = vxor.u32 %v4153, 2147483648
        %v4186 = vxor.u32 %v4154, 2147483648
        %v4187 = vxor.u32 %v4155, 2147483648
        %v4188 = vxor.u32 %v4156, 2147483648
        %v4189 = vxor.u32 %v4157, 2147483648
        %v4190 = vxor.u32 %v4158, 2147483648
        %v4191 = vxor.u32 %v4159, 2147483648
        %v4192 = vxor.u32 %v4160, 2147483648
        %v4193 = vxor.u32 %v4161, 2147483648
        %v4194 = vxor.u32 %v4162, 2147483648
        %v4195 = vxor.u32 %v4163, 2147483648
        %v4196 = vxor.u32 %v4164, 2147483648
        %v4197 = vxor.u32 %v4165, 2147483648
        %v4198 = vxor.u32 %v4166, 2147483648
        %v4199 = vxor.u32 %v4167, 2147483648
        %v4200 = vxor.u32 %v4168, 2147483648
        %v4201 = vxor.u32 %v4169, 2147483648
        %v4202 = vxor.u32 %v4170, 2147483648
        %v4203 = vxor.u32 %v4171, 2147483648
        %v4204 = vxor.u32 %v4172, 2147483648
        %v4205 = vxor.u32 %v4173, 2147483648
        %v4206 = vxor.u32 %v4174, 2147483648
        %v4207 = vxor.u32 %v4175, 2147483648
        %v4208 = vxor.u32 %v4176, 2147483648
        %v4209 = vxor.u32 %v4177, 2147483648
        %v4210 = vxor.u32 %v4178, 2147483648
        %v4211 = vxor.u32 %v4179, 2147483648
        %v4212 = vxor.u32 %v4180, 2147483648
        %v4213 = vxor.u32 %v4181, 2147483648
        %v4214 = vmul.f32 %v4182, 1.442695
        %v4215 = vpow.pop %v4214
        %v4216 = vmul.f32 %v4183, 1.442695
        %v4217 = vpow.pop %v4216
        %v4218 = vmul.f32 %v4184, 1.442695
        %v4219 = vpow.pop %v4218
        %v4220 = vmul.f32 %v4185, 1.442695
        %v4221 = vpow.pop %v4220
        %v4222 = vmul.f32 %v4186, 1.442695
        %v4223 = vpow.pop %v4222
        %v4224 = vmul.f32 %v4187, 1.442695
        %v4225 = vpow.pop %v4224
        %v4226 = vmul.f32 %v4188, 1.442695
        %v4227 = vpow.pop %v4226
        %v4228 = vmul.f32 %v4189, 1.442695
        %v4229 = vpow.pop %v4228
        %v4230 = vmul.f32 %v4190, 1.442695
        %v4231 = vpow.pop %v4230
        %v4232 = vmul.f32 %v4191, 1.442695
        %v4233 = vpow.pop %v4232
        %v4234 = vmul.f32 %v4192, 1.442695
        %v4235 = vpow.pop %v4234
        %v4236 = vmul.f32 %v4193, 1.442695
        %v4237 = vpow.pop %v4236
        %v4238 = vmul.f32 %v4194, 1.442695
        %v4239 = vpow.pop %v4238
        %v4240 = vmul.f32 %v4195, 1.442695
        %v4241 = vpow.pop %v4240
        %v4242 = vmul.f32 %v4196, 1.442695
        %v4243 = vpow.pop %v4242
        %v4244 = vmul.f32 %v4197, 1.442695
        %v4245 = vpow.pop %v4244
        %v4246 = vmul.f32 %v4198, 1.442695
        %v4247 = vpow.pop %v4246
        %v4248 = vmul.f32 %v4199, 1.442695
        %v4249 = vpow.pop %v4248
        %v4250 = vmul.f32 %v4200, 1.442695
        %v4251 = vpow.pop %v4250
        %v4252 = vmul.f32 %v4201, 1.442695
        %v4253 = vpow.pop %v4252
        %v4254 = vmul.f32 %v4202, 1.442695
        %v4255 = vpow.pop %v4254
        %v4256 = vmul.f32 %v4203, 1.442695
        %v4257 = vpow.pop %v4256
        %v4258 = vmul.f32 %v4204, 1.442695
        %v4259 = vpow.pop %v4258
        %v4260 = vmul.f32 %v4205, 1.442695
        %v4261 = vpow.pop %v4260
        %v4262 = vmul.f32 %v4206, 1.442695
        %v4263 = vpow.pop %v4262
        %v4264 = vmul.f32 %v4207, 1.442695
        %v4265 = vpow.pop %v4264
        %v4266 = vmul.f32 %v4208, 1.442695
        %v4267 = vpow.pop %v4266
        %v4268 = vmul.f32 %v4209, 1.442695
        %v4269 = vpow.pop %v4268
        %v4270 = vmul.f32 %v4210, 1.442695
        %v4271 = vpow.pop %v4270
        %v4272 = vmul.f32 %v4211, 1.442695
        %v4273 = vpow.pop %v4272
        %v4274 = vmul.f32 %v4212, 1.442695
        %v4275 = vpow.pop %v4274
        %v4276 = vmul.f32 %v4213, 1.442695
        %v4277 = vpow.pop %v4276
        %v4278 = vadd.f32 %v4215, 1.0
        %v4279 = vadd.f32 %v4217, 1.0
        %v4280 = vadd.f32 %v4219, 1.0
        %v4281 = vadd.f32 %v4221, 1.0
        %v4282 = vadd.f32 %v4223, 1.0
        %v4283 = vadd.f32 %v4225, 1.0
        %v4284 = vadd.f32 %v4227, 1.0
        %v4285 = vadd.f32 %v4229, 1.0
        %v4286 = vadd.f32 %v4231, 1.0
        %v4287 = vadd.f32 %v4233, 1.0
        %v4288 = vadd.f32 %v4235, 1.0
        %v4289 = vadd.f32 %v4237, 1.0
        %v4290 = vadd.f32 %v4239, 1.0
        %v4291 = vadd.f32 %v4241, 1.0
        %v4292 = vadd.f32 %v4243, 1.0
        %v4293 = vadd.f32 %v4245, 1.0
        %v4294 = vadd.f32 %v4247, 1.0
        %v4295 = vadd.f32 %v4249, 1.0
        %v4296 = vadd.f32 %v4251, 1.0
        %v4297 = vadd.f32 %v4253, 1.0
        %v4298 = vadd.f32 %v4255, 1.0
        %v4299 = vadd.f32 %v4257, 1.0
        %v4300 = vadd.f32 %v4259, 1.0
        %v4301 = vadd.f32 %v4261, 1.0
        %v4302 = vadd.f32 %v4263, 1.0
        %v4303 = vadd.f32 %v4265, 1.0
        %v4304 = vadd.f32 %v4267, 1.0
        %v4305 = vadd.f32 %v4269, 1.0
        %v4306 = vadd.f32 %v4271, 1.0
        %v4307 = vadd.f32 %v4273, 1.0
        %v4308 = vadd.f32 %v4275, 1.0
        %v4309 = vadd.f32 %v4277, 1.0
        %v4310 = vrcp.pop %v4278
        %v4311 = vmul.f32 %v4278, %v4310
        %v4312 = vsub.f32 1.0, %v4311
        %v4313 = vmul.f32 %v4310, %v4312
        %v4314 = vadd.f32 %v4310, %v4313
        %vm4315 = vweird.f32 %v4278
        %vm4316 = vweird.f32 %v4310
        %vm4317 = vmor %vm4315, %vm4316
        %v4318 = vsel %vm4317, %v4310, %v4314
        %v4319 = vand.u32 2147483647, %v4278
        %vm4320 = vcmp.eq.f32.partialorder %v4319, 8.507059e+37
        %v4321 = vand.u32 %v4278, 2147483648
        %v4322 = vor.u32 1.1754944e-38, %v4321
        %v4323 = vsel %vm4320, %v4322, %v4318
        %v4324 = vmul.f32 1.0, %v4323
        %v4325 = vrcp.pop %v4279
        %v4326 = vmul.f32 %v4279, %v4325
        %v4327 = vsub.f32 1.0, %v4326
        %v4328 = vmul.f32 %v4325, %v4327
        %v4329 = vadd.f32 %v4325, %v4328
        %vm4330 = vweird.f32 %v4279
        %vm4331 = vweird.f32 %v4325
        %vm4332 = vmor %vm4330, %vm4331
        %v4333 = vsel %vm4332, %v4325, %v4329
        %v4334 = vand.u32 2147483647, %v4279
        %vm4335 = vcmp.eq.f32.partialorder %v4334, 8.507059e+37
        %v4336 = vand.u32 %v4279, 2147483648
        %v4337 = vor.u32 1.1754944e-38, %v4336
        %v4338 = vsel %vm4335, %v4337, %v4333
        %v4339 = vmul.f32 1.0, %v4338
        %v4340 = vrcp.pop %v4280
        %v4341 = vmul.f32 %v4280, %v4340
        %v4342 = vsub.f32 1.0, %v4341
        %v4343 = vmul.f32 %v4340, %v4342
        %v4344 = vadd.f32 %v4340, %v4343
        %vm4345 = vweird.f32 %v4280
        %vm4346 = vweird.f32 %v4340
        %vm4347 = vmor %vm4345, %vm4346
        %v4348 = vsel %vm4347, %v4340, %v4344
        %v4349 = vand.u32 2147483647, %v4280
        %vm4350 = vcmp.eq.f32.partialorder %v4349, 8.507059e+37
        %v4351 = vand.u32 %v4280, 2147483648
        %v4352 = vor.u32 1.1754944e-38, %v4351
        %v4353 = vsel %vm4350, %v4352, %v4348
        %v4354 = vmul.f32 1.0, %v4353
        %v4355 = vrcp.pop %v4281
        %v4356 = vmul.f32 %v4281, %v4355
        %v4357 = vsub.f32 1.0, %v4356
        %v4358 = vmul.f32 %v4355, %v4357
        %v4359 = vadd.f32 %v4355, %v4358
        %vm4360 = vweird.f32 %v4281
        %vm4361 = vweird.f32 %v4355
        %vm4362 = vmor %vm4360, %vm4361
        %v4363 = vsel %vm4362, %v4355, %v4359
        %v4364 = vand.u32 2147483647, %v4281
        %vm4365 = vcmp.eq.f32.partialorder %v4364, 8.507059e+37
        %v4366 = vand.u32 %v4281, 2147483648
        %v4367 = vor.u32 1.1754944e-38, %v4366
        %v4368 = vsel %vm4365, %v4367, %v4363
        %v4369 = vmul.f32 1.0, %v4368
        %v4370 = vrcp.pop %v4282
        %v4371 = vmul.f32 %v4282, %v4370
        %v4372 = vsub.f32 1.0, %v4371
        %v4373 = vmul.f32 %v4370, %v4372
        %v4374 = vadd.f32 %v4370, %v4373
        %vm4375 = vweird.f32 %v4282
        %vm4376 = vweird.f32 %v4370
        %vm4377 = vmor %vm4375, %vm4376
        %v4378 = vsel %vm4377, %v4370, %v4374
        %v4379 = vand.u32 2147483647, %v4282
        %vm4380 = vcmp.eq.f32.partialorder %v4379, 8.507059e+37
        %v4381 = vand.u32 %v4282, 2147483648
        %v4382 = vor.u32 1.1754944e-38, %v4381
        %v4383 = vsel %vm4380, %v4382, %v4378
        %v4384 = vmul.f32 1.0, %v4383
        %v4385 = vrcp.pop %v4283
        %v4386 = vmul.f32 %v4283, %v4385
        %v4387 = vsub.f32 1.0, %v4386
        %v4388 = vmul.f32 %v4385, %v4387
        %v4389 = vadd.f32 %v4385, %v4388
        %vm4390 = vweird.f32 %v4283
        %vm4391 = vweird.f32 %v4385
        %vm4392 = vmor %vm4390, %vm4391
        %v4393 = vsel %vm4392, %v4385, %v4389
        %v4394 = vand.u32 2147483647, %v4283
        %vm4395 = vcmp.eq.f32.partialorder %v4394, 8.507059e+37
        %v4396 = vand.u32 %v4283, 2147483648
        %v4397 = vor.u32 1.1754944e-38, %v4396
        %v4398 = vsel %vm4395, %v4397, %v4393
        %v4399 = vmul.f32 1.0, %v4398
        %v4400 = vrcp.pop %v4284
        %v4401 = vmul.f32 %v4284, %v4400
        %v4402 = vsub.f32 1.0, %v4401
        %v4403 = vmul.f32 %v4400, %v4402
        %v4404 = vadd.f32 %v4400, %v4403
        %vm4405 = vweird.f32 %v4284
        %vm4406 = vweird.f32 %v4400
        %vm4407 = vmor %vm4405, %vm4406
        %v4408 = vsel %vm4407, %v4400, %v4404
        %v4409 = vand.u32 2147483647, %v4284
        %vm4410 = vcmp.eq.f32.partialorder %v4409, 8.507059e+37
        %v4411 = vand.u32 %v4284, 2147483648
        %v4412 = vor.u32 1.1754944e-38, %v4411
        %v4413 = vsel %vm4410, %v4412, %v4408
        %v4414 = vmul.f32 1.0, %v4413
        %v4415 = vrcp.pop %v4285
        %v4416 = vmul.f32 %v4285, %v4415
        %v4417 = vsub.f32 1.0, %v4416
        %v4418 = vmul.f32 %v4415, %v4417
        %v4419 = vadd.f32 %v4415, %v4418
        %vm4420 = vweird.f32 %v4285
        %vm4421 = vweird.f32 %v4415
        %vm4422 = vmor %vm4420, %vm4421
        %v4423 = vsel %vm4422, %v4415, %v4419
        %v4424 = vand.u32 2147483647, %v4285
        %vm4425 = vcmp.eq.f32.partialorder %v4424, 8.507059e+37
        %v4426 = vand.u32 %v4285, 2147483648
        %v4427 = vor.u32 1.1754944e-38, %v4426
        %v4428 = vsel %vm4425, %v4427, %v4423
        %v4429 = vmul.f32 1.0, %v4428
        %v4430 = vrcp.pop %v4286
        %v4431 = vmul.f32 %v4286, %v4430
        %v4432 = vsub.f32 1.0, %v4431
        %v4433 = vmul.f32 %v4430, %v4432
        %v4434 = vadd.f32 %v4430, %v4433
        %vm4435 = vweird.f32 %v4286
        %vm4436 = vweird.f32 %v4430
        %vm4437 = vmor %vm4435, %vm4436
        %v4438 = vsel %vm4437, %v4430, %v4434
        %v4439 = vand.u32 2147483647, %v4286
        %vm4440 = vcmp.eq.f32.partialorder %v4439, 8.507059e+37
        %v4441 = vand.u32 %v4286, 2147483648
        %v4442 = vor.u32 1.1754944e-38, %v4441
        %v4443 = vsel %vm4440, %v4442, %v4438
        %v4444 = vmul.f32 1.0, %v4443
        %v4445 = vrcp.pop %v4287
        %v4446 = vmul.f32 %v4287, %v4445
        %v4447 = vsub.f32 1.0, %v4446
        %v4448 = vmul.f32 %v4445, %v4447
        %v4449 = vadd.f32 %v4445, %v4448
        %vm4450 = vweird.f32 %v4287
        %vm4451 = vweird.f32 %v4445
        %vm4452 = vmor %vm4450, %vm4451
        %v4453 = vsel %vm4452, %v4445, %v4449
        %v4454 = vand.u32 2147483647, %v4287
        %vm4455 = vcmp.eq.f32.partialorder %v4454, 8.507059e+37
        %v4456 = vand.u32 %v4287, 2147483648
        %v4457 = vor.u32 1.1754944e-38, %v4456
        %v4458 = vsel %vm4455, %v4457, %v4453
        %v4459 = vmul.f32 1.0, %v4458
        %v4460 = vrcp.pop %v4288
        %v4461 = vmul.f32 %v4288, %v4460
        %v4462 = vsub.f32 1.0, %v4461
        %v4463 = vmul.f32 %v4460, %v4462
        %v4464 = vadd.f32 %v4460, %v4463
        %vm4465 = vweird.f32 %v4288
        %vm4466 = vweird.f32 %v4460
        %vm4467 = vmor %vm4465, %vm4466
        %v4468 = vsel %vm4467, %v4460, %v4464
        %v4469 = vand.u32 2147483647, %v4288
        %vm4470 = vcmp.eq.f32.partialorder %v4469, 8.507059e+37
        %v4471 = vand.u32 %v4288, 2147483648
        %v4472 = vor.u32 1.1754944e-38, %v4471
        %v4473 = vsel %vm4470, %v4472, %v4468
        %v4474 = vmul.f32 1.0, %v4473
        %v4475 = vrcp.pop %v4289
        %v4476 = vmul.f32 %v4289, %v4475
        %v4477 = vsub.f32 1.0, %v4476
        %v4478 = vmul.f32 %v4475, %v4477
        %v4479 = vadd.f32 %v4475, %v4478
        %vm4480 = vweird.f32 %v4289
        %vm4481 = vweird.f32 %v4475
        %vm4482 = vmor %vm4480, %vm4481
        %v4483 = vsel %vm4482, %v4475, %v4479
        %v4484 = vand.u32 2147483647, %v4289
        %vm4485 = vcmp.eq.f32.partialorder %v4484, 8.507059e+37
        %v4486 = vand.u32 %v4289, 2147483648
        %v4487 = vor.u32 1.1754944e-38, %v4486
        %v4488 = vsel %vm4485, %v4487, %v4483
        %v4489 = vmul.f32 1.0, %v4488
        %v4490 = vrcp.pop %v4290
        %v4491 = vmul.f32 %v4290, %v4490
        %v4492 = vsub.f32 1.0, %v4491
        %v4493 = vmul.f32 %v4490, %v4492
        %v4494 = vadd.f32 %v4490, %v4493
        %vm4495 = vweird.f32 %v4290
        %vm4496 = vweird.f32 %v4490
        %vm4497 = vmor %vm4495, %vm4496
        %v4498 = vsel %vm4497, %v4490, %v4494
        %v4499 = vand.u32 2147483647, %v4290
        %vm4500 = vcmp.eq.f32.partialorder %v4499, 8.507059e+37
        %v4501 = vand.u32 %v4290, 2147483648
        %v4502 = vor.u32 1.1754944e-38, %v4501
        %v4503 = vsel %vm4500, %v4502, %v4498
        %v4504 = vmul.f32 1.0, %v4503
        %v4505 = vrcp.pop %v4291
        %v4506 = vmul.f32 %v4291, %v4505
        %v4507 = vsub.f32 1.0, %v4506
        %v4508 = vmul.f32 %v4505, %v4507
        %v4509 = vadd.f32 %v4505, %v4508
        %vm4510 = vweird.f32 %v4291
        %vm4511 = vweird.f32 %v4505
        %vm4512 = vmor %vm4510, %vm4511
        %v4513 = vsel %vm4512, %v4505, %v4509
        %v4514 = vand.u32 2147483647, %v4291
        %vm4515 = vcmp.eq.f32.partialorder %v4514, 8.507059e+37
        %v4516 = vand.u32 %v4291, 2147483648
        %v4517 = vor.u32 1.1754944e-38, %v4516
        %v4518 = vsel %vm4515, %v4517, %v4513
        %v4519 = vmul.f32 1.0, %v4518
        %v4520 = vrcp.pop %v4292
        %v4521 = vmul.f32 %v4292, %v4520
        %v4522 = vsub.f32 1.0, %v4521
        %v4523 = vmul.f32 %v4520, %v4522
        %v4524 = vadd.f32 %v4520, %v4523
        %vm4525 = vweird.f32 %v4292
        %vm4526 = vweird.f32 %v4520
        %vm4527 = vmor %vm4525, %vm4526
        %v4528 = vsel %vm4527, %v4520, %v4524
        %v4529 = vand.u32 2147483647, %v4292
        %vm4530 = vcmp.eq.f32.partialorder %v4529, 8.507059e+37
        %v4531 = vand.u32 %v4292, 2147483648
        %v4532 = vor.u32 1.1754944e-38, %v4531
        %v4533 = vsel %vm4530, %v4532, %v4528
        %v4534 = vmul.f32 1.0, %v4533
        %v4535 = vrcp.pop %v4293
        %v4536 = vmul.f32 %v4293, %v4535
        %v4537 = vsub.f32 1.0, %v4536
        %v4538 = vmul.f32 %v4535, %v4537
        %v4539 = vadd.f32 %v4535, %v4538
        %vm4540 = vweird.f32 %v4293
        %vm4541 = vweird.f32 %v4535
        %vm4542 = vmor %vm4540, %vm4541
        %v4543 = vsel %vm4542, %v4535, %v4539
        %v4544 = vand.u32 2147483647, %v4293
        %vm4545 = vcmp.eq.f32.partialorder %v4544, 8.507059e+37
        %v4546 = vand.u32 %v4293, 2147483648
        %v4547 = vor.u32 1.1754944e-38, %v4546
        %v4548 = vsel %vm4545, %v4547, %v4543
        %v4549 = vmul.f32 1.0, %v4548
        %v4550 = vrcp.pop %v4294
        %v4551 = vmul.f32 %v4294, %v4550
        %v4552 = vsub.f32 1.0, %v4551
        %v4553 = vmul.f32 %v4550, %v4552
        %v4554 = vadd.f32 %v4550, %v4553
        %vm4555 = vweird.f32 %v4294
        %vm4556 = vweird.f32 %v4550
        %vm4557 = vmor %vm4555, %vm4556
        %v4558 = vsel %vm4557, %v4550, %v4554
        %v4559 = vand.u32 2147483647, %v4294
        %vm4560 = vcmp.eq.f32.partialorder %v4559, 8.507059e+37
        %v4561 = vand.u32 %v4294, 2147483648
        %v4562 = vor.u32 1.1754944e-38, %v4561
        %v4563 = vsel %vm4560, %v4562, %v4558
        %v4564 = vmul.f32 1.0, %v4563
        %v4565 = vrcp.pop %v4295
        %v4566 = vmul.f32 %v4295, %v4565
        %v4567 = vsub.f32 1.0, %v4566
        %v4568 = vmul.f32 %v4565, %v4567
        %v4569 = vadd.f32 %v4565, %v4568
        %vm4570 = vweird.f32 %v4295
        %vm4571 = vweird.f32 %v4565
        %vm4572 = vmor %vm4570, %vm4571
        %v4573 = vsel %vm4572, %v4565, %v4569
        %v4574 = vand.u32 2147483647, %v4295
        %vm4575 = vcmp.eq.f32.partialorder %v4574, 8.507059e+37
        %v4576 = vand.u32 %v4295, 2147483648
        %v4577 = vor.u32 1.1754944e-38, %v4576
        %v4578 = vsel %vm4575, %v4577, %v4573
        %v4579 = vmul.f32 1.0, %v4578
        %v4580 = vrcp.pop %v4296
        %v4581 = vmul.f32 %v4296, %v4580
        %v4582 = vsub.f32 1.0, %v4581
        %v4583 = vmul.f32 %v4580, %v4582
        %v4584 = vadd.f32 %v4580, %v4583
        %vm4585 = vweird.f32 %v4296
        %vm4586 = vweird.f32 %v4580
        %vm4587 = vmor %vm4585, %vm4586
        %v4588 = vsel %vm4587, %v4580, %v4584
        %v4589 = vand.u32 2147483647, %v4296
        %vm4590 = vcmp.eq.f32.partialorder %v4589, 8.507059e+37
        %v4591 = vand.u32 %v4296, 2147483648
        %v4592 = vor.u32 1.1754944e-38, %v4591
        %v4593 = vsel %vm4590, %v4592, %v4588
        %v4594 = vmul.f32 1.0, %v4593
        %v4595 = vrcp.pop %v4297
        %v4596 = vmul.f32 %v4297, %v4595
        %v4597 = vsub.f32 1.0, %v4596
        %v4598 = vmul.f32 %v4595, %v4597
        %v4599 = vadd.f32 %v4595, %v4598
        %vm4600 = vweird.f32 %v4297
        %vm4601 = vweird.f32 %v4595
        %vm4602 = vmor %vm4600, %vm4601
        %v4603 = vsel %vm4602, %v4595, %v4599
        %v4604 = vand.u32 2147483647, %v4297
        %vm4605 = vcmp.eq.f32.partialorder %v4604, 8.507059e+37
        %v4606 = vand.u32 %v4297, 2147483648
        %v4607 = vor.u32 1.1754944e-38, %v4606
        %v4608 = vsel %vm4605, %v4607, %v4603
        %v4609 = vmul.f32 1.0, %v4608
        %v4610 = vrcp.pop %v4298
        %v4611 = vmul.f32 %v4298, %v4610
        %v4612 = vsub.f32 1.0, %v4611
        %v4613 = vmul.f32 %v4610, %v4612
        %v4614 = vadd.f32 %v4610, %v4613
        %vm4615 = vweird.f32 %v4298
        %vm4616 = vweird.f32 %v4610
        %vm4617 = vmor %vm4615, %vm4616
        %v4618 = vsel %vm4617, %v4610, %v4614
        %v4619 = vand.u32 2147483647, %v4298
        %vm4620 = vcmp.eq.f32.partialorder %v4619, 8.507059e+37
        %v4621 = vand.u32 %v4298, 2147483648
        %v4622 = vor.u32 1.1754944e-38, %v4621
        %v4623 = vsel %vm4620, %v4622, %v4618
        %v4624 = vmul.f32 1.0, %v4623
        %v4625 = vrcp.pop %v4299
        %v4626 = vmul.f32 %v4299, %v4625
        %v4627 = vsub.f32 1.0, %v4626
        %v4628 = vmul.f32 %v4625, %v4627
        %v4629 = vadd.f32 %v4625, %v4628
        %vm4630 = vweird.f32 %v4299
        %vm4631 = vweird.f32 %v4625
        %vm4632 = vmor %vm4630, %vm4631
        %v4633 = vsel %vm4632, %v4625, %v4629
        %v4634 = vand.u32 2147483647, %v4299
        %vm4635 = vcmp.eq.f32.partialorder %v4634, 8.507059e+37
        %v4636 = vand.u32 %v4299, 2147483648
        %v4637 = vor.u32 1.1754944e-38, %v4636
        %v4638 = vsel %vm4635, %v4637, %v4633
        %v4639 = vmul.f32 1.0, %v4638
        %v4640 = vrcp.pop %v4300
        %v4641 = vmul.f32 %v4300, %v4640
        %v4642 = vsub.f32 1.0, %v4641
        %v4643 = vmul.f32 %v4640, %v4642
        %v4644 = vadd.f32 %v4640, %v4643
        %vm4645 = vweird.f32 %v4300
        %vm4646 = vweird.f32 %v4640
        %vm4647 = vmor %vm4645, %vm4646
        %v4648 = vsel %vm4647, %v4640, %v4644
        %v4649 = vand.u32 2147483647, %v4300
        %vm4650 = vcmp.eq.f32.partialorder %v4649, 8.507059e+37
        %v4651 = vand.u32 %v4300, 2147483648
        %v4652 = vor.u32 1.1754944e-38, %v4651
        %v4653 = vsel %vm4650, %v4652, %v4648
        %v4654 = vmul.f32 1.0, %v4653
        %v4655 = vrcp.pop %v4301
        %v4656 = vmul.f32 %v4301, %v4655
        %v4657 = vsub.f32 1.0, %v4656
        %v4658 = vmul.f32 %v4655, %v4657
        %v4659 = vadd.f32 %v4655, %v4658
        %vm4660 = vweird.f32 %v4301
        %vm4661 = vweird.f32 %v4655
        %vm4662 = vmor %vm4660, %vm4661
        %v4663 = vsel %vm4662, %v4655, %v4659
        %v4664 = vand.u32 2147483647, %v4301
        %vm4665 = vcmp.eq.f32.partialorder %v4664, 8.507059e+37
        %v4666 = vand.u32 %v4301, 2147483648
        %v4667 = vor.u32 1.1754944e-38, %v4666
        %v4668 = vsel %vm4665, %v4667, %v4663
        %v4669 = vmul.f32 1.0, %v4668
        %v4670 = vrcp.pop %v4302
        %v4671 = vmul.f32 %v4302, %v4670
        %v4672 = vsub.f32 1.0, %v4671
        %v4673 = vmul.f32 %v4670, %v4672
        %v4674 = vadd.f32 %v4670, %v4673
        %vm4675 = vweird.f32 %v4302
        %vm4676 = vweird.f32 %v4670
        %vm4677 = vmor %vm4675, %vm4676
        %v4678 = vsel %vm4677, %v4670, %v4674
        %v4679 = vand.u32 2147483647, %v4302
        %vm4680 = vcmp.eq.f32.partialorder %v4679, 8.507059e+37
        %v4681 = vand.u32 %v4302, 2147483648
        %v4682 = vor.u32 1.1754944e-38, %v4681
        %v4683 = vsel %vm4680, %v4682, %v4678
        %v4684 = vmul.f32 1.0, %v4683
        %v4685 = vrcp.pop %v4303
        %v4686 = vmul.f32 %v4303, %v4685
        %v4687 = vsub.f32 1.0, %v4686
        %v4688 = vmul.f32 %v4685, %v4687
        %v4689 = vadd.f32 %v4685, %v4688
        %vm4690 = vweird.f32 %v4303
        %vm4691 = vweird.f32 %v4685
        %vm4692 = vmor %vm4690, %vm4691
        %v4693 = vsel %vm4692, %v4685, %v4689
        %v4694 = vand.u32 2147483647, %v4303
        %vm4695 = vcmp.eq.f32.partialorder %v4694, 8.507059e+37
        %v4696 = vand.u32 %v4303, 2147483648
        %v4697 = vor.u32 1.1754944e-38, %v4696
        %v4698 = vsel %vm4695, %v4697, %v4693
        %v4699 = vmul.f32 1.0, %v4698
        %v4700 = vrcp.pop %v4304
        %v4701 = vmul.f32 %v4304, %v4700
        %v4702 = vsub.f32 1.0, %v4701
        %v4703 = vmul.f32 %v4700, %v4702
        %v4704 = vadd.f32 %v4700, %v4703
        %vm4705 = vweird.f32 %v4304
        %vm4706 = vweird.f32 %v4700
        %vm4707 = vmor %vm4705, %vm4706
        %v4708 = vsel %vm4707, %v4700, %v4704
        %v4709 = vand.u32 2147483647, %v4304
        %vm4710 = vcmp.eq.f32.partialorder %v4709, 8.507059e+37
        %v4711 = vand.u32 %v4304, 2147483648
        %v4712 = vor.u32 1.1754944e-38, %v4711
        %v4713 = vsel %vm4710, %v4712, %v4708
        %v4714 = vmul.f32 1.0, %v4713
        %v4715 = vrcp.pop %v4305
        %v4716 = vmul.f32 %v4305, %v4715
        %v4717 = vsub.f32 1.0, %v4716
        %v4718 = vmul.f32 %v4715, %v4717
        %v4719 = vadd.f32 %v4715, %v4718
        %vm4720 = vweird.f32 %v4305
        %vm4721 = vweird.f32 %v4715
        %vm4722 = vmor %vm4720, %vm4721
        %v4723 = vsel %vm4722, %v4715, %v4719
        %v4724 = vand.u32 2147483647, %v4305
        %vm4725 = vcmp.eq.f32.partialorder %v4724, 8.507059e+37
        %v4726 = vand.u32 %v4305, 2147483648
        %v4727 = vor.u32 1.1754944e-38, %v4726
        %v4728 = vsel %vm4725, %v4727, %v4723
        %v4729 = vmul.f32 1.0, %v4728
        %v4730 = vrcp.pop %v4306
        %v4731 = vmul.f32 %v4306, %v4730
        %v4732 = vsub.f32 1.0, %v4731
        %v4733 = vmul.f32 %v4730, %v4732
        %v4734 = vadd.f32 %v4730, %v4733
        %vm4735 = vweird.f32 %v4306
        %vm4736 = vweird.f32 %v4730
        %vm4737 = vmor %vm4735, %vm4736
        %v4738 = vsel %vm4737, %v4730, %v4734
        %v4739 = vand.u32 2147483647, %v4306
        %vm4740 = vcmp.eq.f32.partialorder %v4739, 8.507059e+37
        %v4741 = vand.u32 %v4306, 2147483648
        %v4742 = vor.u32 1.1754944e-38, %v4741
        %v4743 = vsel %vm4740, %v4742, %v4738
        %v4744 = vmul.f32 1.0, %v4743
        %v4745 = vrcp.pop %v4307
        %v4746 = vmul.f32 %v4307, %v4745
        %v4747 = vsub.f32 1.0, %v4746
        %v4748 = vmul.f32 %v4745, %v4747
        %v4749 = vadd.f32 %v4745, %v4748
        %vm4750 = vweird.f32 %v4307
        %vm4751 = vweird.f32 %v4745
        %vm4752 = vmor %vm4750, %vm4751
        %v4753 = vsel %vm4752, %v4745, %v4749
        %v4754 = vand.u32 2147483647, %v4307
        %vm4755 = vcmp.eq.f32.partialorder %v4754, 8.507059e+37
        %v4756 = vand.u32 %v4307, 2147483648
        %v4757 = vor.u32 1.1754944e-38, %v4756
        %v4758 = vsel %vm4755, %v4757, %v4753
        %v4759 = vmul.f32 1.0, %v4758
        %v4760 = vrcp.pop %v4308
        %v4761 = vmul.f32 %v4308, %v4760
        %v4762 = vsub.f32 1.0, %v4761
        %v4763 = vmul.f32 %v4760, %v4762
        %v4764 = vadd.f32 %v4760, %v4763
        %vm4765 = vweird.f32 %v4308
        %vm4766 = vweird.f32 %v4760
        %vm4767 = vmor %vm4765, %vm4766
        %v4768 = vsel %vm4767, %v4760, %v4764
        %v4769 = vand.u32 2147483647, %v4308
        %vm4770 = vcmp.eq.f32.partialorder %v4769, 8.507059e+37
        %v4771 = vand.u32 %v4308, 2147483648
        %v4772 = vor.u32 1.1754944e-38, %v4771
        %v4773 = vsel %vm4770, %v4772, %v4768
        %v4774 = vmul.f32 1.0, %v4773
        %v4775 = vrcp.pop %v4309
        %v4776 = vmul.f32 %v4309, %v4775
        %v4777 = vsub.f32 1.0, %v4776
        %v4778 = vmul.f32 %v4775, %v4777
        %v4779 = vadd.f32 %v4775, %v4778
        %vm4780 = vweird.f32 %v4309
        %vm4781 = vweird.f32 %v4775
        %vm4782 = vmor %vm4780, %vm4781
        %v4783 = vsel %vm4782, %v4775, %v4779
        %v4784 = vand.u32 2147483647, %v4309
        %vm4785 = vcmp.eq.f32.partialorder %v4784, 8.507059e+37
        %v4786 = vand.u32 %v4309, 2147483648
        %v4787 = vor.u32 1.1754944e-38, %v4786
        %v4788 = vsel %vm4785, %v4787, %v4783
        %v4789 = vmul.f32 1.0, %v4788
        %4791 = vset.pattern.permute.xlu0 0
        %4792 = vperm.xlu0 %4791, %v4324
        %v4793 = vpop.permute.xlu0 %4792
        %4796 = vset.pattern.permute.xlu0 0
        %4797 = vperm.xlu0 %4796, %v4339
        %v4798 = vpop.permute.xlu0 %4797
        %4801 = vset.pattern.permute.xlu0 0
        %4802 = vperm.xlu0 %4801, %v4354
        %v4803 = vpop.permute.xlu0 %4802
        %4806 = vset.pattern.permute.xlu0 0
        %4807 = vperm.xlu0 %4806, %v4369
        %v4808 = vpop.permute.xlu0 %4807
        %4811 = vset.pattern.permute.xlu0 0
        %4812 = vperm.xlu0 %4811, %v4384
        %v4813 = vpop.permute.xlu0 %4812
        %4816 = vset.pattern.permute.xlu0 0
        %4817 = vperm.xlu0 %4816, %v4399
        %v4818 = vpop.permute.xlu0 %4817
        %4821 = vset.pattern.permute.xlu0 0
        %4822 = vperm.xlu0 %4821, %v4414
        %v4823 = vpop.permute.xlu0 %4822
        %4826 = vset.pattern.permute.xlu0 0
        %4827 = vperm.xlu0 %4826, %v4429
        %v4828 = vpop.permute.xlu0 %4827
        %4831 = vset.pattern.permute.xlu0 0
        %4832 = vperm.xlu0 %4831, %v4444
        %v4833 = vpop.permute.xlu0 %4832
        %4836 = vset.pattern.permute.xlu0 0
        %4837 = vperm.xlu0 %4836, %v4459
        %v4838 = vpop.permute.xlu0 %4837
        %4841 = vset.pattern.permute.xlu0 0
        %4842 = vperm.xlu0 %4841, %v4474
        %v4843 = vpop.permute.xlu0 %4842
        %4846 = vset.pattern.permute.xlu0 0
        %4847 = vperm.xlu0 %4846, %v4489
        %v4848 = vpop.permute.xlu0 %4847
        %4851 = vset.pattern.permute.xlu0 0
        %4852 = vperm.xlu0 %4851, %v4504
        %v4853 = vpop.permute.xlu0 %4852
        %4856 = vset.pattern.permute.xlu0 0
        %4857 = vperm.xlu0 %4856, %v4519
        %v4858 = vpop.permute.xlu0 %4857
        %4861 = vset.pattern.permute.xlu0 0
        %4862 = vperm.xlu0 %4861, %v4534
        %v4863 = vpop.permute.xlu0 %4862
        %4866 = vset.pattern.permute.xlu0 0
        %4867 = vperm.xlu0 %4866, %v4549
        %v4868 = vpop.permute.xlu0 %4867
        %4871 = vset.pattern.permute.xlu0 0
        %4872 = vperm.xlu0 %4871, %v4564
        %v4873 = vpop.permute.xlu0 %4872
        %4876 = vset.pattern.permute.xlu0 0
        %4877 = vperm.xlu0 %4876, %v4579
        %v4878 = vpop.permute.xlu0 %4877
        %4881 = vset.pattern.permute.xlu0 0
        %4882 = vperm.xlu0 %4881, %v4594
        %v4883 = vpop.permute.xlu0 %4882
        %4886 = vset.pattern.permute.xlu0 0
        %4887 = vperm.xlu0 %4886, %v4609
        %v4888 = vpop.permute.xlu0 %4887
        %4891 = vset.pattern.permute.xlu0 0
        %4892 = vperm.xlu0 %4891, %v4624
        %v4893 = vpop.permute.xlu0 %4892
        %4896 = vset.pattern.permute.xlu0 0
        %4897 = vperm.xlu0 %4896, %v4639
        %v4898 = vpop.permute.xlu0 %4897
        %4901 = vset.pattern.permute.xlu0 0
        %4902 = vperm.xlu0 %4901, %v4654
        %v4903 = vpop.permute.xlu0 %4902
        %4906 = vset.pattern.permute.xlu0 0
        %4907 = vperm.xlu0 %4906, %v4669
        %v4908 = vpop.permute.xlu0 %4907
        %4911 = vset.pattern.permute.xlu0 0
        %4912 = vperm.xlu0 %4911, %v4684
        %v4913 = vpop.permute.xlu0 %4912
        %4916 = vset.pattern.permute.xlu0 0
        %4917 = vperm.xlu0 %4916, %v4699
        %v4918 = vpop.permute.xlu0 %4917
        %4921 = vset.pattern.permute.xlu0 0
        %4922 = vperm.xlu0 %4921, %v4714
        %v4923 = vpop.permute.xlu0 %4922
        %4926 = vset.pattern.permute.xlu0 0
        %4927 = vperm.xlu0 %4926, %v4729
        %v4928 = vpop.permute.xlu0 %4927
        %4931 = vset.pattern.permute.xlu0 0
        %4932 = vperm.xlu0 %4931, %v4744
        %v4933 = vpop.permute.xlu0 %4932
        %4936 = vset.pattern.permute.xlu0 0
        %4937 = vperm.xlu0 %4936, %v4759
        %v4938 = vpop.permute.xlu0 %4937
        %4941 = vset.pattern.permute.xlu0 0
        %4942 = vperm.xlu0 %4941, %v4774
        %v4943 = vpop.permute.xlu0 %4942
        %4946 = vset.pattern.permute.xlu0 0
        %4947 = vperm.xlu0 %4946, %v4789
        %v4948 = vpop.permute.xlu0 %4947
        %v4950 = vmul.f32 %v3684, %v4793
        %v4951 = vmul.f32 %v3699, %v4798
        %v4952 = vmul.f32 %v3714, %v4803
        %v4953 = vmul.f32 %v3729, %v4808
        %v4954 = vmul.f32 %v3744, %v4813
        %v4955 = vmul.f32 %v3759, %v4818
        %v4956 = vmul.f32 %v3774, %v4823
        %v4957 = vmul.f32 %v3789, %v4828
        %v4958 = vmul.f32 %v3804, %v4833
        %v4959 = vmul.f32 %v3819, %v4838
        %v4960 = vmul.f32 %v3834, %v4843
        %v4961 = vmul.f32 %v3849, %v4848
        %v4962 = vmul.f32 %v3864, %v4853
        %v4963 = vmul.f32 %v3879, %v4858
        %v4964 = vmul.f32 %v3894, %v4863
        %v4965 = vmul.f32 %v3909, %v4868
        %v4966 = vmul.f32 %v3924, %v4873
        %v4967 = vmul.f32 %v3939, %v4878
        %v4968 = vmul.f32 %v3954, %v4883
        %v4969 = vmul.f32 %v3969, %v4888
        %v4970 = vmul.f32 %v3984, %v4893
        %v4971 = vmul.f32 %v3999, %v4898
        %v4972 = vmul.f32 %v4014, %v4903
        %v4973 = vmul.f32 %v4029, %v4908
        %v4974 = vmul.f32 %v4044, %v4913
        %v4975 = vmul.f32 %v4059, %v4918
        %v4976 = vmul.f32 %v4074, %v4923
        %v4977 = vmul.f32 %v4089, %v4928
        %v4978 = vmul.f32 %v4104, %v4933
        %v4979 = vmul.f32 %v4119, %v4938
        %v4980 = vmul.f32 %v4134, %v4943
        %v4981 = vmul.f32 %v4149, %v4948
        %vm4982 = vcmask 31744
        %v4983 = vsel %vm4982, %v4950, 0.0
        %v4984 = vsel %vm4982, %v4951, 0.0
        %v4985 = vadd.f32 %v4983, %v4984
        %v4986 = vsel %vm4982, %v4952, 0.0
        %v4987 = vadd.f32 %v4985, %v4986
        %v4988 = vsel %vm4982, %v4953, 0.0
        %v4989 = vadd.f32 %v4987, %v4988
        %v4990 = vsel %vm4982, %v4954, 0.0
        %v4991 = vadd.f32 %v4989, %v4990
        %v4992 = vsel %vm4982, %v4955, 0.0
        %v4993 = vadd.f32 %v4991, %v4992
        %v4994 = vsel %vm4982, %v4956, 0.0
        %v4995 = vadd.f32 %v4993, %v4994
        %v4996 = vsel %vm4982, %v4957, 0.0
        %v4997 = vadd.f32 %v4995, %v4996
        %v4998 = vsel %vm4982, %v4958, 0.0
        %v4999 = vadd.f32 %v4997, %v4998
        %v5000 = vsel %vm4982, %v4959, 0.0
        %v5001 = vadd.f32 %v4999, %v5000
        %v5002 = vsel %vm4982, %v4960, 0.0
        %v5003 = vadd.f32 %v5001, %v5002
        %v5004 = vsel %vm4982, %v4961, 0.0
        %v5005 = vadd.f32 %v5003, %v5004
        %v5006 = vsel %vm4982, %v4962, 0.0
        %v5007 = vadd.f32 %v5005, %v5006
        %v5008 = vsel %vm4982, %v4963, 0.0
        %v5009 = vadd.f32 %v5007, %v5008
        %v5010 = vsel %vm4982, %v4964, 0.0
        %v5011 = vadd.f32 %v5009, %v5010
        %v5012 = vsel %vm4982, %v4965, 0.0
        %v5013 = vadd.f32 %v5011, %v5012
        %v5014 = vsel %vm4982, %v4966, 0.0
        %v5015 = vadd.f32 %v5013, %v5014
        %v5016 = vsel %vm4982, %v4967, 0.0
        %v5017 = vadd.f32 %v5015, %v5016
        %v5018 = vsel %vm4982, %v4968, 0.0
        %v5019 = vadd.f32 %v5017, %v5018
        %v5020 = vsel %vm4982, %v4969, 0.0
        %v5021 = vadd.f32 %v5019, %v5020
        %v5022 = vsel %vm4982, %v4970, 0.0
        %v5023 = vadd.f32 %v5021, %v5022
        %v5024 = vsel %vm4982, %v4971, 0.0
        %v5025 = vadd.f32 %v5023, %v5024
        %v5026 = vsel %vm4982, %v4972, 0.0
        %v5027 = vadd.f32 %v5025, %v5026
        %v5028 = vsel %vm4982, %v4973, 0.0
        %v5029 = vadd.f32 %v5027, %v5028
        %v5030 = vsel %vm4982, %v4974, 0.0
        %v5031 = vadd.f32 %v5029, %v5030
        %v5032 = vsel %vm4982, %v4975, 0.0
        %v5033 = vadd.f32 %v5031, %v5032
        %v5034 = vsel %vm4982, %v4976, 0.0
        %v5035 = vadd.f32 %v5033, %v5034
        %v5036 = vsel %vm4982, %v4977, 0.0
        %v5037 = vadd.f32 %v5035, %v5036
        %v5038 = vsel %vm4982, %v4978, 0.0
        %v5039 = vadd.f32 %v5037, %v5038
        %v5040 = vsel %vm4982, %v4979, 0.0
        %v5041 = vadd.f32 %v5039, %v5040
        %v5042 = vsel %vm4982, %v4980, 0.0
        %v5043 = vadd.f32 %v5041, %v5042
        %v5044 = vsel %vm4982, %v4981, 0.0
        %v5045 = vadd.f32 %v5043, %v5044
        %v5046 = vrot.slane %v5045, 4
        %v5047 = vadd.f32 %v5045, %v5046
        %v5048 = vrot.slane %v5047, 2
        %v5049 = vadd.f32 %v5047, %v5048
        %v5050 = vrot.slane %v5049, 1
        %v5051 = vadd.f32 %v5049, %v5050
        %v5052 = vrcp.pop 256.0
        %v5053 = vmul.f32 256.0, %v5052
        %v5054 = vsub.f32 1.0, %v5053
        %v5055 = vmul.f32 %v5052, %v5054
        %v5056 = vadd.f32 %v5052, %v5055
        %vm5057 = vweird.f32 %v5052
        %v5058 = vsel %vm5057, %v5052, %v5056
        %v5059 = vmul.f32 %v5051, %v5058
        %v5060 = vsel %vm4982, %v4950, -inf
        %v5061 = vsel %vm4982, %v4951, -inf
        %v5062 = vsel %vm4982, %v4952, -inf
        %v5063 = vsel %vm4982, %v4953, -inf
        %v5064 = vsel %vm4982, %v4954, -inf
        %v5065 = vmax.f32 %v5060, %v5064
        %v5066 = vsel %vm4982, %v4955, -inf
        %v5067 = vmax.f32 %v5061, %v5066
        %v5068 = vsel %vm4982, %v4956, -inf
        %v5069 = vmax.f32 %v5062, %v5068
        %v5070 = vsel %vm4982, %v4957, -inf
        %v5071 = vmax.f32 %v5063, %v5070
        %v5072 = vsel %vm4982, %v4958, -inf
        %v5073 = vmax.f32 %v5065, %v5072
        %v5074 = vsel %vm4982, %v4959, -inf
        %v5075 = vmax.f32 %v5067, %v5074
        %v5076 = vsel %vm4982, %v4960, -inf
        %v5077 = vmax.f32 %v5069, %v5076
        %v5078 = vsel %vm4982, %v4961, -inf
        %v5079 = vmax.f32 %v5071, %v5078
        %v5080 = vsel %vm4982, %v4962, -inf
        %v5081 = vmax.f32 %v5073, %v5080
        %v5082 = vsel %vm4982, %v4963, -inf
        %v5083 = vmax.f32 %v5075, %v5082
        %v5084 = vsel %vm4982, %v4964, -inf
        %v5085 = vmax.f32 %v5077, %v5084
        %v5086 = vsel %vm4982, %v4965, -inf
        %v5087 = vmax.f32 %v5079, %v5086
        %v5088 = vsel %vm4982, %v4966, -inf
        %v5089 = vmax.f32 %v5081, %v5088
        %v5090 = vsel %vm4982, %v4967, -inf
        %v5091 = vmax.f32 %v5083, %v5090
        %v5092 = vsel %vm4982, %v4968, -inf
        %v5093 = vmax.f32 %v5085, %v5092
        %v5094 = vsel %vm4982, %v4969, -inf
        %v5095 = vmax.f32 %v5087, %v5094
        %v5096 = vsel %vm4982, %v4970, -inf
        %v5097 = vmax.f32 %v5089, %v5096
        %v5098 = vsel %vm4982, %v4971, -inf
        %v5099 = vmax.f32 %v5091, %v5098
        %v5100 = vsel %vm4982, %v4972, -inf
        %v5101 = vmax.f32 %v5093, %v5100
        %v5102 = vsel %vm4982, %v4973, -inf
        %v5103 = vmax.f32 %v5095, %v5102
        %v5104 = vsel %vm4982, %v4974, -inf
        %v5105 = vmax.f32 %v5097, %v5104
        %v5106 = vsel %vm4982, %v4975, -inf
        %v5107 = vmax.f32 %v5099, %v5106
        %v5108 = vsel %vm4982, %v4976, -inf
        %v5109 = vmax.f32 %v5101, %v5108
        %v5110 = vsel %vm4982, %v4977, -inf
        %v5111 = vmax.f32 %v5103, %v5110
        %v5112 = vsel %vm4982, %v4978, -inf
        %v5113 = vmax.f32 %v5105, %v5112
        %v5114 = vsel %vm4982, %v4979, -inf
        %v5115 = vmax.f32 %v5107, %v5114
        %v5116 = vsel %vm4982, %v4980, -inf
        %v5117 = vmax.f32 %v5109, %v5116
        %v5118 = vsel %vm4982, %v4981, -inf
        %v5119 = vmax.f32 %v5111, %v5118
        %v5120 = vmax.f32 %v5113, %v5115
        %v5121 = vmax.f32 %v5117, %v5119
        %v5122 = vmax.f32 %v5120, %v5121
        %v5123 = vrot.slane %v5122, 4
        %v5124 = vmax.f32 %v5122, %v5123
        %v5125 = vrot.slane %v5124, 2
        %v5126 = vmax.f32 %v5124, %v5125
        %v5127 = vrot.slane %v5126, 1
        %v5128 = vmax.f32 %v5126, %v5127
        %v5129 = vld [vmem:[%s5 + $0x9] sm:$0x1]
        %v5130 = vld [vmem:[%s5 + $0xa] sm:$0x1]
        %v5131 = vld [vmem:[%s5 + $0xb] sm:$0x1]
        %v5132 = vmul.f32 %v5059, %v5129
        %v5133 = vmul.f32 %v5128, %v5130
        %v5134 = vadd.f32 %v5132, %v5133
        %v5135 = vadd.f32 %v5134, %v5131
        %vm5136 = vcmask 24576
        %v5137 = vsel %vm5136, %v5135, -inf
        %5138 = vmax.xlane.f32.xlu0 %v5137
        %v5139 = vpop.xlane.xlu0 %5138
        %v5140 = vsub.f32 %v5135, %v5139
        %v5141 = vmul.f32 %v5140, 1.442695
        %v5142 = vpow.pop %v5141
        %v5143 = vsel %vm5136, %v5142, 0.0
        %5144 = vadd.xlane.f32.xlu0 %v5143
        %v5145 = vpop.xlane.xlu0 %5144
        %v5146 = vrcp.pop %v5145
        %v5147 = vmul.f32 %v5145, %v5146
        %v5148 = vsub.f32 1.0, %v5147
        %v5149 = vmul.f32 %v5146, %v5148
        %v5150 = vadd.f32 %v5146, %v5149
        %vm5151 = vweird.f32 %v5145
        %vm5152 = vweird.f32 %v5146
        %vm5153 = vmor %vm5151, %vm5152
        %v5154 = vsel %vm5153, %v5146, %v5150
        %v5155 = vand.u32 2147483647, %v5145
        %vm5156 = vcmp.eq.f32.partialorder %v5155, 8.507059e+37
        %v5157 = vand.u32 %v5145, 2147483648
        %v5158 = vor.u32 1.1754944e-38, %v5157
        %v5159 = vsel %vm5156, %v5158, %v5154
        %v5160 = vmul.f32 %v5142, %v5159
        %v5161 = vperm.slane %v5160, 0
        %5163 = vrot.lane.b32.xlu0 %v5161, 4
        %v5164 = vpop.permute.xlu0 %5163
        %v5166 = vmul.f32 %v3324, %v5164
        %v5167 = vmul.f32 %v3325, %v5164
        %v5168 = vmul.f32 %v3326, %v5164
        %v5169 = vmul.f32 %v3327, %v5164
        %v5170 = vmul.f32 %v3328, %v5164
        %v5171 = vmul.f32 %v3329, %v5164
        %v5172 = vmul.f32 %v3330, %v5164
        %v5173 = vmul.f32 %v3331, %v5164
        %5182 = vrot.lane.b32.xlu0 %v5166, 124
        %v5183 = vpop.permute.xlu0 %5182
        %5184 = vrot.lane.b32.xlu0 %v5167, 124
        %v5185 = vpop.permute.xlu0 %5184
        %5186 = vrot.lane.b32.xlu0 %v5168, 124
        %v5187 = vpop.permute.xlu0 %5186
        %5188 = vrot.lane.b32.xlu0 %v5169, 124
        %v5189 = vpop.permute.xlu0 %5188
        %5190 = vrot.lane.b32.xlu0 %v5170, 124
        %v5191 = vpop.permute.xlu0 %5190
        %5192 = vrot.lane.b32.xlu0 %v5171, 124
        %v5193 = vpop.permute.xlu0 %5192
        %5194 = vrot.lane.b32.xlu0 %v5172, 124
        %v5195 = vpop.permute.xlu0 %5194
        %5196 = vrot.lane.b32.xlu0 %v5173, 124
        %v5197 = vpop.permute.xlu0 %5196
        %v5206 = vsel %vm4982, %v5183, 0.0
        %5207 = vadd.xlane.f32.xlu0 %v5206
        %v5208 = vpop.xlane.xlu0 %5207
        %v5209 = vsel %vm4982, %v5185, 0.0
        %5210 = vadd.xlane.f32.xlu0 %v5209
        %v5211 = vpop.xlane.xlu0 %5210
        %v5212 = vsel %vm4982, %v5187, 0.0
        %5213 = vadd.xlane.f32.xlu0 %v5212
        %v5214 = vpop.xlane.xlu0 %5213
        %v5215 = vsel %vm4982, %v5189, 0.0
        %5216 = vadd.xlane.f32.xlu0 %v5215
        %v5217 = vpop.xlane.xlu0 %5216
        %v5218 = vsel %vm4982, %v5191, 0.0
        %5219 = vadd.xlane.f32.xlu0 %v5218
        %v5220 = vpop.xlane.xlu0 %5219
        %v5221 = vsel %vm4982, %v5193, 0.0
        %5222 = vadd.xlane.f32.xlu0 %v5221
        %v5223 = vpop.xlane.xlu0 %5222
        %v5224 = vsel %vm4982, %v5195, 0.0
        %5225 = vadd.xlane.f32.xlu0 %v5224
        %v5226 = vpop.xlane.xlu0 %5225
        %v5227 = vsel %vm4982, %v5197, 0.0
        %5228 = vadd.xlane.f32.xlu0 %v5227
        %v5229 = vpop.xlane.xlu0 %5228
        %s5230 = scalar_lea.vmem [#allocation4], 288
        %v5231 = vld [vmem:[%s5230] sm:$0xf]
        %v5232 = vld [vmem:[%s5230 + $0x4] sm:$0xf]
        %v5233 = vld [vmem:[%s5230 + $0x8] sm:$0xf]
        %v5234 = vld [vmem:[%s5230 + $0xc] sm:$0xf]
        %v5235 = vld [vmem:[%s5230 + $0x10] sm:$0xf]
        %v5236 = vld [vmem:[%s5230 + $0x14] sm:$0xf]
        %v5237 = vld [vmem:[%s5230 + $0x18] sm:$0xf]
        %v5238 = vld [vmem:[%s5230 + $0x1c] sm:$0xf]
        %v5239 = vld [vmem:[%s5230 + $0x20] sm:$0xf]
        %v5240 = vld [vmem:[%s5230 + $0x24] sm:$0xf]
        %v5241 = vld [vmem:[%s5230 + $0x28] sm:$0xf]
        %v5242 = vld [vmem:[%s5230 + $0x2c] sm:$0xf]
        %v5243 = vld [vmem:[%s5230 + $0x30] sm:$0xf]
        %v5244 = vld [vmem:[%s5230 + $0x34] sm:$0xf]
        %v5245 = vld [vmem:[%s5230 + $0x38] sm:$0xf]
        %v5246 = vld [vmem:[%s5230 + $0x3c] sm:$0xf]
        %v5247 = vld [vmem:[%s5230 + $0x40] sm:$0xf]
        %v5248 = vld [vmem:[%s5230 + $0x44] sm:$0xf]
        %v5249 = vld [vmem:[%s5230 + $0x48] sm:$0xf]
        %v5250 = vld [vmem:[%s5230 + $0x4c] sm:$0xf]
        %v5251 = vld [vmem:[%s5230 + $0x50] sm:$0xf]
        %v5252 = vld [vmem:[%s5230 + $0x54] sm:$0xf]
        %v5253 = vld [vmem:[%s5230 + $0x58] sm:$0xf]
        %v5254 = vld [vmem:[%s5230 + $0x5c] sm:$0xf]
        %v5255 = vld [vmem:[%s5230 + $0x60] sm:$0xf]
        %v5256 = vld [vmem:[%s5230 + $0x64] sm:$0xf]
        %v5257 = vld [vmem:[%s5230 + $0x68] sm:$0xf]
        %v5258 = vld [vmem:[%s5230 + $0x6c] sm:$0xf]
        %v5259 = vld [vmem:[%s5230 + $0x70] sm:$0xf]
        %v5260 = vld [vmem:[%s5230 + $0x74] sm:$0xf]
        %v5261 = vld [vmem:[%s5230 + $0x78] sm:$0xf]
        %v5262 = vld [vmem:[%s5230 + $0x7c] sm:$0xf]
        %v5263 = vld [vmem:[%s5230 + $0x80] sm:$0xf]
        %v5264 = vld [vmem:[%s5230 + $0x84] sm:$0xf]
        %v5265 = vld [vmem:[%s5230 + $0x88] sm:$0xf]
        %v5266 = vld [vmem:[%s5230 + $0x8c] sm:$0xf]
        %v5267 = vld [vmem:[%s5230 + $0x90] sm:$0xf]
        %v5268 = vld [vmem:[%s5230 + $0x94] sm:$0xf]
        %v5269 = vld [vmem:[%s5230 + $0x98] sm:$0xf]
        %v5270 = vld [vmem:[%s5230 + $0x9c] sm:$0xf]
        %v5271 = vld [vmem:[%s5230 + $0xa0] sm:$0xf]
        %v5272 = vld [vmem:[%s5230 + $0xa4] sm:$0xf]
        %v5273 = vld [vmem:[%s5230 + $0xa8] sm:$0xf]
        %v5274 = vld [vmem:[%s5230 + $0xac] sm:$0xf]
        %v5275 = vld [vmem:[%s5230 + $0xb0] sm:$0xf]
        %v5276 = vld [vmem:[%s5230 + $0xb4] sm:$0xf]
        %v5277 = vld [vmem:[%s5230 + $0xb8] sm:$0xf]
        %v5278 = vld [vmem:[%s5230 + $0xbc] sm:$0xf]
        %v5279 = vld [vmem:[%s5230 + $0xc0] sm:$0xf]
        %v5280 = vld [vmem:[%s5230 + $0xc4] sm:$0xf]
        %v5281 = vld [vmem:[%s5230 + $0xc8] sm:$0xf]
        %v5282 = vld [vmem:[%s5230 + $0xcc] sm:$0xf]
        %v5283 = vld [vmem:[%s5230 + $0xd0] sm:$0xf]
        %v5284 = vld [vmem:[%s5230 + $0xd4] sm:$0xf]
        %v5285 = vld [vmem:[%s5230 + $0xd8] sm:$0xf]
        %v5286 = vld [vmem:[%s5230 + $0xdc] sm:$0xf]
        %v5287 = vld [vmem:[%s5230 + $0xe0] sm:$0xf]
        %v5288 = vld [vmem:[%s5230 + $0xe4] sm:$0xf]
        %v5289 = vld [vmem:[%s5230 + $0xe8] sm:$0xf]
        %v5290 = vld [vmem:[%s5230 + $0xec] sm:$0xf]
        %v5291 = vld [vmem:[%s5230 + $0xf0] sm:$0xf]
        %v5292 = vld [vmem:[%s5230 + $0xf4] sm:$0xf]
        %v5293 = vld [vmem:[%s5230 + $0xf8] sm:$0xf]
        %v5294 = vld [vmem:[%s5230 + $0xfc] sm:$0xf]
        %v5295 = vld [vmem:[%s5230 + $0x100] sm:$0xf]
        %v5296 = vld [vmem:[%s5230 + $0x104] sm:$0xf]
        %v5297 = vld [vmem:[%s5230 + $0x108] sm:$0xf]
        %v5298 = vld [vmem:[%s5230 + $0x10c] sm:$0xf]
        %v5299 = vld [vmem:[%s5230 + $0x110] sm:$0xf]
        %v5300 = vld [vmem:[%s5230 + $0x114] sm:$0xf]
        %v5301 = vld [vmem:[%s5230 + $0x118] sm:$0xf]
        %v5302 = vld [vmem:[%s5230 + $0x11c] sm:$0xf]
        %v5303 = vunpack.c.l.bf16 %v5231
        %v5304 = vunpack.c.l.bf16 %v5232
        %v5305 = vunpack.c.l.bf16 %v5233
        %v5306 = vunpack.c.l.bf16 %v5234
        %v5307 = vunpack.c.l.bf16 %v5235
        %v5308 = vunpack.c.l.bf16 %v5236
        %v5309 = vunpack.c.l.bf16 %v5237
        %v5310 = vunpack.c.l.bf16 %v5238
        %v5311 = vmul.f32 %v5303, %v5208
        %v5312 = vmul.f32 %v5304, %v5211
        %v5313 = vmul.f32 %v5305, %v5214
        %v5314 = vmul.f32 %v5306, %v5217
        %v5315 = vmul.f32 %v5307, %v5220
        %v5316 = vmul.f32 %v5308, %v5223
        %v5317 = vmul.f32 %v5309, %v5226
        %v5318 = vmul.f32 %v5310, %v5229
        %v5319 = vunpack.c.l.bf16 %v5239
        %v5320 = vunpack.c.l.bf16 %v5240
        %v5321 = vunpack.c.l.bf16 %v5241
        %v5322 = vunpack.c.l.bf16 %v5242
        %v5323 = vunpack.c.l.bf16 %v5243
        %v5324 = vunpack.c.l.bf16 %v5244
        %v5325 = vunpack.c.l.bf16 %v5245
        %v5326 = vunpack.c.l.bf16 %v5246
        %v5327 = vmul.f32 %v5319, %v5208
        %v5328 = vmul.f32 %v5320, %v5211
        %v5329 = vmul.f32 %v5321, %v5214
        %v5330 = vmul.f32 %v5322, %v5217
        %v5331 = vmul.f32 %v5323, %v5220
        %v5332 = vmul.f32 %v5324, %v5223
        %v5333 = vmul.f32 %v5325, %v5226
        %v5334 = vmul.f32 %v5326, %v5229
        %v5335 = vunpack.c.l.bf16 %v5247
        %v5336 = vunpack.c.l.bf16 %v5248
        %v5337 = vunpack.c.l.bf16 %v5249
        %v5338 = vunpack.c.l.bf16 %v5250
        %v5339 = vunpack.c.l.bf16 %v5251
        %v5340 = vunpack.c.l.bf16 %v5252
        %v5341 = vunpack.c.l.bf16 %v5253
        %v5342 = vunpack.c.l.bf16 %v5254
        %v5343 = vmul.f32 %v5335, %v5208
        %v5344 = vmul.f32 %v5336, %v5211
        %v5345 = vmul.f32 %v5337, %v5214
        %v5346 = vmul.f32 %v5338, %v5217
        %v5347 = vmul.f32 %v5339, %v5220
        %v5348 = vmul.f32 %v5340, %v5223
        %v5349 = vmul.f32 %v5341, %v5226
        %v5350 = vmul.f32 %v5342, %v5229
        %v5351 = vunpack.c.l.bf16 %v5255
        %v5352 = vunpack.c.l.bf16 %v5256
        %v5353 = vunpack.c.l.bf16 %v5257
        %v5354 = vunpack.c.l.bf16 %v5258
        %v5355 = vunpack.c.l.bf16 %v5259
        %v5356 = vunpack.c.l.bf16 %v5260
        %v5357 = vunpack.c.l.bf16 %v5261
        %v5358 = vunpack.c.l.bf16 %v5262
        %v5359 = vmul.f32 %v5351, %v5208
        %v5360 = vmul.f32 %v5352, %v5211
        %v5361 = vmul.f32 %v5353, %v5214
        %v5362 = vmul.f32 %v5354, %v5217
        %v5363 = vmul.f32 %v5355, %v5220
        %v5364 = vmul.f32 %v5356, %v5223
        %v5365 = vmul.f32 %v5357, %v5226
        %v5366 = vmul.f32 %v5358, %v5229
        %v5367 = vunpack.c.l.bf16 %v5263
        %v5368 = vunpack.c.l.bf16 %v5264
        %v5369 = vunpack.c.l.bf16 %v5265
        %v5370 = vunpack.c.l.bf16 %v5266
        %v5371 = vunpack.c.l.bf16 %v5267
        %v5372 = vunpack.c.l.bf16 %v5268
        %v5373 = vunpack.c.l.bf16 %v5269
        %v5374 = vunpack.c.l.bf16 %v5270
        %v5375 = vmul.f32 %v5367, %v5208
        %v5376 = vmul.f32 %v5368, %v5211
        %v5377 = vmul.f32 %v5369, %v5214
        %v5378 = vmul.f32 %v5370, %v5217
        %v5379 = vmul.f32 %v5371, %v5220
        %v5380 = vmul.f32 %v5372, %v5223
        %v5381 = vmul.f32 %v5373, %v5226
        %v5382 = vmul.f32 %v5374, %v5229
        %v5383 = vunpack.c.l.bf16 %v5271
        %v5384 = vunpack.c.l.bf16 %v5272
        %v5385 = vunpack.c.l.bf16 %v5273
        %v5386 = vunpack.c.l.bf16 %v5274
        %v5387 = vunpack.c.l.bf16 %v5275
        %v5388 = vunpack.c.l.bf16 %v5276
        %v5389 = vunpack.c.l.bf16 %v5277
        %v5390 = vunpack.c.l.bf16 %v5278
        %v5391 = vmul.f32 %v5383, %v5208
        %v5392 = vmul.f32 %v5384, %v5211
        %v5393 = vmul.f32 %v5385, %v5214
        %v5394 = vmul.f32 %v5386, %v5217
        %v5395 = vmul.f32 %v5387, %v5220
        %v5396 = vmul.f32 %v5388, %v5223
        %v5397 = vmul.f32 %v5389, %v5226
        %v5398 = vmul.f32 %v5390, %v5229
        %v5399 = vunpack.c.l.bf16 %v5279
        %v5400 = vunpack.c.l.bf16 %v5280
        %v5401 = vunpack.c.l.bf16 %v5281
        %v5402 = vunpack.c.l.bf16 %v5282
        %v5403 = vunpack.c.l.bf16 %v5283
        %v5404 = vunpack.c.l.bf16 %v5284
        %v5405 = vunpack.c.l.bf16 %v5285
        %v5406 = vunpack.c.l.bf16 %v5286
        %v5407 = vmul.f32 %v5399, %v5208
        %v5408 = vmul.f32 %v5400, %v5211
        %v5409 = vmul.f32 %v5401, %v5214
        %v5410 = vmul.f32 %v5402, %v5217
        %v5411 = vmul.f32 %v5403, %v5220
        %v5412 = vmul.f32 %v5404, %v5223
        %v5413 = vmul.f32 %v5405, %v5226
        %v5414 = vmul.f32 %v5406, %v5229
        %v5415 = vunpack.c.l.bf16 %v5287
        %v5416 = vunpack.c.l.bf16 %v5288
        %v5417 = vunpack.c.l.bf16 %v5289
        %v5418 = vunpack.c.l.bf16 %v5290
        %v5419 = vunpack.c.l.bf16 %v5291
        %v5420 = vunpack.c.l.bf16 %v5292
        %v5421 = vunpack.c.l.bf16 %v5293
        %v5422 = vunpack.c.l.bf16 %v5294
        %v5423 = vmul.f32 %v5415, %v5208
        %v5424 = vmul.f32 %v5416, %v5211
        %v5425 = vmul.f32 %v5417, %v5214
        %v5426 = vmul.f32 %v5418, %v5217
        %v5427 = vmul.f32 %v5419, %v5220
        %v5428 = vmul.f32 %v5420, %v5223
        %v5429 = vmul.f32 %v5421, %v5226
        %v5430 = vmul.f32 %v5422, %v5229
        %v5431 = vunpack.c.l.bf16 %v5295
        %v5432 = vunpack.c.l.bf16 %v5296
        %v5433 = vunpack.c.l.bf16 %v5297
        %v5434 = vunpack.c.l.bf16 %v5298
        %v5435 = vunpack.c.l.bf16 %v5299
        %v5436 = vunpack.c.l.bf16 %v5300
        %v5437 = vunpack.c.l.bf16 %v5301
        %v5438 = vunpack.c.l.bf16 %v5302
        %v5439 = vmul.f32 %v5431, %v5208
        %v5440 = vmul.f32 %v5432, %v5211
        %v5441 = vmul.f32 %v5433, %v5214
        %v5442 = vmul.f32 %v5434, %v5217
        %v5443 = vmul.f32 %v5435, %v5220
        %v5444 = vmul.f32 %v5436, %v5223
        %v5445 = vmul.f32 %v5437, %v5226
        %v5446 = vmul.f32 %v5438, %v5229
        %v5447 = vpack.c.bf16 %v5312, %v5311
        %v5448 = vpack.c.bf16 %v5314, %v5313
        %v5449 = vpack.c.bf16 %v5316, %v5315
        %v5450 = vpack.c.bf16 %v5318, %v5317
        %v5451 = vpack.c.bf16 %v5328, %v5327
        %v5452 = vpack.c.bf16 %v5330, %v5329
        %v5453 = vpack.c.bf16 %v5332, %v5331
        %v5454 = vpack.c.bf16 %v5334, %v5333
        %v5455 = vpack.c.bf16 %v5344, %v5343
        %v5456 = vpack.c.bf16 %v5346, %v5345
        %v5457 = vpack.c.bf16 %v5348, %v5347
        %v5458 = vpack.c.bf16 %v5350, %v5349
        %v5459 = vpack.c.bf16 %v5360, %v5359
        %v5460 = vpack.c.bf16 %v5362, %v5361
        %v5461 = vpack.c.bf16 %v5364, %v5363
        %v5462 = vpack.c.bf16 %v5366, %v5365
        %v5463 = vpack.c.bf16 %v5376, %v5375
        %v5464 = vpack.c.bf16 %v5378, %v5377
        %v5465 = vpack.c.bf16 %v5380, %v5379
        %v5466 = vpack.c.bf16 %v5382, %v5381
        %v5467 = vpack.c.bf16 %v5392, %v5391
        %v5468 = vpack.c.bf16 %v5394, %v5393
        %v5469 = vpack.c.bf16 %v5396, %v5395
        %v5470 = vpack.c.bf16 %v5398, %v5397
        %v5471 = vpack.c.bf16 %v5408, %v5407
        %v5472 = vpack.c.bf16 %v5410, %v5409
        %v5473 = vpack.c.bf16 %v5412, %v5411
        %v5474 = vpack.c.bf16 %v5414, %v5413
        %v5475 = vpack.c.bf16 %v5424, %v5423
        %v5476 = vpack.c.bf16 %v5426, %v5425
        %v5477 = vpack.c.bf16 %v5428, %v5427
        %v5478 = vpack.c.bf16 %v5430, %v5429
        %v5479 = vpack.c.bf16 %v5440, %v5439
        %v5480 = vpack.c.bf16 %v5442, %v5441
        %v5481 = vpack.c.bf16 %v5444, %v5443
        %v5482 = vpack.c.bf16 %v5446, %v5445
        %v5483 = vld [vmem:[%s5 + $0x4] sm:$0x1]
        %v5484 = vld [vmem:[%s5 + $0x5] sm:$0x1]
        %v5485 = vld [vmem:[%s5 + $0x6] sm:$0x1]
        %v5486 = vld [vmem:[%s5 + $0x7] sm:$0x1]
        %v5487 = vperm.slane %v5483, 0
        %5488 = vmatpush.bf16.msra.mxu0 %v5454
        %5489 = vmatpush.bf16.msra.mxu0 %v5453
        %5490 = vmatpush.bf16.msra.mxu0 %v5452
        %5491 = vmatpush.bf16.msra.mxu0 %v5451
        %5492 = vmatpush.bf16.msra.mxu0 %v5450
        %5493 = vmatpush.bf16.msra.mxu0 %v5449
        %5494 = vmatpush.bf16.msra.mxu0 %v5448
        %5495 = vmatpush.bf16.msra.mxu0 %v5447
        %5496 = vmatmul.bf16.gmra.mxu0 %v2021
        %v5497 = vpop.f32.mrf.mxu0
        %v5498 = vadd.f32 %v5487, %v5497
        %v5499 = vpop.f32.mrf.mxu0
        %v5500 = vadd.f32 %v5487, %v5499
        %5501 = vmatmul.bf16.gmra.mxu0 %v2026
        %v5502 = vpop.f32.mrf.mxu0
        %v5503 = vadd.f32 %v5487, %v5502
        %v5504 = vpop.f32.mrf.mxu0
        %v5505 = vadd.f32 %v5487, %v5504
        %5506 = vmatmul.bf16.gmra.mxu0 %v2031
        %v5507 = vpop.f32.mrf.mxu0
        %v5508 = vadd.f32 %v5487, %v5507
        %v5509 = vpop.f32.mrf.mxu0
        %v5510 = vadd.f32 %v5487, %v5509
        %5511 = vmatmul.bf16.gmra.mxu0 %v2036
        %v5512 = vpop.f32.mrf.mxu0
        %v5513 = vadd.f32 %v5487, %v5512
        %v5514 = vpop.f32.mrf.mxu0
        %v5515 = vadd.f32 %v5487, %v5514
        %5516 = vmatmul.bf16.gmra.mxu0 %v2041
        %v5517 = vpop.f32.mrf.mxu0
        %v5518 = vadd.f32 %v5487, %v5517
        %v5519 = vpop.f32.mrf.mxu0
        %v5520 = vadd.f32 %v5487, %v5519
        %5521 = vmatmul.bf16.gmra.mxu0 %v2046
        %v5522 = vpop.f32.mrf.mxu0
        %v5523 = vadd.f32 %v5487, %v5522
        %v5524 = vpop.f32.mrf.mxu0
        %v5525 = vadd.f32 %v5487, %v5524
        %5526 = vmatmul.bf16.gmra.mxu0 %v2051
        %v5527 = vpop.f32.mrf.mxu0
        %v5528 = vadd.f32 %v5487, %v5527
        %v5529 = vpop.f32.mrf.mxu0
        %v5530 = vadd.f32 %v5487, %v5529
        %5531 = vmatmul.bf16.gmra.mxu0 %v2056
        %v5532 = vpop.f32.mrf.mxu0
        %v5533 = vadd.f32 %v5487, %v5532
        %v5534 = vpop.f32.mrf.mxu0
        %v5535 = vadd.f32 %v5487, %v5534
        %5536 = vmatmul.bf16.gmra.mxu0 %v2061
        %v5537 = vpop.f32.mrf.mxu0
        %v5538 = vadd.f32 %v5487, %v5537
        %v5539 = vpop.f32.mrf.mxu0
        %v5540 = vadd.f32 %v5487, %v5539
        %5541 = vmatmul.bf16.gmra.mxu0 %v2066
        %v5542 = vpop.f32.mrf.mxu0
        %v5543 = vadd.f32 %v5487, %v5542
        %v5544 = vpop.f32.mrf.mxu0
        %v5545 = vadd.f32 %v5487, %v5544
        %5546 = vmatmul.bf16.gmra.mxu0 %v2071
        %v5547 = vpop.f32.mrf.mxu0
        %v5548 = vadd.f32 %v5487, %v5547
        %v5549 = vpop.f32.mrf.mxu0
        %v5550 = vadd.f32 %v5487, %v5549
        %5551 = vmatmul.bf16.gmra.mxu0 %v2076
        %v5552 = vpop.f32.mrf.mxu0
        %v5553 = vadd.f32 %v5487, %v5552
        %v5554 = vpop.f32.mrf.mxu0
        %v5555 = vadd.f32 %v5487, %v5554
        %5556 = vmatmul.bf16.gmra.mxu0 %v2081
        %v5557 = vpop.f32.mrf.mxu0
        %v5558 = vadd.f32 %v5487, %v5557
        %v5559 = vpop.f32.mrf.mxu0
        %v5560 = vadd.f32 %v5487, %v5559
        %5561 = vmatmul.bf16.gmra.mxu0 %v2086
        %v5562 = vpop.f32.mrf.mxu0
        %v5563 = vadd.f32 %v5487, %v5562
        %v5564 = vpop.f32.mrf.mxu0
        %v5565 = vadd.f32 %v5487, %v5564
        %5566 = vmatmul.bf16.gmra.mxu0 %v2091
        %v5567 = vpop.f32.mrf.mxu0
        %v5568 = vadd.f32 %v5487, %v5567
        %v5569 = vpop.f32.mrf.mxu0
        %v5570 = vadd.f32 %v5487, %v5569
        %5571 = vmatmul.bf16.gmra.mxu0 %v2096
        %v5572 = vpop.f32.mrf.mxu0
        %v5573 = vadd.f32 %v5487, %v5572
        %v5574 = vpop.f32.mrf.mxu0
        %v5575 = vadd.f32 %v5487, %v5574
        %5576 = vdwg.mxu0
        %5577 = vmatpush.bf16.msra.mxu0 %v5462
        %5578 = vmatpush.bf16.msra.mxu0 %v5461
        %5579 = vmatpush.bf16.msra.mxu0 %v5460
        %5580 = vmatpush.bf16.msra.mxu0 %v5459
        %5581 = vmatpush.bf16.msra.mxu0 %v5458
        %5582 = vmatpush.bf16.msra.mxu0 %v5457
        %5583 = vmatpush.bf16.msra.mxu0 %v5456
        %5584 = vmatpush.bf16.msra.mxu0 %v5455
        %5585 = vmatmul.bf16.gmra.mxu0 %v2022
        %v5586 = vpop.f32.mrf.mxu0
        %v5587 = vadd.f32 %v5498, %v5586
        %v5588 = vpop.f32.mrf.mxu0
        %v5589 = vadd.f32 %v5500, %v5588
        %5590 = vmatmul.bf16.gmra.mxu0 %v2027
        %v5591 = vpop.f32.mrf.mxu0
        %v5592 = vadd.f32 %v5503, %v5591
        %v5593 = vpop.f32.mrf.mxu0
        %v5594 = vadd.f32 %v5505, %v5593
        %5595 = vmatmul.bf16.gmra.mxu0 %v2032
        %v5596 = vpop.f32.mrf.mxu0
        %v5597 = vadd.f32 %v5508, %v5596
        %v5598 = vpop.f32.mrf.mxu0
        %v5599 = vadd.f32 %v5510, %v5598
        %5600 = vmatmul.bf16.gmra.mxu0 %v2037
        %v5601 = vpop.f32.mrf.mxu0
        %v5602 = vadd.f32 %v5513, %v5601
        %v5603 = vpop.f32.mrf.mxu0
        %v5604 = vadd.f32 %v5515, %v5603
        %5605 = vmatmul.bf16.gmra.mxu0 %v2042
        %v5606 = vpop.f32.mrf.mxu0
        %v5607 = vadd.f32 %v5518, %v5606
        %v5608 = vpop.f32.mrf.mxu0
        %v5609 = vadd.f32 %v5520, %v5608
        %5610 = vmatmul.bf16.gmra.mxu0 %v2047
        %v5611 = vpop.f32.mrf.mxu0
        %v5612 = vadd.f32 %v5523, %v5611
        %v5613 = vpop.f32.mrf.mxu0
        %v5614 = vadd.f32 %v5525, %v5613
        %5615 = vmatmul.bf16.gmra.mxu0 %v2052
        %v5616 = vpop.f32.mrf.mxu0
        %v5617 = vadd.f32 %v5528, %v5616
        %v5618 = vpop.f32.mrf.mxu0
        %v5619 = vadd.f32 %v5530, %v5618
        %5620 = vmatmul.bf16.gmra.mxu0 %v2057
        %v5621 = vpop.f32.mrf.mxu0
        %v5622 = vadd.f32 %v5533, %v5621
        %v5623 = vpop.f32.mrf.mxu0
        %v5624 = vadd.f32 %v5535, %v5623
        %5625 = vmatmul.bf16.gmra.mxu0 %v2062
        %v5626 = vpop.f32.mrf.mxu0
        %v5627 = vadd.f32 %v5538, %v5626
        %v5628 = vpop.f32.mrf.mxu0
        %v5629 = vadd.f32 %v5540, %v5628
        %5630 = vmatmul.bf16.gmra.mxu0 %v2067
        %v5631 = vpop.f32.mrf.mxu0
        %v5632 = vadd.f32 %v5543, %v5631
        %v5633 = vpop.f32.mrf.mxu0
        %v5634 = vadd.f32 %v5545, %v5633
        %5635 = vmatmul.bf16.gmra.mxu0 %v2072
        %v5636 = vpop.f32.mrf.mxu0
        %v5637 = vadd.f32 %v5548, %v5636
        %v5638 = vpop.f32.mrf.mxu0
        %v5639 = vadd.f32 %v5550, %v5638
        %5640 = vmatmul.bf16.gmra.mxu0 %v2077
        %v5641 = vpop.f32.mrf.mxu0
        %v5642 = vadd.f32 %v5553, %v5641
        %v5643 = vpop.f32.mrf.mxu0
        %v5644 = vadd.f32 %v5555, %v5643
        %5645 = vmatmul.bf16.gmra.mxu0 %v2082
        %v5646 = vpop.f32.mrf.mxu0
        %v5647 = vadd.f32 %v5558, %v5646
        %v5648 = vpop.f32.mrf.mxu0
        %v5649 = vadd.f32 %v5560, %v5648
        %5650 = vmatmul.bf16.gmra.mxu0 %v2087
        %v5651 = vpop.f32.mrf.mxu0
        %v5652 = vadd.f32 %v5563, %v5651
        %v5653 = vpop.f32.mrf.mxu0
        %v5654 = vadd.f32 %v5565, %v5653
        %5655 = vmatmul.bf16.gmra.mxu0 %v2092
        %v5656 = vpop.f32.mrf.mxu0
        %v5657 = vadd.f32 %v5568, %v5656
        %v5658 = vpop.f32.mrf.mxu0
        %v5659 = vadd.f32 %v5570, %v5658
        %5660 = vmatmul.bf16.gmra.mxu0 %v2097
        %v5661 = vpop.f32.mrf.mxu0
        %v5662 = vadd.f32 %v5573, %v5661
        %v5663 = vpop.f32.mrf.mxu0
        %v5664 = vadd.f32 %v5575, %v5663
        %5665 = vdwg.mxu0
        %5666 = vmatpush.bf16.msra.mxu0 %v5470
        %5667 = vmatpush.bf16.msra.mxu0 %v5469
        %5668 = vmatpush.bf16.msra.mxu0 %v5468
        %5669 = vmatpush.bf16.msra.mxu0 %v5467
        %5670 = vmatpush.bf16.msra.mxu0 %v5466
        %5671 = vmatpush.bf16.msra.mxu0 %v5465
        %5672 = vmatpush.bf16.msra.mxu0 %v5464
        %5673 = vmatpush.bf16.msra.mxu0 %v5463
        %5674 = vmatmul.bf16.gmra.mxu0 %v2023
        %v5675 = vpop.f32.mrf.mxu0
        %v5676 = vadd.f32 %v5587, %v5675
        %v5677 = vpop.f32.mrf.mxu0
        %v5678 = vadd.f32 %v5589, %v5677
        %5679 = vmatmul.bf16.gmra.mxu0 %v2028
        %v5680 = vpop.f32.mrf.mxu0
        %v5681 = vadd.f32 %v5592, %v5680
        %v5682 = vpop.f32.mrf.mxu0
        %v5683 = vadd.f32 %v5594, %v5682
        %5684 = vmatmul.bf16.gmra.mxu0 %v2033
        %v5685 = vpop.f32.mrf.mxu0
        %v5686 = vadd.f32 %v5597, %v5685
        %v5687 = vpop.f32.mrf.mxu0
        %v5688 = vadd.f32 %v5599, %v5687
        %5689 = vmatmul.bf16.gmra.mxu0 %v2038
        %v5690 = vpop.f32.mrf.mxu0
        %v5691 = vadd.f32 %v5602, %v5690
        %v5692 = vpop.f32.mrf.mxu0
        %v5693 = vadd.f32 %v5604, %v5692
        %5694 = vmatmul.bf16.gmra.mxu0 %v2043
        %v5695 = vpop.f32.mrf.mxu0
        %v5696 = vadd.f32 %v5607, %v5695
        %v5697 = vpop.f32.mrf.mxu0
        %v5698 = vadd.f32 %v5609, %v5697
        %5699 = vmatmul.bf16.gmra.mxu0 %v2048
        %v5700 = vpop.f32.mrf.mxu0
        %v5701 = vadd.f32 %v5612, %v5700
        %v5702 = vpop.f32.mrf.mxu0
        %v5703 = vadd.f32 %v5614, %v5702
        %5704 = vmatmul.bf16.gmra.mxu0 %v2053
        %v5705 = vpop.f32.mrf.mxu0
        %v5706 = vadd.f32 %v5617, %v5705
        %v5707 = vpop.f32.mrf.mxu0
        %v5708 = vadd.f32 %v5619, %v5707
        %5709 = vmatmul.bf16.gmra.mxu0 %v2058
        %v5710 = vpop.f32.mrf.mxu0
        %v5711 = vadd.f32 %v5622, %v5710
        %v5712 = vpop.f32.mrf.mxu0
        %v5713 = vadd.f32 %v5624, %v5712
        %5714 = vmatmul.bf16.gmra.mxu0 %v2063
        %v5715 = vpop.f32.mrf.mxu0
        %v5716 = vadd.f32 %v5627, %v5715
        %v5717 = vpop.f32.mrf.mxu0
        %v5718 = vadd.f32 %v5629, %v5717
        %5719 = vmatmul.bf16.gmra.mxu0 %v2068
        %v5720 = vpop.f32.mrf.mxu0
        %v5721 = vadd.f32 %v5632, %v5720
        %v5722 = vpop.f32.mrf.mxu0
        %v5723 = vadd.f32 %v5634, %v5722
        %5724 = vmatmul.bf16.gmra.mxu0 %v2073
        %v5725 = vpop.f32.mrf.mxu0
        %v5726 = vadd.f32 %v5637, %v5725
        %v5727 = vpop.f32.mrf.mxu0
        %v5728 = vadd.f32 %v5639, %v5727
        %5729 = vmatmul.bf16.gmra.mxu0 %v2078
        %v5730 = vpop.f32.mrf.mxu0
        %v5731 = vadd.f32 %v5642, %v5730
        %v5732 = vpop.f32.mrf.mxu0
        %v5733 = vadd.f32 %v5644, %v5732
        %5734 = vmatmul.bf16.gmra.mxu0 %v2083
        %v5735 = vpop.f32.mrf.mxu0
        %v5736 = vadd.f32 %v5647, %v5735
        %v5737 = vpop.f32.mrf.mxu0
        %v5738 = vadd.f32 %v5649, %v5737
        %5739 = vmatmul.bf16.gmra.mxu0 %v2088
        %v5740 = vpop.f32.mrf.mxu0
        %v5741 = vadd.f32 %v5652, %v5740
        %v5742 = vpop.f32.mrf.mxu0
        %v5743 = vadd.f32 %v5654, %v5742
        %5744 = vmatmul.bf16.gmra.mxu0 %v2093
        %v5745 = vpop.f32.mrf.mxu0
        %v5746 = vadd.f32 %v5657, %v5745
        %v5747 = vpop.f32.mrf.mxu0
        %v5748 = vadd.f32 %v5659, %v5747
        %5749 = vmatmul.bf16.gmra.mxu0 %v2098
        %v5750 = vpop.f32.mrf.mxu0
        %v5751 = vadd.f32 %v5662, %v5750
        %v5752 = vpop.f32.mrf.mxu0
        %v5753 = vadd.f32 %v5664, %v5752
        %5754 = vdwg.mxu0
        %5755 = vmatpush.bf16.msra.mxu0 %v5478
        %5756 = vmatpush.bf16.msra.mxu0 %v5477
        %5757 = vmatpush.bf16.msra.mxu0 %v5476
        %5758 = vmatpush.bf16.msra.mxu0 %v5475
        %5759 = vmatpush.bf16.msra.mxu0 %v5474
        %5760 = vmatpush.bf16.msra.mxu0 %v5473
        %5761 = vmatpush.bf16.msra.mxu0 %v5472
        %5762 = vmatpush.bf16.msra.mxu0 %v5471
        %5763 = vmatmul.bf16.gmra.mxu0 %v2024
        %v5764 = vpop.f32.mrf.mxu0
        %v5765 = vadd.f32 %v5676, %v5764
        %v5766 = vpop.f32.mrf.mxu0
        %v5767 = vadd.f32 %v5678, %v5766
        %5768 = vmatmul.bf16.gmra.mxu0 %v2029
        %v5769 = vpop.f32.mrf.mxu0
        %v5770 = vadd.f32 %v5681, %v5769
        %v5771 = vpop.f32.mrf.mxu0
        %v5772 = vadd.f32 %v5683, %v5771
        %5773 = vmatmul.bf16.gmra.mxu0 %v2034
        %v5774 = vpop.f32.mrf.mxu0
        %v5775 = vadd.f32 %v5686, %v5774
        %v5776 = vpop.f32.mrf.mxu0
        %v5777 = vadd.f32 %v5688, %v5776
        %5778 = vmatmul.bf16.gmra.mxu0 %v2039
        %v5779 = vpop.f32.mrf.mxu0
        %v5780 = vadd.f32 %v5691, %v5779
        %v5781 = vpop.f32.mrf.mxu0
        %v5782 = vadd.f32 %v5693, %v5781
        %5783 = vmatmul.bf16.gmra.mxu0 %v2044
        %v5784 = vpop.f32.mrf.mxu0
        %v5785 = vadd.f32 %v5696, %v5784
        %v5786 = vpop.f32.mrf.mxu0
        %v5787 = vadd.f32 %v5698, %v5786
        %5788 = vmatmul.bf16.gmra.mxu0 %v2049
        %v5789 = vpop.f32.mrf.mxu0
        %v5790 = vadd.f32 %v5701, %v5789
        %v5791 = vpop.f32.mrf.mxu0
        %v5792 = vadd.f32 %v5703, %v5791
        %5793 = vmatmul.bf16.gmra.mxu0 %v2054
        %v5794 = vpop.f32.mrf.mxu0
        %v5795 = vadd.f32 %v5706, %v5794
        %v5796 = vpop.f32.mrf.mxu0
        %v5797 = vadd.f32 %v5708, %v5796
        %5798 = vmatmul.bf16.gmra.mxu0 %v2059
        %v5799 = vpop.f32.mrf.mxu0
        %v5800 = vadd.f32 %v5711, %v5799
        %v5801 = vpop.f32.mrf.mxu0
        %v5802 = vadd.f32 %v5713, %v5801
        %5803 = vmatmul.bf16.gmra.mxu0 %v2064
        %v5804 = vpop.f32.mrf.mxu0
        %v5805 = vadd.f32 %v5716, %v5804
        %v5806 = vpop.f32.mrf.mxu0
        %v5807 = vadd.f32 %v5718, %v5806
        %5808 = vmatmul.bf16.gmra.mxu0 %v2069
        %v5809 = vpop.f32.mrf.mxu0
        %v5810 = vadd.f32 %v5721, %v5809
        %v5811 = vpop.f32.mrf.mxu0
        %v5812 = vadd.f32 %v5723, %v5811
        %5813 = vmatmul.bf16.gmra.mxu0 %v2074
        %v5814 = vpop.f32.mrf.mxu0
        %v5815 = vadd.f32 %v5726, %v5814
        %v5816 = vpop.f32.mrf.mxu0
        %v5817 = vadd.f32 %v5728, %v5816
        %5818 = vmatmul.bf16.gmra.mxu0 %v2079
        %v5819 = vpop.f32.mrf.mxu0
        %v5820 = vadd.f32 %v5731, %v5819
        %v5821 = vpop.f32.mrf.mxu0
        %v5822 = vadd.f32 %v5733, %v5821
        %5823 = vmatmul.bf16.gmra.mxu0 %v2084
        %v5824 = vpop.f32.mrf.mxu0
        %v5825 = vadd.f32 %v5736, %v5824
        %v5826 = vpop.f32.mrf.mxu0
        %v5827 = vadd.f32 %v5738, %v5826
        %5828 = vmatmul.bf16.gmra.mxu0 %v2089
        %v5829 = vpop.f32.mrf.mxu0
        %v5830 = vadd.f32 %v5741, %v5829
        %v5831 = vpop.f32.mrf.mxu0
        %v5832 = vadd.f32 %v5743, %v5831
        %5833 = vmatmul.bf16.gmra.mxu0 %v2094
        %v5834 = vpop.f32.mrf.mxu0
        %v5835 = vadd.f32 %v5746, %v5834
        %v5836 = vpop.f32.mrf.mxu0
        %v5837 = vadd.f32 %v5748, %v5836
        %5838 = vmatmul.bf16.gmra.mxu0 %v2099
        %v5839 = vpop.f32.mrf.mxu0
        %v5840 = vadd.f32 %v5751, %v5839
        %v5841 = vpop.f32.mrf.mxu0
        %v5842 = vadd.f32 %v5753, %v5841
        %5843 = vdwg.mxu0
        %5844 = vmatpush.bf16.msra.mxu0 0
        %5845 = vmatpush.bf16.msra.mxu0 0
        %5846 = vmatpush.bf16.msra.mxu0 0
        %5847 = vmatpush.bf16.msra.mxu0 0
        %5848 = vmatpush.bf16.msra.mxu0 %v5482
        %5849 = vmatpush.bf16.msra.mxu0 %v5481
        %5850 = vmatpush.bf16.msra.mxu0 %v5480
        %5851 = vmatpush.bf16.msra.mxu0 %v5479
        %5852 = vmatmul.bf16.gmra.mxu0 %v2382
        %v5853 = vpop.f32.mrf.mxu0
        %v5854 = vadd.f32 %v5765, %v5853
        %v5855 = vpop.f32.mrf.mxu0
        %v5856 = vadd.f32 %v5767, %v5855
        %5857 = vmatmul.bf16.gmra.mxu0 %v2385
        %v5858 = vpop.f32.mrf.mxu0
        %v5859 = vadd.f32 %v5770, %v5858
        %v5860 = vpop.f32.mrf.mxu0
        %v5861 = vadd.f32 %v5772, %v5860
        %5862 = vmatmul.bf16.gmra.mxu0 %v2388
        %v5863 = vpop.f32.mrf.mxu0
        %v5864 = vadd.f32 %v5775, %v5863
        %v5865 = vpop.f32.mrf.mxu0
        %v5866 = vadd.f32 %v5777, %v5865
        %5867 = vmatmul.bf16.gmra.mxu0 %v2391
        %v5868 = vpop.f32.mrf.mxu0
        %v5869 = vadd.f32 %v5780, %v5868
        %v5870 = vpop.f32.mrf.mxu0
        %v5871 = vadd.f32 %v5782, %v5870
        %5872 = vmatmul.bf16.gmra.mxu0 %v2394
        %v5873 = vpop.f32.mrf.mxu0
        %v5874 = vadd.f32 %v5785, %v5873
        %v5875 = vpop.f32.mrf.mxu0
        %v5876 = vadd.f32 %v5787, %v5875
        %5877 = vmatmul.bf16.gmra.mxu0 %v2397
        %v5878 = vpop.f32.mrf.mxu0
        %v5879 = vadd.f32 %v5790, %v5878
        %v5880 = vpop.f32.mrf.mxu0
        %v5881 = vadd.f32 %v5792, %v5880
        %5882 = vmatmul.bf16.gmra.mxu0 %v2400
        %v5883 = vpop.f32.mrf.mxu0
        %v5884 = vadd.f32 %v5795, %v5883
        %v5885 = vpop.f32.mrf.mxu0
        %v5886 = vadd.f32 %v5797, %v5885
        %5887 = vmatmul.bf16.gmra.mxu0 %v2403
        %v5888 = vpop.f32.mrf.mxu0
        %v5889 = vadd.f32 %v5800, %v5888
        %v5890 = vpop.f32.mrf.mxu0
        %v5891 = vadd.f32 %v5802, %v5890
        %5892 = vmatmul.bf16.gmra.mxu0 %v2406
        %v5893 = vpop.f32.mrf.mxu0
        %v5894 = vadd.f32 %v5805, %v5893
        %v5895 = vpop.f32.mrf.mxu0
        %v5896 = vadd.f32 %v5807, %v5895
        %5897 = vmatmul.bf16.gmra.mxu0 %v2409
        %v5898 = vpop.f32.mrf.mxu0
        %v5899 = vadd.f32 %v5810, %v5898
        %v5900 = vpop.f32.mrf.mxu0
        %v5901 = vadd.f32 %v5812, %v5900
        %5902 = vmatmul.bf16.gmra.mxu0 %v2412
        %v5903 = vpop.f32.mrf.mxu0
        %v5904 = vadd.f32 %v5815, %v5903
        %v5905 = vpop.f32.mrf.mxu0
        %v5906 = vadd.f32 %v5817, %v5905
        %5907 = vmatmul.bf16.gmra.mxu0 %v2415
        %v5908 = vpop.f32.mrf.mxu0
        %v5909 = vadd.f32 %v5820, %v5908
        %v5910 = vpop.f32.mrf.mxu0
        %v5911 = vadd.f32 %v5822, %v5910
        %5912 = vmatmul.bf16.gmra.mxu0 %v2418
        %v5913 = vpop.f32.mrf.mxu0
        %v5914 = vadd.f32 %v5825, %v5913
        %v5915 = vpop.f32.mrf.mxu0
        %v5916 = vadd.f32 %v5827, %v5915
        %5917 = vmatmul.bf16.gmra.mxu0 %v2421
        %v5918 = vpop.f32.mrf.mxu0
        %v5919 = vadd.f32 %v5830, %v5918
        %v5920 = vpop.f32.mrf.mxu0
        %v5921 = vadd.f32 %v5832, %v5920
        %5922 = vmatmul.bf16.gmra.mxu0 %v2424
        %v5923 = vpop.f32.mrf.mxu0
        %v5924 = vadd.f32 %v5835, %v5923
        %v5925 = vpop.f32.mrf.mxu0
        %v5926 = vadd.f32 %v5837, %v5925
        %5927 = vmatmul.bf16.gmra.mxu0 %v2427
        %v5928 = vpop.f32.mrf.mxu0
        %v5929 = vadd.f32 %v5840, %v5928
        %v5930 = vpop.f32.mrf.mxu0
        %v5931 = vadd.f32 %v5842, %v5930
        %5932 = vdwg.mxu0
        %s5933 = scalar_lea.vmem [#allocation9], 64
        %v5934 = vld [vmem:[%s5933] sm:$0xff]
        %v5935 = vld [vmem:[%s5933 + $0x8] sm:$0xff]
        %v5936 = vld [vmem:[%s5933 + $0x10] sm:$0xff]
        %v5937 = vld [vmem:[%s5933 + $0x18] sm:$0xff]
        %v5938 = vld [vmem:[%s5933 + $0x20] sm:$0xff]
        %v5939 = vld [vmem:[%s5933 + $0x28] sm:$0xff]
        %v5940 = vld [vmem:[%s5933 + $0x30] sm:$0xff]
        %v5941 = vld [vmem:[%s5933 + $0x38] sm:$0xff]
        %v5942 = vsel %vm321, %v5854, 0.0
        %v5943 = vsel %vm321, %v5856, 0.0
        %v5944 = vadd.f32 %v5942, %v5943
        %v5945 = vsel %vm321, %v5859, 0.0
        %v5946 = vadd.f32 %v5944, %v5945
        %v5947 = vsel %vm321, %v5861, 0.0
        %v5948 = vadd.f32 %v5946, %v5947
        %v5949 = vsel %vm321, %v5864, 0.0
        %v5950 = vadd.f32 %v5948, %v5949
        %v5951 = vsel %vm321, %v5866, 0.0
        %v5952 = vadd.f32 %v5950, %v5951
        %v5953 = vsel %vm321, %v5869, 0.0
        %v5954 = vadd.f32 %v5952, %v5953
        %v5955 = vsel %vm321, %v5871, 0.0
        %v5956 = vadd.f32 %v5954, %v5955
        %v5957 = vsel %vm321, %v5874, 0.0
        %v5958 = vadd.f32 %v5956, %v5957
        %v5959 = vsel %vm321, %v5876, 0.0
        %v5960 = vadd.f32 %v5958, %v5959
        %v5961 = vsel %vm321, %v5879, 0.0
        %v5962 = vadd.f32 %v5960, %v5961
        %v5963 = vsel %vm321, %v5881, 0.0
        %v5964 = vadd.f32 %v5962, %v5963
        %v5965 = vsel %vm321, %v5884, 0.0
        %v5966 = vadd.f32 %v5964, %v5965
        %v5967 = vsel %vm321, %v5886, 0.0
        %v5968 = vadd.f32 %v5966, %v5967
        %v5969 = vsel %vm321, %v5889, 0.0
        %v5970 = vadd.f32 %v5968, %v5969
        %v5971 = vsel %vm321, %v5891, 0.0
        %v5972 = vadd.f32 %v5970, %v5971
        %v5973 = vsel %vm321, %v5894, 0.0
        %v5974 = vadd.f32 %v5972, %v5973
        %v5975 = vsel %vm321, %v5896, 0.0
        %v5976 = vadd.f32 %v5974, %v5975
        %v5977 = vsel %vm321, %v5899, 0.0
        %v5978 = vadd.f32 %v5976, %v5977
        %v5979 = vsel %vm321, %v5901, 0.0
        %v5980 = vadd.f32 %v5978, %v5979
        %v5981 = vsel %vm321, %v5904, 0.0
        %v5982 = vadd.f32 %v5980, %v5981
        %v5983 = vsel %vm321, %v5906, 0.0
        %v5984 = vadd.f32 %v5982, %v5983
        %v5985 = vsel %vm321, %v5909, 0.0
        %v5986 = vadd.f32 %v5984, %v5985
        %v5987 = vsel %vm321, %v5911, 0.0
        %v5988 = vadd.f32 %v5986, %v5987
        %v5989 = vsel %vm321, %v5914, 0.0
        %v5990 = vadd.f32 %v5988, %v5989
        %v5991 = vsel %vm321, %v5916, 0.0
        %v5992 = vadd.f32 %v5990, %v5991
        %v5993 = vsel %vm321, %v5919, 0.0
        %v5994 = vadd.f32 %v5992, %v5993
        %v5995 = vsel %vm321, %v5921, 0.0
        %v5996 = vadd.f32 %v5994, %v5995
        %v5997 = vsel %vm321, %v5924, 0.0
        %v5998 = vadd.f32 %v5996, %v5997
        %v5999 = vsel %vm321, %v5926, 0.0
        %v6000 = vadd.f32 %v5998, %v5999
        %v6001 = vsel %vm321, %v5929, 0.0
        %v6002 = vadd.f32 %v6000, %v6001
        %v6003 = vsel %vm321, %v5931, 0.0
        %v6004 = vadd.f32 %v6002, %v6003
        %v6005 = vrot.slane %v6004, 4
        %v6006 = vadd.f32 %v6004, %v6005
        %v6007 = vrot.slane %v6006, 2
        %v6008 = vadd.f32 %v6006, %v6007
        %v6009 = vrot.slane %v6008, 1
        %v6010 = vadd.f32 %v6008, %v6009
        %v6011 = vmul.f32 %v5854, %v5854
        %v6012 = vmul.f32 %v5856, %v5856
        %v6013 = vmul.f32 %v5859, %v5859
        %v6014 = vmul.f32 %v5861, %v5861
        %v6015 = vmul.f32 %v5864, %v5864
        %v6016 = vmul.f32 %v5866, %v5866
        %v6017 = vmul.f32 %v5869, %v5869
        %v6018 = vmul.f32 %v5871, %v5871
        %v6019 = vmul.f32 %v5874, %v5874
        %v6020 = vmul.f32 %v5876, %v5876
        %v6021 = vmul.f32 %v5879, %v5879
        %v6022 = vmul.f32 %v5881, %v5881
        %v6023 = vmul.f32 %v5884, %v5884
        %v6024 = vmul.f32 %v5886, %v5886
        %v6025 = vmul.f32 %v5889, %v5889
        %v6026 = vmul.f32 %v5891, %v5891
        %v6027 = vmul.f32 %v5894, %v5894
        %v6028 = vmul.f32 %v5896, %v5896
        %v6029 = vmul.f32 %v5899, %v5899
        %v6030 = vmul.f32 %v5901, %v5901
        %v6031 = vmul.f32 %v5904, %v5904
        %v6032 = vmul.f32 %v5906, %v5906
        %v6033 = vmul.f32 %v5909, %v5909
        %v6034 = vmul.f32 %v5911, %v5911
        %v6035 = vmul.f32 %v5914, %v5914
        %v6036 = vmul.f32 %v5916, %v5916
        %v6037 = vmul.f32 %v5919, %v5919
        %v6038 = vmul.f32 %v5921, %v5921
        %v6039 = vmul.f32 %v5924, %v5924
        %v6040 = vmul.f32 %v5926, %v5926
        %v6041 = vmul.f32 %v5929, %v5929
        %v6042 = vmul.f32 %v5931, %v5931
        %v6043 = vsel %vm321, %v6011, 0.0
        %v6044 = vsel %vm321, %v6012, 0.0
        %v6045 = vadd.f32 %v6043, %v6044
        %v6046 = vsel %vm321, %v6013, 0.0
        %v6047 = vadd.f32 %v6045, %v6046
        %v6048 = vsel %vm321, %v6014, 0.0
        %v6049 = vadd.f32 %v6047, %v6048
        %v6050 = vsel %vm321, %v6015, 0.0
        %v6051 = vadd.f32 %v6049, %v6050
        %v6052 = vsel %vm321, %v6016, 0.0
        %v6053 = vadd.f32 %v6051, %v6052
        %v6054 = vsel %vm321, %v6017, 0.0
        %v6055 = vadd.f32 %v6053, %v6054
        %v6056 = vsel %vm321, %v6018, 0.0
        %v6057 = vadd.f32 %v6055, %v6056
        %v6058 = vsel %vm321, %v6019, 0.0
        %v6059 = vadd.f32 %v6057, %v6058
        %v6060 = vsel %vm321, %v6020, 0.0
        %v6061 = vadd.f32 %v6059, %v6060
        %v6062 = vsel %vm321, %v6021, 0.0
        %v6063 = vadd.f32 %v6061, %v6062
        %v6064 = vsel %vm321, %v6022, 0.0
        %v6065 = vadd.f32 %v6063, %v6064
        %v6066 = vsel %vm321, %v6023, 0.0
        %v6067 = vadd.f32 %v6065, %v6066
        %v6068 = vsel %vm321, %v6024, 0.0
        %v6069 = vadd.f32 %v6067, %v6068
        %v6070 = vsel %vm321, %v6025, 0.0
        %v6071 = vadd.f32 %v6069, %v6070
        %v6072 = vsel %vm321, %v6026, 0.0
        %v6073 = vadd.f32 %v6071, %v6072
        %v6074 = vsel %vm321, %v6027, 0.0
        %v6075 = vadd.f32 %v6073, %v6074
        %v6076 = vsel %vm321, %v6028, 0.0
        %v6077 = vadd.f32 %v6075, %v6076
        %v6078 = vsel %vm321, %v6029, 0.0
        %v6079 = vadd.f32 %v6077, %v6078
        %v6080 = vsel %vm321, %v6030, 0.0
        %v6081 = vadd.f32 %v6079, %v6080
        %v6082 = vsel %vm321, %v6031, 0.0
        %v6083 = vadd.f32 %v6081, %v6082
        %v6084 = vsel %vm321, %v6032, 0.0
        %v6085 = vadd.f32 %v6083, %v6084
        %v6086 = vsel %vm321, %v6033, 0.0
        %v6087 = vadd.f32 %v6085, %v6086
        %v6088 = vsel %vm321, %v6034, 0.0
        %v6089 = vadd.f32 %v6087, %v6088
        %v6090 = vsel %vm321, %v6035, 0.0
        %v6091 = vadd.f32 %v6089, %v6090
        %v6092 = vsel %vm321, %v6036, 0.0
        %v6093 = vadd.f32 %v6091, %v6092
        %v6094 = vsel %vm321, %v6037, 0.0
        %v6095 = vadd.f32 %v6093, %v6094
        %v6096 = vsel %vm321, %v6038, 0.0
        %v6097 = vadd.f32 %v6095, %v6096
        %v6098 = vsel %vm321, %v6039, 0.0
        %v6099 = vadd.f32 %v6097, %v6098
        %v6100 = vsel %vm321, %v6040, 0.0
        %v6101 = vadd.f32 %v6099, %v6100
        %v6102 = vsel %vm321, %v6041, 0.0
        %v6103 = vadd.f32 %v6101, %v6102
        %v6104 = vsel %vm321, %v6042, 0.0
        %v6105 = vadd.f32 %v6103, %v6104
        %v6106 = vrot.slane %v6105, 4
        %v6107 = vadd.f32 %v6105, %v6106
        %v6108 = vrot.slane %v6107, 2
        %v6109 = vadd.f32 %v6107, %v6108
        %v6110 = vrot.slane %v6109, 1
        %v6111 = vadd.f32 %v6109, %v6110
        %v6112 = vsel %vm3052, %v6010, %v6111
        %v6114 = vsel %vm321, %v6112, 0
        %6116 = vmatpush.msra.mxu0 0.0
        %6117 = vmatpush.msra.mxu0 0.0
        %6118 = vmatpush.msra.mxu0 0.0
        %6119 = vmatpush.msra.mxu0 0.0
        %6120 = vmatpush.msra.mxu0 0.0
        %6121 = vmatpush.msra.mxu0 0.0
        %6122 = vmatpush.msra.mxu0 0.0
        %6123 = vmatpush.msra.mxu0 0.0
        %6124 = vmatpush.msra.mxu0 %v5941
        %6125 = vmatpush.msra.mxu0 %v5940
        %6126 = vmatpush.msra.mxu0 %v5939
        %6127 = vmatpush.msra.mxu0 %v5938
        %6128 = vmatpush.msra.mxu0 %v5937
        %6129 = vmatpush.msra.mxu0 %v5936
        %6130 = vmatpush.msra.mxu0 %v5935
        %6131 = vmatpush.msra.mxu0 %v5934
        %6132 = vmatmul.f32.gmra.mxu0 %v6114
        %v6133 = vpop.f32.mrf.mxu0
        %v6134 = vadd.f32 0.0, %v6133
        %6135 = vdwg.mxu0
        %v6136 = vmul.f32 %v6134, %v6134
        %v6138 = vrot.slane %v6136, 7
        %v6140 = vsub.f32 %v6134, %v6138
        %v6141 = vmax.f32 %v6140, 0.0
        %v6142 = vadd.f32 %v6141, 1e-05
        %v6143 = vrsqrt.pop %v6142
        %v6144 = vmul.f32 %v6143, %v6142
        %v6145 = vmul.f32 %v6144, %v6143
        %v6146 = vmul.f32 0.5, %v6145
        %v6147 = vsub.f32 1.5, %v6146
        %v6148 = vmul.f32 %v6143, %v6147
        %vm6149 = vweird.f32 %v6142
        %vm6150 = vweird.f32 %v6143
        %vm6151 = vmor %vm6149, %vm6150
        %v6152 = vsel %vm6151, %v6143, %v6148
        %v6153 = vperm.slane %v6134, 0
        %v6154 = vsub.f32 %v5854, %v6153
        %v6155 = vsub.f32 %v5856, %v6153
        %v6156 = vsub.f32 %v5859, %v6153
        %v6157 = vsub.f32 %v5861, %v6153
        %v6158 = vsub.f32 %v5864, %v6153
        %v6159 = vsub.f32 %v5866, %v6153
        %v6160 = vsub.f32 %v5869, %v6153
        %v6161 = vsub.f32 %v5871, %v6153
        %v6162 = vsub.f32 %v5874, %v6153
        %v6163 = vsub.f32 %v5876, %v6153
        %v6164 = vsub.f32 %v5879, %v6153
        %v6165 = vsub.f32 %v5881, %v6153
        %v6166 = vsub.f32 %v5884, %v6153
        %v6167 = vsub.f32 %v5886, %v6153
        %v6168 = vsub.f32 %v5889, %v6153
        %v6169 = vsub.f32 %v5891, %v6153
        %v6170 = vsub.f32 %v5894, %v6153
        %v6171 = vsub.f32 %v5896, %v6153
        %v6172 = vsub.f32 %v5899, %v6153
        %v6173 = vsub.f32 %v5901, %v6153
        %v6174 = vsub.f32 %v5904, %v6153
        %v6175 = vsub.f32 %v5906, %v6153
        %v6176 = vsub.f32 %v5909, %v6153
        %v6177 = vsub.f32 %v5911, %v6153
        %v6178 = vsub.f32 %v5914, %v6153
        %v6179 = vsub.f32 %v5916, %v6153
        %v6180 = vsub.f32 %v5919, %v6153
        %v6181 = vsub.f32 %v5921, %v6153
        %v6182 = vsub.f32 %v5924, %v6153
        %v6183 = vsub.f32 %v5926, %v6153
        %v6184 = vsub.f32 %v5929, %v6153
        %v6185 = vsub.f32 %v5931, %v6153
        %v6186 = vperm.slane %v6152, 1
        %v6187 = vmul.f32 %v6154, %v6186
        %v6188 = vmul.f32 %v6155, %v6186
        %v6189 = vmul.f32 %v6156, %v6186
        %v6190 = vmul.f32 %v6157, %v6186
        %v6191 = vmul.f32 %v6158, %v6186
        %v6192 = vmul.f32 %v6159, %v6186
        %v6193 = vmul.f32 %v6160, %v6186
        %v6194 = vmul.f32 %v6161, %v6186
        %v6195 = vmul.f32 %v6162, %v6186
        %v6196 = vmul.f32 %v6163, %v6186
        %v6197 = vmul.f32 %v6164, %v6186
        %v6198 = vmul.f32 %v6165, %v6186
        %v6199 = vmul.f32 %v6166, %v6186
        %v6200 = vmul.f32 %v6167, %v6186
        %v6201 = vmul.f32 %v6168, %v6186
        %v6202 = vmul.f32 %v6169, %v6186
        %v6203 = vmul.f32 %v6170, %v6186
        %v6204 = vmul.f32 %v6171, %v6186
        %v6205 = vmul.f32 %v6172, %v6186
        %v6206 = vmul.f32 %v6173, %v6186
        %v6207 = vmul.f32 %v6174, %v6186
        %v6208 = vmul.f32 %v6175, %v6186
        %v6209 = vmul.f32 %v6176, %v6186
        %v6210 = vmul.f32 %v6177, %v6186
        %v6211 = vmul.f32 %v6178, %v6186
        %v6212 = vmul.f32 %v6179, %v6186
        %v6213 = vmul.f32 %v6180, %v6186
        %v6214 = vmul.f32 %v6181, %v6186
        %v6215 = vmul.f32 %v6182, %v6186
        %v6216 = vmul.f32 %v6183, %v6186
        %v6217 = vmul.f32 %v6184, %v6186
        %v6218 = vmul.f32 %v6185, %v6186
        %v6219 = vperm.slane %v5484, 0
        %v6220 = vmul.f32 %v6187, %v6219
        %v6221 = vmul.f32 %v6188, %v6219
        %v6222 = vmul.f32 %v6189, %v6219
        %v6223 = vmul.f32 %v6190, %v6219
        %v6224 = vmul.f32 %v6191, %v6219
        %v6225 = vmul.f32 %v6192, %v6219
        %v6226 = vmul.f32 %v6193, %v6219
        %v6227 = vmul.f32 %v6194, %v6219
        %v6228 = vmul.f32 %v6195, %v6219
        %v6229 = vmul.f32 %v6196, %v6219
        %v6230 = vmul.f32 %v6197, %v6219
        %v6231 = vmul.f32 %v6198, %v6219
        %v6232 = vmul.f32 %v6199, %v6219
        %v6233 = vmul.f32 %v6200, %v6219
        %v6234 = vmul.f32 %v6201, %v6219
        %v6235 = vmul.f32 %v6202, %v6219
        %v6236 = vmul.f32 %v6203, %v6219
        %v6237 = vmul.f32 %v6204, %v6219
        %v6238 = vmul.f32 %v6205, %v6219
        %v6239 = vmul.f32 %v6206, %v6219
        %v6240 = vmul.f32 %v6207, %v6219
        %v6241 = vmul.f32 %v6208, %v6219
        %v6242 = vmul.f32 %v6209, %v6219
        %v6243 = vmul.f32 %v6210, %v6219
        %v6244 = vmul.f32 %v6211, %v6219
        %v6245 = vmul.f32 %v6212, %v6219
        %v6246 = vmul.f32 %v6213, %v6219
        %v6247 = vmul.f32 %v6214, %v6219
        %v6248 = vmul.f32 %v6215, %v6219
        %v6249 = vmul.f32 %v6216, %v6219
        %v6250 = vmul.f32 %v6217, %v6219
        %v6251 = vmul.f32 %v6218, %v6219
        %v6252 = vperm.slane %v5485, 0
        %v6253 = vadd.f32 %v6220, %v6252
        %v6254 = vadd.f32 %v6221, %v6252
        %v6255 = vadd.f32 %v6222, %v6252
        %v6256 = vadd.f32 %v6223, %v6252
        %v6257 = vadd.f32 %v6224, %v6252
        %v6258 = vadd.f32 %v6225, %v6252
        %v6259 = vadd.f32 %v6226, %v6252
        %v6260 = vadd.f32 %v6227, %v6252
        %v6261 = vadd.f32 %v6228, %v6252
        %v6262 = vadd.f32 %v6229, %v6252
        %v6263 = vadd.f32 %v6230, %v6252
        %v6264 = vadd.f32 %v6231, %v6252
        %v6265 = vadd.f32 %v6232, %v6252
        %v6266 = vadd.f32 %v6233, %v6252
        %v6267 = vadd.f32 %v6234, %v6252
        %v6268 = vadd.f32 %v6235, %v6252
        %v6269 = vadd.f32 %v6236, %v6252
        %v6270 = vadd.f32 %v6237, %v6252
        %v6271 = vadd.f32 %v6238, %v6252
        %v6272 = vadd.f32 %v6239, %v6252
        %v6273 = vadd.f32 %v6240, %v6252
        %v6274 = vadd.f32 %v6241, %v6252
        %v6275 = vadd.f32 %v6242, %v6252
        %v6276 = vadd.f32 %v6243, %v6252
        %v6277 = vadd.f32 %v6244, %v6252
        %v6278 = vadd.f32 %v6245, %v6252
        %v6279 = vadd.f32 %v6246, %v6252
        %v6280 = vadd.f32 %v6247, %v6252
        %v6281 = vadd.f32 %v6248, %v6252
        %v6282 = vadd.f32 %v6249, %v6252
        %v6283 = vadd.f32 %v6250, %v6252
        %v6284 = vadd.f32 %v6251, %v6252
        %vm6285 = vcmp.gt.f32.partialorder %v6253, 0.0
        %vm6286 = vcmp.gt.f32.partialorder %v6254, 0.0
        %vm6287 = vcmp.gt.f32.partialorder %v6255, 0.0
        %vm6288 = vcmp.gt.f32.partialorder %v6256, 0.0
        %vm6289 = vcmp.gt.f32.partialorder %v6257, 0.0
        %vm6290 = vcmp.gt.f32.partialorder %v6258, 0.0
        %vm6291 = vcmp.gt.f32.partialorder %v6259, 0.0
        %vm6292 = vcmp.gt.f32.partialorder %v6260, 0.0
        %vm6293 = vcmp.gt.f32.partialorder %v6261, 0.0
        %vm6294 = vcmp.gt.f32.partialorder %v6262, 0.0
        %vm6295 = vcmp.gt.f32.partialorder %v6263, 0.0
        %vm6296 = vcmp.gt.f32.partialorder %v6264, 0.0
        %vm6297 = vcmp.gt.f32.partialorder %v6265, 0.0
        %vm6298 = vcmp.gt.f32.partialorder %v6266, 0.0
        %vm6299 = vcmp.gt.f32.partialorder %v6267, 0.0
        %vm6300 = vcmp.gt.f32.partialorder %v6268, 0.0
        %vm6301 = vcmp.gt.f32.partialorder %v6269, 0.0
        %vm6302 = vcmp.gt.f32.partialorder %v6270, 0.0
        %vm6303 = vcmp.gt.f32.partialorder %v6271, 0.0
        %vm6304 = vcmp.gt.f32.partialorder %v6272, 0.0
        %vm6305 = vcmp.gt.f32.partialorder %v6273, 0.0
        %vm6306 = vcmp.gt.f32.partialorder %v6274, 0.0
        %vm6307 = vcmp.gt.f32.partialorder %v6275, 0.0
        %vm6308 = vcmp.gt.f32.partialorder %v6276, 0.0
        %vm6309 = vcmp.gt.f32.partialorder %v6277, 0.0
        %vm6310 = vcmp.gt.f32.partialorder %v6278, 0.0
        %vm6311 = vcmp.gt.f32.partialorder %v6279, 0.0
        %vm6312 = vcmp.gt.f32.partialorder %v6280, 0.0
        %vm6313 = vcmp.gt.f32.partialorder %v6281, 0.0
        %vm6314 = vcmp.gt.f32.partialorder %v6282, 0.0
        %vm6315 = vcmp.gt.f32.partialorder %v6283, 0.0
        %vm6316 = vcmp.gt.f32.partialorder %v6284, 0.0
        %v6317 = vperm.slane %v5486, 0
        %v6318 = vmul.f32 %v6317, %v6253
        %v6319 = vmul.f32 %v6317, %v6254
        %v6320 = vmul.f32 %v6317, %v6255
        %v6321 = vmul.f32 %v6317, %v6256
        %v6322 = vmul.f32 %v6317, %v6257
        %v6323 = vmul.f32 %v6317, %v6258
        %v6324 = vmul.f32 %v6317, %v6259
        %v6325 = vmul.f32 %v6317, %v6260
        %v6326 = vmul.f32 %v6317, %v6261
        %v6327 = vmul.f32 %v6317, %v6262
        %v6328 = vmul.f32 %v6317, %v6263
        %v6329 = vmul.f32 %v6317, %v6264
        %v6330 = vmul.f32 %v6317, %v6265
        %v6331 = vmul.f32 %v6317, %v6266
        %v6332 = vmul.f32 %v6317, %v6267
        %v6333 = vmul.f32 %v6317, %v6268
        %v6334 = vmul.f32 %v6317, %v6269
        %v6335 = vmul.f32 %v6317, %v6270
        %v6336 = vmul.f32 %v6317, %v6271
        %v6337 = vmul.f32 %v6317, %v6272
        %v6338 = vmul.f32 %v6317, %v6273
        %v6339 = vmul.f32 %v6317, %v6274
        %v6340 = vmul.f32 %v6317, %v6275
        %v6341 = vmul.f32 %v6317, %v6276
        %v6342 = vmul.f32 %v6317, %v6277
        %v6343 = vmul.f32 %v6317, %v6278
        %v6344 = vmul.f32 %v6317, %v6279
        %v6345 = vmul.f32 %v6317, %v6280
        %v6346 = vmul.f32 %v6317, %v6281
        %v6347 = vmul.f32 %v6317, %v6282
        %v6348 = vmul.f32 %v6317, %v6283
        %v6349 = vmul.f32 %v6317, %v6284
        %v6350 = vsel %vm6285, %v6253, %v6318
        %v6351 = vsel %vm6286, %v6254, %v6319
        %v6352 = vsel %vm6287, %v6255, %v6320
        %v6353 = vsel %vm6288, %v6256, %v6321
        %v6354 = vsel %vm6289, %v6257, %v6322
        %v6355 = vsel %vm6290, %v6258, %v6323
        %v6356 = vsel %vm6291, %v6259, %v6324
        %v6357 = vsel %vm6292, %v6260, %v6325
        %v6358 = vsel %vm6293, %v6261, %v6326
        %v6359 = vsel %vm6294, %v6262, %v6327
        %v6360 = vsel %vm6295, %v6263, %v6328
        %v6361 = vsel %vm6296, %v6264, %v6329
        %v6362 = vsel %vm6297, %v6265, %v6330
        %v6363 = vsel %vm6298, %v6266, %v6331
        %v6364 = vsel %vm6299, %v6267, %v6332
        %v6365 = vsel %vm6300, %v6268, %v6333
        %v6366 = vsel %vm6301, %v6269, %v6334
        %v6367 = vsel %vm6302, %v6270, %v6335
        %v6368 = vsel %vm6303, %v6271, %v6336
        %v6369 = vsel %vm6304, %v6272, %v6337
        %v6370 = vsel %vm6305, %v6273, %v6338
        %v6371 = vsel %vm6306, %v6274, %v6339
        %v6372 = vsel %vm6307, %v6275, %v6340
        %v6373 = vsel %vm6308, %v6276, %v6341
        %v6374 = vsel %vm6309, %v6277, %v6342
        %v6375 = vsel %vm6310, %v6278, %v6343
        %v6376 = vsel %vm6311, %v6279, %v6344
        %v6377 = vsel %vm6312, %v6280, %v6345
        %v6378 = vsel %vm6313, %v6281, %v6346
        %v6379 = vsel %vm6314, %v6282, %v6347
        %v6380 = vsel %vm6315, %v6283, %v6348
        %v6381 = vsel %vm6316, %v6284, %v6349
        %6382 = vst.msk [vmem:[%s309] sm:$0xff] %vm321, %v6350
        %6383 = vst.msk [vmem:[%s309 + $0x8] sm:$0xff] %vm321, %v6351
        %6384 = vst.msk [vmem:[%s309 + $0x10] sm:$0xff] %vm321, %v6352
        %6385 = vst.msk [vmem:[%s309 + $0x18] sm:$0xff] %vm321, %v6353
        %6386 = vst.msk [vmem:[%s309 + $0x20] sm:$0xff] %vm321, %v6354
        %6387 = vst.msk [vmem:[%s309 + $0x28] sm:$0xff] %vm321, %v6355
        %6388 = vst.msk [vmem:[%s309 + $0x30] sm:$0xff] %vm321, %v6356
        %6389 = vst.msk [vmem:[%s309 + $0x38] sm:$0xff] %vm321, %v6357
        %6390 = vst.msk [vmem:[%s309 + $0x40] sm:$0xff] %vm321, %v6358
        %6391 = vst.msk [vmem:[%s309 + $0x48] sm:$0xff] %vm321, %v6359
        %6392 = vst.msk [vmem:[%s309 + $0x50] sm:$0xff] %vm321, %v6360
        %6393 = vst.msk [vmem:[%s309 + $0x58] sm:$0xff] %vm321, %v6361
        %6394 = vst.msk [vmem:[%s309 + $0x60] sm:$0xff] %vm321, %v6362
        %6395 = vst.msk [vmem:[%s309 + $0x68] sm:$0xff] %vm321, %v6363
        %6396 = vst.msk [vmem:[%s309 + $0x70] sm:$0xff] %vm321, %v6364
        %6397 = vst.msk [vmem:[%s309 + $0x78] sm:$0xff] %vm321, %v6365
        %6398 = vst.msk [vmem:[%s309 + $0x80] sm:$0xff] %vm321, %v6366
        %6399 = vst.msk [vmem:[%s309 + $0x88] sm:$0xff] %vm321, %v6367
        %6400 = vst.msk [vmem:[%s309 + $0x90] sm:$0xff] %vm321, %v6368
        %6401 = vst.msk [vmem:[%s309 + $0x98] sm:$0xff] %vm321, %v6369
        %6402 = vst.msk [vmem:[%s309 + $0xa0] sm:$0xff] %vm321, %v6370
        %6403 = vst.msk [vmem:[%s309 + $0xa8] sm:$0xff] %vm321, %v6371
        %6404 = vst.msk [vmem:[%s309 + $0xb0] sm:$0xff] %vm321, %v6372
        %6405 = vst.msk [vmem:[%s309 + $0xb8] sm:$0xff] %vm321, %v6373
        %6406 = vst.msk [vmem:[%s309 + $0xc0] sm:$0xff] %vm321, %v6374
        %6407 = vst.msk [vmem:[%s309 + $0xc8] sm:$0xff] %vm321, %v6375
        %6408 = vst.msk [vmem:[%s309 + $0xd0] sm:$0xff] %vm321, %v6376
        %6409 = vst.msk [vmem:[%s309 + $0xd8] sm:$0xff] %vm321, %v6377
        %6410 = vst.msk [vmem:[%s309 + $0xe0] sm:$0xff] %vm321, %v6378
        %6411 = vst.msk [vmem:[%s309 + $0xe8] sm:$0xff] %vm321, %v6379
        %6412 = vst.msk [vmem:[%s309 + $0xf0] sm:$0xff] %vm321, %v6380
        %6413 = vst.msk [vmem:[%s309 + $0xf8] sm:$0xff] %vm321, %v6381
        %s6414 = sand.u32 %s166, 1
        %s6415 = scalar_lea.sflag [#allocation6], %s6414
        %s6416 = sand.u32 %s166, 1
        %s6417 = smul.addr %s6416, 256
        %s6418 = scalar_lea.vmem [#allocation10], %s6417
        // Predicated region
        $region57: #{_lambda_.1} parent=43 // pred_check
          %p6419 = pneg %p176
        $region58: #{_lambda_.1} parent=43 // pred_check_branch
          %6421 = sbr.rel (%p6419) target = $region60
        $region59: #{_lambda_.1} parent=43 // pred_region
          %6423 = vsyncadd %s6415, 0
          %s6424 = smul.addr %s22, 32
          %s6425 = smul.addr %s6424, 8
          %s6426 = scalar_lea.hbm %s6, %s6425
          %s6427 = sshll.u32 %s6418, 4
          %s6428 = int_to_ptr.vmem [resolvable:$true] %s6427
          %s6429 = sshll.u32 %s6426, 4
          %s6430 = int_to_ptr.hbm [resolvable:$true] %s6429
          %6435 = dma.vmem_to_hbm [thread:$0]  %s6428, 4096, %s6430, %s6415, 128, 128, 8
        $region60: #{_lambda_.1} parent=43 // pred_fallthru
          _
      $region44: #{_lambda_.1} parent=5 // pred_fallthru
        _
      %p6436 = scmp.le.s32.totalorder 2, %s17
      // Predicated region
      $region61: #{_lambda_.1} parent=5 // pred_check
        %p6437 = pneg %p6436
      $region62: #{_lambda_.1} parent=5 // pred_check_branch
        %6439 = sbr.rel (%p6437) target = $region64
      $region63: #{_lambda_.1} parent=5 // pred_region
        %s6440 = ssub.s32 %s17, 2
        // Predicated region
        $region65: #{_lambda_.1} parent=63 // pred_check
          %p6441 = pneg %p182
        $region66: #{_lambda_.1} parent=63 // pred_check_branch
          %6443 = sbr.rel (%p6441) target = $region68
        $region67: #{_lambda_.1} parent=63 // pred_region
          %s6444 = sand.u32 %s167, 1
          %s6445 = scalar_lea.sflag [#allocation6], %s6444
          %s6446 = sand.u32 %s167, 1
          %s6447 = smul.addr %s6446, 256
          %s6448 = scalar_lea.vmem [#allocation10], %s6447
          %6450 = dma.done %s6445, 4096
        $region68: #{_lambda_.1} parent=63 // pred_fallthru
          _
      $region64: #{_lambda_.1} parent=5 // pred_fallthru
        _
    $region6: #{_lambda_.1} parent=1 // loop_footer
      %s21 = sadd.s32 1, %s17
    $region7: #{_lambda_.1} parent=1 // loop_footer_branch
      %16 = sbr.rel target = $region3
    $region8: #{_lambda_.1} parent=1 // loop_exit
      _
    %6451 = vsyncpa [#allocation5], 1
    %s6452 = scalar_lea.sflag [#allocation5], 1
    %6453 = vsyncpa %s6452, 1
    %6454 = vsyncpa [#allocation8], 1
    %6455 = vsyncpa [#allocation6], 1
    %s6456 = scalar_lea.sflag [#allocation6], 1
    %6457 = vsyncpa %s6456, 1

</llo_original>
